<compile_context>
chip_gen: v6e
topology: v6e:2x2x1
jax: 0.10.0
libtpu: 0.0.40
codegen_flags: <defaults>
</compile_context>

<pallas_src>
import functools

import numpy as np
import jax
import jax.numpy as jnp
from jax.experimental import pallas as pl
from jax.experimental.pallas import tpu as pltpu


# ----------------------------------------------------------------------------
# Small helpers
# ----------------------------------------------------------------------------
def _conv1_m_tiles():
    """2-way 'parallel' M split only where a second TensorCore exists (v7x)."""
    try:
        kind = jax.devices()[0].device_kind.lower()
    except Exception:
        return 1
    return 2 if ("v7" in kind or "7x" in kind) else 1


# ----------------------------------------------------------------------------
# Pallas kernel: fused  out = act(x @ w + b)   (conv im2col matmuls)
# ----------------------------------------------------------------------------
def _matmul_bias_act_kernel(x_ref, w_ref, b_ref, o_ref, *, act):
    x = x_ref[...]
    w = w_ref[...]
    # Cast activations to the (bf16) weight dtype right at the MXU input:
    # native bf16 MXU path, f32 accumulation via preferred_element_type.
    y = jnp.dot(x.astype(w.dtype), w, preferred_element_type=jnp.float32)
    y = y + b_ref[...]                      # bias (1, N) f32, broadcasts over rows
    if act == "leaky_relu":                 # nn.LeakyReLU default slope = 0.01
        y = jnp.where(y > 0, y, 0.01 * y)
    elif act == "relu":
        y = jnp.maximum(y, 0.0)
    o_ref[...] = y.astype(o_ref.dtype)


def matmul_bias_act(x, w, b, act="none", m_tiles=1, out_dtype=jnp.float32):
    """x: (M, K) @ w: (K, N) + b -> act -> (M, N), M optionally tiled."""
    M, K = x.shape
    K2, N = w.shape
    assert K == K2, (K, K2)
    # Fall back to one tile if M does not split cleanly into sublane-aligned
    # tiles (robust to other input spatial sizes).
    if m_tiles > 1 and (M % m_tiles != 0 or (M // m_tiles) % 16 != 0):
        m_tiles = 1
    tm = M // m_tiles
    b2 = b.reshape(1, N).astype(jnp.float32)
    return pl.pallas_call(
        functools.partial(_matmul_bias_act_kernel, act=act),
        out_shape=jax.ShapeDtypeStruct((M, N), out_dtype),
        grid=(m_tiles,),
        in_specs=[
            pl.BlockSpec((tm, K), lambda i: (i, 0)),
            pl.BlockSpec((K, N), lambda i: (0, 0)),
            pl.BlockSpec((1, N), lambda i: (0, 0)),
        ],
        out_specs=pl.BlockSpec((tm, N), lambda i: (i, 0)),
        compiler_params=pltpu.CompilerParams(
            dimension_semantics=("parallel",)),
    )(x, w, b2)


# ----------------------------------------------------------------------------
# Pallas kernel: fused FC stack, 2-wide "head" grid
#   grid step 0: predictor head  l1 -> ReLU -> l2 -> ReLU -> l3
#   grid step 1: target head     l1
# ----------------------------------------------------------------------------
def _fused_fc_kernel(f_ref, w1_ref, b1_ref, w2_ref, b2_ref, w3_ref, b3_ref,
                     o_ref):
    i = pl.program_id(0)
    # First linear of the current head (shared structure between both heads).
    h = jnp.dot(f_ref[0], w1_ref[0], preferred_element_type=jnp.float32)
    h = h + b1_ref[0]

    @pl.when(i == 0)
    def _():  # predictor head: ReLU -> l2 -> ReLU -> l3
        a = jnp.maximum(h, 0.0)
        a = jnp.dot(a.astype(w2_ref.dtype), w2_ref[...],
                    preferred_element_type=jnp.float32) + b2_ref[...]
        a = jnp.maximum(a, 0.0)
        a = jnp.dot(a.astype(w3_ref.dtype), w3_ref[...],
                    preferred_element_type=jnp.float32) + b3_ref[...]
        o_ref[0] = a.astype(o_ref.dtype)

    @pl.when(i == 1)
    def _():  # target head: single linear, no activation
        o_ref[0] = h.astype(o_ref.dtype)


def fused_fc(f_stack, fp):
    """f_stack: (2, B, K) stacked [pred_features, targ_features] (HWC order)."""
    _, B, Kin = f_stack.shape
    N = fp["fc_w1"].shape[2]
    out = pl.pallas_call(
        _fused_fc_kernel,
        out_shape=jax.ShapeDtypeStruct((2, B, N), jnp.float32),
        grid=(2,),
        in_specs=[
            pl.BlockSpec((1, B, Kin), lambda i: (i, 0, 0)),   # features (head i)
            pl.BlockSpec((1, Kin, N), lambda i: (i, 0, 0)),   # l1 weight (head i)
            pl.BlockSpec((1, 1, N), lambda i: (i, 0, 0)),     # l1 bias   (head i)
            pl.BlockSpec((N, N), lambda i: (0, 0)),           # l2 weight (pred)
            pl.BlockSpec((1, N), lambda i: (0, 0)),           # l2 bias
            pl.BlockSpec((N, N), lambda i: (0, 0)),           # l3 weight (pred)
            pl.BlockSpec((1, N), lambda i: (0, 0)),           # l3 bias
        ],
        out_specs=pl.BlockSpec((1, B, N), lambda i: (i, 0, 0)),
        compiler_params=pltpu.CompilerParams(
            dimension_semantics=("parallel",),
            # ~8 MiB with bf16 weights (f32 fallback ~17 MiB); well under the
            # 64 MiB physical VMEM of v7x.
            vmem_limit_bytes=24 * 1024 * 1024),
    )(f_stack, fp["fc_w1"], fp["fc_b1"], fp["fc_w2"], fp["fc_b2"],
      fp["fc_w3"], fp["fc_b3"])
    return out[0], out[1]


# ----------------------------------------------------------------------------
# Conv2d via im2col (plain-XLA patch glue) + Pallas fused matmul (hot path)
# ----------------------------------------------------------------------------
def conv2d_mm(x_nhwc, wmat, b, *, kh, kw, stride, act, m_tiles=1,
              out_dtype=jnp.float32):
    """x_nhwc: (B, H, W, Cin); wmat: (kh*kw*Cin, Cout) im2col-layout weight."""
    B, H, W, Cin = x_nhwc.shape
    K, Cout = wmat.shape
    assert K == kh * kw * Cin, (K, kh, kw, Cin)
    oh = (H - kh) // stride + 1
    ow = (W - kw) // stride + 1

    patches = []
    for i in range(kh):
        for j in range(kw):
            patches.append(
                x_nhwc[:, i:i + stride * oh:stride, j:j + stride * ow:stride, :])
    # (B, oh, ow, kh*kw, Cin) -> (B*oh*ow, kh*kw*Cin)   (order: kh, kw, cin)
    p = jnp.stack(patches, axis=3).reshape(B * oh * ow, kh * kw * Cin)

    y = matmul_bias_act(p, wmat, b, act=act, m_tiles=m_tiles,
                        out_dtype=out_dtype)
    return y.reshape(B, oh, ow, Cout)


# ----------------------------------------------------------------------------
# Deterministic parameter init (orthogonal, gain sqrt(2); zero biases),
# raw PyTorch layout (conv OIHW, linear (out, in)).
# ----------------------------------------------------------------------------
def _ortho(key, shape):
    init = jax.nn.initializers.orthogonal(scale=float(np.sqrt(2.0)))
    return init(key, shape, jnp.float32)


def _conv_w(key, cout, cin, kh, kw):
    return _ortho(key, (cout, cin * kh * kw)).reshape(cout, cin, kh, kw)


def init_rnd_params(key):
    ks = jax.random.split(key, 10)
    pred = dict(
        c1_w=_conv_w(ks[0], 32, 1, 8, 8),   c1_b=jnp.zeros((32,), jnp.float32),
        c2_w=_conv_w(ks[1], 64, 32, 4, 4),  c2_b=jnp.zeros((64,), jnp.float32),
        c3_w=_conv_w(ks[2], 64, 64, 3, 3),  c3_b=jnp.zeros((64,), jnp.float32),
        l1_w=_ortho(ks[3], (512, 7 * 7 * 64)), l1_b=jnp.zeros((512,), jnp.float32),
        l2_w=_ortho(ks[4], (512, 512)),        l2_b=jnp.zeros((512,), jnp.float32),
        l3_w=_ortho(ks[5], (512, 512)),        l3_b=jnp.zeros((512,), jnp.float32),
    )
    targ = dict(
        c1_w=_conv_w(ks[6], 32, 1, 8, 8),   c1_b=jnp.zeros((32,), jnp.float32),
        c2_w=_conv_w(ks[7], 64, 32, 4, 4),  c2_b=jnp.zeros((64,), jnp.float32),
        c3_w=_conv_w(ks[8], 64, 64, 3, 3),  c3_b=jnp.zeros((64,), jnp.float32),
        l1_w=_ortho(ks[9], (512, 7 * 7 * 64)), l1_b=jnp.zeros((512,), jnp.float32),
    )
    return dict(pred=pred, targ=targ)


def prepare_fused_params(params, weight_dtype=jnp.bfloat16):
    """One-time (outside jit) prep:
      - fuse pred+targ conv weights (concat / block-diagonal im2col layout,
        conv1 Cout padded to 128 lanes),
      - pre-transpose FC weights to (K, N) and pre-permute l1 rows from
        CHW-flatten to HWC-flatten order (so no transpose in the forward),
      - stack the two heads' l1 weights/biases along a leading axis for the
        2-wide head grid of the fused FC kernel,
      - cast all weights to `weight_dtype` (bf16 by default); biases stay f32.
    """
    p, t = params["pred"], params["targ"]
    wd = weight_dtype

    # conv1: both heads read the same 1-channel input -> concat along Cout,
    # then zero-pad Cout 64 -> 128 so the Pallas output store is lane-dense.
    w1 = jnp.concatenate(
        [jnp.transpose(p["c1_w"], (2, 3, 1, 0)),            # (8,8,1,32)
         jnp.transpose(t["c1_w"], (2, 3, 1, 0))], axis=-1)  # (8,8,1,64)
    w1 = w1.reshape(8 * 8 * 1, 64)
    w1 = jnp.pad(w1, ((0, 0), (0, 64)))                     # (64, 128)
    b1 = jnp.pad(jnp.concatenate([p["c1_b"], t["c1_b"]]), (0, 64))  # (128,)

    def block_diag_conv(wp, wt):
        # OIHW -> im2col (kh*kw*Cin_total, Cout_total), block-diagonal per
        # (kh, kw) so the pred/targ channel groups stay independent.
        cout_p, cin_p, kh, kw = wp.shape
        cout_t, cin_t, _, _ = wt.shape
        w = jnp.zeros((kh, kw, cin_p + cin_t, cout_p + cout_t), jnp.float32)
        w = w.at[:, :, :cin_p, :cout_p].set(jnp.transpose(wp, (2, 3, 1, 0)))
        w = w.at[:, :, cin_p:, cout_p:].set(jnp.transpose(wt, (2, 3, 1, 0)))
        return w.reshape(kh * kw * (cin_p + cin_t), cout_p + cout_t)

    def l1_hwc_T(w):
        # (512, 64*7*7) with columns in (c, y, x) order  ->  (7*7*64, 512)
        # with rows in (y, x, c) order (matches NHWC-flatten of the trunk).
        n_out, k = w.shape
        w = w.reshape(n_out, 64, 7, 7).transpose(0, 2, 3, 1).reshape(n_out, k)
        return w.T

    fused = dict(
        c1_w=w1.astype(wd), c1_b=b1,
        c2_w=block_diag_conv(p["c2_w"], t["c2_w"]).astype(wd),   # (1024, 128)
        c2_b=jnp.concatenate([p["c2_b"], t["c2_b"]]),
        c3_w=block_diag_conv(p["c3_w"], t["c3_w"]).astype(wd),   # (1152, 128)
        c3_b=jnp.concatenate([p["c3_b"], t["c3_b"]]),
        # Stacked l1 (head 0 = predictor, head 1 = target), HWC row order.
        fc_w1=jnp.stack([l1_hwc_T(p["l1_w"]),
                         l1_hwc_T(t["l1_w"])]).astype(wd),       # (2, 3136, 512)
        fc_b1=jnp.stack([p["l1_b"], t["l1_b"]]).reshape(2, 1, -1)
              .astype(jnp.float32),                              # (2, 1, 512)
        fc_w2=p["l2_w"].T.astype(wd), fc_b2=p["l2_b"].reshape(1, -1),
        fc_w3=p["l3_w"].T.astype(wd), fc_b3=p["l3_b"].reshape(1, -1),
    )
    return fused


# ----------------------------------------------------------------------------
# Forward pass: (predict_feature, target_feature)
# ----------------------------------------------------------------------------
@jax.jit
def rnd_forward(fused, next_obs_nchw):
    x = jnp.transpose(next_obs_nchw.astype(jnp.float32), (0, 2, 3, 1))  # NHWC
    act_dtype = fused["c1_w"].dtype            # bf16 production / f32 validation

    # Fused (pred ++ targ) conv trunk.  conv1 M split only on 2-core chips.
    h = conv2d_mm(x, fused["c1_w"], fused["c1_b"], kh=8, kw=8, stride=4,
                  act="leaky_relu", m_tiles=_conv1_m_tiles(),
                  out_dtype=act_dtype)
    h = h[..., :64]                   # drop lane-padding channels (identically 0)
    h = conv2d_mm(h, fused["c2_w"], fused["c2_b"], kh=4, kw=4, stride=2,
                  act="leaky_relu", out_dtype=act_dtype)
    h = conv2d_mm(h, fused["c3_w"], fused["c3_b"], kh=3, kw=3, stride=1,
                  act="leaky_relu", out_dtype=act_dtype)

    # Channels [0:64] = predictor trunk, [64:128] = target trunk.  The l1
    # weights were pre-permuted to HWC order, so a plain reshape suffices
    # (no NHWC->NCHW transpose).
    B = h.shape[0]
    f_stack = jnp.stack([h[..., :64].reshape(B, -1),
                         h[..., 64:].reshape(B, -1)], axis=0)   # (2, B, 3136)

    predict_feature, target_feature = fused_fc(f_stack, fused)
    return predict_feature, target_feature


# ----------------------------------------------------------------------------
# Plain-JAX/XLA reference (mirrors the PyTorch module) for validation.
# ----------------------------------------------------------------------------
@jax.jit
def _ref_forward(params, x_nchw):
    def conv(x, w, b, stride):
        y = jax.lax.conv_general_dilated(
            x, w, window_strides=(stride, stride), padding="VALID",
            dimension_numbers=("NCHW", "OIHW", "NCHW"))
        return y + b[None, :, None, None]

    def trunk(x, p):
        h = jax.nn.leaky_relu(conv(x, p["c1_w"], p["c1_b"], 4))
        h = jax.nn.leaky_relu(conv(h, p["c2_w"], p["c2_b"], 2))
        h = jax.nn.leaky_relu(conv(h, p["c3_w"], p["c3_b"], 1))
        return h.reshape(h.shape[0], -1)

    p, t = params["pred"], params["targ"]
    f = trunk(x_nchw, p)
    f = jax.nn.relu(f @ p["l1_w"].T + p["l1_b"])
    f = jax.nn.relu(f @ p["l2_w"].T + p["l2_b"])
    pred = f @ p["l3_w"].T + p["l3_b"]
    g = trunk(x_nchw, t)
    targ = g @ t["l1_w"].T + t["l1_b"]
    return pred, targ


if __name__ == "__main__":
    key = jax.random.PRNGKey(0)
    pkey, xkey = jax.random.split(key)

    raw_params = init_rnd_params(pkey)
    # Production path: bf16 weights / bf16 MXU inputs, f32 accumulation.
    fused_bf16 = prepare_fused_params(raw_params, weight_dtype=jnp.bfloat16)
    # Validation path: identical kernels with f32 weights (no quantization).
    fused_f32 = prepare_fused_params(raw_params, weight_dtype=jnp.float32)

    # batch=2; spatial 84x84 with 1 channel matches feature_output = 7*7*64.
    next_obs = jax.random.normal(xkey, (2, 1, 84, 84), dtype=jnp.float32)

    predict_feature, target_feature = rnd_forward(fused_bf16, next_obs)
    jax.block_until_ready((predict_feature, target_feature))

    assert predict_feature.shape == (2, 512), predict_feature.shape
    assert target_feature.shape == (2, 512), target_feature.shape
    assert predict_feature.dtype == jnp.float32
    assert target_feature.dtype == jnp.float32
    assert bool(jnp.all(jnp.isfinite(predict_feature)))
    assert bool(jnp.all(jnp.isfinite(target_feature)))

    ref_pred, ref_targ = _ref_forward(raw_params, next_obs)

    # 1) Structural correctness: the same Pallas kernels with f32 weights must
    #    match the plain-XLA reference (tolerance inherited from the previously
    #    passing all-f32 test).
    p32, t32 = rnd_forward(fused_f32, next_obs)
    np.testing.assert_allclose(np.asarray(p32), np.asarray(ref_pred),
                               rtol=5e-2, atol=5e-2)
    np.testing.assert_allclose(np.asarray(t32), np.asarray(ref_targ),
                               rtol=5e-2, atol=5e-2)

    # 2) Quantization error of the bf16 production path (documented precision
    #    change; f32 accumulation keeps it at the ~1e-2 relative level).
    def rel_l2(a, b):
        a = np.asarray(a, np.float64)
        b = np.asarray(b, np.float64)
        return float(np.linalg.norm(a - b) / np.linalg.norm(b))

    assert rel_l2(predict_feature, ref_pred) < 5e-2
    assert rel_l2(target_feature, ref_targ) < 5e-2

    print("KERNEL_OK")
</pallas_src>

<mosaic_0001>
module attributes {stable_mosaic.version = 11 : i64} {
  func.func @_matmul_bias_act_kernel(%arg0: i32, %arg1: memref<800x64xf32, #tpu.memory_space<vmem>>, %arg2: memref<64x128xbf16, #tpu.memory_space<vmem>>, %arg3: memref<1x128xf32, #tpu.memory_space<vmem>>, %arg4: memref<800x128xbf16, #tpu.memory_space<vmem>>) attributes {dimension_semantics = [#tpu.dimension_semantics<parallel>], iteration_bounds = array<i64: 1>, scalar_prefetch = 0 : i64, scratch_operands = 0 : i64, tpu.core_type = #tpu.core_type<tc>, window_params = [{transform_indices = @transform_0, window_bounds = array<i64: 800, 64>}, {pipeline_mode = #tpu.pipeline_mode<synchronous>, transform_indices = @transform_1, window_bounds = array<i64: 64, 128>}, {pipeline_mode = #tpu.pipeline_mode<synchronous>, transform_indices = @transform_2, window_bounds = array<i64: 1, 128>}, {transform_indices = @transform_3, window_bounds = array<i64: 800, 128>}]} {
    %c0 = arith.constant 0 : index
    %c0_0 = arith.constant 0 : index
    %0 = vector.load %arg1[%c0, %c0_0] : memref<800x64xf32, #tpu.memory_space<vmem>>, vector<800x64xf32>
    %c0_1 = arith.constant 0 : index
    %c0_2 = arith.constant 0 : index
    %1 = vector.load %arg2[%c0_1, %c0_2] : memref<64x128xbf16, #tpu.memory_space<vmem>>, vector<64x128xbf16>
    %2 = arith.truncf %0 : vector<800x64xf32> to vector<800x64xbf16>
    %cst = arith.constant dense<0.000000e+00> : vector<800x128xf32>
    %3 = tpu.matmul %2, %1, %cst {dimension_numbers = #tpu.dot_dimension_numbers<[1], [0], [0], [1], [0, 0, 1, 1], [], []>} : vector<800x64xbf16>, vector<64x128xbf16>, vector<800x128xf32> -> vector<800x128xf32>
    %c0_3 = arith.constant 0 : index
    %c0_4 = arith.constant 0 : index
    %4 = vector.load %arg3[%c0_3, %c0_4] : memref<1x128xf32, #tpu.memory_space<vmem>>, vector<1x128xf32>
    %5 = vector.broadcast %4 : vector<1x128xf32> to vector<800x128xf32>
    %6 = arith.addf %3, %5 : vector<800x128xf32>
    %cst_5 = arith.constant 0.000000e+00 : f32
    %7 = vector.broadcast %cst_5 : f32 to vector<800x128xf32>
    %8 = arith.cmpf ogt, %6, %7 : vector<800x128xf32>
    %cst_6 = arith.constant 0.00999999977 : f32
    %9 = vector.broadcast %cst_6 : f32 to vector<800x128xf32>
    %10 = arith.mulf %9, %6 : vector<800x128xf32>
    %11 = arith.select %8, %6, %10 : vector<800x128xi1>, vector<800x128xf32>
    %12 = arith.truncf %11 : vector<800x128xf32> to vector<800x128xbf16>
    %c0_7 = arith.constant 0 : index
    %c0_8 = arith.constant 0 : index
    %13 = vector.load %arg4[%c0_7, %c0_8] : memref<800x128xbf16, #tpu.memory_space<vmem>>, vector<800x128xbf16>
    tpu.vector_store %arg4[%c0_7, %c0_8], %12 {strides = array<i32>} : memref<800x128xbf16, #tpu.memory_space<vmem>>, vector<800x128xbf16>,
    return
  }
  func.func @transform_0(%arg0: i32) -> (i32, i32) {
    %c0_i32 = arith.constant 0 : i32
    %c0_i32_0 = arith.constant 0 : i32
    return %arg0, %c0_i32 : i32, i32
  }
  func.func @transform_1(%arg0: i32) -> (i32, i32) {
    %c0_i32 = arith.constant 0 : i32
    %c0_i32_0 = arith.constant 0 : i32
    %c0_i32_1 = arith.constant 0 : i32
    return %c0_i32, %c0_i32_0 : i32, i32
  }
  func.func @transform_2(%arg0: i32) -> (i32, i32) {
    %c0_i32 = arith.constant 0 : i32
    %c0_i32_0 = arith.constant 0 : i32
    %c0_i32_1 = arith.constant 0 : i32
    return %c0_i32, %c0_i32_0 : i32, i32
  }
  func.func @transform_3(%arg0: i32) -> (i32, i32) {
    %c0_i32 = arith.constant 0 : i32
    %c0_i32_0 = arith.constant 0 : i32
    return %arg0, %c0_i32 : i32, i32
  }
}

module attributes {stable_mosaic.version = 11 : i64} {
  func.func @_matmul_bias_act_kernel(%arg0: i32, %arg1: memref<162x1024xbf16, #tpu.memory_space<vmem>>, %arg2: memref<1024x128xbf16, #tpu.memory_space<vmem>>, %arg3: memref<1x128xf32, #tpu.memory_space<vmem>>, %arg4: memref<162x128xbf16, #tpu.memory_space<vmem>>) attributes {dimension_semantics = [#tpu.dimension_semantics<parallel>], iteration_bounds = array<i64: 1>, scalar_prefetch = 0 : i64, scratch_operands = 0 : i64, tpu.core_type = #tpu.core_type<tc>, window_params = [{transform_indices = @transform_0, window_bounds = array<i64: 162, 1024>}, {pipeline_mode = #tpu.pipeline_mode<synchronous>, transform_indices = @transform_1, window_bounds = array<i64: 1024, 128>}, {pipeline_mode = #tpu.pipeline_mode<synchronous>, transform_indices = @transform_2, window_bounds = array<i64: 1, 128>}, {transform_indices = @transform_3, window_bounds = array<i64: 162, 128>}]} {
    %c0 = arith.constant 0 : index
    %c0_0 = arith.constant 0 : index
    %0 = vector.load %arg1[%c0, %c0_0] : memref<162x1024xbf16, #tpu.memory_space<vmem>>, vector<162x1024xbf16>
    %c0_1 = arith.constant 0 : index
    %c0_2 = arith.constant 0 : index
    %1 = vector.load %arg2[%c0_1, %c0_2] : memref<1024x128xbf16, #tpu.memory_space<vmem>>, vector<1024x128xbf16>
    %cst = arith.constant dense<0.000000e+00> : vector<162x128xf32>
    %2 = tpu.matmul %0, %1, %cst {dimension_numbers = #tpu.dot_dimension_numbers<[1], [0], [0], [1], [0, 0, 1, 1], [], []>} : vector<162x1024xbf16>, vector<1024x128xbf16>, vector<162x128xf32> -> vector<162x128xf32>
    %c0_3 = arith.constant 0 : index
    %c0_4 = arith.constant 0 : index
    %3 = vector.load %arg3[%c0_3, %c0_4] : memref<1x128xf32, #tpu.memory_space<vmem>>, vector<1x128xf32>
    %4 = vector.broadcast %3 : vector<1x128xf32> to vector<162x128xf32>
    %5 = arith.addf %2, %4 : vector<162x128xf32>
    %cst_5 = arith.constant 0.000000e+00 : f32
    %6 = vector.broadcast %cst_5 : f32 to vector<162x128xf32>
    %7 = arith.cmpf ogt, %5, %6 : vector<162x128xf32>
    %cst_6 = arith.constant 0.00999999977 : f32
    %8 = vector.broadcast %cst_6 : f32 to vector<162x128xf32>
    %9 = arith.mulf %8, %5 : vector<162x128xf32>
    %10 = arith.select %7, %5, %9 : vector<162x128xi1>, vector<162x128xf32>
    %11 = arith.truncf %10 : vector<162x128xf32> to vector<162x128xbf16>
    %c0_7 = arith.constant 0 : index
    %c0_8 = arith.constant 0 : index
    %12 = vector.load %arg4[%c0_7, %c0_8] : memref<162x128xbf16, #tpu.memory_space<vmem>>, vector<162x128xbf16>
    tpu.vector_store %arg4[%c0_7, %c0_8], %11 {strides = array<i32>} : memref<162x128xbf16, #tpu.memory_space<vmem>>, vector<162x128xbf16>,
    return
  }
  func.func @transform_0(%arg0: i32) -> (i32, i32) {
    %c0_i32 = arith.constant 0 : i32
    %c0_i32_0 = arith.constant 0 : i32
    return %arg0, %c0_i32 : i32, i32
  }
  func.func @transform_1(%arg0: i32) -> (i32, i32) {
    %c0_i32 = arith.constant 0 : i32
    %c0_i32_0 = arith.constant 0 : i32
    %c0_i32_1 = arith.constant 0 : i32
    return %c0_i32, %c0_i32_0 : i32, i32
  }
  func.func @transform_2(%arg0: i32) -> (i32, i32) {
    %c0_i32 = arith.constant 0 : i32
    %c0_i32_0 = arith.constant 0 : i32
    %c0_i32_1 = arith.constant 0 : i32
    return %c0_i32, %c0_i32_0 : i32, i32
  }
  func.func @transform_3(%arg0: i32) -> (i32, i32) {
    %c0_i32 = arith.constant 0 : i32
    %c0_i32_0 = arith.constant 0 : i32
    return %arg0, %c0_i32 : i32, i32
  }
}

module attributes {stable_mosaic.version = 11 : i64} {
  func.func @_matmul_bias_act_kernel(%arg0: i32, %arg1: memref<98x1152xbf16, #tpu.memory_space<vmem>>, %arg2: memref<1152x128xbf16, #tpu.memory_space<vmem>>, %arg3: memref<1x128xf32, #tpu.memory_space<vmem>>, %arg4: memref<98x128xbf16, #tpu.memory_space<vmem>>) attributes {dimension_semantics = [#tpu.dimension_semantics<parallel>], iteration_bounds = array<i64: 1>, scalar_prefetch = 0 : i64, scratch_operands = 0 : i64, tpu.core_type = #tpu.core_type<tc>, window_params = [{transform_indices = @transform_0, window_bounds = array<i64: 98, 1152>}, {pipeline_mode = #tpu.pipeline_mode<synchronous>, transform_indices = @transform_1, window_bounds = array<i64: 1152, 128>}, {pipeline_mode = #tpu.pipeline_mode<synchronous>, transform_indices = @transform_2, window_bounds = array<i64: 1, 128>}, {transform_indices = @transform_3, window_bounds = array<i64: 98, 128>}]} {
    %c0 = arith.constant 0 : index
    %c0_0 = arith.constant 0 : index
    %0 = vector.load %arg1[%c0, %c0_0] : memref<98x1152xbf16, #tpu.memory_space<vmem>>, vector<98x1152xbf16>
    %c0_1 = arith.constant 0 : index
    %c0_2 = arith.constant 0 : index
    %1 = vector.load %arg2[%c0_1, %c0_2] : memref<1152x128xbf16, #tpu.memory_space<vmem>>, vector<1152x128xbf16>
    %cst = arith.constant dense<0.000000e+00> : vector<98x128xf32>
    %2 = tpu.matmul %0, %1, %cst {dimension_numbers = #tpu.dot_dimension_numbers<[1], [0], [0], [1], [0, 0, 1, 1], [], []>} : vector<98x1152xbf16>, vector<1152x128xbf16>, vector<98x128xf32> -> vector<98x128xf32>
    %c0_3 = arith.constant 0 : index
    %c0_4 = arith.constant 0 : index
    %3 = vector.load %arg3[%c0_3, %c0_4] : memref<1x128xf32, #tpu.memory_space<vmem>>, vector<1x128xf32>
    %4 = vector.broadcast %3 : vector<1x128xf32> to vector<98x128xf32>
    %5 = arith.addf %2, %4 : vector<98x128xf32>
    %cst_5 = arith.constant 0.000000e+00 : f32
    %6 = vector.broadcast %cst_5 : f32 to vector<98x128xf32>
    %7 = arith.cmpf ogt, %5, %6 : vector<98x128xf32>
    %cst_6 = arith.constant 0.00999999977 : f32
    %8 = vector.broadcast %cst_6 : f32 to vector<98x128xf32>
    %9 = arith.mulf %8, %5 : vector<98x128xf32>
    %10 = arith.select %7, %5, %9 : vector<98x128xi1>, vector<98x128xf32>
    %11 = arith.truncf %10 : vector<98x128xf32> to vector<98x128xbf16>
    %c0_7 = arith.constant 0 : index
    %c0_8 = arith.constant 0 : index
    %12 = vector.load %arg4[%c0_7, %c0_8] : memref<98x128xbf16, #tpu.memory_space<vmem>>, vector<98x128xbf16>
    tpu.vector_store %arg4[%c0_7, %c0_8], %11 {strides = array<i32>} : memref<98x128xbf16, #tpu.memory_space<vmem>>, vector<98x128xbf16>,
    return
  }
  func.func @transform_0(%arg0: i32) -> (i32, i32) {
    %c0_i32 = arith.constant 0 : i32
    %c0_i32_0 = arith.constant 0 : i32
    return %arg0, %c0_i32 : i32, i32
  }
  func.func @transform_1(%arg0: i32) -> (i32, i32) {
    %c0_i32 = arith.constant 0 : i32
    %c0_i32_0 = arith.constant 0 : i32
    %c0_i32_1 = arith.constant 0 : i32
    return %c0_i32, %c0_i32_0 : i32, i32
  }
  func.func @transform_2(%arg0: i32) -> (i32, i32) {
    %c0_i32 = arith.constant 0 : i32
    %c0_i32_0 = arith.constant 0 : i32
    %c0_i32_1 = arith.constant 0 : i32
    return %c0_i32, %c0_i32_0 : i32, i32
  }
  func.func @transform_3(%arg0: i32) -> (i32, i32) {
    %c0_i32 = arith.constant 0 : i32
    %c0_i32_0 = arith.constant 0 : i32
    return %arg0, %c0_i32 : i32, i32
  }
}

module attributes {stable_mosaic.version = 11 : i64} {
  func.func @_fused_fc_kernel(%arg0: i32, %arg1: memref<1x2x3136xbf16, #tpu.memory_space<vmem>>, %arg2: memref<1x3136x512xbf16, #tpu.memory_space<vmem>>, %arg3: memref<1x1x512xf32, #tpu.memory_space<vmem>>, %arg4: memref<512x512xbf16, #tpu.memory_space<vmem>>, %arg5: memref<1x512xf32, #tpu.memory_space<vmem>>, %arg6: memref<512x512xbf16, #tpu.memory_space<vmem>>, %arg7: memref<1x512xf32, #tpu.memory_space<vmem>>, %arg8: memref<1x2x512xf32, #tpu.memory_space<vmem>>) attributes {dimension_semantics = [#tpu.dimension_semantics<parallel>], iteration_bounds = array<i64: 2>, scalar_prefetch = 0 : i64, scratch_operands = 0 : i64, tpu.core_type = #tpu.core_type<tc>, window_params = [{transform_indices = @transform_0, window_bounds = array<i64: 1, 2, 3136>}, {transform_indices = @transform_1, window_bounds = array<i64: 1, 3136, 512>}, {transform_indices = @transform_2, window_bounds = array<i64: 1, 1, 512>}, {pipeline_mode = #tpu.pipeline_mode<synchronous>, transform_indices = @transform_3, window_bounds = array<i64: 512, 512>}, {pipeline_mode = #tpu.pipeline_mode<synchronous>, transform_indices = @transform_4, window_bounds = array<i64: 1, 512>}, {pipeline_mode = #tpu.pipeline_mode<synchronous>, transform_indices = @transform_5, window_bounds = array<i64: 512, 512>}, {pipeline_mode = #tpu.pipeline_mode<synchronous>, transform_indices = @transform_6, window_bounds = array<i64: 1, 512>}, {transform_indices = @transform_7, window_bounds = array<i64: 1, 2, 512>}]} {
    %c0 = arith.constant 0 : index
    %c0_0 = arith.constant 0 : index
    %c0_1 = arith.constant 0 : index
    %0 = vector.load %arg1[%c0, %c0_0, %c0_1] : memref<1x2x3136xbf16, #tpu.memory_space<vmem>>, vector<1x2x3136xbf16>
    %1 = vector.shape_cast %0 : vector<1x2x3136xbf16> to vector<2x3136xbf16>
    %c0_2 = arith.constant 0 : index
    %c0_3 = arith.constant 0 : index
    %c0_4 = arith.constant 0 : index
    %2 = vector.load %arg2[%c0_2, %c0_3, %c0_4] : memref<1x3136x512xbf16, #tpu.memory_space<vmem>>, vector<1x3136x512xbf16>
    %3 = vector.shape_cast %2 : vector<1x3136x512xbf16> to vector<3136x512xbf16>
    %cst = arith.constant dense<0.000000e+00> : vector<2x512xf32>
    %4 = tpu.matmul %1, %3, %cst {dimension_numbers = #tpu.dot_dimension_numbers<[1], [0], [0], [1], [0, 0, 1, 1], [], []>} : vector<2x3136xbf16>, vector<3136x512xbf16>, vector<2x512xf32> -> vector<2x512xf32>
    %c0_5 = arith.constant 0 : index
    %c0_6 = arith.constant 0 : index
    %c0_7 = arith.constant 0 : index
    %5 = vector.load %arg3[%c0_5, %c0_6, %c0_7] : memref<1x1x512xf32, #tpu.memory_space<vmem>>, vector<1x1x512xf32>
    %6 = vector.shape_cast %5 : vector<1x1x512xf32> to vector<1x512xf32>
    %7 = vector.broadcast %6 : vector<1x512xf32> to vector<2x512xf32>
    %8 = arith.addf %4, %7 : vector<2x512xf32>
    %c0_i32 = arith.constant 0 : i32
    %9 = arith.cmpi eq, %arg0, %c0_i32 : i32
    %10 = arith.extui %9 : i1 to i32
    %c0_i32_8 = arith.constant 0 : i32
    %11 = arith.cmpi ne, %10, %c0_i32_8 : i32
    scf.if %11 {
      %cst_10 = arith.constant 0.000000e+00 : f32
      %15 = vector.broadcast %cst_10 : f32 to vector<2x512xf32>
      %16 = arith.maximumf %8, %15 : vector<2x512xf32>
      %17 = arith.truncf %16 : vector<2x512xf32> to vector<2x512xbf16>
      %c0_11 = arith.constant 0 : index
      %c0_12 = arith.constant 0 : index
      %18 = vector.load %arg4[%c0_11, %c0_12] : memref<512x512xbf16, #tpu.memory_space<vmem>>, vector<512x512xbf16>
      %cst_13 = arith.constant dense<0.000000e+00> : vector<2x512xf32>
      %19 = tpu.matmul %17, %18, %cst_13 {dimension_numbers = #tpu.dot_dimension_numbers<[1], [0], [0], [1], [0, 0, 1, 1], [], []>} : vector<2x512xbf16>, vector<512x512xbf16>, vector<2x512xf32> -> vector<2x512xf32>
      %c0_14 = arith.constant 0 : index
      %c0_15 = arith.constant 0 : index
      %20 = vector.load %arg5[%c0_14, %c0_15] : memref<1x512xf32, #tpu.memory_space<vmem>>, vector<1x512xf32>
      %21 = vector.broadcast %20 : vector<1x512xf32> to vector<2x512xf32>
      %22 = arith.addf %19, %21 : vector<2x512xf32>
      %cst_16 = arith.constant 0.000000e+00 : f32
      %23 = vector.broadcast %cst_16 : f32 to vector<2x512xf32>
      %24 = arith.maximumf %22, %23 : vector<2x512xf32>
      %25 = arith.truncf %24 : vector<2x512xf32> to vector<2x512xbf16>
      %c0_17 = arith.constant 0 : index
      %c0_18 = arith.constant 0 : index
      %26 = vector.load %arg6[%c0_17, %c0_18] : memref<512x512xbf16, #tpu.memory_space<vmem>>, vector<512x512xbf16>
      %cst_19 = arith.constant dense<0.000000e+00> : vector<2x512xf32>
      %27 = tpu.matmul %25, %26, %cst_19 {dimension_numbers = #tpu.dot_dimension_numbers<[1], [0], [0], [1], [0, 0, 1, 1], [], []>} : vector<2x512xbf16>, vector<512x512xbf16>, vector<2x512xf32> -> vector<2x512xf32>
      %c0_20 = arith.constant 0 : index
      %c0_21 = arith.constant 0 : index
      %28 = vector.load %arg7[%c0_20, %c0_21] : memref<1x512xf32, #tpu.memory_space<vmem>>, vector<1x512xf32>
      %29 = vector.broadcast %28 : vector<1x512xf32> to vector<2x512xf32>
      %30 = arith.addf %27, %29 : vector<2x512xf32>
      %c0_22 = arith.constant 0 : index
      %c0_23 = arith.constant 0 : index
      %c0_24 = arith.constant 0 : index
      %31 = vector.load %arg8[%c0_22, %c0_23, %c0_24] : memref<1x2x512xf32, #tpu.memory_space<vmem>>, vector<1x2x512xf32>
      %32 = vector.shape_cast %31 : vector<1x2x512xf32> to vector<2x512xf32>
      %33 = vector.shape_cast %30 : vector<2x512xf32> to vector<1x2x512xf32>
      tpu.vector_store %arg8[%c0_22, %c0_23, %c0_24], %33 {strides = array<i32>} : memref<1x2x512xf32, #tpu.memory_space<vmem>>, vector<1x2x512xf32>,
    } else {
    }
    %c1_i32 = arith.constant 1 : i32
    %12 = arith.cmpi eq, %arg0, %c1_i32 : i32
    %13 = arith.extui %12 : i1 to i32
    %c0_i32_9 = arith.constant 0 : i32
    %14 = arith.cmpi ne, %13, %c0_i32_9 : i32
    scf.if %14 {
      %c0_10 = arith.constant 0 : index
      %c0_11 = arith.constant 0 : index
      %c0_12 = arith.constant 0 : index
      %15 = vector.load %arg8[%c0_10, %c0_11, %c0_12] : memref<1x2x512xf32, #tpu.memory_space<vmem>>, vector<1x2x512xf32>
      %16 = vector.shape_cast %15 : vector<1x2x512xf32> to vector<2x512xf32>
      %17 = vector.shape_cast %8 : vector<2x512xf32> to vector<1x2x512xf32>
      tpu.vector_store %arg8[%c0_10, %c0_11, %c0_12], %17 {strides = array<i32>} : memref<1x2x512xf32, #tpu.memory_space<vmem>>, vector<1x2x512xf32>,
    } else {
    }
    return
  }
  func.func @transform_0(%arg0: i32) -> (i32, i32, i32) {
    %c0_i32 = arith.constant 0 : i32
    %c0_i32_0 = arith.constant 0 : i32
    %c0_i32_1 = arith.constant 0 : i32
    return %arg0, %c0_i32, %c0_i32_0 : i32, i32, i32
  }
  func.func @transform_1(%arg0: i32) -> (i32, i32, i32) {
    %c0_i32 = arith.constant 0 : i32
    %c0_i32_0 = arith.constant 0 : i32
    %c0_i32_1 = arith.constant 0 : i32
    return %arg0, %c0_i32, %c0_i32_0 : i32, i32, i32
  }
  func.func @transform_2(%arg0: i32) -> (i32, i32, i32) {
    %c0_i32 = arith.constant 0 : i32
    %c0_i32_0 = arith.constant 0 : i32
    %c0_i32_1 = arith.constant 0 : i32
    return %arg0, %c0_i32, %c0_i32_0 : i32, i32, i32
  }
  func.func @transform_3(%arg0: i32) -> (i32, i32) {
    %c0_i32 = arith.constant 0 : i32
    %c0_i32_0 = arith.constant 0 : i32
    %c0_i32_1 = arith.constant 0 : i32
    return %c0_i32, %c0_i32_0 : i32, i32
  }
  func.func @transform_4(%arg0: i32) -> (i32, i32) {
    %c0_i32 = arith.constant 0 : i32
    %c0_i32_0 = arith.constant 0 : i32
    %c0_i32_1 = arith.constant 0 : i32
    return %c0_i32, %c0_i32_0 : i32, i32
  }
  func.func @transform_5(%arg0: i32) -> (i32, i32) {
    %c0_i32 = arith.constant 0 : i32
    %c0_i32_0 = arith.constant 0 : i32
    %c0_i32_1 = arith.constant 0 : i32
    return %c0_i32, %c0_i32_0 : i32, i32
  }
  func.func @transform_6(%arg0: i32) -> (i32, i32) {
    %c0_i32 = arith.constant 0 : i32
    %c0_i32_0 = arith.constant 0 : i32
    %c0_i32_1 = arith.constant 0 : i32
    return %c0_i32, %c0_i32_0 : i32, i32
  }
  func.func @transform_7(%arg0: i32) -> (i32, i32, i32) {
    %c0_i32 = arith.constant 0 : i32
    %c0_i32_0 = arith.constant 0 : i32
    %c0_i32_1 = arith.constant 0 : i32
    return %arg0, %c0_i32, %c0_i32_0 : i32, i32, i32
  }
}

</mosaic_0001>

<llo_original>
// kernel: rnd_forward.4
$region0: #{rnd_forward.4}
  #allocation0 [shape = 'u32[]', space=smem, size = 0x4, offset = 0x4, fixed_abs, tag = 'smem constant byte address 0x4 - core index']
  #allocation1 [shape = 'u32[144,128]{1,0:T(1,128)}', space=vmem, size = 0x12000, scoped, tag = 'internal scratch']
  %s0 = inlined_call_operand.vmem [shape: f32[800,64], index: 0, kind: input, shape index: {}]
  %s1 = inlined_call_operand.vmem [shape: bf16[64,128], index: 1, kind: input, shape index: {}]
  %s2 = inlined_call_operand.vmem [shape: f32[1,128], index: 2, kind: input, shape index: {}]
  %s3 = inlined_call_operand.vmem [shape: bf16[800,128], index: 3, kind: output, shape index: {}]
  %s4 = sld [smem:[#allocation0]]
  $region22: #{rnd_forward.4} parent=0
    _
  %s6 = ssub.s32 1, %s4
  %s7 = scalar_select 0, %s6, %s4
  // Predicated region
  $region2: #{rnd_forward.4} parent=0 // pred_check
    _
  $region3: #{rnd_forward.4} parent=0 // pred_check_branch
    %9 = sbr.rel (0) target = $region5
  $region4: #{rnd_forward.4} parent=0 // pred_region
    _
  $region5: #{rnd_forward.4} parent=0 // pred_fallthru
    _
  // Predicated region
  $region6: #{rnd_forward.4} parent=0 // pred_check
    _
  $region7: #{rnd_forward.4} parent=0 // pred_check_branch
    %11 = sbr.rel (0) target = $region9
  $region8: #{rnd_forward.4} parent=0 // pred_region
    _
  $region9: #{rnd_forward.4} parent=0 // pred_fallthru
    _
  // Predicated region
  $region10: #{rnd_forward.4} parent=0 // pred_check
    _
  $region11: #{rnd_forward.4} parent=0 // pred_check_branch
    %13 = sbr.rel (0) target = $region13
  $region12: #{rnd_forward.4} parent=0 // pred_region
    _
  $region13: #{rnd_forward.4} parent=0 // pred_fallthru
    _
  %v15 = vld [vmem:[%s0] sm:$0xff]
  %v16 = vld [vmem:[%s0 + $0x8] sm:$0xff]
  %v17 = vld [vmem:[%s0 + $0x10] sm:$0xff]
  %v18 = vld [vmem:[%s0 + $0x18] sm:$0xff]
  %v19 = vld [vmem:[%s0 + $0x20] sm:$0xff]
  %v20 = vld [vmem:[%s0 + $0x28] sm:$0xff]
  %v21 = vld [vmem:[%s0 + $0x30] sm:$0xff]
  %v22 = vld [vmem:[%s0 + $0x38] sm:$0xff]
  %v23 = vld [vmem:[%s0 + $0x40] sm:$0xff]
  %v24 = vld [vmem:[%s0 + $0x48] sm:$0xff]
  %v25 = vld [vmem:[%s0 + $0x50] sm:$0xff]
  %v26 = vld [vmem:[%s0 + $0x58] sm:$0xff]
  %v27 = vld [vmem:[%s0 + $0x60] sm:$0xff]
  %v28 = vld [vmem:[%s0 + $0x68] sm:$0xff]
  %v29 = vld [vmem:[%s0 + $0x70] sm:$0xff]
  %v30 = vld [vmem:[%s0 + $0x78] sm:$0xff]
  %v31 = vld [vmem:[%s0 + $0x80] sm:$0xff]
  %v32 = vld [vmem:[%s0 + $0x88] sm:$0xff]
  %v33 = vld [vmem:[%s0 + $0x90] sm:$0xff]
  %v34 = vld [vmem:[%s0 + $0x98] sm:$0xff]
  %v35 = vld [vmem:[%s0 + $0xa0] sm:$0xff]
  %v36 = vld [vmem:[%s0 + $0xa8] sm:$0xff]
  %v37 = vld [vmem:[%s0 + $0xb0] sm:$0xff]
  %v38 = vld [vmem:[%s0 + $0xb8] sm:$0xff]
  %v39 = vld [vmem:[%s0 + $0xc0] sm:$0xff]
  %v40 = vld [vmem:[%s0 + $0xc8] sm:$0xff]
  %v41 = vld [vmem:[%s0 + $0xd0] sm:$0xff]
  %v42 = vld [vmem:[%s0 + $0xd8] sm:$0xff]
  %v43 = vld [vmem:[%s0 + $0xe0] sm:$0xff]
  %v44 = vld [vmem:[%s0 + $0xe8] sm:$0xff]
  %v45 = vld [vmem:[%s0 + $0xf0] sm:$0xff]
  %v46 = vld [vmem:[%s0 + $0xf8] sm:$0xff]
  %v47 = vld [vmem:[%s0 + $0x100] sm:$0xff]
  %v48 = vld [vmem:[%s0 + $0x108] sm:$0xff]
  %v49 = vld [vmem:[%s0 + $0x110] sm:$0xff]
  %v50 = vld [vmem:[%s0 + $0x118] sm:$0xff]
  %v51 = vld [vmem:[%s0 + $0x120] sm:$0xff]
  %v52 = vld [vmem:[%s0 + $0x128] sm:$0xff]
  %v53 = vld [vmem:[%s0 + $0x130] sm:$0xff]
  %v54 = vld [vmem:[%s0 + $0x138] sm:$0xff]
  %v55 = vld [vmem:[%s0 + $0x140] sm:$0xff]
  %v56 = vld [vmem:[%s0 + $0x148] sm:$0xff]
  %v57 = vld [vmem:[%s0 + $0x150] sm:$0xff]
  %v58 = vld [vmem:[%s0 + $0x158] sm:$0xff]
  %v59 = vld [vmem:[%s0 + $0x160] sm:$0xff]
  %v60 = vld [vmem:[%s0 + $0x168] sm:$0xff]
  %v61 = vld [vmem:[%s0 + $0x170] sm:$0xff]
  %v62 = vld [vmem:[%s0 + $0x178] sm:$0xff]
  %v63 = vld [vmem:[%s0 + $0x180] sm:$0xff]
  %v64 = vld [vmem:[%s0 + $0x188] sm:$0xff]
  %v65 = vld [vmem:[%s0 + $0x190] sm:$0xff]
  %v66 = vld [vmem:[%s0 + $0x198] sm:$0xff]
  %v67 = vld [vmem:[%s0 + $0x1a0] sm:$0xff]
  %v68 = vld [vmem:[%s0 + $0x1a8] sm:$0xff]
  %v69 = vld [vmem:[%s0 + $0x1b0] sm:$0xff]
  %v70 = vld [vmem:[%s0 + $0x1b8] sm:$0xff]
  %v71 = vld [vmem:[%s0 + $0x1c0] sm:$0xff]
  %v72 = vld [vmem:[%s0 + $0x1c8] sm:$0xff]
  %v73 = vld [vmem:[%s0 + $0x1d0] sm:$0xff]
  %v74 = vld [vmem:[%s0 + $0x1d8] sm:$0xff]
  %v75 = vld [vmem:[%s0 + $0x1e0] sm:$0xff]
  %v76 = vld [vmem:[%s0 + $0x1e8] sm:$0xff]
  %v77 = vld [vmem:[%s0 + $0x1f0] sm:$0xff]
  %v78 = vld [vmem:[%s0 + $0x1f8] sm:$0xff]
  %v79 = vld [vmem:[%s0 + $0x200] sm:$0xff]
  %v80 = vld [vmem:[%s0 + $0x208] sm:$0xff]
  %v81 = vld [vmem:[%s0 + $0x210] sm:$0xff]
  %v82 = vld [vmem:[%s0 + $0x218] sm:$0xff]
  %v83 = vld [vmem:[%s0 + $0x220] sm:$0xff]
  %v84 = vld [vmem:[%s0 + $0x228] sm:$0xff]
  %v85 = vld [vmem:[%s0 + $0x230] sm:$0xff]
  %v86 = vld [vmem:[%s0 + $0x238] sm:$0xff]
  %v87 = vld [vmem:[%s0 + $0x240] sm:$0xff]
  %v88 = vld [vmem:[%s0 + $0x248] sm:$0xff]
  %v89 = vld [vmem:[%s0 + $0x250] sm:$0xff]
  %v90 = vld [vmem:[%s0 + $0x258] sm:$0xff]
  %v91 = vld [vmem:[%s0 + $0x260] sm:$0xff]
  %v92 = vld [vmem:[%s0 + $0x268] sm:$0xff]
  %v93 = vld [vmem:[%s0 + $0x270] sm:$0xff]
  %v94 = vld [vmem:[%s0 + $0x278] sm:$0xff]
  %v95 = vld [vmem:[%s0 + $0x280] sm:$0xff]
  %v96 = vld [vmem:[%s0 + $0x288] sm:$0xff]
  %v97 = vld [vmem:[%s0 + $0x290] sm:$0xff]
  %v98 = vld [vmem:[%s0 + $0x298] sm:$0xff]
  %v99 = vld [vmem:[%s0 + $0x2a0] sm:$0xff]
  %v100 = vld [vmem:[%s0 + $0x2a8] sm:$0xff]
  %v101 = vld [vmem:[%s0 + $0x2b0] sm:$0xff]
  %v102 = vld [vmem:[%s0 + $0x2b8] sm:$0xff]
  %v103 = vld [vmem:[%s0 + $0x2c0] sm:$0xff]
  %v104 = vld [vmem:[%s0 + $0x2c8] sm:$0xff]
  %v105 = vld [vmem:[%s0 + $0x2d0] sm:$0xff]
  %v106 = vld [vmem:[%s0 + $0x2d8] sm:$0xff]
  %v107 = vld [vmem:[%s0 + $0x2e0] sm:$0xff]
  %v108 = vld [vmem:[%s0 + $0x2e8] sm:$0xff]
  %v109 = vld [vmem:[%s0 + $0x2f0] sm:$0xff]
  %v110 = vld [vmem:[%s0 + $0x2f8] sm:$0xff]
  %v111 = vld [vmem:[%s0 + $0x300] sm:$0xff]
  %v112 = vld [vmem:[%s0 + $0x308] sm:$0xff]
  %v113 = vld [vmem:[%s0 + $0x310] sm:$0xff]
  %v114 = vld [vmem:[%s0 + $0x318] sm:$0xff]
  %v115 = vld [vmem:[%s1] sm:$0xf]
  %v116 = vld [vmem:[%s1 + $0x4] sm:$0xf]
  %v117 = vld [vmem:[%s1 + $0x8] sm:$0xf]
  %v118 = vld [vmem:[%s1 + $0xc] sm:$0xf]
  %v119 = vld [vmem:[%s1 + $0x10] sm:$0xf]
  %v120 = vld [vmem:[%s1 + $0x14] sm:$0xf]
  %v121 = vld [vmem:[%s1 + $0x18] sm:$0xf]
  %v122 = vld [vmem:[%s1 + $0x1c] sm:$0xf]
  %v123 = vpack.c.bf16 %v16, %v15
  %v124 = vpack.c.bf16 %v18, %v17
  %v125 = vpack.c.bf16 %v20, %v19
  %v126 = vpack.c.bf16 %v22, %v21
  %v127 = vpack.c.bf16 %v24, %v23
  %v128 = vpack.c.bf16 %v26, %v25
  %v129 = vpack.c.bf16 %v28, %v27
  %v130 = vpack.c.bf16 %v30, %v29
  %v131 = vpack.c.bf16 %v32, %v31
  %v132 = vpack.c.bf16 %v34, %v33
  %v133 = vpack.c.bf16 %v36, %v35
  %v134 = vpack.c.bf16 %v38, %v37
  %v135 = vpack.c.bf16 %v40, %v39
  %v136 = vpack.c.bf16 %v42, %v41
  %v137 = vpack.c.bf16 %v44, %v43
  %v138 = vpack.c.bf16 %v46, %v45
  %v139 = vpack.c.bf16 %v48, %v47
  %v140 = vpack.c.bf16 %v50, %v49
  %v141 = vpack.c.bf16 %v52, %v51
  %v142 = vpack.c.bf16 %v54, %v53
  %v143 = vpack.c.bf16 %v56, %v55
  %v144 = vpack.c.bf16 %v58, %v57
  %v145 = vpack.c.bf16 %v60, %v59
  %v146 = vpack.c.bf16 %v62, %v61
  %v147 = vpack.c.bf16 %v64, %v63
  %v148 = vpack.c.bf16 %v66, %v65
  %v149 = vpack.c.bf16 %v68, %v67
  %v150 = vpack.c.bf16 %v70, %v69
  %v151 = vpack.c.bf16 %v72, %v71
  %v152 = vpack.c.bf16 %v74, %v73
  %v153 = vpack.c.bf16 %v76, %v75
  %v154 = vpack.c.bf16 %v78, %v77
  %v155 = vpack.c.bf16 %v80, %v79
  %v156 = vpack.c.bf16 %v82, %v81
  %v157 = vpack.c.bf16 %v84, %v83
  %v158 = vpack.c.bf16 %v86, %v85
  %v159 = vpack.c.bf16 %v88, %v87
  %v160 = vpack.c.bf16 %v90, %v89
  %v161 = vpack.c.bf16 %v92, %v91
  %v162 = vpack.c.bf16 %v94, %v93
  %v163 = vpack.c.bf16 %v96, %v95
  %v164 = vpack.c.bf16 %v98, %v97
  %v165 = vpack.c.bf16 %v100, %v99
  %v166 = vpack.c.bf16 %v102, %v101
  %v167 = vpack.c.bf16 %v104, %v103
  %v168 = vpack.c.bf16 %v106, %v105
  %v169 = vpack.c.bf16 %v108, %v107
  %v170 = vpack.c.bf16 %v110, %v109
  %v171 = vpack.c.bf16 %v112, %v111
  %v172 = vpack.c.bf16 %v114, %v113
  %v173 = vld [vmem:[%s2] sm:$0x1]
  %v175 = vlaneseq
  %v176 = vshrl.u32 %v175, 7
  %v177 = vsub.s32 0, %v176
  %v178 = vrot.slane %v173, %v177
  %v188 = vunpack.c.l.b16 %v115
  %v189 = vunpack.c.l.b16 %v116
  %v190 = vunpack.c.l.b16 %v117
  %v191 = vunpack.c.l.b16 %v118
  %v192 = vunpack.c.l.b16 %v119
  %v193 = vunpack.c.l.b16 %v120
  %v194 = vunpack.c.l.b16 %v121
  %v195 = vunpack.c.l.b16 %v122
  %v196 = vpack.c.b16 %v189, %v188
  %v197 = vpack.c.b16 %v191, %v190
  %v198 = vpack.c.b16 %v193, %v192
  %v199 = vpack.c.b16 %v195, %v194
  %vm204 = vcmask 523264
  %v206 = vsel %vm204, %v123, 0
  %v209 = vsel %vm204, %v124, 0
  %v212 = vsel %vm204, %v125, 0
  %v215 = vsel %vm204, %v126, 0
  %v218 = vsel %vm204, %v127, 0
  %v221 = vsel %vm204, %v128, 0
  %v224 = vsel %vm204, %v129, 0
  %v227 = vsel %vm204, %v130, 0
  %v230 = vsel %vm204, %v131, 0
  %v233 = vsel %vm204, %v132, 0
  %v236 = vsel %vm204, %v133, 0
  %v239 = vsel %vm204, %v134, 0
  %v242 = vsel %vm204, %v135, 0
  %v245 = vsel %vm204, %v136, 0
  %v248 = vsel %vm204, %v137, 0
  %v251 = vsel %vm204, %v138, 0
  %v254 = vsel %vm204, %v139, 0
  %v257 = vsel %vm204, %v140, 0
  %v260 = vsel %vm204, %v141, 0
  %v263 = vsel %vm204, %v142, 0
  %v266 = vsel %vm204, %v143, 0
  %v269 = vsel %vm204, %v144, 0
  %v272 = vsel %vm204, %v145, 0
  %v275 = vsel %vm204, %v146, 0
  %v278 = vsel %vm204, %v147, 0
  %v281 = vsel %vm204, %v148, 0
  %v284 = vsel %vm204, %v149, 0
  %v287 = vsel %vm204, %v150, 0
  %v290 = vsel %vm204, %v151, 0
  %v293 = vsel %vm204, %v152, 0
  %v296 = vsel %vm204, %v153, 0
  %v299 = vsel %vm204, %v154, 0
  %v302 = vsel %vm204, %v155, 0
  %v305 = vsel %vm204, %v156, 0
  %v308 = vsel %vm204, %v157, 0
  %v311 = vsel %vm204, %v158, 0
  %v314 = vsel %vm204, %v159, 0
  %v317 = vsel %vm204, %v160, 0
  %v320 = vsel %vm204, %v161, 0
  %v323 = vsel %vm204, %v162, 0
  %v326 = vsel %vm204, %v163, 0
  %v329 = vsel %vm204, %v164, 0
  %v332 = vsel %vm204, %v165, 0
  %v335 = vsel %vm204, %v166, 0
  %v338 = vsel %vm204, %v167, 0
  %v341 = vsel %vm204, %v168, 0
  %v344 = vsel %vm204, %v169, 0
  %v347 = vsel %vm204, %v170, 0
  %v350 = vsel %vm204, %v171, 0
  %v353 = vsel %vm204, %v172, 0
  %355 = vmatprep.subr.bf16.mxu0 0
  %356 = vmatpush1.bf16.msra.mxu0 0
  %357 = vmatprep.subr.bf16.mxu0 0
  %358 = vmatpush1.bf16.msra.mxu0 0
  %359 = vmatprep.subr.bf16.mxu0 0
  %360 = vmatpush1.bf16.msra.mxu0 0
  %361 = vmatprep.subr.bf16.mxu0 0
  %362 = vmatpush1.bf16.msra.mxu0 0
  %363 = vmatprep.subr.bf16.mxu0 0
  %364 = vmatpush1.bf16.msra.mxu0 %v199
  %365 = vmatprep.subr.bf16.mxu0 0
  %366 = vmatpush1.bf16.msra.mxu0 %v198
  %367 = vmatprep.subr.bf16.mxu0 0
  %368 = vmatpush1.bf16.msra.mxu0 %v197
  %369 = vmatprep.subr.bf16.mxu0 0
  %370 = vmatpush1.bf16.msra.mxu0 %v196
  %371 = vmatprep.subr.bf16.mxu0 0
  %372 = vmatpush2.bf16.msra.mxu0 0
  %373 = vmatprep.subr.bf16.mxu0 0
  %374 = vmatpush2.bf16.msra.mxu0 0
  %375 = vmatprep.subr.bf16.mxu0 0
  %376 = vmatpush2.bf16.msra.mxu0 0
  %377 = vmatprep.subr.bf16.mxu0 0
  %378 = vmatpush2.bf16.msra.mxu0 0
  %379 = vmatprep.subr.bf16.mxu0 0
  %380 = vmatpush2.bf16.msra.mxu0 0
  %381 = vmatprep.subr.bf16.mxu0 0
  %382 = vmatpush2.bf16.msra.mxu0 0
  %383 = vmatprep.subr.bf16.mxu0 0
  %384 = vmatpush2.bf16.msra.mxu0 0
  %385 = vmatprep.subr.bf16.mxu0 0
  %386 = vmatpush2.bf16.msra.mxu0 0
  %387 = vmatprep.mubr.bf16.mxu0 0
  %388 = vmatmul.mubr.bf16.gmra.mxu0 %v206
  %v389 = vpop.f32.mrf.mxu0
  %v390 = vadd.f32 %v178, %v389
  %v391 = vpop.f32.mrf.mxu0
  %v392 = vpop.f32.mrf.mxu0
  %v393 = vadd.f32 %v178, %v392
  %v394 = vpop.f32.mrf.mxu0
  %395 = vmatprep.mubr.bf16.mxu0 0
  %396 = vmatmul.mubr.bf16.gmra.mxu0 %v209
  %v397 = vpop.f32.mrf.mxu0
  %v398 = vadd.f32 %v178, %v397
  %v399 = vpop.f32.mrf.mxu0
  %v400 = vpop.f32.mrf.mxu0
  %v401 = vadd.f32 %v178, %v400
  %v402 = vpop.f32.mrf.mxu0
  %403 = vmatprep.mubr.bf16.mxu0 0
  %404 = vmatmul.mubr.bf16.gmra.mxu0 %v212
  %v405 = vpop.f32.mrf.mxu0
  %v406 = vadd.f32 %v178, %v405
  %v407 = vpop.f32.mrf.mxu0
  %v408 = vpop.f32.mrf.mxu0
  %v409 = vadd.f32 %v178, %v408
  %v410 = vpop.f32.mrf.mxu0
  %411 = vmatprep.mubr.bf16.mxu0 0
  %412 = vmatmul.mubr.bf16.gmra.mxu0 %v215
  %v413 = vpop.f32.mrf.mxu0
  %v414 = vadd.f32 %v178, %v413
  %v415 = vpop.f32.mrf.mxu0
  %v416 = vpop.f32.mrf.mxu0
  %v417 = vadd.f32 %v178, %v416
  %v418 = vpop.f32.mrf.mxu0
  %419 = vmatprep.mubr.bf16.mxu0 0
  %420 = vmatmul.mubr.bf16.gmra.mxu0 %v218
  %v421 = vpop.f32.mrf.mxu0
  %v422 = vadd.f32 %v178, %v421
  %v423 = vpop.f32.mrf.mxu0
  %v424 = vpop.f32.mrf.mxu0
  %v425 = vadd.f32 %v178, %v424
  %v426 = vpop.f32.mrf.mxu0
  %427 = vmatprep.mubr.bf16.mxu0 0
  %428 = vmatmul.mubr.bf16.gmra.mxu0 %v221
  %v429 = vpop.f32.mrf.mxu0
  %v430 = vadd.f32 %v178, %v429
  %v431 = vpop.f32.mrf.mxu0
  %v432 = vpop.f32.mrf.mxu0
  %v433 = vadd.f32 %v178, %v432
  %v434 = vpop.f32.mrf.mxu0
  %435 = vmatprep.mubr.bf16.mxu0 0
  %436 = vmatmul.mubr.bf16.gmra.mxu0 %v224
  %v437 = vpop.f32.mrf.mxu0
  %v438 = vadd.f32 %v178, %v437
  %v439 = vpop.f32.mrf.mxu0
  %v440 = vpop.f32.mrf.mxu0
  %v441 = vadd.f32 %v178, %v440
  %v442 = vpop.f32.mrf.mxu0
  %443 = vmatprep.mubr.bf16.mxu0 0
  %444 = vmatmul.mubr.bf16.gmra.mxu0 %v227
  %v445 = vpop.f32.mrf.mxu0
  %v446 = vadd.f32 %v178, %v445
  %v447 = vpop.f32.mrf.mxu0
  %v448 = vpop.f32.mrf.mxu0
  %v449 = vadd.f32 %v178, %v448
  %v450 = vpop.f32.mrf.mxu0
  %451 = vmatprep.mubr.bf16.mxu0 0
  %452 = vmatmul.mubr.bf16.gmra.mxu0 %v230
  %v453 = vpop.f32.mrf.mxu0
  %v454 = vadd.f32 %v178, %v453
  %v455 = vpop.f32.mrf.mxu0
  %v456 = vpop.f32.mrf.mxu0
  %v457 = vadd.f32 %v178, %v456
  %v458 = vpop.f32.mrf.mxu0
  %459 = vmatprep.mubr.bf16.mxu0 0
  %460 = vmatmul.mubr.bf16.gmra.mxu0 %v233
  %v461 = vpop.f32.mrf.mxu0
  %v462 = vadd.f32 %v178, %v461
  %v463 = vpop.f32.mrf.mxu0
  %v464 = vpop.f32.mrf.mxu0
  %v465 = vadd.f32 %v178, %v464
  %v466 = vpop.f32.mrf.mxu0
  %467 = vmatprep.mubr.bf16.mxu0 0
  %468 = vmatmul.mubr.bf16.gmra.mxu0 %v236
  %v469 = vpop.f32.mrf.mxu0
  %v470 = vadd.f32 %v178, %v469
  %v471 = vpop.f32.mrf.mxu0
  %v472 = vpop.f32.mrf.mxu0
  %v473 = vadd.f32 %v178, %v472
  %v474 = vpop.f32.mrf.mxu0
  %475 = vmatprep.mubr.bf16.mxu0 0
  %476 = vmatmul.mubr.bf16.gmra.mxu0 %v239
  %v477 = vpop.f32.mrf.mxu0
  %v478 = vadd.f32 %v178, %v477
  %v479 = vpop.f32.mrf.mxu0
  %v480 = vpop.f32.mrf.mxu0
  %v481 = vadd.f32 %v178, %v480
  %v482 = vpop.f32.mrf.mxu0
  %483 = vmatprep.mubr.bf16.mxu0 0
  %484 = vmatmul.mubr.bf16.gmra.mxu0 %v242
  %v485 = vpop.f32.mrf.mxu0
  %v486 = vadd.f32 %v178, %v485
  %v487 = vpop.f32.mrf.mxu0
  %v488 = vpop.f32.mrf.mxu0
  %v489 = vadd.f32 %v178, %v488
  %v490 = vpop.f32.mrf.mxu0
  %491 = vmatprep.mubr.bf16.mxu0 0
  %492 = vmatmul.mubr.bf16.gmra.mxu0 %v245
  %v493 = vpop.f32.mrf.mxu0
  %v494 = vadd.f32 %v178, %v493
  %v495 = vpop.f32.mrf.mxu0
  %v496 = vpop.f32.mrf.mxu0
  %v497 = vadd.f32 %v178, %v496
  %v498 = vpop.f32.mrf.mxu0
  %499 = vmatprep.mubr.bf16.mxu0 0
  %500 = vmatmul.mubr.bf16.gmra.mxu0 %v248
  %v501 = vpop.f32.mrf.mxu0
  %v502 = vadd.f32 %v178, %v501
  %v503 = vpop.f32.mrf.mxu0
  %v504 = vpop.f32.mrf.mxu0
  %v505 = vadd.f32 %v178, %v504
  %v506 = vpop.f32.mrf.mxu0
  %507 = vmatprep.mubr.bf16.mxu0 0
  %508 = vmatmul.mubr.bf16.gmra.mxu0 %v251
  %v509 = vpop.f32.mrf.mxu0
  %v510 = vadd.f32 %v178, %v509
  %v511 = vpop.f32.mrf.mxu0
  %v512 = vpop.f32.mrf.mxu0
  %v513 = vadd.f32 %v178, %v512
  %v514 = vpop.f32.mrf.mxu0
  %515 = vmatprep.mubr.bf16.mxu0 0
  %516 = vmatmul.mubr.bf16.gmra.mxu0 %v254
  %v517 = vpop.f32.mrf.mxu0
  %v518 = vadd.f32 %v178, %v517
  %v519 = vpop.f32.mrf.mxu0
  %v520 = vpop.f32.mrf.mxu0
  %v521 = vadd.f32 %v178, %v520
  %v522 = vpop.f32.mrf.mxu0
  %523 = vmatprep.mubr.bf16.mxu0 0
  %524 = vmatmul.mubr.bf16.gmra.mxu0 %v257
  %v525 = vpop.f32.mrf.mxu0
  %v526 = vadd.f32 %v178, %v525
  %v527 = vpop.f32.mrf.mxu0
  %v528 = vpop.f32.mrf.mxu0
  %v529 = vadd.f32 %v178, %v528
  %v530 = vpop.f32.mrf.mxu0
  %531 = vmatprep.mubr.bf16.mxu0 0
  %532 = vmatmul.mubr.bf16.gmra.mxu0 %v260
  %v533 = vpop.f32.mrf.mxu0
  %v534 = vadd.f32 %v178, %v533
  %v535 = vpop.f32.mrf.mxu0
  %v536 = vpop.f32.mrf.mxu0
  %v537 = vadd.f32 %v178, %v536
  %v538 = vpop.f32.mrf.mxu0
  %539 = vmatprep.mubr.bf16.mxu0 0
  %540 = vmatmul.mubr.bf16.gmra.mxu0 %v263
  %v541 = vpop.f32.mrf.mxu0
  %v542 = vadd.f32 %v178, %v541
  %v543 = vpop.f32.mrf.mxu0
  %v544 = vpop.f32.mrf.mxu0
  %v545 = vadd.f32 %v178, %v544
  %v546 = vpop.f32.mrf.mxu0
  %547 = vmatprep.mubr.bf16.mxu0 0
  %548 = vmatmul.mubr.bf16.gmra.mxu0 %v266
  %v549 = vpop.f32.mrf.mxu0
  %v550 = vadd.f32 %v178, %v549
  %v551 = vpop.f32.mrf.mxu0
  %v552 = vpop.f32.mrf.mxu0
  %v553 = vadd.f32 %v178, %v552
  %v554 = vpop.f32.mrf.mxu0
  %555 = vmatprep.mubr.bf16.mxu0 0
  %556 = vmatmul.mubr.bf16.gmra.mxu0 %v269
  %v557 = vpop.f32.mrf.mxu0
  %v558 = vadd.f32 %v178, %v557
  %v559 = vpop.f32.mrf.mxu0
  %v560 = vpop.f32.mrf.mxu0
  %v561 = vadd.f32 %v178, %v560
  %v562 = vpop.f32.mrf.mxu0
  %563 = vmatprep.mubr.bf16.mxu0 0
  %564 = vmatmul.mubr.bf16.gmra.mxu0 %v272
  %v565 = vpop.f32.mrf.mxu0
  %v566 = vadd.f32 %v178, %v565
  %v567 = vpop.f32.mrf.mxu0
  %v568 = vpop.f32.mrf.mxu0
  %v569 = vadd.f32 %v178, %v568
  %v570 = vpop.f32.mrf.mxu0
  %571 = vmatprep.mubr.bf16.mxu0 0
  %572 = vmatmul.mubr.bf16.gmra.mxu0 %v275
  %v573 = vpop.f32.mrf.mxu0
  %v574 = vadd.f32 %v178, %v573
  %v575 = vpop.f32.mrf.mxu0
  %v576 = vpop.f32.mrf.mxu0
  %v577 = vadd.f32 %v178, %v576
  %v578 = vpop.f32.mrf.mxu0
  %579 = vmatprep.mubr.bf16.mxu0 0
  %580 = vmatmul.mubr.bf16.gmra.mxu0 %v278
  %v581 = vpop.f32.mrf.mxu0
  %v582 = vadd.f32 %v178, %v581
  %v583 = vpop.f32.mrf.mxu0
  %v584 = vpop.f32.mrf.mxu0
  %v585 = vadd.f32 %v178, %v584
  %v586 = vpop.f32.mrf.mxu0
  %587 = vmatprep.mubr.bf16.mxu0 0
  %588 = vmatmul.mubr.bf16.gmra.mxu0 %v281
  %v589 = vpop.f32.mrf.mxu0
  %v590 = vadd.f32 %v178, %v589
  %v591 = vpop.f32.mrf.mxu0
  %v592 = vpop.f32.mrf.mxu0
  %v593 = vadd.f32 %v178, %v592
  %v594 = vpop.f32.mrf.mxu0
  %595 = vmatprep.mubr.bf16.mxu0 0
  %596 = vmatmul.mubr.bf16.gmra.mxu0 %v284
  %v597 = vpop.f32.mrf.mxu0
  %v598 = vadd.f32 %v178, %v597
  %v599 = vpop.f32.mrf.mxu0
  %v600 = vpop.f32.mrf.mxu0
  %v601 = vadd.f32 %v178, %v600
  %v602 = vpop.f32.mrf.mxu0
  %603 = vmatprep.mubr.bf16.mxu0 0
  %604 = vmatmul.mubr.bf16.gmra.mxu0 %v287
  %v605 = vpop.f32.mrf.mxu0
  %v606 = vadd.f32 %v178, %v605
  %v607 = vpop.f32.mrf.mxu0
  %v608 = vpop.f32.mrf.mxu0
  %v609 = vadd.f32 %v178, %v608
  %v610 = vpop.f32.mrf.mxu0
  %611 = vmatprep.mubr.bf16.mxu0 0
  %612 = vmatmul.mubr.bf16.gmra.mxu0 %v290
  %v613 = vpop.f32.mrf.mxu0
  %v614 = vadd.f32 %v178, %v613
  %v615 = vpop.f32.mrf.mxu0
  %v616 = vpop.f32.mrf.mxu0
  %v617 = vadd.f32 %v178, %v616
  %v618 = vpop.f32.mrf.mxu0
  %619 = vmatprep.mubr.bf16.mxu0 0
  %620 = vmatmul.mubr.bf16.gmra.mxu0 %v293
  %v621 = vpop.f32.mrf.mxu0
  %v622 = vadd.f32 %v178, %v621
  %v623 = vpop.f32.mrf.mxu0
  %v624 = vpop.f32.mrf.mxu0
  %v625 = vadd.f32 %v178, %v624
  %v626 = vpop.f32.mrf.mxu0
  %627 = vmatprep.mubr.bf16.mxu0 0
  %628 = vmatmul.mubr.bf16.gmra.mxu0 %v296
  %v629 = vpop.f32.mrf.mxu0
  %v630 = vadd.f32 %v178, %v629
  %v631 = vpop.f32.mrf.mxu0
  %v632 = vpop.f32.mrf.mxu0
  %v633 = vadd.f32 %v178, %v632
  %v634 = vpop.f32.mrf.mxu0
  %635 = vmatprep.mubr.bf16.mxu0 0
  %636 = vmatmul.mubr.bf16.gmra.mxu0 %v299
  %v637 = vpop.f32.mrf.mxu0
  %v638 = vadd.f32 %v178, %v637
  %v639 = vpop.f32.mrf.mxu0
  %v640 = vpop.f32.mrf.mxu0
  %v641 = vadd.f32 %v178, %v640
  %v642 = vpop.f32.mrf.mxu0
  %643 = vmatprep.mubr.bf16.mxu0 0
  %644 = vmatmul.mubr.bf16.gmra.mxu0 %v302
  %v645 = vpop.f32.mrf.mxu0
  %v646 = vadd.f32 %v178, %v645
  %v647 = vpop.f32.mrf.mxu0
  %v648 = vpop.f32.mrf.mxu0
  %v649 = vadd.f32 %v178, %v648
  %v650 = vpop.f32.mrf.mxu0
  %651 = vmatprep.mubr.bf16.mxu0 0
  %652 = vmatmul.mubr.bf16.gmra.mxu0 %v305
  %v653 = vpop.f32.mrf.mxu0
  %v654 = vadd.f32 %v178, %v653
  %v655 = vpop.f32.mrf.mxu0
  %v656 = vpop.f32.mrf.mxu0
  %v657 = vadd.f32 %v178, %v656
  %v658 = vpop.f32.mrf.mxu0
  %659 = vmatprep.mubr.bf16.mxu0 0
  %660 = vmatmul.mubr.bf16.gmra.mxu0 %v308
  %v661 = vpop.f32.mrf.mxu0
  %v662 = vadd.f32 %v178, %v661
  %v663 = vpop.f32.mrf.mxu0
  %v664 = vpop.f32.mrf.mxu0
  %v665 = vadd.f32 %v178, %v664
  %v666 = vpop.f32.mrf.mxu0
  %667 = vmatprep.mubr.bf16.mxu0 0
  %668 = vmatmul.mubr.bf16.gmra.mxu0 %v311
  %v669 = vpop.f32.mrf.mxu0
  %v670 = vadd.f32 %v178, %v669
  %v671 = vpop.f32.mrf.mxu0
  %v672 = vpop.f32.mrf.mxu0
  %v673 = vadd.f32 %v178, %v672
  %v674 = vpop.f32.mrf.mxu0
  %675 = vmatprep.mubr.bf16.mxu0 0
  %676 = vmatmul.mubr.bf16.gmra.mxu0 %v314
  %v677 = vpop.f32.mrf.mxu0
  %v678 = vadd.f32 %v178, %v677
  %v679 = vpop.f32.mrf.mxu0
  %v680 = vpop.f32.mrf.mxu0
  %v681 = vadd.f32 %v178, %v680
  %v682 = vpop.f32.mrf.mxu0
  %683 = vmatprep.mubr.bf16.mxu0 0
  %684 = vmatmul.mubr.bf16.gmra.mxu0 %v317
  %v685 = vpop.f32.mrf.mxu0
  %v686 = vadd.f32 %v178, %v685
  %v687 = vpop.f32.mrf.mxu0
  %v688 = vpop.f32.mrf.mxu0
  %v689 = vadd.f32 %v178, %v688
  %v690 = vpop.f32.mrf.mxu0
  %691 = vmatprep.mubr.bf16.mxu0 0
  %692 = vmatmul.mubr.bf16.gmra.mxu0 %v320
  %v693 = vpop.f32.mrf.mxu0
  %v694 = vadd.f32 %v178, %v693
  %v695 = vpop.f32.mrf.mxu0
  %v696 = vpop.f32.mrf.mxu0
  %v697 = vadd.f32 %v178, %v696
  %v698 = vpop.f32.mrf.mxu0
  %699 = vmatprep.mubr.bf16.mxu0 0
  %700 = vmatmul.mubr.bf16.gmra.mxu0 %v323
  %v701 = vpop.f32.mrf.mxu0
  %v702 = vadd.f32 %v178, %v701
  %v703 = vpop.f32.mrf.mxu0
  %v704 = vpop.f32.mrf.mxu0
  %v705 = vadd.f32 %v178, %v704
  %v706 = vpop.f32.mrf.mxu0
  %707 = vmatprep.mubr.bf16.mxu0 0
  %708 = vmatmul.mubr.bf16.gmra.mxu0 %v326
  %v709 = vpop.f32.mrf.mxu0
  %v710 = vadd.f32 %v178, %v709
  %v711 = vpop.f32.mrf.mxu0
  %v712 = vpop.f32.mrf.mxu0
  %v713 = vadd.f32 %v178, %v712
  %v714 = vpop.f32.mrf.mxu0
  %715 = vmatprep.mubr.bf16.mxu0 0
  %716 = vmatmul.mubr.bf16.gmra.mxu0 %v329
  %v717 = vpop.f32.mrf.mxu0
  %v718 = vadd.f32 %v178, %v717
  %v719 = vpop.f32.mrf.mxu0
  %v720 = vpop.f32.mrf.mxu0
  %v721 = vadd.f32 %v178, %v720
  %v722 = vpop.f32.mrf.mxu0
  %723 = vmatprep.mubr.bf16.mxu0 0
  %724 = vmatmul.mubr.bf16.gmra.mxu0 %v332
  %v725 = vpop.f32.mrf.mxu0
  %v726 = vadd.f32 %v178, %v725
  %v727 = vpop.f32.mrf.mxu0
  %v728 = vpop.f32.mrf.mxu0
  %v729 = vadd.f32 %v178, %v728
  %v730 = vpop.f32.mrf.mxu0
  %731 = vmatprep.mubr.bf16.mxu0 0
  %732 = vmatmul.mubr.bf16.gmra.mxu0 %v335
  %v733 = vpop.f32.mrf.mxu0
  %v734 = vadd.f32 %v178, %v733
  %v735 = vpop.f32.mrf.mxu0
  %v736 = vpop.f32.mrf.mxu0
  %v737 = vadd.f32 %v178, %v736
  %v738 = vpop.f32.mrf.mxu0
  %739 = vmatprep.mubr.bf16.mxu0 0
  %740 = vmatmul.mubr.bf16.gmra.mxu0 %v338
  %v741 = vpop.f32.mrf.mxu0
  %v742 = vadd.f32 %v178, %v741
  %v743 = vpop.f32.mrf.mxu0
  %v744 = vpop.f32.mrf.mxu0
  %v745 = vadd.f32 %v178, %v744
  %v746 = vpop.f32.mrf.mxu0
  %747 = vmatprep.mubr.bf16.mxu0 0
  %748 = vmatmul.mubr.bf16.gmra.mxu0 %v341
  %v749 = vpop.f32.mrf.mxu0
  %v750 = vadd.f32 %v178, %v749
  %v751 = vpop.f32.mrf.mxu0
  %v752 = vpop.f32.mrf.mxu0
  %v753 = vadd.f32 %v178, %v752
  %v754 = vpop.f32.mrf.mxu0
  %755 = vmatprep.mubr.bf16.mxu0 0
  %756 = vmatmul.mubr.bf16.gmra.mxu0 %v344
  %v757 = vpop.f32.mrf.mxu0
  %v758 = vadd.f32 %v178, %v757
  %v759 = vpop.f32.mrf.mxu0
  %v760 = vpop.f32.mrf.mxu0
  %v761 = vadd.f32 %v178, %v760
  %v762 = vpop.f32.mrf.mxu0
  %763 = vmatprep.mubr.bf16.mxu0 0
  %764 = vmatmul.mubr.bf16.gmra.mxu0 %v347
  %v765 = vpop.f32.mrf.mxu0
  %v766 = vadd.f32 %v178, %v765
  %v767 = vpop.f32.mrf.mxu0
  %v768 = vpop.f32.mrf.mxu0
  %v769 = vadd.f32 %v178, %v768
  %v770 = vpop.f32.mrf.mxu0
  %771 = vmatprep.mubr.bf16.mxu0 0
  %772 = vmatmul.mubr.bf16.gmra.mxu0 %v350
  %v773 = vpop.f32.mrf.mxu0
  %v774 = vadd.f32 %v178, %v773
  %v775 = vpop.f32.mrf.mxu0
  %v776 = vpop.f32.mrf.mxu0
  %v777 = vadd.f32 %v178, %v776
  %v778 = vpop.f32.mrf.mxu0
  %779 = vmatprep.mubr.bf16.mxu0 0
  %780 = vmatmul.mubr.bf16.gmra.mxu0 %v353
  %v781 = vpop.f32.mrf.mxu0
  %v782 = vadd.f32 %v178, %v781
  %v783 = vpop.f32.mrf.mxu0
  %v784 = vpop.f32.mrf.mxu0
  %v785 = vadd.f32 %v178, %v784
  %v786 = vpop.f32.mrf.mxu0
  %787 = vdwg.mxu0
  %vm788 = vcmp.gt.f32.partialorder %v390, 0.0
  %vm789 = vcmp.gt.f32.partialorder %v393, 0.0
  %vm790 = vcmp.gt.f32.partialorder %v398, 0.0
  %vm791 = vcmp.gt.f32.partialorder %v401, 0.0
  %vm792 = vcmp.gt.f32.partialorder %v406, 0.0
  %vm793 = vcmp.gt.f32.partialorder %v409, 0.0
  %vm794 = vcmp.gt.f32.partialorder %v414, 0.0
  %vm795 = vcmp.gt.f32.partialorder %v417, 0.0
  %vm796 = vcmp.gt.f32.partialorder %v422, 0.0
  %vm797 = vcmp.gt.f32.partialorder %v425, 0.0
  %vm798 = vcmp.gt.f32.partialorder %v430, 0.0
  %vm799 = vcmp.gt.f32.partialorder %v433, 0.0
  %vm800 = vcmp.gt.f32.partialorder %v438, 0.0
  %vm801 = vcmp.gt.f32.partialorder %v441, 0.0
  %vm802 = vcmp.gt.f32.partialorder %v446, 0.0
  %vm803 = vcmp.gt.f32.partialorder %v449, 0.0
  %vm804 = vcmp.gt.f32.partialorder %v454, 0.0
  %vm805 = vcmp.gt.f32.partialorder %v457, 0.0
  %vm806 = vcmp.gt.f32.partialorder %v462, 0.0
  %vm807 = vcmp.gt.f32.partialorder %v465, 0.0
  %vm808 = vcmp.gt.f32.partialorder %v470, 0.0
  %vm809 = vcmp.gt.f32.partialorder %v473, 0.0
  %vm810 = vcmp.gt.f32.partialorder %v478, 0.0
  %vm811 = vcmp.gt.f32.partialorder %v481, 0.0
  %vm812 = vcmp.gt.f32.partialorder %v486, 0.0
  %vm813 = vcmp.gt.f32.partialorder %v489, 0.0
  %vm814 = vcmp.gt.f32.partialorder %v494, 0.0
  %vm815 = vcmp.gt.f32.partialorder %v497, 0.0
  %vm816 = vcmp.gt.f32.partialorder %v502, 0.0
  %vm817 = vcmp.gt.f32.partialorder %v505, 0.0
  %vm818 = vcmp.gt.f32.partialorder %v510, 0.0
  %vm819 = vcmp.gt.f32.partialorder %v513, 0.0
  %vm820 = vcmp.gt.f32.partialorder %v518, 0.0
  %vm821 = vcmp.gt.f32.partialorder %v521, 0.0
  %vm822 = vcmp.gt.f32.partialorder %v526, 0.0
  %vm823 = vcmp.gt.f32.partialorder %v529, 0.0
  %vm824 = vcmp.gt.f32.partialorder %v534, 0.0
  %vm825 = vcmp.gt.f32.partialorder %v537, 0.0
  %vm826 = vcmp.gt.f32.partialorder %v542, 0.0
  %vm827 = vcmp.gt.f32.partialorder %v545, 0.0
  %vm828 = vcmp.gt.f32.partialorder %v550, 0.0
  %vm829 = vcmp.gt.f32.partialorder %v553, 0.0
  %vm830 = vcmp.gt.f32.partialorder %v558, 0.0
  %vm831 = vcmp.gt.f32.partialorder %v561, 0.0
  %vm832 = vcmp.gt.f32.partialorder %v566, 0.0
  %vm833 = vcmp.gt.f32.partialorder %v569, 0.0
  %vm834 = vcmp.gt.f32.partialorder %v574, 0.0
  %vm835 = vcmp.gt.f32.partialorder %v577, 0.0
  %vm836 = vcmp.gt.f32.partialorder %v582, 0.0
  %vm837 = vcmp.gt.f32.partialorder %v585, 0.0
  %vm838 = vcmp.gt.f32.partialorder %v590, 0.0
  %vm839 = vcmp.gt.f32.partialorder %v593, 0.0
  %vm840 = vcmp.gt.f32.partialorder %v598, 0.0
  %vm841 = vcmp.gt.f32.partialorder %v601, 0.0
  %vm842 = vcmp.gt.f32.partialorder %v606, 0.0
  %vm843 = vcmp.gt.f32.partialorder %v609, 0.0
  %vm844 = vcmp.gt.f32.partialorder %v614, 0.0
  %vm845 = vcmp.gt.f32.partialorder %v617, 0.0
  %vm846 = vcmp.gt.f32.partialorder %v622, 0.0
  %vm847 = vcmp.gt.f32.partialorder %v625, 0.0
  %vm848 = vcmp.gt.f32.partialorder %v630, 0.0
  %vm849 = vcmp.gt.f32.partialorder %v633, 0.0
  %vm850 = vcmp.gt.f32.partialorder %v638, 0.0
  %vm851 = vcmp.gt.f32.partialorder %v641, 0.0
  %vm852 = vcmp.gt.f32.partialorder %v646, 0.0
  %vm853 = vcmp.gt.f32.partialorder %v649, 0.0
  %vm854 = vcmp.gt.f32.partialorder %v654, 0.0
  %vm855 = vcmp.gt.f32.partialorder %v657, 0.0
  %vm856 = vcmp.gt.f32.partialorder %v662, 0.0
  %vm857 = vcmp.gt.f32.partialorder %v665, 0.0
  %vm858 = vcmp.gt.f32.partialorder %v670, 0.0
  %vm859 = vcmp.gt.f32.partialorder %v673, 0.0
  %vm860 = vcmp.gt.f32.partialorder %v678, 0.0
  %vm861 = vcmp.gt.f32.partialorder %v681, 0.0
  %vm862 = vcmp.gt.f32.partialorder %v686, 0.0
  %vm863 = vcmp.gt.f32.partialorder %v689, 0.0
  %vm864 = vcmp.gt.f32.partialorder %v694, 0.0
  %vm865 = vcmp.gt.f32.partialorder %v697, 0.0
  %vm866 = vcmp.gt.f32.partialorder %v702, 0.0
  %vm867 = vcmp.gt.f32.partialorder %v705, 0.0
  %vm868 = vcmp.gt.f32.partialorder %v710, 0.0
  %vm869 = vcmp.gt.f32.partialorder %v713, 0.0
  %vm870 = vcmp.gt.f32.partialorder %v718, 0.0
  %vm871 = vcmp.gt.f32.partialorder %v721, 0.0
  %vm872 = vcmp.gt.f32.partialorder %v726, 0.0
  %vm873 = vcmp.gt.f32.partialorder %v729, 0.0
  %vm874 = vcmp.gt.f32.partialorder %v734, 0.0
  %vm875 = vcmp.gt.f32.partialorder %v737, 0.0
  %vm876 = vcmp.gt.f32.partialorder %v742, 0.0
  %vm877 = vcmp.gt.f32.partialorder %v745, 0.0
  %vm878 = vcmp.gt.f32.partialorder %v750, 0.0
  %vm879 = vcmp.gt.f32.partialorder %v753, 0.0
  %vm880 = vcmp.gt.f32.partialorder %v758, 0.0
  %vm881 = vcmp.gt.f32.partialorder %v761, 0.0
  %vm882 = vcmp.gt.f32.partialorder %v766, 0.0
  %vm883 = vcmp.gt.f32.partialorder %v769, 0.0
  %vm884 = vcmp.gt.f32.partialorder %v774, 0.0
  %vm885 = vcmp.gt.f32.partialorder %v777, 0.0
  %vm886 = vcmp.gt.f32.partialorder %v782, 0.0
  %vm887 = vcmp.gt.f32.partialorder %v785, 0.0
  %v888 = vmul.f32 %v390, 0.01
  %v889 = vmul.f32 %v393, 0.01
  %v890 = vmul.f32 %v398, 0.01
  %v891 = vmul.f32 %v401, 0.01
  %v892 = vmul.f32 %v406, 0.01
  %v893 = vmul.f32 %v409, 0.01
  %v894 = vmul.f32 %v414, 0.01
  %v895 = vmul.f32 %v417, 0.01
  %v896 = vmul.f32 %v422, 0.01
  %v897 = vmul.f32 %v425, 0.01
  %v898 = vmul.f32 %v430, 0.01
  %v899 = vmul.f32 %v433, 0.01
  %v900 = vmul.f32 %v438, 0.01
  %v901 = vmul.f32 %v441, 0.01
  %v902 = vmul.f32 %v446, 0.01
  %v903 = vmul.f32 %v449, 0.01
  %v904 = vmul.f32 %v454, 0.01
  %v905 = vmul.f32 %v457, 0.01
  %v906 = vmul.f32 %v462, 0.01
  %v907 = vmul.f32 %v465, 0.01
  %v908 = vmul.f32 %v470, 0.01
  %v909 = vmul.f32 %v473, 0.01
  %v910 = vmul.f32 %v478, 0.01
  %v911 = vmul.f32 %v481, 0.01
  %v912 = vmul.f32 %v486, 0.01
  %v913 = vmul.f32 %v489, 0.01
  %v914 = vmul.f32 %v494, 0.01
  %v915 = vmul.f32 %v497, 0.01
  %v916 = vmul.f32 %v502, 0.01
  %v917 = vmul.f32 %v505, 0.01
  %v918 = vmul.f32 %v510, 0.01
  %v919 = vmul.f32 %v513, 0.01
  %v920 = vmul.f32 %v518, 0.01
  %v921 = vmul.f32 %v521, 0.01
  %v922 = vmul.f32 %v526, 0.01
  %v923 = vmul.f32 %v529, 0.01
  %v924 = vmul.f32 %v534, 0.01
  %v925 = vmul.f32 %v537, 0.01
  %v926 = vmul.f32 %v542, 0.01
  %v927 = vmul.f32 %v545, 0.01
  %v928 = vmul.f32 %v550, 0.01
  %v929 = vmul.f32 %v553, 0.01
  %v930 = vmul.f32 %v558, 0.01
  %v931 = vmul.f32 %v561, 0.01
  %v932 = vmul.f32 %v566, 0.01
  %v933 = vmul.f32 %v569, 0.01
  %v934 = vmul.f32 %v574, 0.01
  %v935 = vmul.f32 %v577, 0.01
  %v936 = vmul.f32 %v582, 0.01
  %v937 = vmul.f32 %v585, 0.01
  %v938 = vmul.f32 %v590, 0.01
  %v939 = vmul.f32 %v593, 0.01
  %v940 = vmul.f32 %v598, 0.01
  %v941 = vmul.f32 %v601, 0.01
  %v942 = vmul.f32 %v606, 0.01
  %v943 = vmul.f32 %v609, 0.01
  %v944 = vmul.f32 %v614, 0.01
  %v945 = vmul.f32 %v617, 0.01
  %v946 = vmul.f32 %v622, 0.01
  %v947 = vmul.f32 %v625, 0.01
  %v948 = vmul.f32 %v630, 0.01
  %v949 = vmul.f32 %v633, 0.01
  %v950 = vmul.f32 %v638, 0.01
  %v951 = vmul.f32 %v641, 0.01
  %v952 = vmul.f32 %v646, 0.01
  %v953 = vmul.f32 %v649, 0.01
  %v954 = vmul.f32 %v654, 0.01
  %v955 = vmul.f32 %v657, 0.01
  %v956 = vmul.f32 %v662, 0.01
  %v957 = vmul.f32 %v665, 0.01
  %v958 = vmul.f32 %v670, 0.01
  %v959 = vmul.f32 %v673, 0.01
  %v960 = vmul.f32 %v678, 0.01
  %v961 = vmul.f32 %v681, 0.01
  %v962 = vmul.f32 %v686, 0.01
  %v963 = vmul.f32 %v689, 0.01
  %v964 = vmul.f32 %v694, 0.01
  %v965 = vmul.f32 %v697, 0.01
  %v966 = vmul.f32 %v702, 0.01
  %v967 = vmul.f32 %v705, 0.01
  %v968 = vmul.f32 %v710, 0.01
  %v969 = vmul.f32 %v713, 0.01
  %v970 = vmul.f32 %v718, 0.01
  %v971 = vmul.f32 %v721, 0.01
  %v972 = vmul.f32 %v726, 0.01
  %v973 = vmul.f32 %v729, 0.01
  %v974 = vmul.f32 %v734, 0.01
  %v975 = vmul.f32 %v737, 0.01
  %v976 = vmul.f32 %v742, 0.01
  %v977 = vmul.f32 %v745, 0.01
  %v978 = vmul.f32 %v750, 0.01
  %v979 = vmul.f32 %v753, 0.01
  %v980 = vmul.f32 %v758, 0.01
  %v981 = vmul.f32 %v761, 0.01
  %v982 = vmul.f32 %v766, 0.01
  %v983 = vmul.f32 %v769, 0.01
  %v984 = vmul.f32 %v774, 0.01
  %v985 = vmul.f32 %v777, 0.01
  %v986 = vmul.f32 %v782, 0.01
  %v987 = vmul.f32 %v785, 0.01
  %v988 = vsel %vm788, %v390, %v888
  %v989 = vsel %vm789, %v393, %v889
  %v990 = vsel %vm790, %v398, %v890
  %v991 = vsel %vm791, %v401, %v891
  %v992 = vsel %vm792, %v406, %v892
  %v993 = vsel %vm793, %v409, %v893
  %v994 = vsel %vm794, %v414, %v894
  %v995 = vsel %vm795, %v417, %v895
  %v996 = vsel %vm796, %v422, %v896
  %v997 = vsel %vm797, %v425, %v897
  %v998 = vsel %vm798, %v430, %v898
  %v999 = vsel %vm799, %v433, %v899
  %v1000 = vsel %vm800, %v438, %v900
  %v1001 = vsel %vm801, %v441, %v901
  %v1002 = vsel %vm802, %v446, %v902
  %v1003 = vsel %vm803, %v449, %v903
  %v1004 = vsel %vm804, %v454, %v904
  %v1005 = vsel %vm805, %v457, %v905
  %v1006 = vsel %vm806, %v462, %v906
  %v1007 = vsel %vm807, %v465, %v907
  %v1008 = vsel %vm808, %v470, %v908
  %v1009 = vsel %vm809, %v473, %v909
  %v1010 = vsel %vm810, %v478, %v910
  %v1011 = vsel %vm811, %v481, %v911
  %v1012 = vsel %vm812, %v486, %v912
  %v1013 = vsel %vm813, %v489, %v913
  %v1014 = vsel %vm814, %v494, %v914
  %v1015 = vsel %vm815, %v497, %v915
  %v1016 = vsel %vm816, %v502, %v916
  %v1017 = vsel %vm817, %v505, %v917
  %v1018 = vsel %vm818, %v510, %v918
  %v1019 = vsel %vm819, %v513, %v919
  %v1020 = vsel %vm820, %v518, %v920
  %v1021 = vsel %vm821, %v521, %v921
  %v1022 = vsel %vm822, %v526, %v922
  %v1023 = vsel %vm823, %v529, %v923
  %v1024 = vsel %vm824, %v534, %v924
  %v1025 = vsel %vm825, %v537, %v925
  %v1026 = vsel %vm826, %v542, %v926
  %v1027 = vsel %vm827, %v545, %v927
  %v1028 = vsel %vm828, %v550, %v928
  %v1029 = vsel %vm829, %v553, %v929
  %v1030 = vsel %vm830, %v558, %v930
  %v1031 = vsel %vm831, %v561, %v931
  %v1032 = vsel %vm832, %v566, %v932
  %v1033 = vsel %vm833, %v569, %v933
  %v1034 = vsel %vm834, %v574, %v934
  %v1035 = vsel %vm835, %v577, %v935
  %v1036 = vsel %vm836, %v582, %v936
  %v1037 = vsel %vm837, %v585, %v937
  %v1038 = vsel %vm838, %v590, %v938
  %v1039 = vsel %vm839, %v593, %v939
  %v1040 = vsel %vm840, %v598, %v940
  %v1041 = vsel %vm841, %v601, %v941
  %v1042 = vsel %vm842, %v606, %v942
  %v1043 = vsel %vm843, %v609, %v943
  %v1044 = vsel %vm844, %v614, %v944
  %v1045 = vsel %vm845, %v617, %v945
  %v1046 = vsel %vm846, %v622, %v946
  %v1047 = vsel %vm847, %v625, %v947
  %v1048 = vsel %vm848, %v630, %v948
  %v1049 = vsel %vm849, %v633, %v949
  %v1050 = vsel %vm850, %v638, %v950
  %v1051 = vsel %vm851, %v641, %v951
  %v1052 = vsel %vm852, %v646, %v952
  %v1053 = vsel %vm853, %v649, %v953
  %v1054 = vsel %vm854, %v654, %v954
  %v1055 = vsel %vm855, %v657, %v955
  %v1056 = vsel %vm856, %v662, %v956
  %v1057 = vsel %vm857, %v665, %v957
  %v1058 = vsel %vm858, %v670, %v958
  %v1059 = vsel %vm859, %v673, %v959
  %v1060 = vsel %vm860, %v678, %v960
  %v1061 = vsel %vm861, %v681, %v961
  %v1062 = vsel %vm862, %v686, %v962
  %v1063 = vsel %vm863, %v689, %v963
  %v1064 = vsel %vm864, %v694, %v964
  %v1065 = vsel %vm865, %v697, %v965
  %v1066 = vsel %vm866, %v702, %v966
  %v1067 = vsel %vm867, %v705, %v967
  %v1068 = vsel %vm868, %v710, %v968
  %v1069 = vsel %vm869, %v713, %v969
  %v1070 = vsel %vm870, %v718, %v970
  %v1071 = vsel %vm871, %v721, %v971
  %v1072 = vsel %vm872, %v726, %v972
  %v1073 = vsel %vm873, %v729, %v973
  %v1074 = vsel %vm874, %v734, %v974
  %v1075 = vsel %vm875, %v737, %v975
  %v1076 = vsel %vm876, %v742, %v976
  %v1077 = vsel %vm877, %v745, %v977
  %v1078 = vsel %vm878, %v750, %v978
  %v1079 = vsel %vm879, %v753, %v979
  %v1080 = vsel %vm880, %v758, %v980
  %v1081 = vsel %vm881, %v761, %v981
  %v1082 = vsel %vm882, %v766, %v982
  %v1083 = vsel %vm883, %v769, %v983
  %v1084 = vsel %vm884, %v774, %v984
  %v1085 = vsel %vm885, %v777, %v985
  %v1086 = vsel %vm886, %v782, %v986
  %v1087 = vsel %vm887, %v785, %v987
  %v1088 = vpack.c.bf16 %v989, %v988
  %v1089 = vpack.c.bf16 %v991, %v990
  %v1090 = vpack.c.bf16 %v993, %v992
  %v1091 = vpack.c.bf16 %v995, %v994
  %v1092 = vpack.c.bf16 %v997, %v996
  %v1093 = vpack.c.bf16 %v999, %v998
  %v1094 = vpack.c.bf16 %v1001, %v1000
  %v1095 = vpack.c.bf16 %v1003, %v1002
  %v1096 = vpack.c.bf16 %v1005, %v1004
  %v1097 = vpack.c.bf16 %v1007, %v1006
  %v1098 = vpack.c.bf16 %v1009, %v1008
  %v1099 = vpack.c.bf16 %v1011, %v1010
  %v1100 = vpack.c.bf16 %v1013, %v1012
  %v1101 = vpack.c.bf16 %v1015, %v1014
  %v1102 = vpack.c.bf16 %v1017, %v1016
  %v1103 = vpack.c.bf16 %v1019, %v1018
  %v1104 = vpack.c.bf16 %v1021, %v1020
  %v1105 = vpack.c.bf16 %v1023, %v1022
  %v1106 = vpack.c.bf16 %v1025, %v1024
  %v1107 = vpack.c.bf16 %v1027, %v1026
  %v1108 = vpack.c.bf16 %v1029, %v1028
  %v1109 = vpack.c.bf16 %v1031, %v1030
  %v1110 = vpack.c.bf16 %v1033, %v1032
  %v1111 = vpack.c.bf16 %v1035, %v1034
  %v1112 = vpack.c.bf16 %v1037, %v1036
  %v1113 = vpack.c.bf16 %v1039, %v1038
  %v1114 = vpack.c.bf16 %v1041, %v1040
  %v1115 = vpack.c.bf16 %v1043, %v1042
  %v1116 = vpack.c.bf16 %v1045, %v1044
  %v1117 = vpack.c.bf16 %v1047, %v1046
  %v1118 = vpack.c.bf16 %v1049, %v1048
  %v1119 = vpack.c.bf16 %v1051, %v1050
  %v1120 = vpack.c.bf16 %v1053, %v1052
  %v1121 = vpack.c.bf16 %v1055, %v1054
  %v1122 = vpack.c.bf16 %v1057, %v1056
  %v1123 = vpack.c.bf16 %v1059, %v1058
  %v1124 = vpack.c.bf16 %v1061, %v1060
  %v1125 = vpack.c.bf16 %v1063, %v1062
  %v1126 = vpack.c.bf16 %v1065, %v1064
  %v1127 = vpack.c.bf16 %v1067, %v1066
  %v1128 = vpack.c.bf16 %v1069, %v1068
  %v1129 = vpack.c.bf16 %v1071, %v1070
  %v1130 = vpack.c.bf16 %v1073, %v1072
  %v1131 = vpack.c.bf16 %v1075, %v1074
  %v1132 = vpack.c.bf16 %v1077, %v1076
  %v1133 = vpack.c.bf16 %v1079, %v1078
  %v1134 = vpack.c.bf16 %v1081, %v1080
  %v1135 = vpack.c.bf16 %v1083, %v1082
  %v1136 = vpack.c.bf16 %v1085, %v1084
  %v1137 = vpack.c.bf16 %v1087, %v1086
  %v1188 = vunpack.c.l.b16 %v1088
  %v1189 = vunpack.c.h.b16 %v1088
  %v1190 = vunpack.c.l.b16 %v1089
  %v1191 = vunpack.c.h.b16 %v1089
  %v1192 = vunpack.c.l.b16 %v1090
  %v1193 = vunpack.c.h.b16 %v1090
  %v1194 = vunpack.c.l.b16 %v1091
  %v1195 = vunpack.c.h.b16 %v1091
  %v1196 = vunpack.c.l.b16 %v1092
  %v1197 = vunpack.c.h.b16 %v1092
  %v1198 = vunpack.c.l.b16 %v1093
  %v1199 = vunpack.c.h.b16 %v1093
  %v1200 = vunpack.c.l.b16 %v1094
  %v1201 = vunpack.c.h.b16 %v1094
  %v1202 = vunpack.c.l.b16 %v1095
  %v1203 = vunpack.c.h.b16 %v1095
  %v1204 = vunpack.c.l.b16 %v1096
  %v1205 = vunpack.c.h.b16 %v1096
  %v1206 = vunpack.c.l.b16 %v1097
  %v1207 = vunpack.c.h.b16 %v1097
  %v1208 = vunpack.c.l.b16 %v1098
  %v1209 = vunpack.c.h.b16 %v1098
  %v1210 = vunpack.c.l.b16 %v1099
  %v1211 = vunpack.c.h.b16 %v1099
  %v1212 = vunpack.c.l.b16 %v1100
  %v1213 = vunpack.c.h.b16 %v1100
  %v1214 = vunpack.c.l.b16 %v1101
  %v1215 = vunpack.c.h.b16 %v1101
  %v1216 = vunpack.c.l.b16 %v1102
  %v1217 = vunpack.c.h.b16 %v1102
  %v1218 = vunpack.c.l.b16 %v1103
  %v1219 = vunpack.c.h.b16 %v1103
  %v1220 = vunpack.c.l.b16 %v1104
  %v1221 = vunpack.c.h.b16 %v1104
  %v1222 = vunpack.c.l.b16 %v1105
  %v1223 = vunpack.c.h.b16 %v1105
  %v1224 = vunpack.c.l.b16 %v1106
  %v1225 = vunpack.c.h.b16 %v1106
  %v1226 = vunpack.c.l.b16 %v1107
  %v1227 = vunpack.c.h.b16 %v1107
  %v1228 = vunpack.c.l.b16 %v1108
  %v1229 = vunpack.c.h.b16 %v1108
  %v1230 = vunpack.c.l.b16 %v1109
  %v1231 = vunpack.c.h.b16 %v1109
  %v1232 = vunpack.c.l.b16 %v1110
  %v1233 = vunpack.c.h.b16 %v1110
  %v1234 = vunpack.c.l.b16 %v1111
  %v1235 = vunpack.c.h.b16 %v1111
  %v1236 = vunpack.c.l.b16 %v1112
  %v1237 = vunpack.c.h.b16 %v1112
  %v1238 = vunpack.c.l.b16 %v1113
  %v1239 = vunpack.c.h.b16 %v1113
  %v1240 = vunpack.c.l.b16 %v1114
  %v1241 = vunpack.c.h.b16 %v1114
  %v1242 = vunpack.c.l.b16 %v1115
  %v1243 = vunpack.c.h.b16 %v1115
  %v1244 = vunpack.c.l.b16 %v1116
  %v1245 = vunpack.c.h.b16 %v1116
  %v1246 = vunpack.c.l.b16 %v1117
  %v1247 = vunpack.c.h.b16 %v1117
  %v1248 = vunpack.c.l.b16 %v1118
  %v1249 = vunpack.c.h.b16 %v1118
  %v1250 = vunpack.c.l.b16 %v1119
  %v1251 = vunpack.c.h.b16 %v1119
  %v1252 = vunpack.c.l.b16 %v1120
  %v1253 = vunpack.c.h.b16 %v1120
  %v1254 = vunpack.c.l.b16 %v1121
  %v1255 = vunpack.c.h.b16 %v1121
  %v1256 = vunpack.c.l.b16 %v1122
  %v1257 = vunpack.c.h.b16 %v1122
  %v1258 = vunpack.c.l.b16 %v1123
  %v1259 = vunpack.c.h.b16 %v1123
  %v1260 = vunpack.c.l.b16 %v1124
  %v1261 = vunpack.c.h.b16 %v1124
  %v1262 = vunpack.c.l.b16 %v1125
  %v1263 = vunpack.c.h.b16 %v1125
  %v1264 = vunpack.c.l.b16 %v1126
  %v1265 = vunpack.c.h.b16 %v1126
  %v1266 = vunpack.c.l.b16 %v1127
  %v1267 = vunpack.c.h.b16 %v1127
  %v1268 = vunpack.c.l.b16 %v1128
  %v1269 = vunpack.c.h.b16 %v1128
  %v1270 = vunpack.c.l.b16 %v1129
  %v1271 = vunpack.c.h.b16 %v1129
  %v1272 = vunpack.c.l.b16 %v1130
  %v1273 = vunpack.c.h.b16 %v1130
  %v1274 = vunpack.c.l.b16 %v1131
  %v1275 = vunpack.c.h.b16 %v1131
  %v1276 = vunpack.c.l.b16 %v1132
  %v1277 = vunpack.c.h.b16 %v1132
  %v1278 = vunpack.c.l.b16 %v1133
  %v1279 = vunpack.c.h.b16 %v1133
  %v1280 = vunpack.c.l.b16 %v1134
  %v1281 = vunpack.c.h.b16 %v1134
  %v1282 = vunpack.c.l.b16 %v1135
  %v1283 = vunpack.c.h.b16 %v1135
  %v1284 = vunpack.c.l.b16 %v1136
  %v1285 = vunpack.c.h.b16 %v1136
  %v1286 = vunpack.c.l.b16 %v1137
  %v1287 = vunpack.c.h.b16 %v1137
  %v1288 = vpack.c.b16 %v1188, %v1188
  %v1289 = vpack.c.b16 %v1189, %v1189
  %v1290 = vpack.c.b16 %v1190, %v1190
  %v1291 = vpack.c.b16 %v1191, %v1191
  %v1292 = vpack.c.b16 %v1192, %v1192
  %v1293 = vpack.c.b16 %v1193, %v1193
  %v1294 = vpack.c.b16 %v1194, %v1194
  %v1295 = vpack.c.b16 %v1195, %v1195
  %v1296 = vpack.c.b16 %v1196, %v1196
  %v1297 = vpack.c.b16 %v1197, %v1197
  %v1298 = vpack.c.b16 %v1198, %v1198
  %v1299 = vpack.c.b16 %v1199, %v1199
  %v1300 = vpack.c.b16 %v1200, %v1200
  %v1301 = vpack.c.b16 %v1201, %v1201
  %v1302 = vpack.c.b16 %v1202, %v1202
  %v1303 = vpack.c.b16 %v1203, %v1203
  %v1304 = vpack.c.b16 %v1204, %v1204
  %v1305 = vpack.c.b16 %v1205, %v1205
  %v1306 = vpack.c.b16 %v1206, %v1206
  %v1307 = vpack.c.b16 %v1207, %v1207
  %v1308 = vpack.c.b16 %v1208, %v1208
  %v1309 = vpack.c.b16 %v1209, %v1209
  %v1310 = vpack.c.b16 %v1210, %v1210
  %v1311 = vpack.c.b16 %v1211, %v1211
  %v1312 = vpack.c.b16 %v1212, %v1212
  %v1313 = vpack.c.b16 %v1213, %v1213
  %v1314 = vpack.c.b16 %v1214, %v1214
  %v1315 = vpack.c.b16 %v1215, %v1215
  %v1316 = vpack.c.b16 %v1216, %v1216
  %v1317 = vpack.c.b16 %v1217, %v1217
  %v1318 = vpack.c.b16 %v1218, %v1218
  %v1319 = vpack.c.b16 %v1219, %v1219
  %v1320 = vpack.c.b16 %v1220, %v1220
  %v1321 = vpack.c.b16 %v1221, %v1221
  %v1322 = vpack.c.b16 %v1222, %v1222
  %v1323 = vpack.c.b16 %v1223, %v1223
  %v1324 = vpack.c.b16 %v1224, %v1224
  %v1325 = vpack.c.b16 %v1225, %v1225
  %v1326 = vpack.c.b16 %v1226, %v1226
  %v1327 = vpack.c.b16 %v1227, %v1227
  %v1328 = vpack.c.b16 %v1228, %v1228
  %v1329 = vpack.c.b16 %v1229, %v1229
  %v1330 = vpack.c.b16 %v1230, %v1230
  %v1331 = vpack.c.b16 %v1231, %v1231
  %v1332 = vpack.c.b16 %v1232, %v1232
  %v1333 = vpack.c.b16 %v1233, %v1233
  %v1334 = vpack.c.b16 %v1234, %v1234
  %v1335 = vpack.c.b16 %v1235, %v1235
  %v1336 = vpack.c.b16 %v1236, %v1236
  %v1337 = vpack.c.b16 %v1237, %v1237
  %v1338 = vpack.c.b16 %v1238, %v1238
  %v1339 = vpack.c.b16 %v1239, %v1239
  %v1340 = vpack.c.b16 %v1240, %v1240
  %v1341 = vpack.c.b16 %v1241, %v1241
  %v1342 = vpack.c.b16 %v1242, %v1242
  %v1343 = vpack.c.b16 %v1243, %v1243
  %v1344 = vpack.c.b16 %v1244, %v1244
  %v1345 = vpack.c.b16 %v1245, %v1245
  %v1346 = vpack.c.b16 %v1246, %v1246
  %v1347 = vpack.c.b16 %v1247, %v1247
  %v1348 = vpack.c.b16 %v1248, %v1248
  %v1349 = vpack.c.b16 %v1249, %v1249
  %v1350 = vpack.c.b16 %v1250, %v1250
  %v1351 = vpack.c.b16 %v1251, %v1251
  %v1352 = vpack.c.b16 %v1252, %v1252
  %v1353 = vpack.c.b16 %v1253, %v1253
  %v1354 = vpack.c.b16 %v1254, %v1254
  %v1355 = vpack.c.b16 %v1255, %v1255
  %v1356 = vpack.c.b16 %v1256, %v1256
  %v1357 = vpack.c.b16 %v1257, %v1257
  %v1358 = vpack.c.b16 %v1258, %v1258
  %v1359 = vpack.c.b16 %v1259, %v1259
  %v1360 = vpack.c.b16 %v1260, %v1260
  %v1361 = vpack.c.b16 %v1261, %v1261
  %v1362 = vpack.c.b16 %v1262, %v1262
  %v1363 = vpack.c.b16 %v1263, %v1263
  %v1364 = vpack.c.b16 %v1264, %v1264
  %v1365 = vpack.c.b16 %v1265, %v1265
  %v1366 = vpack.c.b16 %v1266, %v1266
  %v1367 = vpack.c.b16 %v1267, %v1267
  %v1368 = vpack.c.b16 %v1268, %v1268
  %v1369 = vpack.c.b16 %v1269, %v1269
  %v1370 = vpack.c.b16 %v1270, %v1270
  %v1371 = vpack.c.b16 %v1271, %v1271
  %v1372 = vpack.c.b16 %v1272, %v1272
  %v1373 = vpack.c.b16 %v1273, %v1273
  %v1374 = vpack.c.b16 %v1274, %v1274
  %v1375 = vpack.c.b16 %v1275, %v1275
  %v1376 = vpack.c.b16 %v1276, %v1276
  %v1377 = vpack.c.b16 %v1277, %v1277
  %v1378 = vpack.c.b16 %v1278, %v1278
  %v1379 = vpack.c.b16 %v1279, %v1279
  %v1380 = vpack.c.b16 %v1280, %v1280
  %v1381 = vpack.c.b16 %v1281, %v1281
  %v1382 = vpack.c.b16 %v1282, %v1282
  %v1383 = vpack.c.b16 %v1283, %v1283
  %v1384 = vpack.c.b16 %v1284, %v1284
  %v1385 = vpack.c.b16 %v1285, %v1285
  %v1386 = vpack.c.b16 %v1286, %v1286
  %v1387 = vpack.c.b16 %v1287, %v1287
  %1488 = vst [vmem:[%s3] sm:$0xf] %v1288
  %1489 = vst [vmem:[%s3 + $0x4] sm:$0xf] %v1289
  %1490 = vst [vmem:[%s3 + $0x8] sm:$0xf] %v1290
  %1491 = vst [vmem:[%s3 + $0xc] sm:$0xf] %v1291
  %1492 = vst [vmem:[%s3 + $0x10] sm:$0xf] %v1292
  %1493 = vst [vmem:[%s3 + $0x14] sm:$0xf] %v1293
  %1494 = vst [vmem:[%s3 + $0x18] sm:$0xf] %v1294
  %1495 = vst [vmem:[%s3 + $0x1c] sm:$0xf] %v1295
  %1496 = vst [vmem:[%s3 + $0x20] sm:$0xf] %v1296
  %1497 = vst [vmem:[%s3 + $0x24] sm:$0xf] %v1297
  %1498 = vst [vmem:[%s3 + $0x28] sm:$0xf] %v1298
  %1499 = vst [vmem:[%s3 + $0x2c] sm:$0xf] %v1299
  %1500 = vst [vmem:[%s3 + $0x30] sm:$0xf] %v1300
  %1501 = vst [vmem:[%s3 + $0x34] sm:$0xf] %v1301
  %1502 = vst [vmem:[%s3 + $0x38] sm:$0xf] %v1302
  %1503 = vst [vmem:[%s3 + $0x3c] sm:$0xf] %v1303
  %1504 = vst [vmem:[%s3 + $0x40] sm:$0xf] %v1304
  %1505 = vst [vmem:[%s3 + $0x44] sm:$0xf] %v1305
  %1506 = vst [vmem:[%s3 + $0x48] sm:$0xf] %v1306
  %1507 = vst [vmem:[%s3 + $0x4c] sm:$0xf] %v1307
  %1508 = vst [vmem:[%s3 + $0x50] sm:$0xf] %v1308
  %1509 = vst [vmem:[%s3 + $0x54] sm:$0xf] %v1309
  %1510 = vst [vmem:[%s3 + $0x58] sm:$0xf] %v1310
  %1511 = vst [vmem:[%s3 + $0x5c] sm:$0xf] %v1311
  %1512 = vst [vmem:[%s3 + $0x60] sm:$0xf] %v1312
  %1513 = vst [vmem:[%s3 + $0x64] sm:$0xf] %v1313
  %1514 = vst [vmem:[%s3 + $0x68] sm:$0xf] %v1314
  %1515 = vst [vmem:[%s3 + $0x6c] sm:$0xf] %v1315
  %1516 = vst [vmem:[%s3 + $0x70] sm:$0xf] %v1316
  %1517 = vst [vmem:[%s3 + $0x74] sm:$0xf] %v1317
  %1518 = vst [vmem:[%s3 + $0x78] sm:$0xf] %v1318
  %1519 = vst [vmem:[%s3 + $0x7c] sm:$0xf] %v1319
  %1520 = vst [vmem:[%s3 + $0x80] sm:$0xf] %v1320
  %1521 = vst [vmem:[%s3 + $0x84] sm:$0xf] %v1321
  %1522 = vst [vmem:[%s3 + $0x88] sm:$0xf] %v1322
  %1523 = vst [vmem:[%s3 + $0x8c] sm:$0xf] %v1323
  %1524 = vst [vmem:[%s3 + $0x90] sm:$0xf] %v1324
  %1525 = vst [vmem:[%s3 + $0x94] sm:$0xf] %v1325
  %1526 = vst [vmem:[%s3 + $0x98] sm:$0xf] %v1326
  %1527 = vst [vmem:[%s3 + $0x9c] sm:$0xf] %v1327
  %1528 = vst [vmem:[%s3 + $0xa0] sm:$0xf] %v1328
  %1529 = vst [vmem:[%s3 + $0xa4] sm:$0xf] %v1329
  %1530 = vst [vmem:[%s3 + $0xa8] sm:$0xf] %v1330
  %1531 = vst [vmem:[%s3 + $0xac] sm:$0xf] %v1331
  %1532 = vst [vmem:[%s3 + $0xb0] sm:$0xf] %v1332
  %1533 = vst [vmem:[%s3 + $0xb4] sm:$0xf] %v1333
  %1534 = vst [vmem:[%s3 + $0xb8] sm:$0xf] %v1334
  %1535 = vst [vmem:[%s3 + $0xbc] sm:$0xf] %v1335
  %1536 = vst [vmem:[%s3 + $0xc0] sm:$0xf] %v1336
  %1537 = vst [vmem:[%s3 + $0xc4] sm:$0xf] %v1337
  %1538 = vst [vmem:[%s3 + $0xc8] sm:$0xf] %v1338
  %1539 = vst [vmem:[%s3 + $0xcc] sm:$0xf] %v1339
  %1540 = vst [vmem:[%s3 + $0xd0] sm:$0xf] %v1340
  %1541 = vst [vmem:[%s3 + $0xd4] sm:$0xf] %v1341
  %1542 = vst [vmem:[%s3 + $0xd8] sm:$0xf] %v1342
  %1543 = vst [vmem:[%s3 + $0xdc] sm:$0xf] %v1343
  %1544 = vst [vmem:[%s3 + $0xe0] sm:$0xf] %v1344
  %1545 = vst [vmem:[%s3 + $0xe4] sm:$0xf] %v1345
  %1546 = vst [vmem:[%s3 + $0xe8] sm:$0xf] %v1346
  %1547 = vst [vmem:[%s3 + $0xec] sm:$0xf] %v1347
  %1548 = vst [vmem:[%s3 + $0xf0] sm:$0xf] %v1348
  %1549 = vst [vmem:[%s3 + $0xf4] sm:$0xf] %v1349
  %1550 = vst [vmem:[%s3 + $0xf8] sm:$0xf] %v1350
  %1551 = vst [vmem:[%s3 + $0xfc] sm:$0xf] %v1351
  %1552 = vst [vmem:[%s3 + $0x100] sm:$0xf] %v1352
  %1553 = vst [vmem:[%s3 + $0x104] sm:$0xf] %v1353
  %1554 = vst [vmem:[%s3 + $0x108] sm:$0xf] %v1354
  %1555 = vst [vmem:[%s3 + $0x10c] sm:$0xf] %v1355
  %1556 = vst [vmem:[%s3 + $0x110] sm:$0xf] %v1356
  %1557 = vst [vmem:[%s3 + $0x114] sm:$0xf] %v1357
  %1558 = vst [vmem:[%s3 + $0x118] sm:$0xf] %v1358
  %1559 = vst [vmem:[%s3 + $0x11c] sm:$0xf] %v1359
  %1560 = vst [vmem:[%s3 + $0x120] sm:$0xf] %v1360
  %1561 = vst [vmem:[%s3 + $0x124] sm:$0xf] %v1361
  %1562 = vst [vmem:[%s3 + $0x128] sm:$0xf] %v1362
  %1563 = vst [vmem:[%s3 + $0x12c] sm:$0xf] %v1363
  %1564 = vst [vmem:[%s3 + $0x130] sm:$0xf] %v1364
  %1565 = vst [vmem:[%s3 + $0x134] sm:$0xf] %v1365
  %1566 = vst [vmem:[%s3 + $0x138] sm:$0xf] %v1366
  %1567 = vst [vmem:[%s3 + $0x13c] sm:$0xf] %v1367
  %1568 = vst [vmem:[%s3 + $0x140] sm:$0xf] %v1368
  %1569 = vst [vmem:[%s3 + $0x144] sm:$0xf] %v1369
  %1570 = vst [vmem:[%s3 + $0x148] sm:$0xf] %v1370
  %1571 = vst [vmem:[%s3 + $0x14c] sm:$0xf] %v1371
  %1572 = vst [vmem:[%s3 + $0x150] sm:$0xf] %v1372
  %1573 = vst [vmem:[%s3 + $0x154] sm:$0xf] %v1373
  %1574 = vst [vmem:[%s3 + $0x158] sm:$0xf] %v1374
  %1575 = vst [vmem:[%s3 + $0x15c] sm:$0xf] %v1375
  %1576 = vst [vmem:[%s3 + $0x160] sm:$0xf] %v1376
  %1577 = vst [vmem:[%s3 + $0x164] sm:$0xf] %v1377
  %1578 = vst [vmem:[%s3 + $0x168] sm:$0xf] %v1378
  %1579 = vst [vmem:[%s3 + $0x16c] sm:$0xf] %v1379
  %1580 = vst [vmem:[%s3 + $0x170] sm:$0xf] %v1380
  %1581 = vst [vmem:[%s3 + $0x174] sm:$0xf] %v1381
  %1582 = vst [vmem:[%s3 + $0x178] sm:$0xf] %v1382
  %1583 = vst [vmem:[%s3 + $0x17c] sm:$0xf] %v1383
  %1584 = vst [vmem:[%s3 + $0x180] sm:$0xf] %v1384
  %1585 = vst [vmem:[%s3 + $0x184] sm:$0xf] %v1385
  %1586 = vst [vmem:[%s3 + $0x188] sm:$0xf] %v1386
  %1587 = vst [vmem:[%s3 + $0x18c] sm:$0xf] %v1387
  // Predicated region
  $region14: #{rnd_forward.4} parent=0 // pred_check
    _
  $region15: #{rnd_forward.4} parent=0 // pred_check_branch
    %1589 = sbr.rel (0) target = $region17
  $region16: #{rnd_forward.4} parent=0 // pred_region
    _
  $region17: #{rnd_forward.4} parent=0 // pred_fallthru
    _
  // Predicated region
  $region18: #{rnd_forward.4} parent=0 // pred_check
    _
  $region19: #{rnd_forward.4} parent=0 // pred_check_branch
    %1591 = sbr.rel (0) target = $region21
  $region20: #{rnd_forward.4} parent=0 // pred_region
    _
  $region21: #{rnd_forward.4} parent=0 // pred_fallthru
    _

// kernel: rnd_forward.5
$region0: #{rnd_forward.5}
  #allocation0 [shape = 'u32[]', space=smem, size = 0x4, offset = 0x4, fixed_abs, tag = 'smem constant byte address 0x4 - core index']
  #allocation1 [shape = 'u32[144,128]{1,0:T(1,128)}', space=vmem, size = 0x12000, scoped, tag = 'internal scratch']
  %s0 = inlined_call_operand.vmem [shape: bf16[162,1024], index: 0, kind: input, shape index: {}]
  %s1 = inlined_call_operand.vmem [shape: bf16[1024,128], index: 1, kind: input, shape index: {}]
  %s2 = inlined_call_operand.vmem [shape: f32[1,128], index: 2, kind: input, shape index: {}]
  %s3 = inlined_call_operand.vmem [shape: bf16[162,128], index: 3, kind: output, shape index: {}]
  %s4 = sld [smem:[#allocation0]]
  $region22: #{rnd_forward.5} parent=0
    _
  %s6 = ssub.s32 1, %s4
  %s7 = scalar_select 0, %s6, %s4
  // Predicated region
  $region2: #{rnd_forward.5} parent=0 // pred_check
    _
  $region3: #{rnd_forward.5} parent=0 // pred_check_branch
    %9 = sbr.rel (0) target = $region5
  $region4: #{rnd_forward.5} parent=0 // pred_region
    _
  $region5: #{rnd_forward.5} parent=0 // pred_fallthru
    _
  // Predicated region
  $region6: #{rnd_forward.5} parent=0 // pred_check
    _
  $region7: #{rnd_forward.5} parent=0 // pred_check_branch
    %11 = sbr.rel (0) target = $region9
  $region8: #{rnd_forward.5} parent=0 // pred_region
    _
  $region9: #{rnd_forward.5} parent=0 // pred_fallthru
    _
  // Predicated region
  $region10: #{rnd_forward.5} parent=0 // pred_check
    _
  $region11: #{rnd_forward.5} parent=0 // pred_check_branch
    %13 = sbr.rel (0) target = $region13
  $region12: #{rnd_forward.5} parent=0 // pred_region
    _
  $region13: #{rnd_forward.5} parent=0 // pred_fallthru
    _
  %v15 = vld [vmem:[%s0] sm:$0xff]
  %v16 = vld [vmem:[%s0 + $0x8] sm:$0xff]
  %v17 = vld [vmem:[%s0 + $0x10] sm:$0xff]
  %v18 = vld [vmem:[%s0 + $0x18] sm:$0xff]
  %v19 = vld [vmem:[%s0 + $0x20] sm:$0xff]
  %v20 = vld [vmem:[%s0 + $0x28] sm:$0xff]
  %v21 = vld [vmem:[%s0 + $0x30] sm:$0xff]
  %v22 = vld [vmem:[%s0 + $0x38] sm:$0xff]
  %v23 = vld [vmem:[%s0 + $0x40] sm:$0xff]
  %v24 = vld [vmem:[%s0 + $0x48] sm:$0xff]
  %v25 = vld [vmem:[%s0 + $0x50] sm:$0xff]
  %v26 = vld [vmem:[%s0 + $0x58] sm:$0xff]
  %v27 = vld [vmem:[%s0 + $0x60] sm:$0xff]
  %v28 = vld [vmem:[%s0 + $0x68] sm:$0xff]
  %v29 = vld [vmem:[%s0 + $0x70] sm:$0xff]
  %v30 = vld [vmem:[%s0 + $0x78] sm:$0xff]
  %v31 = vld [vmem:[%s0 + $0x80] sm:$0xff]
  %v32 = vld [vmem:[%s0 + $0x88] sm:$0xff]
  %v33 = vld [vmem:[%s0 + $0x90] sm:$0xff]
  %v34 = vld [vmem:[%s0 + $0x98] sm:$0xff]
  %v35 = vld [vmem:[%s0 + $0xa0] sm:$0xff]
  %v36 = vld [vmem:[%s0 + $0xa8] sm:$0xff]
  %v37 = vld [vmem:[%s0 + $0xb0] sm:$0xff]
  %v38 = vld [vmem:[%s0 + $0xb8] sm:$0xff]
  %v39 = vld [vmem:[%s0 + $0xc0] sm:$0xff]
  %v40 = vld [vmem:[%s0 + $0xc8] sm:$0xff]
  %v41 = vld [vmem:[%s0 + $0xd0] sm:$0xff]
  %v42 = vld [vmem:[%s0 + $0xd8] sm:$0xff]
  %v43 = vld [vmem:[%s0 + $0xe0] sm:$0xff]
  %v44 = vld [vmem:[%s0 + $0xe8] sm:$0xff]
  %v45 = vld [vmem:[%s0 + $0xf0] sm:$0xff]
  %v46 = vld [vmem:[%s0 + $0xf8] sm:$0xff]
  %v47 = vld [vmem:[%s0 + $0x100] sm:$0xff]
  %v48 = vld [vmem:[%s0 + $0x108] sm:$0xff]
  %v49 = vld [vmem:[%s0 + $0x110] sm:$0xff]
  %v50 = vld [vmem:[%s0 + $0x118] sm:$0xff]
  %v51 = vld [vmem:[%s0 + $0x120] sm:$0xff]
  %v52 = vld [vmem:[%s0 + $0x128] sm:$0xff]
  %v53 = vld [vmem:[%s0 + $0x130] sm:$0xff]
  %v54 = vld [vmem:[%s0 + $0x138] sm:$0xff]
  %v55 = vld [vmem:[%s0 + $0x140] sm:$0xff]
  %v56 = vld [vmem:[%s0 + $0x148] sm:$0xff]
  %v57 = vld [vmem:[%s0 + $0x150] sm:$0xff]
  %v58 = vld [vmem:[%s0 + $0x158] sm:$0xff]
  %v59 = vld [vmem:[%s0 + $0x160] sm:$0xff]
  %v60 = vld [vmem:[%s0 + $0x168] sm:$0xff]
  %v61 = vld [vmem:[%s0 + $0x170] sm:$0xff]
  %v62 = vld [vmem:[%s0 + $0x178] sm:$0xff]
  %v63 = vld [vmem:[%s0 + $0x180] sm:$0xff]
  %v64 = vld [vmem:[%s0 + $0x188] sm:$0xff]
  %v65 = vld [vmem:[%s0 + $0x190] sm:$0xff]
  %v66 = vld [vmem:[%s0 + $0x198] sm:$0xff]
  %v67 = vld [vmem:[%s0 + $0x1a0] sm:$0xff]
  %v68 = vld [vmem:[%s0 + $0x1a8] sm:$0xff]
  %v69 = vld [vmem:[%s0 + $0x1b0] sm:$0xff]
  %v70 = vld [vmem:[%s0 + $0x1b8] sm:$0xff]
  %v71 = vld [vmem:[%s0 + $0x1c0] sm:$0xff]
  %v72 = vld [vmem:[%s0 + $0x1c8] sm:$0xff]
  %v73 = vld [vmem:[%s0 + $0x1d0] sm:$0xff]
  %v74 = vld [vmem:[%s0 + $0x1d8] sm:$0xff]
  %v75 = vld [vmem:[%s0 + $0x1e0] sm:$0xff]
  %v76 = vld [vmem:[%s0 + $0x1e8] sm:$0xff]
  %v77 = vld [vmem:[%s0 + $0x1f0] sm:$0xff]
  %v78 = vld [vmem:[%s0 + $0x1f8] sm:$0xff]
  %v79 = vld [vmem:[%s0 + $0x200] sm:$0xff]
  %v80 = vld [vmem:[%s0 + $0x208] sm:$0xff]
  %v81 = vld [vmem:[%s0 + $0x210] sm:$0xff]
  %v82 = vld [vmem:[%s0 + $0x218] sm:$0xff]
  %v83 = vld [vmem:[%s0 + $0x220] sm:$0xff]
  %v84 = vld [vmem:[%s0 + $0x228] sm:$0xff]
  %v85 = vld [vmem:[%s0 + $0x230] sm:$0xff]
  %v86 = vld [vmem:[%s0 + $0x238] sm:$0xff]
  %v87 = vld [vmem:[%s0 + $0x240] sm:$0xff]
  %v88 = vld [vmem:[%s0 + $0x248] sm:$0xff]
  %v89 = vld [vmem:[%s0 + $0x250] sm:$0xff]
  %v90 = vld [vmem:[%s0 + $0x258] sm:$0xff]
  %v91 = vld [vmem:[%s0 + $0x260] sm:$0xff]
  %v92 = vld [vmem:[%s0 + $0x268] sm:$0xff]
  %v93 = vld [vmem:[%s0 + $0x270] sm:$0xff]
  %v94 = vld [vmem:[%s0 + $0x278] sm:$0xff]
  %v95 = vld [vmem:[%s0 + $0x280] sm:$0x11]
  %v96 = vld [vmem:[%s0 + $0x288] sm:$0x11]
  %v97 = vld [vmem:[%s0 + $0x290] sm:$0x11]
  %v98 = vld [vmem:[%s0 + $0x298] sm:$0x11]
  %v99 = vld [vmem:[%s1] sm:$0xf]
  %v100 = vld [vmem:[%s1 + $0x4] sm:$0xf]
  %v101 = vld [vmem:[%s1 + $0x8] sm:$0xf]
  %v102 = vld [vmem:[%s1 + $0xc] sm:$0xf]
  %v103 = vld [vmem:[%s1 + $0x10] sm:$0xf]
  %v104 = vld [vmem:[%s1 + $0x14] sm:$0xf]
  %v105 = vld [vmem:[%s1 + $0x18] sm:$0xf]
  %v106 = vld [vmem:[%s1 + $0x1c] sm:$0xf]
  %v107 = vld [vmem:[%s1 + $0x20] sm:$0xf]
  %v108 = vld [vmem:[%s1 + $0x24] sm:$0xf]
  %v109 = vld [vmem:[%s1 + $0x28] sm:$0xf]
  %v110 = vld [vmem:[%s1 + $0x2c] sm:$0xf]
  %v111 = vld [vmem:[%s1 + $0x30] sm:$0xf]
  %v112 = vld [vmem:[%s1 + $0x34] sm:$0xf]
  %v113 = vld [vmem:[%s1 + $0x38] sm:$0xf]
  %v114 = vld [vmem:[%s1 + $0x3c] sm:$0xf]
  %v115 = vld [vmem:[%s1 + $0x40] sm:$0xf]
  %v116 = vld [vmem:[%s1 + $0x44] sm:$0xf]
  %v117 = vld [vmem:[%s1 + $0x48] sm:$0xf]
  %v118 = vld [vmem:[%s1 + $0x4c] sm:$0xf]
  %v119 = vld [vmem:[%s1 + $0x50] sm:$0xf]
  %v120 = vld [vmem:[%s1 + $0x54] sm:$0xf]
  %v121 = vld [vmem:[%s1 + $0x58] sm:$0xf]
  %v122 = vld [vmem:[%s1 + $0x5c] sm:$0xf]
  %v123 = vld [vmem:[%s1 + $0x60] sm:$0xf]
  %v124 = vld [vmem:[%s1 + $0x64] sm:$0xf]
  %v125 = vld [vmem:[%s1 + $0x68] sm:$0xf]
  %v126 = vld [vmem:[%s1 + $0x6c] sm:$0xf]
  %v127 = vld [vmem:[%s1 + $0x70] sm:$0xf]
  %v128 = vld [vmem:[%s1 + $0x74] sm:$0xf]
  %v129 = vld [vmem:[%s1 + $0x78] sm:$0xf]
  %v130 = vld [vmem:[%s1 + $0x7c] sm:$0xf]
  %v131 = vld [vmem:[%s1 + $0x80] sm:$0xf]
  %v132 = vld [vmem:[%s1 + $0x84] sm:$0xf]
  %v133 = vld [vmem:[%s1 + $0x88] sm:$0xf]
  %v134 = vld [vmem:[%s1 + $0x8c] sm:$0xf]
  %v135 = vld [vmem:[%s1 + $0x90] sm:$0xf]
  %v136 = vld [vmem:[%s1 + $0x94] sm:$0xf]
  %v137 = vld [vmem:[%s1 + $0x98] sm:$0xf]
  %v138 = vld [vmem:[%s1 + $0x9c] sm:$0xf]
  %v139 = vld [vmem:[%s1 + $0xa0] sm:$0xf]
  %v140 = vld [vmem:[%s1 + $0xa4] sm:$0xf]
  %v141 = vld [vmem:[%s1 + $0xa8] sm:$0xf]
  %v142 = vld [vmem:[%s1 + $0xac] sm:$0xf]
  %v143 = vld [vmem:[%s1 + $0xb0] sm:$0xf]
  %v144 = vld [vmem:[%s1 + $0xb4] sm:$0xf]
  %v145 = vld [vmem:[%s1 + $0xb8] sm:$0xf]
  %v146 = vld [vmem:[%s1 + $0xbc] sm:$0xf]
  %v147 = vld [vmem:[%s1 + $0xc0] sm:$0xf]
  %v148 = vld [vmem:[%s1 + $0xc4] sm:$0xf]
  %v149 = vld [vmem:[%s1 + $0xc8] sm:$0xf]
  %v150 = vld [vmem:[%s1 + $0xcc] sm:$0xf]
  %v151 = vld [vmem:[%s1 + $0xd0] sm:$0xf]
  %v152 = vld [vmem:[%s1 + $0xd4] sm:$0xf]
  %v153 = vld [vmem:[%s1 + $0xd8] sm:$0xf]
  %v154 = vld [vmem:[%s1 + $0xdc] sm:$0xf]
  %v155 = vld [vmem:[%s1 + $0xe0] sm:$0xf]
  %v156 = vld [vmem:[%s1 + $0xe4] sm:$0xf]
  %v157 = vld [vmem:[%s1 + $0xe8] sm:$0xf]
  %v158 = vld [vmem:[%s1 + $0xec] sm:$0xf]
  %v159 = vld [vmem:[%s1 + $0xf0] sm:$0xf]
  %v160 = vld [vmem:[%s1 + $0xf4] sm:$0xf]
  %v161 = vld [vmem:[%s1 + $0xf8] sm:$0xf]
  %v162 = vld [vmem:[%s1 + $0xfc] sm:$0xf]
  %v163 = vld [vmem:[%s1 + $0x100] sm:$0xf]
  %v164 = vld [vmem:[%s1 + $0x104] sm:$0xf]
  %v165 = vld [vmem:[%s1 + $0x108] sm:$0xf]
  %v166 = vld [vmem:[%s1 + $0x10c] sm:$0xf]
  %v167 = vld [vmem:[%s1 + $0x110] sm:$0xf]
  %v168 = vld [vmem:[%s1 + $0x114] sm:$0xf]
  %v169 = vld [vmem:[%s1 + $0x118] sm:$0xf]
  %v170 = vld [vmem:[%s1 + $0x11c] sm:$0xf]
  %v171 = vld [vmem:[%s1 + $0x120] sm:$0xf]
  %v172 = vld [vmem:[%s1 + $0x124] sm:$0xf]
  %v173 = vld [vmem:[%s1 + $0x128] sm:$0xf]
  %v174 = vld [vmem:[%s1 + $0x12c] sm:$0xf]
  %v175 = vld [vmem:[%s1 + $0x130] sm:$0xf]
  %v176 = vld [vmem:[%s1 + $0x134] sm:$0xf]
  %v177 = vld [vmem:[%s1 + $0x138] sm:$0xf]
  %v178 = vld [vmem:[%s1 + $0x13c] sm:$0xf]
  %v179 = vld [vmem:[%s1 + $0x140] sm:$0xf]
  %v180 = vld [vmem:[%s1 + $0x144] sm:$0xf]
  %v181 = vld [vmem:[%s1 + $0x148] sm:$0xf]
  %v182 = vld [vmem:[%s1 + $0x14c] sm:$0xf]
  %v183 = vld [vmem:[%s1 + $0x150] sm:$0xf]
  %v184 = vld [vmem:[%s1 + $0x154] sm:$0xf]
  %v185 = vld [vmem:[%s1 + $0x158] sm:$0xf]
  %v186 = vld [vmem:[%s1 + $0x15c] sm:$0xf]
  %v187 = vld [vmem:[%s1 + $0x160] sm:$0xf]
  %v188 = vld [vmem:[%s1 + $0x164] sm:$0xf]
  %v189 = vld [vmem:[%s1 + $0x168] sm:$0xf]
  %v190 = vld [vmem:[%s1 + $0x16c] sm:$0xf]
  %v191 = vld [vmem:[%s1 + $0x170] sm:$0xf]
  %v192 = vld [vmem:[%s1 + $0x174] sm:$0xf]
  %v193 = vld [vmem:[%s1 + $0x178] sm:$0xf]
  %v194 = vld [vmem:[%s1 + $0x17c] sm:$0xf]
  %v195 = vld [vmem:[%s1 + $0x180] sm:$0xf]
  %v196 = vld [vmem:[%s1 + $0x184] sm:$0xf]
  %v197 = vld [vmem:[%s1 + $0x188] sm:$0xf]
  %v198 = vld [vmem:[%s1 + $0x18c] sm:$0xf]
  %v199 = vld [vmem:[%s1 + $0x190] sm:$0xf]
  %v200 = vld [vmem:[%s1 + $0x194] sm:$0xf]
  %v201 = vld [vmem:[%s1 + $0x198] sm:$0xf]
  %v202 = vld [vmem:[%s1 + $0x19c] sm:$0xf]
  %v203 = vld [vmem:[%s1 + $0x1a0] sm:$0xf]
  %v204 = vld [vmem:[%s1 + $0x1a4] sm:$0xf]
  %v205 = vld [vmem:[%s1 + $0x1a8] sm:$0xf]
  %v206 = vld [vmem:[%s1 + $0x1ac] sm:$0xf]
  %v207 = vld [vmem:[%s1 + $0x1b0] sm:$0xf]
  %v208 = vld [vmem:[%s1 + $0x1b4] sm:$0xf]
  %v209 = vld [vmem:[%s1 + $0x1b8] sm:$0xf]
  %v210 = vld [vmem:[%s1 + $0x1bc] sm:$0xf]
  %v211 = vld [vmem:[%s1 + $0x1c0] sm:$0xf]
  %v212 = vld [vmem:[%s1 + $0x1c4] sm:$0xf]
  %v213 = vld [vmem:[%s1 + $0x1c8] sm:$0xf]
  %v214 = vld [vmem:[%s1 + $0x1cc] sm:$0xf]
  %v215 = vld [vmem:[%s1 + $0x1d0] sm:$0xf]
  %v216 = vld [vmem:[%s1 + $0x1d4] sm:$0xf]
  %v217 = vld [vmem:[%s1 + $0x1d8] sm:$0xf]
  %v218 = vld [vmem:[%s1 + $0x1dc] sm:$0xf]
  %v219 = vld [vmem:[%s1 + $0x1e0] sm:$0xf]
  %v220 = vld [vmem:[%s1 + $0x1e4] sm:$0xf]
  %v221 = vld [vmem:[%s1 + $0x1e8] sm:$0xf]
  %v222 = vld [vmem:[%s1 + $0x1ec] sm:$0xf]
  %v223 = vld [vmem:[%s1 + $0x1f0] sm:$0xf]
  %v224 = vld [vmem:[%s1 + $0x1f4] sm:$0xf]
  %v225 = vld [vmem:[%s1 + $0x1f8] sm:$0xf]
  %v226 = vld [vmem:[%s1 + $0x1fc] sm:$0xf]
  %v227 = vld [vmem:[%s2] sm:$0x1]
  %v229 = vlaneseq
  %v230 = vshrl.u32 %v229, 7
  %v231 = vsub.s32 0, %v230
  %v232 = vrot.slane %v227, %v231
  %v318 = vunpack.c.l.b16 %v15
  %v319 = vunpack.c.h.b16 %v15
  %v320 = vunpack.c.l.b16 %v16
  %v321 = vunpack.c.h.b16 %v16
  %v322 = vunpack.c.l.b16 %v17
  %v323 = vunpack.c.h.b16 %v17
  %v324 = vunpack.c.l.b16 %v18
  %v325 = vunpack.c.h.b16 %v18
  %v326 = vunpack.c.l.b16 %v19
  %v327 = vunpack.c.h.b16 %v19
  %v328 = vunpack.c.l.b16 %v20
  %v329 = vunpack.c.h.b16 %v20
  %v330 = vunpack.c.l.b16 %v21
  %v331 = vunpack.c.h.b16 %v21
  %v332 = vunpack.c.l.b16 %v22
  %v333 = vunpack.c.h.b16 %v22
  %v334 = vunpack.c.l.b16 %v23
  %v335 = vunpack.c.h.b16 %v23
  %v336 = vunpack.c.l.b16 %v24
  %v337 = vunpack.c.h.b16 %v24
  %v338 = vunpack.c.l.b16 %v25
  %v339 = vunpack.c.h.b16 %v25
  %v340 = vunpack.c.l.b16 %v26
  %v341 = vunpack.c.h.b16 %v26
  %v342 = vunpack.c.l.b16 %v27
  %v343 = vunpack.c.h.b16 %v27
  %v344 = vunpack.c.l.b16 %v28
  %v345 = vunpack.c.h.b16 %v28
  %v346 = vunpack.c.l.b16 %v29
  %v347 = vunpack.c.h.b16 %v29
  %v348 = vunpack.c.l.b16 %v30
  %v349 = vunpack.c.h.b16 %v30
  %v350 = vunpack.c.l.b16 %v31
  %v351 = vunpack.c.h.b16 %v31
  %v352 = vunpack.c.l.b16 %v32
  %v353 = vunpack.c.h.b16 %v32
  %v354 = vunpack.c.l.b16 %v33
  %v355 = vunpack.c.h.b16 %v33
  %v356 = vunpack.c.l.b16 %v34
  %v357 = vunpack.c.h.b16 %v34
  %v358 = vunpack.c.l.b16 %v35
  %v359 = vunpack.c.h.b16 %v35
  %v360 = vunpack.c.l.b16 %v36
  %v361 = vunpack.c.h.b16 %v36
  %v362 = vunpack.c.l.b16 %v37
  %v363 = vunpack.c.h.b16 %v37
  %v364 = vunpack.c.l.b16 %v38
  %v365 = vunpack.c.h.b16 %v38
  %v366 = vunpack.c.l.b16 %v39
  %v367 = vunpack.c.h.b16 %v39
  %v368 = vunpack.c.l.b16 %v40
  %v369 = vunpack.c.h.b16 %v40
  %v370 = vunpack.c.l.b16 %v41
  %v371 = vunpack.c.h.b16 %v41
  %v372 = vunpack.c.l.b16 %v42
  %v373 = vunpack.c.h.b16 %v42
  %v374 = vunpack.c.l.b16 %v43
  %v375 = vunpack.c.h.b16 %v43
  %v376 = vunpack.c.l.b16 %v44
  %v377 = vunpack.c.h.b16 %v44
  %v378 = vunpack.c.l.b16 %v45
  %v379 = vunpack.c.h.b16 %v45
  %v380 = vunpack.c.l.b16 %v46
  %v381 = vunpack.c.h.b16 %v46
  %v382 = vunpack.c.l.b16 %v47
  %v383 = vunpack.c.h.b16 %v47
  %v384 = vunpack.c.l.b16 %v48
  %v385 = vunpack.c.h.b16 %v48
  %v386 = vunpack.c.l.b16 %v49
  %v387 = vunpack.c.h.b16 %v49
  %v388 = vunpack.c.l.b16 %v50
  %v389 = vunpack.c.h.b16 %v50
  %v390 = vunpack.c.l.b16 %v51
  %v391 = vunpack.c.h.b16 %v51
  %v392 = vunpack.c.l.b16 %v52
  %v393 = vunpack.c.h.b16 %v52
  %v394 = vunpack.c.l.b16 %v53
  %v395 = vunpack.c.h.b16 %v53
  %v396 = vunpack.c.l.b16 %v54
  %v397 = vunpack.c.h.b16 %v54
  %v398 = vunpack.c.l.b16 %v55
  %v399 = vunpack.c.h.b16 %v55
  %v400 = vunpack.c.l.b16 %v56
  %v401 = vunpack.c.h.b16 %v56
  %v402 = vunpack.c.l.b16 %v57
  %v403 = vunpack.c.h.b16 %v57
  %v404 = vunpack.c.l.b16 %v58
  %v405 = vunpack.c.h.b16 %v58
  %v406 = vunpack.c.l.b16 %v59
  %v407 = vunpack.c.h.b16 %v59
  %v408 = vunpack.c.l.b16 %v60
  %v409 = vunpack.c.h.b16 %v60
  %v410 = vunpack.c.l.b16 %v61
  %v411 = vunpack.c.h.b16 %v61
  %v412 = vunpack.c.l.b16 %v62
  %v413 = vunpack.c.h.b16 %v62
  %v414 = vunpack.c.l.b16 %v63
  %v415 = vunpack.c.h.b16 %v63
  %v416 = vunpack.c.l.b16 %v64
  %v417 = vunpack.c.h.b16 %v64
  %v418 = vunpack.c.l.b16 %v65
  %v419 = vunpack.c.h.b16 %v65
  %v420 = vunpack.c.l.b16 %v66
  %v421 = vunpack.c.h.b16 %v66
  %v422 = vunpack.c.l.b16 %v67
  %v423 = vunpack.c.h.b16 %v67
  %v424 = vunpack.c.l.b16 %v68
  %v425 = vunpack.c.h.b16 %v68
  %v426 = vunpack.c.l.b16 %v69
  %v427 = vunpack.c.h.b16 %v69
  %v428 = vunpack.c.l.b16 %v70
  %v429 = vunpack.c.h.b16 %v70
  %v430 = vunpack.c.l.b16 %v71
  %v431 = vunpack.c.h.b16 %v71
  %v432 = vunpack.c.l.b16 %v72
  %v433 = vunpack.c.h.b16 %v72
  %v434 = vunpack.c.l.b16 %v73
  %v435 = vunpack.c.h.b16 %v73
  %v436 = vunpack.c.l.b16 %v74
  %v437 = vunpack.c.h.b16 %v74
  %v438 = vunpack.c.l.b16 %v75
  %v439 = vunpack.c.h.b16 %v75
  %v440 = vunpack.c.l.b16 %v76
  %v441 = vunpack.c.h.b16 %v76
  %v442 = vunpack.c.l.b16 %v77
  %v443 = vunpack.c.h.b16 %v77
  %v444 = vunpack.c.l.b16 %v78
  %v445 = vunpack.c.h.b16 %v78
  %v446 = vunpack.c.l.b16 %v79
  %v447 = vunpack.c.h.b16 %v79
  %v448 = vunpack.c.l.b16 %v80
  %v449 = vunpack.c.h.b16 %v80
  %v450 = vunpack.c.l.b16 %v81
  %v451 = vunpack.c.h.b16 %v81
  %v452 = vunpack.c.l.b16 %v82
  %v453 = vunpack.c.h.b16 %v82
  %v454 = vunpack.c.l.b16 %v83
  %v455 = vunpack.c.h.b16 %v83
  %v456 = vunpack.c.l.b16 %v84
  %v457 = vunpack.c.h.b16 %v84
  %v458 = vunpack.c.l.b16 %v85
  %v459 = vunpack.c.h.b16 %v85
  %v460 = vunpack.c.l.b16 %v86
  %v461 = vunpack.c.h.b16 %v86
  %v462 = vunpack.c.l.b16 %v87
  %v463 = vunpack.c.h.b16 %v87
  %v464 = vunpack.c.l.b16 %v88
  %v465 = vunpack.c.h.b16 %v88
  %v466 = vunpack.c.l.b16 %v89
  %v467 = vunpack.c.h.b16 %v89
  %v468 = vunpack.c.l.b16 %v90
  %v469 = vunpack.c.h.b16 %v90
  %v470 = vunpack.c.l.b16 %v91
  %v471 = vunpack.c.h.b16 %v91
  %v472 = vunpack.c.l.b16 %v92
  %v473 = vunpack.c.h.b16 %v92
  %v474 = vunpack.c.l.b16 %v93
  %v475 = vunpack.c.h.b16 %v93
  %v476 = vunpack.c.l.b16 %v94
  %v477 = vunpack.c.h.b16 %v94
  %v478 = vunpack.c.l.b16 %v95
  %v479 = vunpack.c.h.b16 %v95
  %v480 = vunpack.c.l.b16 %v96
  %v481 = vunpack.c.h.b16 %v96
  %v482 = vunpack.c.l.b16 %v97
  %v483 = vunpack.c.h.b16 %v97
  %v484 = vunpack.c.l.b16 %v98
  %v485 = vunpack.c.h.b16 %v98
  %v486 = vpack.c.b16 %v326, %v318
  %v487 = vpack.c.b16 %v327, %v319
  %v488 = vpack.c.b16 %v328, %v320
  %v489 = vpack.c.b16 %v329, %v321
  %v490 = vpack.c.b16 %v330, %v322
  %v491 = vpack.c.b16 %v331, %v323
  %v492 = vpack.c.b16 %v332, %v324
  %v493 = vpack.c.b16 %v333, %v325
  %v494 = vpack.c.b16 %v342, %v334
  %v495 = vpack.c.b16 %v343, %v335
  %v496 = vpack.c.b16 %v344, %v336
  %v497 = vpack.c.b16 %v345, %v337
  %v498 = vpack.c.b16 %v346, %v338
  %v499 = vpack.c.b16 %v347, %v339
  %v500 = vpack.c.b16 %v348, %v340
  %v501 = vpack.c.b16 %v349, %v341
  %v502 = vpack.c.b16 %v358, %v350
  %v503 = vpack.c.b16 %v359, %v351
  %v504 = vpack.c.b16 %v360, %v352
  %v505 = vpack.c.b16 %v361, %v353
  %v506 = vpack.c.b16 %v362, %v354
  %v507 = vpack.c.b16 %v363, %v355
  %v508 = vpack.c.b16 %v364, %v356
  %v509 = vpack.c.b16 %v365, %v357
  %v510 = vpack.c.b16 %v374, %v366
  %v511 = vpack.c.b16 %v375, %v367
  %v512 = vpack.c.b16 %v376, %v368
  %v513 = vpack.c.b16 %v377, %v369
  %v514 = vpack.c.b16 %v378, %v370
  %v515 = vpack.c.b16 %v379, %v371
  %v516 = vpack.c.b16 %v380, %v372
  %v517 = vpack.c.b16 %v381, %v373
  %v518 = vpack.c.b16 %v390, %v382
  %v519 = vpack.c.b16 %v391, %v383
  %v520 = vpack.c.b16 %v392, %v384
  %v521 = vpack.c.b16 %v393, %v385
  %v522 = vpack.c.b16 %v394, %v386
  %v523 = vpack.c.b16 %v395, %v387
  %v524 = vpack.c.b16 %v396, %v388
  %v525 = vpack.c.b16 %v397, %v389
  %v526 = vpack.c.b16 %v406, %v398
  %v527 = vpack.c.b16 %v407, %v399
  %v528 = vpack.c.b16 %v408, %v400
  %v529 = vpack.c.b16 %v409, %v401
  %v530 = vpack.c.b16 %v410, %v402
  %v531 = vpack.c.b16 %v411, %v403
  %v532 = vpack.c.b16 %v412, %v404
  %v533 = vpack.c.b16 %v413, %v405
  %v534 = vpack.c.b16 %v422, %v414
  %v535 = vpack.c.b16 %v423, %v415
  %v536 = vpack.c.b16 %v424, %v416
  %v537 = vpack.c.b16 %v425, %v417
  %v538 = vpack.c.b16 %v426, %v418
  %v539 = vpack.c.b16 %v427, %v419
  %v540 = vpack.c.b16 %v428, %v420
  %v541 = vpack.c.b16 %v429, %v421
  %v542 = vpack.c.b16 %v438, %v430
  %v543 = vpack.c.b16 %v439, %v431
  %v544 = vpack.c.b16 %v440, %v432
  %v545 = vpack.c.b16 %v441, %v433
  %v546 = vpack.c.b16 %v442, %v434
  %v547 = vpack.c.b16 %v443, %v435
  %v548 = vpack.c.b16 %v444, %v436
  %v549 = vpack.c.b16 %v445, %v437
  %v550 = vpack.c.b16 %v454, %v446
  %v551 = vpack.c.b16 %v455, %v447
  %v552 = vpack.c.b16 %v456, %v448
  %v553 = vpack.c.b16 %v457, %v449
  %v554 = vpack.c.b16 %v458, %v450
  %v555 = vpack.c.b16 %v459, %v451
  %v556 = vpack.c.b16 %v460, %v452
  %v557 = vpack.c.b16 %v461, %v453
  %v558 = vpack.c.b16 %v470, %v462
  %v559 = vpack.c.b16 %v471, %v463
  %v560 = vpack.c.b16 %v472, %v464
  %v561 = vpack.c.b16 %v473, %v465
  %v562 = vpack.c.b16 %v474, %v466
  %v563 = vpack.c.b16 %v475, %v467
  %v564 = vpack.c.b16 %v476, %v468
  %v565 = vpack.c.b16 %v477, %v469
  %v566 = vpack.c.b16 %v478, %v478
  %v567 = vpack.c.b16 %v479, %v479
  %v568 = vpack.c.b16 %v480, %v480
  %v569 = vpack.c.b16 %v481, %v481
  %v570 = vpack.c.b16 %v482, %v482
  %v571 = vpack.c.b16 %v483, %v483
  %v572 = vpack.c.b16 %v484, %v484
  %v573 = vpack.c.b16 %v485, %v485
  %v790 = vunpack.c.l.b16 %v99
  %v791 = vunpack.c.l.b16 %v100
  %v792 = vunpack.c.l.b16 %v101
  %v793 = vunpack.c.l.b16 %v102
  %v794 = vunpack.c.l.b16 %v103
  %v795 = vunpack.c.l.b16 %v104
  %v796 = vunpack.c.l.b16 %v105
  %v797 = vunpack.c.l.b16 %v106
  %v798 = vunpack.c.l.b16 %v107
  %v799 = vunpack.c.l.b16 %v108
  %v800 = vunpack.c.l.b16 %v109
  %v801 = vunpack.c.l.b16 %v110
  %v802 = vunpack.c.l.b16 %v111
  %v803 = vunpack.c.l.b16 %v112
  %v804 = vunpack.c.l.b16 %v113
  %v805 = vunpack.c.l.b16 %v114
  %v806 = vunpack.c.l.b16 %v115
  %v807 = vunpack.c.l.b16 %v116
  %v808 = vunpack.c.l.b16 %v117
  %v809 = vunpack.c.l.b16 %v118
  %v810 = vunpack.c.l.b16 %v119
  %v811 = vunpack.c.l.b16 %v120
  %v812 = vunpack.c.l.b16 %v121
  %v813 = vunpack.c.l.b16 %v122
  %v814 = vunpack.c.l.b16 %v123
  %v815 = vunpack.c.l.b16 %v124
  %v816 = vunpack.c.l.b16 %v125
  %v817 = vunpack.c.l.b16 %v126
  %v818 = vunpack.c.l.b16 %v127
  %v819 = vunpack.c.l.b16 %v128
  %v820 = vunpack.c.l.b16 %v129
  %v821 = vunpack.c.l.b16 %v130
  %v822 = vunpack.c.l.b16 %v131
  %v823 = vunpack.c.l.b16 %v132
  %v824 = vunpack.c.l.b16 %v133
  %v825 = vunpack.c.l.b16 %v134
  %v826 = vunpack.c.l.b16 %v135
  %v827 = vunpack.c.l.b16 %v136
  %v828 = vunpack.c.l.b16 %v137
  %v829 = vunpack.c.l.b16 %v138
  %v830 = vunpack.c.l.b16 %v139
  %v831 = vunpack.c.l.b16 %v140
  %v832 = vunpack.c.l.b16 %v141
  %v833 = vunpack.c.l.b16 %v142
  %v834 = vunpack.c.l.b16 %v143
  %v835 = vunpack.c.l.b16 %v144
  %v836 = vunpack.c.l.b16 %v145
  %v837 = vunpack.c.l.b16 %v146
  %v838 = vunpack.c.l.b16 %v147
  %v839 = vunpack.c.l.b16 %v148
  %v840 = vunpack.c.l.b16 %v149
  %v841 = vunpack.c.l.b16 %v150
  %v842 = vunpack.c.l.b16 %v151
  %v843 = vunpack.c.l.b16 %v152
  %v844 = vunpack.c.l.b16 %v153
  %v845 = vunpack.c.l.b16 %v154
  %v846 = vunpack.c.l.b16 %v155
  %v847 = vunpack.c.l.b16 %v156
  %v848 = vunpack.c.l.b16 %v157
  %v849 = vunpack.c.l.b16 %v158
  %v850 = vunpack.c.l.b16 %v159
  %v851 = vunpack.c.l.b16 %v160
  %v852 = vunpack.c.l.b16 %v161
  %v853 = vunpack.c.l.b16 %v162
  %v854 = vunpack.c.l.b16 %v163
  %v855 = vunpack.c.l.b16 %v164
  %v856 = vunpack.c.l.b16 %v165
  %v857 = vunpack.c.l.b16 %v166
  %v858 = vunpack.c.l.b16 %v167
  %v859 = vunpack.c.l.b16 %v168
  %v860 = vunpack.c.l.b16 %v169
  %v861 = vunpack.c.l.b16 %v170
  %v862 = vunpack.c.l.b16 %v171
  %v863 = vunpack.c.l.b16 %v172
  %v864 = vunpack.c.l.b16 %v173
  %v865 = vunpack.c.l.b16 %v174
  %v866 = vunpack.c.l.b16 %v175
  %v867 = vunpack.c.l.b16 %v176
  %v868 = vunpack.c.l.b16 %v177
  %v869 = vunpack.c.l.b16 %v178
  %v870 = vunpack.c.l.b16 %v179
  %v871 = vunpack.c.l.b16 %v180
  %v872 = vunpack.c.l.b16 %v181
  %v873 = vunpack.c.l.b16 %v182
  %v874 = vunpack.c.l.b16 %v183
  %v875 = vunpack.c.l.b16 %v184
  %v876 = vunpack.c.l.b16 %v185
  %v877 = vunpack.c.l.b16 %v186
  %v878 = vunpack.c.l.b16 %v187
  %v879 = vunpack.c.l.b16 %v188
  %v880 = vunpack.c.l.b16 %v189
  %v881 = vunpack.c.l.b16 %v190
  %v882 = vunpack.c.l.b16 %v191
  %v883 = vunpack.c.l.b16 %v192
  %v884 = vunpack.c.l.b16 %v193
  %v885 = vunpack.c.l.b16 %v194
  %v886 = vunpack.c.l.b16 %v195
  %v887 = vunpack.c.l.b16 %v196
  %v888 = vunpack.c.l.b16 %v197
  %v889 = vunpack.c.l.b16 %v198
  %v890 = vunpack.c.l.b16 %v199
  %v891 = vunpack.c.l.b16 %v200
  %v892 = vunpack.c.l.b16 %v201
  %v893 = vunpack.c.l.b16 %v202
  %v894 = vunpack.c.l.b16 %v203
  %v895 = vunpack.c.l.b16 %v204
  %v896 = vunpack.c.l.b16 %v205
  %v897 = vunpack.c.l.b16 %v206
  %v898 = vunpack.c.l.b16 %v207
  %v899 = vunpack.c.l.b16 %v208
  %v900 = vunpack.c.l.b16 %v209
  %v901 = vunpack.c.l.b16 %v210
  %v902 = vunpack.c.l.b16 %v211
  %v903 = vunpack.c.l.b16 %v212
  %v904 = vunpack.c.l.b16 %v213
  %v905 = vunpack.c.l.b16 %v214
  %v906 = vunpack.c.l.b16 %v215
  %v907 = vunpack.c.l.b16 %v216
  %v908 = vunpack.c.l.b16 %v217
  %v909 = vunpack.c.l.b16 %v218
  %v910 = vunpack.c.l.b16 %v219
  %v911 = vunpack.c.l.b16 %v220
  %v912 = vunpack.c.l.b16 %v221
  %v913 = vunpack.c.l.b16 %v222
  %v914 = vunpack.c.l.b16 %v223
  %v915 = vunpack.c.l.b16 %v224
  %v916 = vunpack.c.l.b16 %v225
  %v917 = vunpack.c.l.b16 %v226
  %v918 = vpack.c.b16 %v791, %v790
  %v919 = vpack.c.b16 %v793, %v792
  %v920 = vpack.c.b16 %v795, %v794
  %v921 = vpack.c.b16 %v797, %v796
  %v922 = vpack.c.b16 %v799, %v798
  %v923 = vpack.c.b16 %v801, %v800
  %v924 = vpack.c.b16 %v803, %v802
  %v925 = vpack.c.b16 %v805, %v804
  %v926 = vpack.c.b16 %v807, %v806
  %v927 = vpack.c.b16 %v809, %v808
  %v928 = vpack.c.b16 %v811, %v810
  %v929 = vpack.c.b16 %v813, %v812
  %v930 = vpack.c.b16 %v815, %v814
  %v931 = vpack.c.b16 %v817, %v816
  %v932 = vpack.c.b16 %v819, %v818
  %v933 = vpack.c.b16 %v821, %v820
  %v934 = vpack.c.b16 %v823, %v822
  %v935 = vpack.c.b16 %v825, %v824
  %v936 = vpack.c.b16 %v827, %v826
  %v937 = vpack.c.b16 %v829, %v828
  %v938 = vpack.c.b16 %v831, %v830
  %v939 = vpack.c.b16 %v833, %v832
  %v940 = vpack.c.b16 %v835, %v834
  %v941 = vpack.c.b16 %v837, %v836
  %v942 = vpack.c.b16 %v839, %v838
  %v943 = vpack.c.b16 %v841, %v840
  %v944 = vpack.c.b16 %v843, %v842
  %v945 = vpack.c.b16 %v845, %v844
  %v946 = vpack.c.b16 %v847, %v846
  %v947 = vpack.c.b16 %v849, %v848
  %v948 = vpack.c.b16 %v851, %v850
  %v949 = vpack.c.b16 %v853, %v852
  %v950 = vpack.c.b16 %v855, %v854
  %v951 = vpack.c.b16 %v857, %v856
  %v952 = vpack.c.b16 %v859, %v858
  %v953 = vpack.c.b16 %v861, %v860
  %v954 = vpack.c.b16 %v863, %v862
  %v955 = vpack.c.b16 %v865, %v864
  %v956 = vpack.c.b16 %v867, %v866
  %v957 = vpack.c.b16 %v869, %v868
  %v958 = vpack.c.b16 %v871, %v870
  %v959 = vpack.c.b16 %v873, %v872
  %v960 = vpack.c.b16 %v875, %v874
  %v961 = vpack.c.b16 %v877, %v876
  %v962 = vpack.c.b16 %v879, %v878
  %v963 = vpack.c.b16 %v881, %v880
  %v964 = vpack.c.b16 %v883, %v882
  %v965 = vpack.c.b16 %v885, %v884
  %v966 = vpack.c.b16 %v887, %v886
  %v967 = vpack.c.b16 %v889, %v888
  %v968 = vpack.c.b16 %v891, %v890
  %v969 = vpack.c.b16 %v893, %v892
  %v970 = vpack.c.b16 %v895, %v894
  %v971 = vpack.c.b16 %v897, %v896
  %v972 = vpack.c.b16 %v899, %v898
  %v973 = vpack.c.b16 %v901, %v900
  %v974 = vpack.c.b16 %v903, %v902
  %v975 = vpack.c.b16 %v905, %v904
  %v976 = vpack.c.b16 %v907, %v906
  %v977 = vpack.c.b16 %v909, %v908
  %v978 = vpack.c.b16 %v911, %v910
  %v979 = vpack.c.b16 %v913, %v912
  %v980 = vpack.c.b16 %v915, %v914
  %v981 = vpack.c.b16 %v917, %v916
  %1046 = vmatprep.subr.bf16.mxu0 0
  %1047 = vmatpush1.bf16.msra.mxu0 %v925
  %1048 = vmatprep.subr.bf16.mxu0 0
  %1049 = vmatpush1.bf16.msra.mxu0 %v924
  %1050 = vmatprep.subr.bf16.mxu0 0
  %1051 = vmatpush1.bf16.msra.mxu0 %v923
  %1052 = vmatprep.subr.bf16.mxu0 0
  %1053 = vmatpush1.bf16.msra.mxu0 %v922
  %1054 = vmatprep.subr.bf16.mxu0 0
  %1055 = vmatpush1.bf16.msra.mxu0 %v921
  %1056 = vmatprep.subr.bf16.mxu0 0
  %1057 = vmatpush1.bf16.msra.mxu0 %v920
  %1058 = vmatprep.subr.bf16.mxu0 0
  %1059 = vmatpush1.bf16.msra.mxu0 %v919
  %1060 = vmatprep.subr.bf16.mxu0 0
  %1061 = vmatpush1.bf16.msra.mxu0 %v918
  %1062 = vmatprep.subr.bf16.mxu0 0
  %1063 = vmatpush2.bf16.msra.mxu0 %v933
  %1064 = vmatprep.subr.bf16.mxu0 0
  %1065 = vmatpush2.bf16.msra.mxu0 %v932
  %1066 = vmatprep.subr.bf16.mxu0 0
  %1067 = vmatpush2.bf16.msra.mxu0 %v931
  %1068 = vmatprep.subr.bf16.mxu0 0
  %1069 = vmatpush2.bf16.msra.mxu0 %v930
  %1070 = vmatprep.subr.bf16.mxu0 0
  %1071 = vmatpush2.bf16.msra.mxu0 %v929
  %1072 = vmatprep.subr.bf16.mxu0 0
  %1073 = vmatpush2.bf16.msra.mxu0 %v928
  %1074 = vmatprep.subr.bf16.mxu0 0
  %1075 = vmatpush2.bf16.msra.mxu0 %v927
  %1076 = vmatprep.subr.bf16.mxu0 0
  %1077 = vmatpush2.bf16.msra.mxu0 %v926
  %1078 = vmatprep.mubr.bf16.mxu0 %v487
  %1079 = vmatmul.mubr.bf16.gmra.mxu0 %v486
  %v1080 = vpop.f32.mrf.mxu0
  %v1081 = vadd.f32 %v232, %v1080
  %v1082 = vpop.f32.mrf.mxu0
  %v1083 = vpop.f32.mrf.mxu0
  %v1084 = vadd.f32 %v232, %v1083
  %v1085 = vpop.f32.mrf.mxu0
  %1086 = vmatprep.mubr.bf16.mxu0 %v495
  %1087 = vmatmul.mubr.bf16.gmra.mxu0 %v494
  %v1088 = vpop.f32.mrf.mxu0
  %v1089 = vadd.f32 %v232, %v1088
  %v1090 = vpop.f32.mrf.mxu0
  %v1091 = vpop.f32.mrf.mxu0
  %v1092 = vadd.f32 %v232, %v1091
  %v1093 = vpop.f32.mrf.mxu0
  %1094 = vmatprep.mubr.bf16.mxu0 %v503
  %1095 = vmatmul.mubr.bf16.gmra.mxu0 %v502
  %v1096 = vpop.f32.mrf.mxu0
  %v1097 = vadd.f32 %v232, %v1096
  %v1098 = vpop.f32.mrf.mxu0
  %v1099 = vpop.f32.mrf.mxu0
  %v1100 = vadd.f32 %v232, %v1099
  %v1101 = vpop.f32.mrf.mxu0
  %1102 = vmatprep.mubr.bf16.mxu0 %v511
  %1103 = vmatmul.mubr.bf16.gmra.mxu0 %v510
  %v1104 = vpop.f32.mrf.mxu0
  %v1105 = vadd.f32 %v232, %v1104
  %v1106 = vpop.f32.mrf.mxu0
  %v1107 = vpop.f32.mrf.mxu0
  %v1108 = vadd.f32 %v232, %v1107
  %v1109 = vpop.f32.mrf.mxu0
  %1110 = vmatprep.mubr.bf16.mxu0 %v519
  %1111 = vmatmul.mubr.bf16.gmra.mxu0 %v518
  %v1112 = vpop.f32.mrf.mxu0
  %v1113 = vadd.f32 %v232, %v1112
  %v1114 = vpop.f32.mrf.mxu0
  %v1115 = vpop.f32.mrf.mxu0
  %v1116 = vadd.f32 %v232, %v1115
  %v1117 = vpop.f32.mrf.mxu0
  %1118 = vmatprep.mubr.bf16.mxu0 %v527
  %1119 = vmatmul.mubr.bf16.gmra.mxu0 %v526
  %v1120 = vpop.f32.mrf.mxu0
  %v1121 = vadd.f32 %v232, %v1120
  %v1122 = vpop.f32.mrf.mxu0
  %v1123 = vpop.f32.mrf.mxu0
  %v1124 = vadd.f32 %v232, %v1123
  %v1125 = vpop.f32.mrf.mxu0
  %1126 = vmatprep.mubr.bf16.mxu0 %v535
  %1127 = vmatmul.mubr.bf16.gmra.mxu0 %v534
  %v1128 = vpop.f32.mrf.mxu0
  %v1129 = vadd.f32 %v232, %v1128
  %v1130 = vpop.f32.mrf.mxu0
  %v1131 = vpop.f32.mrf.mxu0
  %v1132 = vadd.f32 %v232, %v1131
  %v1133 = vpop.f32.mrf.mxu0
  %1134 = vmatprep.mubr.bf16.mxu0 %v543
  %1135 = vmatmul.mubr.bf16.gmra.mxu0 %v542
  %v1136 = vpop.f32.mrf.mxu0
  %v1137 = vadd.f32 %v232, %v1136
  %v1138 = vpop.f32.mrf.mxu0
  %v1139 = vpop.f32.mrf.mxu0
  %v1140 = vadd.f32 %v232, %v1139
  %v1141 = vpop.f32.mrf.mxu0
  %1142 = vmatprep.mubr.bf16.mxu0 %v551
  %1143 = vmatmul.mubr.bf16.gmra.mxu0 %v550
  %v1144 = vpop.f32.mrf.mxu0
  %v1145 = vadd.f32 %v232, %v1144
  %v1146 = vpop.f32.mrf.mxu0
  %v1147 = vpop.f32.mrf.mxu0
  %v1148 = vadd.f32 %v232, %v1147
  %v1149 = vpop.f32.mrf.mxu0
  %1150 = vmatprep.mubr.bf16.mxu0 %v559
  %1151 = vmatmul.mubr.bf16.gmra.mxu0 %v558
  %v1152 = vpop.f32.mrf.mxu0
  %v1153 = vadd.f32 %v232, %v1152
  %v1154 = vpop.f32.mrf.mxu0
  %v1155 = vpop.f32.mrf.mxu0
  %v1156 = vadd.f32 %v232, %v1155
  %v1157 = vpop.f32.mrf.mxu0
  %1158 = vmatprep.mubr.bf16.mxu0 %v567
  %1159 = vmatmul.mubr.bf16.gmra.mxu0 %v566
  %v1160 = vpop.f32.mrf.mxu0
  %v1161 = vadd.f32 %v232, %v1160
  %v1162 = vpop.f32.mrf.mxu0
  %v1163 = vpop.f32.mrf.mxu0
  %v1164 = vpop.f32.mrf.mxu0
  %1165 = vdwg.mxu0
  %1166 = vmatprep.subr.bf16.mxu0 0
  %1167 = vmatpush1.bf16.msra.mxu0 %v941
  %1168 = vmatprep.subr.bf16.mxu0 0
  %1169 = vmatpush1.bf16.msra.mxu0 %v940
  %1170 = vmatprep.subr.bf16.mxu0 0
  %1171 = vmatpush1.bf16.msra.mxu0 %v939
  %1172 = vmatprep.subr.bf16.mxu0 0
  %1173 = vmatpush1.bf16.msra.mxu0 %v938
  %1174 = vmatprep.subr.bf16.mxu0 0
  %1175 = vmatpush1.bf16.msra.mxu0 %v937
  %1176 = vmatprep.subr.bf16.mxu0 0
  %1177 = vmatpush1.bf16.msra.mxu0 %v936
  %1178 = vmatprep.subr.bf16.mxu0 0
  %1179 = vmatpush1.bf16.msra.mxu0 %v935
  %1180 = vmatprep.subr.bf16.mxu0 0
  %1181 = vmatpush1.bf16.msra.mxu0 %v934
  %1182 = vmatprep.subr.bf16.mxu0 0
  %1183 = vmatpush2.bf16.msra.mxu0 %v949
  %1184 = vmatprep.subr.bf16.mxu0 0
  %1185 = vmatpush2.bf16.msra.mxu0 %v948
  %1186 = vmatprep.subr.bf16.mxu0 0
  %1187 = vmatpush2.bf16.msra.mxu0 %v947
  %1188 = vmatprep.subr.bf16.mxu0 0
  %1189 = vmatpush2.bf16.msra.mxu0 %v946
  %1190 = vmatprep.subr.bf16.mxu0 0
  %1191 = vmatpush2.bf16.msra.mxu0 %v945
  %1192 = vmatprep.subr.bf16.mxu0 0
  %1193 = vmatpush2.bf16.msra.mxu0 %v944
  %1194 = vmatprep.subr.bf16.mxu0 0
  %1195 = vmatpush2.bf16.msra.mxu0 %v943
  %1196 = vmatprep.subr.bf16.mxu0 0
  %1197 = vmatpush2.bf16.msra.mxu0 %v942
  %1198 = vmatprep.mubr.bf16.mxu0 %v489
  %1199 = vmatmul.mubr.bf16.gmra.mxu0 %v488
  %v1200 = vpop.f32.mrf.mxu0
  %v1201 = vadd.f32 %v1081, %v1200
  %v1202 = vpop.f32.mrf.mxu0
  %v1203 = vpop.f32.mrf.mxu0
  %v1204 = vadd.f32 %v1084, %v1203
  %v1205 = vpop.f32.mrf.mxu0
  %1206 = vmatprep.mubr.bf16.mxu0 %v497
  %1207 = vmatmul.mubr.bf16.gmra.mxu0 %v496
  %v1208 = vpop.f32.mrf.mxu0
  %v1209 = vadd.f32 %v1089, %v1208
  %v1210 = vpop.f32.mrf.mxu0
  %v1211 = vpop.f32.mrf.mxu0
  %v1212 = vadd.f32 %v1092, %v1211
  %v1213 = vpop.f32.mrf.mxu0
  %1214 = vmatprep.mubr.bf16.mxu0 %v505
  %1215 = vmatmul.mubr.bf16.gmra.mxu0 %v504
  %v1216 = vpop.f32.mrf.mxu0
  %v1217 = vadd.f32 %v1097, %v1216
  %v1218 = vpop.f32.mrf.mxu0
  %v1219 = vpop.f32.mrf.mxu0
  %v1220 = vadd.f32 %v1100, %v1219
  %v1221 = vpop.f32.mrf.mxu0
  %1222 = vmatprep.mubr.bf16.mxu0 %v513
  %1223 = vmatmul.mubr.bf16.gmra.mxu0 %v512
  %v1224 = vpop.f32.mrf.mxu0
  %v1225 = vadd.f32 %v1105, %v1224
  %v1226 = vpop.f32.mrf.mxu0
  %v1227 = vpop.f32.mrf.mxu0
  %v1228 = vadd.f32 %v1108, %v1227
  %v1229 = vpop.f32.mrf.mxu0
  %1230 = vmatprep.mubr.bf16.mxu0 %v521
  %1231 = vmatmul.mubr.bf16.gmra.mxu0 %v520
  %v1232 = vpop.f32.mrf.mxu0
  %v1233 = vadd.f32 %v1113, %v1232
  %v1234 = vpop.f32.mrf.mxu0
  %v1235 = vpop.f32.mrf.mxu0
  %v1236 = vadd.f32 %v1116, %v1235
  %v1237 = vpop.f32.mrf.mxu0
  %1238 = vmatprep.mubr.bf16.mxu0 %v529
  %1239 = vmatmul.mubr.bf16.gmra.mxu0 %v528
  %v1240 = vpop.f32.mrf.mxu0
  %v1241 = vadd.f32 %v1121, %v1240
  %v1242 = vpop.f32.mrf.mxu0
  %v1243 = vpop.f32.mrf.mxu0
  %v1244 = vadd.f32 %v1124, %v1243
  %v1245 = vpop.f32.mrf.mxu0
  %1246 = vmatprep.mubr.bf16.mxu0 %v537
  %1247 = vmatmul.mubr.bf16.gmra.mxu0 %v536
  %v1248 = vpop.f32.mrf.mxu0
  %v1249 = vadd.f32 %v1129, %v1248
  %v1250 = vpop.f32.mrf.mxu0
  %v1251 = vpop.f32.mrf.mxu0
  %v1252 = vadd.f32 %v1132, %v1251
  %v1253 = vpop.f32.mrf.mxu0
  %1254 = vmatprep.mubr.bf16.mxu0 %v545
  %1255 = vmatmul.mubr.bf16.gmra.mxu0 %v544
  %v1256 = vpop.f32.mrf.mxu0
  %v1257 = vadd.f32 %v1137, %v1256
  %v1258 = vpop.f32.mrf.mxu0
  %v1259 = vpop.f32.mrf.mxu0
  %v1260 = vadd.f32 %v1140, %v1259
  %v1261 = vpop.f32.mrf.mxu0
  %1262 = vmatprep.mubr.bf16.mxu0 %v553
  %1263 = vmatmul.mubr.bf16.gmra.mxu0 %v552
  %v1264 = vpop.f32.mrf.mxu0
  %v1265 = vadd.f32 %v1145, %v1264
  %v1266 = vpop.f32.mrf.mxu0
  %v1267 = vpop.f32.mrf.mxu0
  %v1268 = vadd.f32 %v1148, %v1267
  %v1269 = vpop.f32.mrf.mxu0
  %1270 = vmatprep.mubr.bf16.mxu0 %v561
  %1271 = vmatmul.mubr.bf16.gmra.mxu0 %v560
  %v1272 = vpop.f32.mrf.mxu0
  %v1273 = vadd.f32 %v1153, %v1272
  %v1274 = vpop.f32.mrf.mxu0
  %v1275 = vpop.f32.mrf.mxu0
  %v1276 = vadd.f32 %v1156, %v1275
  %v1277 = vpop.f32.mrf.mxu0
  %1278 = vmatprep.mubr.bf16.mxu0 %v569
  %1279 = vmatmul.mubr.bf16.gmra.mxu0 %v568
  %v1280 = vpop.f32.mrf.mxu0
  %v1281 = vadd.f32 %v1161, %v1280
  %v1282 = vpop.f32.mrf.mxu0
  %v1283 = vpop.f32.mrf.mxu0
  %v1284 = vpop.f32.mrf.mxu0
  %1285 = vdwg.mxu0
  %1286 = vmatprep.subr.bf16.mxu0 0
  %1287 = vmatpush1.bf16.msra.mxu0 %v957
  %1288 = vmatprep.subr.bf16.mxu0 0
  %1289 = vmatpush1.bf16.msra.mxu0 %v956
  %1290 = vmatprep.subr.bf16.mxu0 0
  %1291 = vmatpush1.bf16.msra.mxu0 %v955
  %1292 = vmatprep.subr.bf16.mxu0 0
  %1293 = vmatpush1.bf16.msra.mxu0 %v954
  %1294 = vmatprep.subr.bf16.mxu0 0
  %1295 = vmatpush1.bf16.msra.mxu0 %v953
  %1296 = vmatprep.subr.bf16.mxu0 0
  %1297 = vmatpush1.bf16.msra.mxu0 %v952
  %1298 = vmatprep.subr.bf16.mxu0 0
  %1299 = vmatpush1.bf16.msra.mxu0 %v951
  %1300 = vmatprep.subr.bf16.mxu0 0
  %1301 = vmatpush1.bf16.msra.mxu0 %v950
  %1302 = vmatprep.subr.bf16.mxu0 0
  %1303 = vmatpush2.bf16.msra.mxu0 %v965
  %1304 = vmatprep.subr.bf16.mxu0 0
  %1305 = vmatpush2.bf16.msra.mxu0 %v964
  %1306 = vmatprep.subr.bf16.mxu0 0
  %1307 = vmatpush2.bf16.msra.mxu0 %v963
  %1308 = vmatprep.subr.bf16.mxu0 0
  %1309 = vmatpush2.bf16.msra.mxu0 %v962
  %1310 = vmatprep.subr.bf16.mxu0 0
  %1311 = vmatpush2.bf16.msra.mxu0 %v961
  %1312 = vmatprep.subr.bf16.mxu0 0
  %1313 = vmatpush2.bf16.msra.mxu0 %v960
  %1314 = vmatprep.subr.bf16.mxu0 0
  %1315 = vmatpush2.bf16.msra.mxu0 %v959
  %1316 = vmatprep.subr.bf16.mxu0 0
  %1317 = vmatpush2.bf16.msra.mxu0 %v958
  %1318 = vmatprep.mubr.bf16.mxu0 %v491
  %1319 = vmatmul.mubr.bf16.gmra.mxu0 %v490
  %v1320 = vpop.f32.mrf.mxu0
  %v1321 = vadd.f32 %v1201, %v1320
  %v1322 = vpop.f32.mrf.mxu0
  %v1323 = vpop.f32.mrf.mxu0
  %v1324 = vadd.f32 %v1204, %v1323
  %v1325 = vpop.f32.mrf.mxu0
  %1326 = vmatprep.mubr.bf16.mxu0 %v499
  %1327 = vmatmul.mubr.bf16.gmra.mxu0 %v498
  %v1328 = vpop.f32.mrf.mxu0
  %v1329 = vadd.f32 %v1209, %v1328
  %v1330 = vpop.f32.mrf.mxu0
  %v1331 = vpop.f32.mrf.mxu0
  %v1332 = vadd.f32 %v1212, %v1331
  %v1333 = vpop.f32.mrf.mxu0
  %1334 = vmatprep.mubr.bf16.mxu0 %v507
  %1335 = vmatmul.mubr.bf16.gmra.mxu0 %v506
  %v1336 = vpop.f32.mrf.mxu0
  %v1337 = vadd.f32 %v1217, %v1336
  %v1338 = vpop.f32.mrf.mxu0
  %v1339 = vpop.f32.mrf.mxu0
  %v1340 = vadd.f32 %v1220, %v1339
  %v1341 = vpop.f32.mrf.mxu0
  %1342 = vmatprep.mubr.bf16.mxu0 %v515
  %1343 = vmatmul.mubr.bf16.gmra.mxu0 %v514
  %v1344 = vpop.f32.mrf.mxu0
  %v1345 = vadd.f32 %v1225, %v1344
  %v1346 = vpop.f32.mrf.mxu0
  %v1347 = vpop.f32.mrf.mxu0
  %v1348 = vadd.f32 %v1228, %v1347
  %v1349 = vpop.f32.mrf.mxu0
  %1350 = vmatprep.mubr.bf16.mxu0 %v523
  %1351 = vmatmul.mubr.bf16.gmra.mxu0 %v522
  %v1352 = vpop.f32.mrf.mxu0
  %v1353 = vadd.f32 %v1233, %v1352
  %v1354 = vpop.f32.mrf.mxu0
  %v1355 = vpop.f32.mrf.mxu0
  %v1356 = vadd.f32 %v1236, %v1355
  %v1357 = vpop.f32.mrf.mxu0
  %1358 = vmatprep.mubr.bf16.mxu0 %v531
  %1359 = vmatmul.mubr.bf16.gmra.mxu0 %v530
  %v1360 = vpop.f32.mrf.mxu0
  %v1361 = vadd.f32 %v1241, %v1360
  %v1362 = vpop.f32.mrf.mxu0
  %v1363 = vpop.f32.mrf.mxu0
  %v1364 = vadd.f32 %v1244, %v1363
  %v1365 = vpop.f32.mrf.mxu0
  %1366 = vmatprep.mubr.bf16.mxu0 %v539
  %1367 = vmatmul.mubr.bf16.gmra.mxu0 %v538
  %v1368 = vpop.f32.mrf.mxu0
  %v1369 = vadd.f32 %v1249, %v1368
  %v1370 = vpop.f32.mrf.mxu0
  %v1371 = vpop.f32.mrf.mxu0
  %v1372 = vadd.f32 %v1252, %v1371
  %v1373 = vpop.f32.mrf.mxu0
  %1374 = vmatprep.mubr.bf16.mxu0 %v547
  %1375 = vmatmul.mubr.bf16.gmra.mxu0 %v546
  %v1376 = vpop.f32.mrf.mxu0
  %v1377 = vadd.f32 %v1257, %v1376
  %v1378 = vpop.f32.mrf.mxu0
  %v1379 = vpop.f32.mrf.mxu0
  %v1380 = vadd.f32 %v1260, %v1379
  %v1381 = vpop.f32.mrf.mxu0
  %1382 = vmatprep.mubr.bf16.mxu0 %v555
  %1383 = vmatmul.mubr.bf16.gmra.mxu0 %v554
  %v1384 = vpop.f32.mrf.mxu0
  %v1385 = vadd.f32 %v1265, %v1384
  %v1386 = vpop.f32.mrf.mxu0
  %v1387 = vpop.f32.mrf.mxu0
  %v1388 = vadd.f32 %v1268, %v1387
  %v1389 = vpop.f32.mrf.mxu0
  %1390 = vmatprep.mubr.bf16.mxu0 %v563
  %1391 = vmatmul.mubr.bf16.gmra.mxu0 %v562
  %v1392 = vpop.f32.mrf.mxu0
  %v1393 = vadd.f32 %v1273, %v1392
  %v1394 = vpop.f32.mrf.mxu0
  %v1395 = vpop.f32.mrf.mxu0
  %v1396 = vadd.f32 %v1276, %v1395
  %v1397 = vpop.f32.mrf.mxu0
  %1398 = vmatprep.mubr.bf16.mxu0 %v571
  %1399 = vmatmul.mubr.bf16.gmra.mxu0 %v570
  %v1400 = vpop.f32.mrf.mxu0
  %v1401 = vadd.f32 %v1281, %v1400
  %v1402 = vpop.f32.mrf.mxu0
  %v1403 = vpop.f32.mrf.mxu0
  %v1404 = vpop.f32.mrf.mxu0
  %1405 = vdwg.mxu0
  %1406 = vmatprep.subr.bf16.mxu0 0
  %1407 = vmatpush1.bf16.msra.mxu0 %v973
  %1408 = vmatprep.subr.bf16.mxu0 0
  %1409 = vmatpush1.bf16.msra.mxu0 %v972
  %1410 = vmatprep.subr.bf16.mxu0 0
  %1411 = vmatpush1.bf16.msra.mxu0 %v971
  %1412 = vmatprep.subr.bf16.mxu0 0
  %1413 = vmatpush1.bf16.msra.mxu0 %v970
  %1414 = vmatprep.subr.bf16.mxu0 0
  %1415 = vmatpush1.bf16.msra.mxu0 %v969
  %1416 = vmatprep.subr.bf16.mxu0 0
  %1417 = vmatpush1.bf16.msra.mxu0 %v968
  %1418 = vmatprep.subr.bf16.mxu0 0
  %1419 = vmatpush1.bf16.msra.mxu0 %v967
  %1420 = vmatprep.subr.bf16.mxu0 0
  %1421 = vmatpush1.bf16.msra.mxu0 %v966
  %1422 = vmatprep.subr.bf16.mxu0 0
  %1423 = vmatpush2.bf16.msra.mxu0 %v981
  %1424 = vmatprep.subr.bf16.mxu0 0
  %1425 = vmatpush2.bf16.msra.mxu0 %v980
  %1426 = vmatprep.subr.bf16.mxu0 0
  %1427 = vmatpush2.bf16.msra.mxu0 %v979
  %1428 = vmatprep.subr.bf16.mxu0 0
  %1429 = vmatpush2.bf16.msra.mxu0 %v978
  %1430 = vmatprep.subr.bf16.mxu0 0
  %1431 = vmatpush2.bf16.msra.mxu0 %v977
  %1432 = vmatprep.subr.bf16.mxu0 0
  %1433 = vmatpush2.bf16.msra.mxu0 %v976
  %1434 = vmatprep.subr.bf16.mxu0 0
  %1435 = vmatpush2.bf16.msra.mxu0 %v975
  %1436 = vmatprep.subr.bf16.mxu0 0
  %1437 = vmatpush2.bf16.msra.mxu0 %v974
  %1438 = vmatprep.mubr.bf16.mxu0 %v493
  %1439 = vmatmul.mubr.bf16.gmra.mxu0 %v492
  %v1440 = vpop.f32.mrf.mxu0
  %v1441 = vadd.f32 %v1321, %v1440
  %v1442 = vpop.f32.mrf.mxu0
  %v1443 = vpop.f32.mrf.mxu0
  %v1444 = vadd.f32 %v1324, %v1443
  %v1445 = vpop.f32.mrf.mxu0
  %1446 = vmatprep.mubr.bf16.mxu0 %v501
  %1447 = vmatmul.mubr.bf16.gmra.mxu0 %v500
  %v1448 = vpop.f32.mrf.mxu0
  %v1449 = vadd.f32 %v1329, %v1448
  %v1450 = vpop.f32.mrf.mxu0
  %v1451 = vpop.f32.mrf.mxu0
  %v1452 = vadd.f32 %v1332, %v1451
  %v1453 = vpop.f32.mrf.mxu0
  %1454 = vmatprep.mubr.bf16.mxu0 %v509
  %1455 = vmatmul.mubr.bf16.gmra.mxu0 %v508
  %v1456 = vpop.f32.mrf.mxu0
  %v1457 = vadd.f32 %v1337, %v1456
  %v1458 = vpop.f32.mrf.mxu0
  %v1459 = vpop.f32.mrf.mxu0
  %v1460 = vadd.f32 %v1340, %v1459
  %v1461 = vpop.f32.mrf.mxu0
  %1462 = vmatprep.mubr.bf16.mxu0 %v517
  %1463 = vmatmul.mubr.bf16.gmra.mxu0 %v516
  %v1464 = vpop.f32.mrf.mxu0
  %v1465 = vadd.f32 %v1345, %v1464
  %v1466 = vpop.f32.mrf.mxu0
  %v1467 = vpop.f32.mrf.mxu0
  %v1468 = vadd.f32 %v1348, %v1467
  %v1469 = vpop.f32.mrf.mxu0
  %1470 = vmatprep.mubr.bf16.mxu0 %v525
  %1471 = vmatmul.mubr.bf16.gmra.mxu0 %v524
  %v1472 = vpop.f32.mrf.mxu0
  %v1473 = vadd.f32 %v1353, %v1472
  %v1474 = vpop.f32.mrf.mxu0
  %v1475 = vpop.f32.mrf.mxu0
  %v1476 = vadd.f32 %v1356, %v1475
  %v1477 = vpop.f32.mrf.mxu0
  %1478 = vmatprep.mubr.bf16.mxu0 %v533
  %1479 = vmatmul.mubr.bf16.gmra.mxu0 %v532
  %v1480 = vpop.f32.mrf.mxu0
  %v1481 = vadd.f32 %v1361, %v1480
  %v1482 = vpop.f32.mrf.mxu0
  %v1483 = vpop.f32.mrf.mxu0
  %v1484 = vadd.f32 %v1364, %v1483
  %v1485 = vpop.f32.mrf.mxu0
  %1486 = vmatprep.mubr.bf16.mxu0 %v541
  %1487 = vmatmul.mubr.bf16.gmra.mxu0 %v540
  %v1488 = vpop.f32.mrf.mxu0
  %v1489 = vadd.f32 %v1369, %v1488
  %v1490 = vpop.f32.mrf.mxu0
  %v1491 = vpop.f32.mrf.mxu0
  %v1492 = vadd.f32 %v1372, %v1491
  %v1493 = vpop.f32.mrf.mxu0
  %1494 = vmatprep.mubr.bf16.mxu0 %v549
  %1495 = vmatmul.mubr.bf16.gmra.mxu0 %v548
  %v1496 = vpop.f32.mrf.mxu0
  %v1497 = vadd.f32 %v1377, %v1496
  %v1498 = vpop.f32.mrf.mxu0
  %v1499 = vpop.f32.mrf.mxu0
  %v1500 = vadd.f32 %v1380, %v1499
  %v1501 = vpop.f32.mrf.mxu0
  %1502 = vmatprep.mubr.bf16.mxu0 %v557
  %1503 = vmatmul.mubr.bf16.gmra.mxu0 %v556
  %v1504 = vpop.f32.mrf.mxu0
  %v1505 = vadd.f32 %v1385, %v1504
  %v1506 = vpop.f32.mrf.mxu0
  %v1507 = vpop.f32.mrf.mxu0
  %v1508 = vadd.f32 %v1388, %v1507
  %v1509 = vpop.f32.mrf.mxu0
  %1510 = vmatprep.mubr.bf16.mxu0 %v565
  %1511 = vmatmul.mubr.bf16.gmra.mxu0 %v564
  %v1512 = vpop.f32.mrf.mxu0
  %v1513 = vadd.f32 %v1393, %v1512
  %v1514 = vpop.f32.mrf.mxu0
  %v1515 = vpop.f32.mrf.mxu0
  %v1516 = vadd.f32 %v1396, %v1515
  %v1517 = vpop.f32.mrf.mxu0
  %1518 = vmatprep.mubr.bf16.mxu0 %v573
  %1519 = vmatmul.mubr.bf16.gmra.mxu0 %v572
  %v1520 = vpop.f32.mrf.mxu0
  %v1521 = vadd.f32 %v1401, %v1520
  %v1522 = vpop.f32.mrf.mxu0
  %v1523 = vpop.f32.mrf.mxu0
  %v1524 = vpop.f32.mrf.mxu0
  %1525 = vdwg.mxu0
  %vm1526 = vcmp.gt.f32.partialorder %v1441, 0.0
  %vm1527 = vcmp.gt.f32.partialorder %v1444, 0.0
  %vm1528 = vcmp.gt.f32.partialorder %v1449, 0.0
  %vm1529 = vcmp.gt.f32.partialorder %v1452, 0.0
  %vm1530 = vcmp.gt.f32.partialorder %v1457, 0.0
  %vm1531 = vcmp.gt.f32.partialorder %v1460, 0.0
  %vm1532 = vcmp.gt.f32.partialorder %v1465, 0.0
  %vm1533 = vcmp.gt.f32.partialorder %v1468, 0.0
  %vm1534 = vcmp.gt.f32.partialorder %v1473, 0.0
  %vm1535 = vcmp.gt.f32.partialorder %v1476, 0.0
  %vm1536 = vcmp.gt.f32.partialorder %v1481, 0.0
  %vm1537 = vcmp.gt.f32.partialorder %v1484, 0.0
  %vm1538 = vcmp.gt.f32.partialorder %v1489, 0.0
  %vm1539 = vcmp.gt.f32.partialorder %v1492, 0.0
  %vm1540 = vcmp.gt.f32.partialorder %v1497, 0.0
  %vm1541 = vcmp.gt.f32.partialorder %v1500, 0.0
  %vm1542 = vcmp.gt.f32.partialorder %v1505, 0.0
  %vm1543 = vcmp.gt.f32.partialorder %v1508, 0.0
  %vm1544 = vcmp.gt.f32.partialorder %v1513, 0.0
  %vm1545 = vcmp.gt.f32.partialorder %v1516, 0.0
  %vm1546 = vcmp.gt.f32.partialorder %v1521, 0.0
  %v1547 = vmul.f32 %v1441, 0.01
  %v1548 = vmul.f32 %v1444, 0.01
  %v1549 = vmul.f32 %v1449, 0.01
  %v1550 = vmul.f32 %v1452, 0.01
  %v1551 = vmul.f32 %v1457, 0.01
  %v1552 = vmul.f32 %v1460, 0.01
  %v1553 = vmul.f32 %v1465, 0.01
  %v1554 = vmul.f32 %v1468, 0.01
  %v1555 = vmul.f32 %v1473, 0.01
  %v1556 = vmul.f32 %v1476, 0.01
  %v1557 = vmul.f32 %v1481, 0.01
  %v1558 = vmul.f32 %v1484, 0.01
  %v1559 = vmul.f32 %v1489, 0.01
  %v1560 = vmul.f32 %v1492, 0.01
  %v1561 = vmul.f32 %v1497, 0.01
  %v1562 = vmul.f32 %v1500, 0.01
  %v1563 = vmul.f32 %v1505, 0.01
  %v1564 = vmul.f32 %v1508, 0.01
  %v1565 = vmul.f32 %v1513, 0.01
  %v1566 = vmul.f32 %v1516, 0.01
  %v1567 = vmul.f32 %v1521, 0.01
  %v1568 = vsel %vm1526, %v1441, %v1547
  %v1569 = vsel %vm1527, %v1444, %v1548
  %v1570 = vsel %vm1528, %v1449, %v1549
  %v1571 = vsel %vm1529, %v1452, %v1550
  %v1572 = vsel %vm1530, %v1457, %v1551
  %v1573 = vsel %vm1531, %v1460, %v1552
  %v1574 = vsel %vm1532, %v1465, %v1553
  %v1575 = vsel %vm1533, %v1468, %v1554
  %v1576 = vsel %vm1534, %v1473, %v1555
  %v1577 = vsel %vm1535, %v1476, %v1556
  %v1578 = vsel %vm1536, %v1481, %v1557
  %v1579 = vsel %vm1537, %v1484, %v1558
  %v1580 = vsel %vm1538, %v1489, %v1559
  %v1581 = vsel %vm1539, %v1492, %v1560
  %v1582 = vsel %vm1540, %v1497, %v1561
  %v1583 = vsel %vm1541, %v1500, %v1562
  %v1584 = vsel %vm1542, %v1505, %v1563
  %v1585 = vsel %vm1543, %v1508, %v1564
  %v1586 = vsel %vm1544, %v1513, %v1565
  %v1587 = vsel %vm1545, %v1516, %v1566
  %v1588 = vsel %vm1546, %v1521, %v1567
  %v1589 = vpack.c.bf16 %v1569, %v1568
  %v1590 = vpack.c.bf16 %v1571, %v1570
  %v1591 = vpack.c.bf16 %v1573, %v1572
  %v1592 = vpack.c.bf16 %v1575, %v1574
  %v1593 = vpack.c.bf16 %v1577, %v1576
  %v1594 = vpack.c.bf16 %v1579, %v1578
  %v1595 = vpack.c.bf16 %v1581, %v1580
  %v1596 = vpack.c.bf16 %v1583, %v1582
  %v1597 = vpack.c.bf16 %v1585, %v1584
  %v1598 = vpack.c.bf16 %v1587, %v1586
  %v1599 = vpack.c.bf16 %v1588, %v1588
  %v1611 = vunpack.c.l.b16 %v1589
  %v1612 = vunpack.c.h.b16 %v1589
  %v1613 = vunpack.c.l.b16 %v1590
  %v1614 = vunpack.c.h.b16 %v1590
  %v1615 = vunpack.c.l.b16 %v1591
  %v1616 = vunpack.c.h.b16 %v1591
  %v1617 = vunpack.c.l.b16 %v1592
  %v1618 = vunpack.c.h.b16 %v1592
  %v1619 = vunpack.c.l.b16 %v1593
  %v1620 = vunpack.c.h.b16 %v1593
  %v1621 = vunpack.c.l.b16 %v1594
  %v1622 = vunpack.c.h.b16 %v1594
  %v1623 = vunpack.c.l.b16 %v1595
  %v1624 = vunpack.c.h.b16 %v1595
  %v1625 = vunpack.c.l.b16 %v1596
  %v1626 = vunpack.c.h.b16 %v1596
  %v1627 = vunpack.c.l.b16 %v1597
  %v1628 = vunpack.c.h.b16 %v1597
  %v1629 = vunpack.c.l.b16 %v1598
  %v1630 = vunpack.c.h.b16 %v1598
  %v1631 = vunpack.c.l.b16 %v1599
  %v1632 = vpack.c.b16 %v1611, %v1611
  %v1633 = vpack.c.b16 %v1612, %v1612
  %v1634 = vpack.c.b16 %v1613, %v1613
  %v1635 = vpack.c.b16 %v1614, %v1614
  %v1636 = vpack.c.b16 %v1615, %v1615
  %v1637 = vpack.c.b16 %v1616, %v1616
  %v1638 = vpack.c.b16 %v1617, %v1617
  %v1639 = vpack.c.b16 %v1618, %v1618
  %v1640 = vpack.c.b16 %v1619, %v1619
  %v1641 = vpack.c.b16 %v1620, %v1620
  %v1642 = vpack.c.b16 %v1621, %v1621
  %v1643 = vpack.c.b16 %v1622, %v1622
  %v1644 = vpack.c.b16 %v1623, %v1623
  %v1645 = vpack.c.b16 %v1624, %v1624
  %v1646 = vpack.c.b16 %v1625, %v1625
  %v1647 = vpack.c.b16 %v1626, %v1626
  %v1648 = vpack.c.b16 %v1627, %v1627
  %v1649 = vpack.c.b16 %v1628, %v1628
  %v1650 = vpack.c.b16 %v1629, %v1629
  %v1651 = vpack.c.b16 %v1630, %v1630
  %v1652 = vpack.c.b16 %v1631, %v1631
  %1674 = vst [vmem:[%s3] sm:$0xf] %v1632
  %1675 = vst [vmem:[%s3 + $0x4] sm:$0xf] %v1633
  %1676 = vst [vmem:[%s3 + $0x8] sm:$0xf] %v1634
  %1677 = vst [vmem:[%s3 + $0xc] sm:$0xf] %v1635
  %1678 = vst [vmem:[%s3 + $0x10] sm:$0xf] %v1636
  %1679 = vst [vmem:[%s3 + $0x14] sm:$0xf] %v1637
  %1680 = vst [vmem:[%s3 + $0x18] sm:$0xf] %v1638
  %1681 = vst [vmem:[%s3 + $0x1c] sm:$0xf] %v1639
  %1682 = vst [vmem:[%s3 + $0x20] sm:$0xf] %v1640
  %1683 = vst [vmem:[%s3 + $0x24] sm:$0xf] %v1641
  %1684 = vst [vmem:[%s3 + $0x28] sm:$0xf] %v1642
  %1685 = vst [vmem:[%s3 + $0x2c] sm:$0xf] %v1643
  %1686 = vst [vmem:[%s3 + $0x30] sm:$0xf] %v1644
  %1687 = vst [vmem:[%s3 + $0x34] sm:$0xf] %v1645
  %1688 = vst [vmem:[%s3 + $0x38] sm:$0xf] %v1646
  %1689 = vst [vmem:[%s3 + $0x3c] sm:$0xf] %v1647
  %1690 = vst [vmem:[%s3 + $0x40] sm:$0xf] %v1648
  %1691 = vst [vmem:[%s3 + $0x44] sm:$0xf] %v1649
  %1692 = vst [vmem:[%s3 + $0x48] sm:$0xf] %v1650
  %1693 = vst [vmem:[%s3 + $0x4c] sm:$0xf] %v1651
  %1694 = vst [vmem:[%s3 + $0x50] sm:$0x1] %v1652
  // Predicated region
  $region14: #{rnd_forward.5} parent=0 // pred_check
    _
  $region15: #{rnd_forward.5} parent=0 // pred_check_branch
    %1696 = sbr.rel (0) target = $region17
  $region16: #{rnd_forward.5} parent=0 // pred_region
    _
  $region17: #{rnd_forward.5} parent=0 // pred_fallthru
    _
  // Predicated region
  $region18: #{rnd_forward.5} parent=0 // pred_check
    _
  $region19: #{rnd_forward.5} parent=0 // pred_check_branch
    %1698 = sbr.rel (0) target = $region21
  $region20: #{rnd_forward.5} parent=0 // pred_region
    _
  $region21: #{rnd_forward.5} parent=0 // pred_fallthru
    _

// kernel: rnd_forward.6
$region0: #{rnd_forward.6}
  #allocation0 [shape = 'u32[]', space=smem, size = 0x4, offset = 0x4, fixed_abs, tag = 'smem constant byte address 0x4 - core index']
  #allocation1 [shape = 'u32[144,128]{1,0:T(1,128)}', space=vmem, size = 0x12000, scoped, tag = 'internal scratch']
  %s0 = inlined_call_operand.vmem [shape: bf16[98,1152], index: 0, kind: input, shape index: {}]
  %s1 = inlined_call_operand.vmem [shape: bf16[1152,128], index: 1, kind: input, shape index: {}]
  %s2 = inlined_call_operand.vmem [shape: f32[1,128], index: 2, kind: input, shape index: {}]
  %s3 = inlined_call_operand.vmem [shape: bf16[98,128], index: 3, kind: output, shape index: {}]
  %s4 = sld [smem:[#allocation0]]
  $region22: #{rnd_forward.6} parent=0
    _
  %s6 = ssub.s32 1, %s4
  %s7 = scalar_select 0, %s6, %s4
  // Predicated region
  $region2: #{rnd_forward.6} parent=0 // pred_check
    _
  $region3: #{rnd_forward.6} parent=0 // pred_check_branch
    %9 = sbr.rel (0) target = $region5
  $region4: #{rnd_forward.6} parent=0 // pred_region
    _
  $region5: #{rnd_forward.6} parent=0 // pred_fallthru
    _
  // Predicated region
  $region6: #{rnd_forward.6} parent=0 // pred_check
    _
  $region7: #{rnd_forward.6} parent=0 // pred_check_branch
    %11 = sbr.rel (0) target = $region9
  $region8: #{rnd_forward.6} parent=0 // pred_region
    _
  $region9: #{rnd_forward.6} parent=0 // pred_fallthru
    _
  // Predicated region
  $region10: #{rnd_forward.6} parent=0 // pred_check
    _
  $region11: #{rnd_forward.6} parent=0 // pred_check_branch
    %13 = sbr.rel (0) target = $region13
  $region12: #{rnd_forward.6} parent=0 // pred_region
    _
  $region13: #{rnd_forward.6} parent=0 // pred_fallthru
    _
  %v15 = vld [vmem:[%s0] sm:$0xff]
  %v16 = vld [vmem:[%s0 + $0x8] sm:$0xff]
  %v17 = vld [vmem:[%s0 + $0x10] sm:$0xff]
  %v18 = vld [vmem:[%s0 + $0x18] sm:$0xff]
  %v19 = vld [vmem:[%s0 + $0x20] sm:$0xf]
  %v20 = vld [vmem:[%s0 + $0x24] sm:$0xff]
  %v21 = vld [vmem:[%s0 + $0x2c] sm:$0xff]
  %v22 = vld [vmem:[%s0 + $0x34] sm:$0xff]
  %v23 = vld [vmem:[%s0 + $0x3c] sm:$0xff]
  %v24 = vld [vmem:[%s0 + $0x44] sm:$0xf]
  %v25 = vld [vmem:[%s0 + $0x48] sm:$0xff]
  %v26 = vld [vmem:[%s0 + $0x50] sm:$0xff]
  %v27 = vld [vmem:[%s0 + $0x58] sm:$0xff]
  %v28 = vld [vmem:[%s0 + $0x60] sm:$0xff]
  %v29 = vld [vmem:[%s0 + $0x68] sm:$0xf]
  %v30 = vld [vmem:[%s0 + $0x6c] sm:$0xff]
  %v31 = vld [vmem:[%s0 + $0x74] sm:$0xff]
  %v32 = vld [vmem:[%s0 + $0x7c] sm:$0xff]
  %v33 = vld [vmem:[%s0 + $0x84] sm:$0xff]
  %v34 = vld [vmem:[%s0 + $0x8c] sm:$0xf]
  %v35 = vld [vmem:[%s0 + $0x90] sm:$0xff]
  %v36 = vld [vmem:[%s0 + $0x98] sm:$0xff]
  %v37 = vld [vmem:[%s0 + $0xa0] sm:$0xff]
  %v38 = vld [vmem:[%s0 + $0xa8] sm:$0xff]
  %v39 = vld [vmem:[%s0 + $0xb0] sm:$0xf]
  %v40 = vld [vmem:[%s0 + $0xb4] sm:$0xff]
  %v41 = vld [vmem:[%s0 + $0xbc] sm:$0xff]
  %v42 = vld [vmem:[%s0 + $0xc4] sm:$0xff]
  %v43 = vld [vmem:[%s0 + $0xcc] sm:$0xff]
  %v44 = vld [vmem:[%s0 + $0xd4] sm:$0xf]
  %v45 = vld [vmem:[%s0 + $0xd8] sm:$0xff]
  %v46 = vld [vmem:[%s0 + $0xe0] sm:$0xff]
  %v47 = vld [vmem:[%s0 + $0xe8] sm:$0xff]
  %v48 = vld [vmem:[%s0 + $0xf0] sm:$0xff]
  %v49 = vld [vmem:[%s0 + $0xf8] sm:$0xf]
  %v50 = vld [vmem:[%s0 + $0xfc] sm:$0xff]
  %v51 = vld [vmem:[%s0 + $0x104] sm:$0xff]
  %v52 = vld [vmem:[%s0 + $0x10c] sm:$0xff]
  %v53 = vld [vmem:[%s0 + $0x114] sm:$0xff]
  %v54 = vld [vmem:[%s0 + $0x11c] sm:$0xf]
  %v55 = vld [vmem:[%s0 + $0x120] sm:$0xff]
  %v56 = vld [vmem:[%s0 + $0x128] sm:$0xff]
  %v57 = vld [vmem:[%s0 + $0x130] sm:$0xff]
  %v58 = vld [vmem:[%s0 + $0x138] sm:$0xff]
  %v59 = vld [vmem:[%s0 + $0x140] sm:$0xf]
  %v60 = vld [vmem:[%s0 + $0x144] sm:$0xff]
  %v61 = vld [vmem:[%s0 + $0x14c] sm:$0xff]
  %v62 = vld [vmem:[%s0 + $0x154] sm:$0xff]
  %v63 = vld [vmem:[%s0 + $0x15c] sm:$0xff]
  %v64 = vld [vmem:[%s0 + $0x164] sm:$0xf]
  %v65 = vld [vmem:[%s0 + $0x168] sm:$0xff]
  %v66 = vld [vmem:[%s0 + $0x170] sm:$0xff]
  %v67 = vld [vmem:[%s0 + $0x178] sm:$0xff]
  %v68 = vld [vmem:[%s0 + $0x180] sm:$0xff]
  %v69 = vld [vmem:[%s0 + $0x188] sm:$0xf]
  %v70 = vld [vmem:[%s0 + $0x18c] sm:$0xff]
  %v71 = vld [vmem:[%s0 + $0x194] sm:$0xff]
  %v72 = vld [vmem:[%s0 + $0x19c] sm:$0xff]
  %v73 = vld [vmem:[%s0 + $0x1a4] sm:$0xff]
  %v74 = vld [vmem:[%s0 + $0x1ac] sm:$0xf]
  %v75 = vld [vmem:[%s0 + $0x1b0] sm:$0x11]
  %v76 = vld [vmem:[%s0 + $0x1b8] sm:$0x11]
  %v77 = vld [vmem:[%s0 + $0x1c0] sm:$0x11]
  %v78 = vld [vmem:[%s0 + $0x1c8] sm:$0x11]
  %v79 = vld [vmem:[%s0 + $0x1d0] sm:$0x1]
  %v80 = vld [vmem:[%s1] sm:$0xf]
  %v81 = vld [vmem:[%s1 + $0x4] sm:$0xf]
  %v82 = vld [vmem:[%s1 + $0x8] sm:$0xf]
  %v83 = vld [vmem:[%s1 + $0xc] sm:$0xf]
  %v84 = vld [vmem:[%s1 + $0x10] sm:$0xf]
  %v85 = vld [vmem:[%s1 + $0x14] sm:$0xf]
  %v86 = vld [vmem:[%s1 + $0x18] sm:$0xf]
  %v87 = vld [vmem:[%s1 + $0x1c] sm:$0xf]
  %v88 = vld [vmem:[%s1 + $0x20] sm:$0xf]
  %v89 = vld [vmem:[%s1 + $0x24] sm:$0xf]
  %v90 = vld [vmem:[%s1 + $0x28] sm:$0xf]
  %v91 = vld [vmem:[%s1 + $0x2c] sm:$0xf]
  %v92 = vld [vmem:[%s1 + $0x30] sm:$0xf]
  %v93 = vld [vmem:[%s1 + $0x34] sm:$0xf]
  %v94 = vld [vmem:[%s1 + $0x38] sm:$0xf]
  %v95 = vld [vmem:[%s1 + $0x3c] sm:$0xf]
  %v96 = vld [vmem:[%s1 + $0x40] sm:$0xf]
  %v97 = vld [vmem:[%s1 + $0x44] sm:$0xf]
  %v98 = vld [vmem:[%s1 + $0x48] sm:$0xf]
  %v99 = vld [vmem:[%s1 + $0x4c] sm:$0xf]
  %v100 = vld [vmem:[%s1 + $0x50] sm:$0xf]
  %v101 = vld [vmem:[%s1 + $0x54] sm:$0xf]
  %v102 = vld [vmem:[%s1 + $0x58] sm:$0xf]
  %v103 = vld [vmem:[%s1 + $0x5c] sm:$0xf]
  %v104 = vld [vmem:[%s1 + $0x60] sm:$0xf]
  %v105 = vld [vmem:[%s1 + $0x64] sm:$0xf]
  %v106 = vld [vmem:[%s1 + $0x68] sm:$0xf]
  %v107 = vld [vmem:[%s1 + $0x6c] sm:$0xf]
  %v108 = vld [vmem:[%s1 + $0x70] sm:$0xf]
  %v109 = vld [vmem:[%s1 + $0x74] sm:$0xf]
  %v110 = vld [vmem:[%s1 + $0x78] sm:$0xf]
  %v111 = vld [vmem:[%s1 + $0x7c] sm:$0xf]
  %v112 = vld [vmem:[%s1 + $0x80] sm:$0xf]
  %v113 = vld [vmem:[%s1 + $0x84] sm:$0xf]
  %v114 = vld [vmem:[%s1 + $0x88] sm:$0xf]
  %v115 = vld [vmem:[%s1 + $0x8c] sm:$0xf]
  %v116 = vld [vmem:[%s1 + $0x90] sm:$0xf]
  %v117 = vld [vmem:[%s1 + $0x94] sm:$0xf]
  %v118 = vld [vmem:[%s1 + $0x98] sm:$0xf]
  %v119 = vld [vmem:[%s1 + $0x9c] sm:$0xf]
  %v120 = vld [vmem:[%s1 + $0xa0] sm:$0xf]
  %v121 = vld [vmem:[%s1 + $0xa4] sm:$0xf]
  %v122 = vld [vmem:[%s1 + $0xa8] sm:$0xf]
  %v123 = vld [vmem:[%s1 + $0xac] sm:$0xf]
  %v124 = vld [vmem:[%s1 + $0xb0] sm:$0xf]
  %v125 = vld [vmem:[%s1 + $0xb4] sm:$0xf]
  %v126 = vld [vmem:[%s1 + $0xb8] sm:$0xf]
  %v127 = vld [vmem:[%s1 + $0xbc] sm:$0xf]
  %v128 = vld [vmem:[%s1 + $0xc0] sm:$0xf]
  %v129 = vld [vmem:[%s1 + $0xc4] sm:$0xf]
  %v130 = vld [vmem:[%s1 + $0xc8] sm:$0xf]
  %v131 = vld [vmem:[%s1 + $0xcc] sm:$0xf]
  %v132 = vld [vmem:[%s1 + $0xd0] sm:$0xf]
  %v133 = vld [vmem:[%s1 + $0xd4] sm:$0xf]
  %v134 = vld [vmem:[%s1 + $0xd8] sm:$0xf]
  %v135 = vld [vmem:[%s1 + $0xdc] sm:$0xf]
  %v136 = vld [vmem:[%s1 + $0xe0] sm:$0xf]
  %v137 = vld [vmem:[%s1 + $0xe4] sm:$0xf]
  %v138 = vld [vmem:[%s1 + $0xe8] sm:$0xf]
  %v139 = vld [vmem:[%s1 + $0xec] sm:$0xf]
  %v140 = vld [vmem:[%s1 + $0xf0] sm:$0xf]
  %v141 = vld [vmem:[%s1 + $0xf4] sm:$0xf]
  %v142 = vld [vmem:[%s1 + $0xf8] sm:$0xf]
  %v143 = vld [vmem:[%s1 + $0xfc] sm:$0xf]
  %v144 = vld [vmem:[%s1 + $0x100] sm:$0xf]
  %v145 = vld [vmem:[%s1 + $0x104] sm:$0xf]
  %v146 = vld [vmem:[%s1 + $0x108] sm:$0xf]
  %v147 = vld [vmem:[%s1 + $0x10c] sm:$0xf]
  %v148 = vld [vmem:[%s1 + $0x110] sm:$0xf]
  %v149 = vld [vmem:[%s1 + $0x114] sm:$0xf]
  %v150 = vld [vmem:[%s1 + $0x118] sm:$0xf]
  %v151 = vld [vmem:[%s1 + $0x11c] sm:$0xf]
  %v152 = vld [vmem:[%s1 + $0x120] sm:$0xf]
  %v153 = vld [vmem:[%s1 + $0x124] sm:$0xf]
  %v154 = vld [vmem:[%s1 + $0x128] sm:$0xf]
  %v155 = vld [vmem:[%s1 + $0x12c] sm:$0xf]
  %v156 = vld [vmem:[%s1 + $0x130] sm:$0xf]
  %v157 = vld [vmem:[%s1 + $0x134] sm:$0xf]
  %v158 = vld [vmem:[%s1 + $0x138] sm:$0xf]
  %v159 = vld [vmem:[%s1 + $0x13c] sm:$0xf]
  %v160 = vld [vmem:[%s1 + $0x140] sm:$0xf]
  %v161 = vld [vmem:[%s1 + $0x144] sm:$0xf]
  %v162 = vld [vmem:[%s1 + $0x148] sm:$0xf]
  %v163 = vld [vmem:[%s1 + $0x14c] sm:$0xf]
  %v164 = vld [vmem:[%s1 + $0x150] sm:$0xf]
  %v165 = vld [vmem:[%s1 + $0x154] sm:$0xf]
  %v166 = vld [vmem:[%s1 + $0x158] sm:$0xf]
  %v167 = vld [vmem:[%s1 + $0x15c] sm:$0xf]
  %v168 = vld [vmem:[%s1 + $0x160] sm:$0xf]
  %v169 = vld [vmem:[%s1 + $0x164] sm:$0xf]
  %v170 = vld [vmem:[%s1 + $0x168] sm:$0xf]
  %v171 = vld [vmem:[%s1 + $0x16c] sm:$0xf]
  %v172 = vld [vmem:[%s1 + $0x170] sm:$0xf]
  %v173 = vld [vmem:[%s1 + $0x174] sm:$0xf]
  %v174 = vld [vmem:[%s1 + $0x178] sm:$0xf]
  %v175 = vld [vmem:[%s1 + $0x17c] sm:$0xf]
  %v176 = vld [vmem:[%s1 + $0x180] sm:$0xf]
  %v177 = vld [vmem:[%s1 + $0x184] sm:$0xf]
  %v178 = vld [vmem:[%s1 + $0x188] sm:$0xf]
  %v179 = vld [vmem:[%s1 + $0x18c] sm:$0xf]
  %v180 = vld [vmem:[%s1 + $0x190] sm:$0xf]
  %v181 = vld [vmem:[%s1 + $0x194] sm:$0xf]
  %v182 = vld [vmem:[%s1 + $0x198] sm:$0xf]
  %v183 = vld [vmem:[%s1 + $0x19c] sm:$0xf]
  %v184 = vld [vmem:[%s1 + $0x1a0] sm:$0xf]
  %v185 = vld [vmem:[%s1 + $0x1a4] sm:$0xf]
  %v186 = vld [vmem:[%s1 + $0x1a8] sm:$0xf]
  %v187 = vld [vmem:[%s1 + $0x1ac] sm:$0xf]
  %v188 = vld [vmem:[%s1 + $0x1b0] sm:$0xf]
  %v189 = vld [vmem:[%s1 + $0x1b4] sm:$0xf]
  %v190 = vld [vmem:[%s1 + $0x1b8] sm:$0xf]
  %v191 = vld [vmem:[%s1 + $0x1bc] sm:$0xf]
  %v192 = vld [vmem:[%s1 + $0x1c0] sm:$0xf]
  %v193 = vld [vmem:[%s1 + $0x1c4] sm:$0xf]
  %v194 = vld [vmem:[%s1 + $0x1c8] sm:$0xf]
  %v195 = vld [vmem:[%s1 + $0x1cc] sm:$0xf]
  %v196 = vld [vmem:[%s1 + $0x1d0] sm:$0xf]
  %v197 = vld [vmem:[%s1 + $0x1d4] sm:$0xf]
  %v198 = vld [vmem:[%s1 + $0x1d8] sm:$0xf]
  %v199 = vld [vmem:[%s1 + $0x1dc] sm:$0xf]
  %v200 = vld [vmem:[%s1 + $0x1e0] sm:$0xf]
  %v201 = vld [vmem:[%s1 + $0x1e4] sm:$0xf]
  %v202 = vld [vmem:[%s1 + $0x1e8] sm:$0xf]
  %v203 = vld [vmem:[%s1 + $0x1ec] sm:$0xf]
  %v204 = vld [vmem:[%s1 + $0x1f0] sm:$0xf]
  %v205 = vld [vmem:[%s1 + $0x1f4] sm:$0xf]
  %v206 = vld [vmem:[%s1 + $0x1f8] sm:$0xf]
  %v207 = vld [vmem:[%s1 + $0x1fc] sm:$0xf]
  %v208 = vld [vmem:[%s1 + $0x200] sm:$0xf]
  %v209 = vld [vmem:[%s1 + $0x204] sm:$0xf]
  %v210 = vld [vmem:[%s1 + $0x208] sm:$0xf]
  %v211 = vld [vmem:[%s1 + $0x20c] sm:$0xf]
  %v212 = vld [vmem:[%s1 + $0x210] sm:$0xf]
  %v213 = vld [vmem:[%s1 + $0x214] sm:$0xf]
  %v214 = vld [vmem:[%s1 + $0x218] sm:$0xf]
  %v215 = vld [vmem:[%s1 + $0x21c] sm:$0xf]
  %v216 = vld [vmem:[%s1 + $0x220] sm:$0xf]
  %v217 = vld [vmem:[%s1 + $0x224] sm:$0xf]
  %v218 = vld [vmem:[%s1 + $0x228] sm:$0xf]
  %v219 = vld [vmem:[%s1 + $0x22c] sm:$0xf]
  %v220 = vld [vmem:[%s1 + $0x230] sm:$0xf]
  %v221 = vld [vmem:[%s1 + $0x234] sm:$0xf]
  %v222 = vld [vmem:[%s1 + $0x238] sm:$0xf]
  %v223 = vld [vmem:[%s1 + $0x23c] sm:$0xf]
  %v224 = vld [vmem:[%s2] sm:$0x1]
  %v226 = vlaneseq
  %v227 = vshrl.u32 %v226, 7
  %v228 = vsub.s32 0, %v227
  %v229 = vrot.slane %v224, %v228
  %v296 = vunpack.c.l.b16 %v15
  %v297 = vunpack.c.h.b16 %v15
  %v298 = vunpack.c.l.b16 %v16
  %v299 = vunpack.c.h.b16 %v16
  %v300 = vunpack.c.l.b16 %v17
  %v301 = vunpack.c.h.b16 %v17
  %v302 = vunpack.c.l.b16 %v18
  %v303 = vunpack.c.h.b16 %v18
  %v304 = vunpack.c.l.b16 %v19
  %v305 = vunpack.c.l.b16 %v20
  %v306 = vunpack.c.h.b16 %v20
  %v307 = vunpack.c.l.b16 %v21
  %v308 = vunpack.c.h.b16 %v21
  %v309 = vunpack.c.l.b16 %v22
  %v310 = vunpack.c.h.b16 %v22
  %v311 = vunpack.c.l.b16 %v23
  %v312 = vunpack.c.h.b16 %v23
  %v313 = vunpack.c.l.b16 %v24
  %v314 = vunpack.c.l.b16 %v25
  %v315 = vunpack.c.h.b16 %v25
  %v316 = vunpack.c.l.b16 %v26
  %v317 = vunpack.c.h.b16 %v26
  %v318 = vunpack.c.l.b16 %v27
  %v319 = vunpack.c.h.b16 %v27
  %v320 = vunpack.c.l.b16 %v28
  %v321 = vunpack.c.h.b16 %v28
  %v322 = vunpack.c.l.b16 %v29
  %v323 = vunpack.c.l.b16 %v30
  %v324 = vunpack.c.h.b16 %v30
  %v325 = vunpack.c.l.b16 %v31
  %v326 = vunpack.c.h.b16 %v31
  %v327 = vunpack.c.l.b16 %v32
  %v328 = vunpack.c.h.b16 %v32
  %v329 = vunpack.c.l.b16 %v33
  %v330 = vunpack.c.h.b16 %v33
  %v331 = vunpack.c.l.b16 %v34
  %v332 = vunpack.c.l.b16 %v35
  %v333 = vunpack.c.h.b16 %v35
  %v334 = vunpack.c.l.b16 %v36
  %v335 = vunpack.c.h.b16 %v36
  %v336 = vunpack.c.l.b16 %v37
  %v337 = vunpack.c.h.b16 %v37
  %v338 = vunpack.c.l.b16 %v38
  %v339 = vunpack.c.h.b16 %v38
  %v340 = vunpack.c.l.b16 %v39
  %v341 = vunpack.c.l.b16 %v40
  %v342 = vunpack.c.h.b16 %v40
  %v343 = vunpack.c.l.b16 %v41
  %v344 = vunpack.c.h.b16 %v41
  %v345 = vunpack.c.l.b16 %v42
  %v346 = vunpack.c.h.b16 %v42
  %v347 = vunpack.c.l.b16 %v43
  %v348 = vunpack.c.h.b16 %v43
  %v349 = vunpack.c.l.b16 %v44
  %v350 = vunpack.c.l.b16 %v45
  %v351 = vunpack.c.h.b16 %v45
  %v352 = vunpack.c.l.b16 %v46
  %v353 = vunpack.c.h.b16 %v46
  %v354 = vunpack.c.l.b16 %v47
  %v355 = vunpack.c.h.b16 %v47
  %v356 = vunpack.c.l.b16 %v48
  %v357 = vunpack.c.h.b16 %v48
  %v358 = vunpack.c.l.b16 %v49
  %v359 = vunpack.c.l.b16 %v50
  %v360 = vunpack.c.h.b16 %v50
  %v361 = vunpack.c.l.b16 %v51
  %v362 = vunpack.c.h.b16 %v51
  %v363 = vunpack.c.l.b16 %v52
  %v364 = vunpack.c.h.b16 %v52
  %v365 = vunpack.c.l.b16 %v53
  %v366 = vunpack.c.h.b16 %v53
  %v367 = vunpack.c.l.b16 %v54
  %v368 = vunpack.c.l.b16 %v55
  %v369 = vunpack.c.h.b16 %v55
  %v370 = vunpack.c.l.b16 %v56
  %v371 = vunpack.c.h.b16 %v56
  %v372 = vunpack.c.l.b16 %v57
  %v373 = vunpack.c.h.b16 %v57
  %v374 = vunpack.c.l.b16 %v58
  %v375 = vunpack.c.h.b16 %v58
  %v376 = vunpack.c.l.b16 %v59
  %v377 = vunpack.c.l.b16 %v60
  %v378 = vunpack.c.h.b16 %v60
  %v379 = vunpack.c.l.b16 %v61
  %v380 = vunpack.c.h.b16 %v61
  %v381 = vunpack.c.l.b16 %v62
  %v382 = vunpack.c.h.b16 %v62
  %v383 = vunpack.c.l.b16 %v63
  %v384 = vunpack.c.h.b16 %v63
  %v385 = vunpack.c.l.b16 %v64
  %v386 = vunpack.c.l.b16 %v65
  %v387 = vunpack.c.h.b16 %v65
  %v388 = vunpack.c.l.b16 %v66
  %v389 = vunpack.c.h.b16 %v66
  %v390 = vunpack.c.l.b16 %v67
  %v391 = vunpack.c.h.b16 %v67
  %v392 = vunpack.c.l.b16 %v68
  %v393 = vunpack.c.h.b16 %v68
  %v394 = vunpack.c.l.b16 %v69
  %v395 = vunpack.c.l.b16 %v70
  %v396 = vunpack.c.h.b16 %v70
  %v397 = vunpack.c.l.b16 %v71
  %v398 = vunpack.c.h.b16 %v71
  %v399 = vunpack.c.l.b16 %v72
  %v400 = vunpack.c.h.b16 %v72
  %v401 = vunpack.c.l.b16 %v73
  %v402 = vunpack.c.h.b16 %v73
  %v403 = vunpack.c.l.b16 %v74
  %v404 = vunpack.c.l.b16 %v75
  %v405 = vunpack.c.h.b16 %v75
  %v406 = vunpack.c.l.b16 %v76
  %v407 = vunpack.c.h.b16 %v76
  %v408 = vunpack.c.l.b16 %v77
  %v409 = vunpack.c.h.b16 %v77
  %v410 = vunpack.c.l.b16 %v78
  %v411 = vunpack.c.h.b16 %v78
  %v412 = vunpack.c.l.b16 %v79
  %v413 = vpack.c.b16 %v305, %v296
  %v414 = vpack.c.b16 %v306, %v297
  %v415 = vpack.c.b16 %v307, %v298
  %v416 = vpack.c.b16 %v308, %v299
  %v417 = vpack.c.b16 %v309, %v300
  %v418 = vpack.c.b16 %v310, %v301
  %v419 = vpack.c.b16 %v311, %v302
  %v420 = vpack.c.b16 %v312, %v303
  %v421 = vpack.c.b16 %v313, %v304
  %v422 = vpack.c.b16 %v323, %v314
  %v423 = vpack.c.b16 %v324, %v315
  %v424 = vpack.c.b16 %v325, %v316
  %v425 = vpack.c.b16 %v326, %v317
  %v426 = vpack.c.b16 %v327, %v318
  %v427 = vpack.c.b16 %v328, %v319
  %v428 = vpack.c.b16 %v329, %v320
  %v429 = vpack.c.b16 %v330, %v321
  %v430 = vpack.c.b16 %v331, %v322
  %v431 = vpack.c.b16 %v341, %v332
  %v432 = vpack.c.b16 %v342, %v333
  %v433 = vpack.c.b16 %v343, %v334
  %v434 = vpack.c.b16 %v344, %v335
  %v435 = vpack.c.b16 %v345, %v336
  %v436 = vpack.c.b16 %v346, %v337
  %v437 = vpack.c.b16 %v347, %v338
  %v438 = vpack.c.b16 %v348, %v339
  %v439 = vpack.c.b16 %v349, %v340
  %v440 = vpack.c.b16 %v359, %v350
  %v441 = vpack.c.b16 %v360, %v351
  %v442 = vpack.c.b16 %v361, %v352
  %v443 = vpack.c.b16 %v362, %v353
  %v444 = vpack.c.b16 %v363, %v354
  %v445 = vpack.c.b16 %v364, %v355
  %v446 = vpack.c.b16 %v365, %v356
  %v447 = vpack.c.b16 %v366, %v357
  %v448 = vpack.c.b16 %v367, %v358
  %v449 = vpack.c.b16 %v377, %v368
  %v450 = vpack.c.b16 %v378, %v369
  %v451 = vpack.c.b16 %v379, %v370
  %v452 = vpack.c.b16 %v380, %v371
  %v453 = vpack.c.b16 %v381, %v372
  %v454 = vpack.c.b16 %v382, %v373
  %v455 = vpack.c.b16 %v383, %v374
  %v456 = vpack.c.b16 %v384, %v375
  %v457 = vpack.c.b16 %v385, %v376
  %v458 = vpack.c.b16 %v395, %v386
  %v459 = vpack.c.b16 %v396, %v387
  %v460 = vpack.c.b16 %v397, %v388
  %v461 = vpack.c.b16 %v398, %v389
  %v462 = vpack.c.b16 %v399, %v390
  %v463 = vpack.c.b16 %v400, %v391
  %v464 = vpack.c.b16 %v401, %v392
  %v465 = vpack.c.b16 %v402, %v393
  %v466 = vpack.c.b16 %v403, %v394
  %v467 = vpack.c.b16 %v404, %v404
  %v468 = vpack.c.b16 %v405, %v405
  %v469 = vpack.c.b16 %v406, %v406
  %v470 = vpack.c.b16 %v407, %v407
  %v471 = vpack.c.b16 %v408, %v408
  %v472 = vpack.c.b16 %v409, %v409
  %v473 = vpack.c.b16 %v410, %v410
  %v474 = vpack.c.b16 %v411, %v411
  %v475 = vpack.c.b16 %v412, %v412
  %v683 = vunpack.c.l.b16 %v80
  %v684 = vunpack.c.l.b16 %v81
  %v685 = vunpack.c.l.b16 %v82
  %v686 = vunpack.c.l.b16 %v83
  %v687 = vunpack.c.l.b16 %v84
  %v688 = vunpack.c.l.b16 %v85
  %v689 = vunpack.c.l.b16 %v86
  %v690 = vunpack.c.l.b16 %v87
  %v691 = vunpack.c.l.b16 %v88
  %v692 = vunpack.c.l.b16 %v89
  %v693 = vunpack.c.l.b16 %v90
  %v694 = vunpack.c.l.b16 %v91
  %v695 = vunpack.c.l.b16 %v92
  %v696 = vunpack.c.l.b16 %v93
  %v697 = vunpack.c.l.b16 %v94
  %v698 = vunpack.c.l.b16 %v95
  %v699 = vunpack.c.l.b16 %v96
  %v700 = vunpack.c.l.b16 %v97
  %v701 = vunpack.c.l.b16 %v98
  %v702 = vunpack.c.l.b16 %v99
  %v703 = vunpack.c.l.b16 %v100
  %v704 = vunpack.c.l.b16 %v101
  %v705 = vunpack.c.l.b16 %v102
  %v706 = vunpack.c.l.b16 %v103
  %v707 = vunpack.c.l.b16 %v104
  %v708 = vunpack.c.l.b16 %v105
  %v709 = vunpack.c.l.b16 %v106
  %v710 = vunpack.c.l.b16 %v107
  %v711 = vunpack.c.l.b16 %v108
  %v712 = vunpack.c.l.b16 %v109
  %v713 = vunpack.c.l.b16 %v110
  %v714 = vunpack.c.l.b16 %v111
  %v715 = vunpack.c.l.b16 %v112
  %v716 = vunpack.c.l.b16 %v113
  %v717 = vunpack.c.l.b16 %v114
  %v718 = vunpack.c.l.b16 %v115
  %v719 = vunpack.c.l.b16 %v116
  %v720 = vunpack.c.l.b16 %v117
  %v721 = vunpack.c.l.b16 %v118
  %v722 = vunpack.c.l.b16 %v119
  %v723 = vunpack.c.l.b16 %v120
  %v724 = vunpack.c.l.b16 %v121
  %v725 = vunpack.c.l.b16 %v122
  %v726 = vunpack.c.l.b16 %v123
  %v727 = vunpack.c.l.b16 %v124
  %v728 = vunpack.c.l.b16 %v125
  %v729 = vunpack.c.l.b16 %v126
  %v730 = vunpack.c.l.b16 %v127
  %v731 = vunpack.c.l.b16 %v128
  %v732 = vunpack.c.l.b16 %v129
  %v733 = vunpack.c.l.b16 %v130
  %v734 = vunpack.c.l.b16 %v131
  %v735 = vunpack.c.l.b16 %v132
  %v736 = vunpack.c.l.b16 %v133
  %v737 = vunpack.c.l.b16 %v134
  %v738 = vunpack.c.l.b16 %v135
  %v739 = vunpack.c.l.b16 %v136
  %v740 = vunpack.c.l.b16 %v137
  %v741 = vunpack.c.l.b16 %v138
  %v742 = vunpack.c.l.b16 %v139
  %v743 = vunpack.c.l.b16 %v140
  %v744 = vunpack.c.l.b16 %v141
  %v745 = vunpack.c.l.b16 %v142
  %v746 = vunpack.c.l.b16 %v143
  %v747 = vunpack.c.l.b16 %v144
  %v748 = vunpack.c.l.b16 %v145
  %v749 = vunpack.c.l.b16 %v146
  %v750 = vunpack.c.l.b16 %v147
  %v751 = vunpack.c.l.b16 %v148
  %v752 = vunpack.c.l.b16 %v149
  %v753 = vunpack.c.l.b16 %v150
  %v754 = vunpack.c.l.b16 %v151
  %v755 = vunpack.c.l.b16 %v152
  %v756 = vunpack.c.l.b16 %v153
  %v757 = vunpack.c.l.b16 %v154
  %v758 = vunpack.c.l.b16 %v155
  %v759 = vunpack.c.l.b16 %v156
  %v760 = vunpack.c.l.b16 %v157
  %v761 = vunpack.c.l.b16 %v158
  %v762 = vunpack.c.l.b16 %v159
  %v763 = vunpack.c.l.b16 %v160
  %v764 = vunpack.c.l.b16 %v161
  %v765 = vunpack.c.l.b16 %v162
  %v766 = vunpack.c.l.b16 %v163
  %v767 = vunpack.c.l.b16 %v164
  %v768 = vunpack.c.l.b16 %v165
  %v769 = vunpack.c.l.b16 %v166
  %v770 = vunpack.c.l.b16 %v167
  %v771 = vunpack.c.l.b16 %v168
  %v772 = vunpack.c.l.b16 %v169
  %v773 = vunpack.c.l.b16 %v170
  %v774 = vunpack.c.l.b16 %v171
  %v775 = vunpack.c.l.b16 %v172
  %v776 = vunpack.c.l.b16 %v173
  %v777 = vunpack.c.l.b16 %v174
  %v778 = vunpack.c.l.b16 %v175
  %v779 = vunpack.c.l.b16 %v176
  %v780 = vunpack.c.l.b16 %v177
  %v781 = vunpack.c.l.b16 %v178
  %v782 = vunpack.c.l.b16 %v179
  %v783 = vunpack.c.l.b16 %v180
  %v784 = vunpack.c.l.b16 %v181
  %v785 = vunpack.c.l.b16 %v182
  %v786 = vunpack.c.l.b16 %v183
  %v787 = vunpack.c.l.b16 %v184
  %v788 = vunpack.c.l.b16 %v185
  %v789 = vunpack.c.l.b16 %v186
  %v790 = vunpack.c.l.b16 %v187
  %v791 = vunpack.c.l.b16 %v188
  %v792 = vunpack.c.l.b16 %v189
  %v793 = vunpack.c.l.b16 %v190
  %v794 = vunpack.c.l.b16 %v191
  %v795 = vunpack.c.l.b16 %v192
  %v796 = vunpack.c.l.b16 %v193
  %v797 = vunpack.c.l.b16 %v194
  %v798 = vunpack.c.l.b16 %v195
  %v799 = vunpack.c.l.b16 %v196
  %v800 = vunpack.c.l.b16 %v197
  %v801 = vunpack.c.l.b16 %v198
  %v802 = vunpack.c.l.b16 %v199
  %v803 = vunpack.c.l.b16 %v200
  %v804 = vunpack.c.l.b16 %v201
  %v805 = vunpack.c.l.b16 %v202
  %v806 = vunpack.c.l.b16 %v203
  %v807 = vunpack.c.l.b16 %v204
  %v808 = vunpack.c.l.b16 %v205
  %v809 = vunpack.c.l.b16 %v206
  %v810 = vunpack.c.l.b16 %v207
  %v811 = vunpack.c.l.b16 %v208
  %v812 = vunpack.c.l.b16 %v209
  %v813 = vunpack.c.l.b16 %v210
  %v814 = vunpack.c.l.b16 %v211
  %v815 = vunpack.c.l.b16 %v212
  %v816 = vunpack.c.l.b16 %v213
  %v817 = vunpack.c.l.b16 %v214
  %v818 = vunpack.c.l.b16 %v215
  %v819 = vunpack.c.l.b16 %v216
  %v820 = vunpack.c.l.b16 %v217
  %v821 = vunpack.c.l.b16 %v218
  %v822 = vunpack.c.l.b16 %v219
  %v823 = vunpack.c.l.b16 %v220
  %v824 = vunpack.c.l.b16 %v221
  %v825 = vunpack.c.l.b16 %v222
  %v826 = vunpack.c.l.b16 %v223
  %v827 = vpack.c.b16 %v684, %v683
  %v828 = vpack.c.b16 %v686, %v685
  %v829 = vpack.c.b16 %v688, %v687
  %v830 = vpack.c.b16 %v690, %v689
  %v831 = vpack.c.b16 %v692, %v691
  %v832 = vpack.c.b16 %v694, %v693
  %v833 = vpack.c.b16 %v696, %v695
  %v834 = vpack.c.b16 %v698, %v697
  %v835 = vpack.c.b16 %v700, %v699
  %v836 = vpack.c.b16 %v702, %v701
  %v837 = vpack.c.b16 %v704, %v703
  %v838 = vpack.c.b16 %v706, %v705
  %v839 = vpack.c.b16 %v708, %v707
  %v840 = vpack.c.b16 %v710, %v709
  %v841 = vpack.c.b16 %v712, %v711
  %v842 = vpack.c.b16 %v714, %v713
  %v843 = vpack.c.b16 %v716, %v715
  %v844 = vpack.c.b16 %v718, %v717
  %v845 = vpack.c.b16 %v720, %v719
  %v846 = vpack.c.b16 %v722, %v721
  %v847 = vpack.c.b16 %v724, %v723
  %v848 = vpack.c.b16 %v726, %v725
  %v849 = vpack.c.b16 %v728, %v727
  %v850 = vpack.c.b16 %v730, %v729
  %v851 = vpack.c.b16 %v732, %v731
  %v852 = vpack.c.b16 %v734, %v733
  %v853 = vpack.c.b16 %v736, %v735
  %v854 = vpack.c.b16 %v738, %v737
  %v855 = vpack.c.b16 %v740, %v739
  %v856 = vpack.c.b16 %v742, %v741
  %v857 = vpack.c.b16 %v744, %v743
  %v858 = vpack.c.b16 %v746, %v745
  %v859 = vpack.c.b16 %v748, %v747
  %v860 = vpack.c.b16 %v750, %v749
  %v861 = vpack.c.b16 %v752, %v751
  %v862 = vpack.c.b16 %v754, %v753
  %v863 = vpack.c.b16 %v756, %v755
  %v864 = vpack.c.b16 %v758, %v757
  %v865 = vpack.c.b16 %v760, %v759
  %v866 = vpack.c.b16 %v762, %v761
  %v867 = vpack.c.b16 %v764, %v763
  %v868 = vpack.c.b16 %v766, %v765
  %v869 = vpack.c.b16 %v768, %v767
  %v870 = vpack.c.b16 %v770, %v769
  %v871 = vpack.c.b16 %v772, %v771
  %v872 = vpack.c.b16 %v774, %v773
  %v873 = vpack.c.b16 %v776, %v775
  %v874 = vpack.c.b16 %v778, %v777
  %v875 = vpack.c.b16 %v780, %v779
  %v876 = vpack.c.b16 %v782, %v781
  %v877 = vpack.c.b16 %v784, %v783
  %v878 = vpack.c.b16 %v786, %v785
  %v879 = vpack.c.b16 %v788, %v787
  %v880 = vpack.c.b16 %v790, %v789
  %v881 = vpack.c.b16 %v792, %v791
  %v882 = vpack.c.b16 %v794, %v793
  %v883 = vpack.c.b16 %v796, %v795
  %v884 = vpack.c.b16 %v798, %v797
  %v885 = vpack.c.b16 %v800, %v799
  %v886 = vpack.c.b16 %v802, %v801
  %v887 = vpack.c.b16 %v804, %v803
  %v888 = vpack.c.b16 %v806, %v805
  %v889 = vpack.c.b16 %v808, %v807
  %v890 = vpack.c.b16 %v810, %v809
  %v891 = vpack.c.b16 %v812, %v811
  %v892 = vpack.c.b16 %v814, %v813
  %v893 = vpack.c.b16 %v816, %v815
  %v894 = vpack.c.b16 %v818, %v817
  %v895 = vpack.c.b16 %v820, %v819
  %v896 = vpack.c.b16 %v822, %v821
  %v897 = vpack.c.b16 %v824, %v823
  %v898 = vpack.c.b16 %v826, %v825
  %971 = vmatprep.subr.bf16.mxu0 0
  %972 = vmatpush1.bf16.msra.mxu0 %v834
  %973 = vmatprep.subr.bf16.mxu0 0
  %974 = vmatpush1.bf16.msra.mxu0 %v833
  %975 = vmatprep.subr.bf16.mxu0 0
  %976 = vmatpush1.bf16.msra.mxu0 %v832
  %977 = vmatprep.subr.bf16.mxu0 0
  %978 = vmatpush1.bf16.msra.mxu0 %v831
  %979 = vmatprep.subr.bf16.mxu0 0
  %980 = vmatpush1.bf16.msra.mxu0 %v830
  %981 = vmatprep.subr.bf16.mxu0 0
  %982 = vmatpush1.bf16.msra.mxu0 %v829
  %983 = vmatprep.subr.bf16.mxu0 0
  %984 = vmatpush1.bf16.msra.mxu0 %v828
  %985 = vmatprep.subr.bf16.mxu0 0
  %986 = vmatpush1.bf16.msra.mxu0 %v827
  %987 = vmatprep.subr.bf16.mxu0 0
  %988 = vmatpush2.bf16.msra.mxu0 %v842
  %989 = vmatprep.subr.bf16.mxu0 0
  %990 = vmatpush2.bf16.msra.mxu0 %v841
  %991 = vmatprep.subr.bf16.mxu0 0
  %992 = vmatpush2.bf16.msra.mxu0 %v840
  %993 = vmatprep.subr.bf16.mxu0 0
  %994 = vmatpush2.bf16.msra.mxu0 %v839
  %995 = vmatprep.subr.bf16.mxu0 0
  %996 = vmatpush2.bf16.msra.mxu0 %v838
  %997 = vmatprep.subr.bf16.mxu0 0
  %998 = vmatpush2.bf16.msra.mxu0 %v837
  %999 = vmatprep.subr.bf16.mxu0 0
  %1000 = vmatpush2.bf16.msra.mxu0 %v836
  %1001 = vmatprep.subr.bf16.mxu0 0
  %1002 = vmatpush2.bf16.msra.mxu0 %v835
  %1003 = vmatprep.mubr.bf16.mxu0 %v414
  %1004 = vmatmul.mubr.bf16.gmra.mxu0 %v413
  %v1005 = vpop.f32.mrf.mxu0
  %v1006 = vadd.f32 %v229, %v1005
  %v1007 = vpop.f32.mrf.mxu0
  %v1008 = vpop.f32.mrf.mxu0
  %v1009 = vadd.f32 %v229, %v1008
  %v1010 = vpop.f32.mrf.mxu0
  %1011 = vmatprep.mubr.bf16.mxu0 %v423
  %1012 = vmatmul.mubr.bf16.gmra.mxu0 %v422
  %v1013 = vpop.f32.mrf.mxu0
  %v1014 = vadd.f32 %v229, %v1013
  %v1015 = vpop.f32.mrf.mxu0
  %v1016 = vpop.f32.mrf.mxu0
  %v1017 = vadd.f32 %v229, %v1016
  %v1018 = vpop.f32.mrf.mxu0
  %1019 = vmatprep.mubr.bf16.mxu0 %v432
  %1020 = vmatmul.mubr.bf16.gmra.mxu0 %v431
  %v1021 = vpop.f32.mrf.mxu0
  %v1022 = vadd.f32 %v229, %v1021
  %v1023 = vpop.f32.mrf.mxu0
  %v1024 = vpop.f32.mrf.mxu0
  %v1025 = vadd.f32 %v229, %v1024
  %v1026 = vpop.f32.mrf.mxu0
  %1027 = vmatprep.mubr.bf16.mxu0 %v441
  %1028 = vmatmul.mubr.bf16.gmra.mxu0 %v440
  %v1029 = vpop.f32.mrf.mxu0
  %v1030 = vadd.f32 %v229, %v1029
  %v1031 = vpop.f32.mrf.mxu0
  %v1032 = vpop.f32.mrf.mxu0
  %v1033 = vadd.f32 %v229, %v1032
  %v1034 = vpop.f32.mrf.mxu0
  %1035 = vmatprep.mubr.bf16.mxu0 %v450
  %1036 = vmatmul.mubr.bf16.gmra.mxu0 %v449
  %v1037 = vpop.f32.mrf.mxu0
  %v1038 = vadd.f32 %v229, %v1037
  %v1039 = vpop.f32.mrf.mxu0
  %v1040 = vpop.f32.mrf.mxu0
  %v1041 = vadd.f32 %v229, %v1040
  %v1042 = vpop.f32.mrf.mxu0
  %1043 = vmatprep.mubr.bf16.mxu0 %v459
  %1044 = vmatmul.mubr.bf16.gmra.mxu0 %v458
  %v1045 = vpop.f32.mrf.mxu0
  %v1046 = vadd.f32 %v229, %v1045
  %v1047 = vpop.f32.mrf.mxu0
  %v1048 = vpop.f32.mrf.mxu0
  %v1049 = vadd.f32 %v229, %v1048
  %v1050 = vpop.f32.mrf.mxu0
  %1051 = vmatprep.mubr.bf16.mxu0 %v468
  %1052 = vmatmul.mubr.bf16.gmra.mxu0 %v467
  %v1053 = vpop.f32.mrf.mxu0
  %v1054 = vadd.f32 %v229, %v1053
  %v1055 = vpop.f32.mrf.mxu0
  %v1056 = vpop.f32.mrf.mxu0
  %v1057 = vpop.f32.mrf.mxu0
  %1058 = vdwg.mxu0
  %1059 = vmatprep.subr.bf16.mxu0 0
  %1060 = vmatpush1.bf16.msra.mxu0 %v850
  %1061 = vmatprep.subr.bf16.mxu0 0
  %1062 = vmatpush1.bf16.msra.mxu0 %v849
  %1063 = vmatprep.subr.bf16.mxu0 0
  %1064 = vmatpush1.bf16.msra.mxu0 %v848
  %1065 = vmatprep.subr.bf16.mxu0 0
  %1066 = vmatpush1.bf16.msra.mxu0 %v847
  %1067 = vmatprep.subr.bf16.mxu0 0
  %1068 = vmatpush1.bf16.msra.mxu0 %v846
  %1069 = vmatprep.subr.bf16.mxu0 0
  %1070 = vmatpush1.bf16.msra.mxu0 %v845
  %1071 = vmatprep.subr.bf16.mxu0 0
  %1072 = vmatpush1.bf16.msra.mxu0 %v844
  %1073 = vmatprep.subr.bf16.mxu0 0
  %1074 = vmatpush1.bf16.msra.mxu0 %v843
  %1075 = vmatprep.subr.bf16.mxu0 0
  %1076 = vmatpush2.bf16.msra.mxu0 %v858
  %1077 = vmatprep.subr.bf16.mxu0 0
  %1078 = vmatpush2.bf16.msra.mxu0 %v857
  %1079 = vmatprep.subr.bf16.mxu0 0
  %1080 = vmatpush2.bf16.msra.mxu0 %v856
  %1081 = vmatprep.subr.bf16.mxu0 0
  %1082 = vmatpush2.bf16.msra.mxu0 %v855
  %1083 = vmatprep.subr.bf16.mxu0 0
  %1084 = vmatpush2.bf16.msra.mxu0 %v854
  %1085 = vmatprep.subr.bf16.mxu0 0
  %1086 = vmatpush2.bf16.msra.mxu0 %v853
  %1087 = vmatprep.subr.bf16.mxu0 0
  %1088 = vmatpush2.bf16.msra.mxu0 %v852
  %1089 = vmatprep.subr.bf16.mxu0 0
  %1090 = vmatpush2.bf16.msra.mxu0 %v851
  %1091 = vmatprep.mubr.bf16.mxu0 %v416
  %1092 = vmatmul.mubr.bf16.gmra.mxu0 %v415
  %v1093 = vpop.f32.mrf.mxu0
  %v1094 = vadd.f32 %v1006, %v1093
  %v1095 = vpop.f32.mrf.mxu0
  %v1096 = vpop.f32.mrf.mxu0
  %v1097 = vadd.f32 %v1009, %v1096
  %v1098 = vpop.f32.mrf.mxu0
  %1099 = vmatprep.mubr.bf16.mxu0 %v425
  %1100 = vmatmul.mubr.bf16.gmra.mxu0 %v424
  %v1101 = vpop.f32.mrf.mxu0
  %v1102 = vadd.f32 %v1014, %v1101
  %v1103 = vpop.f32.mrf.mxu0
  %v1104 = vpop.f32.mrf.mxu0
  %v1105 = vadd.f32 %v1017, %v1104
  %v1106 = vpop.f32.mrf.mxu0
  %1107 = vmatprep.mubr.bf16.mxu0 %v434
  %1108 = vmatmul.mubr.bf16.gmra.mxu0 %v433
  %v1109 = vpop.f32.mrf.mxu0
  %v1110 = vadd.f32 %v1022, %v1109
  %v1111 = vpop.f32.mrf.mxu0
  %v1112 = vpop.f32.mrf.mxu0
  %v1113 = vadd.f32 %v1025, %v1112
  %v1114 = vpop.f32.mrf.mxu0
  %1115 = vmatprep.mubr.bf16.mxu0 %v443
  %1116 = vmatmul.mubr.bf16.gmra.mxu0 %v442
  %v1117 = vpop.f32.mrf.mxu0
  %v1118 = vadd.f32 %v1030, %v1117
  %v1119 = vpop.f32.mrf.mxu0
  %v1120 = vpop.f32.mrf.mxu0
  %v1121 = vadd.f32 %v1033, %v1120
  %v1122 = vpop.f32.mrf.mxu0
  %1123 = vmatprep.mubr.bf16.mxu0 %v452
  %1124 = vmatmul.mubr.bf16.gmra.mxu0 %v451
  %v1125 = vpop.f32.mrf.mxu0
  %v1126 = vadd.f32 %v1038, %v1125
  %v1127 = vpop.f32.mrf.mxu0
  %v1128 = vpop.f32.mrf.mxu0
  %v1129 = vadd.f32 %v1041, %v1128
  %v1130 = vpop.f32.mrf.mxu0
  %1131 = vmatprep.mubr.bf16.mxu0 %v461
  %1132 = vmatmul.mubr.bf16.gmra.mxu0 %v460
  %v1133 = vpop.f32.mrf.mxu0
  %v1134 = vadd.f32 %v1046, %v1133
  %v1135 = vpop.f32.mrf.mxu0
  %v1136 = vpop.f32.mrf.mxu0
  %v1137 = vadd.f32 %v1049, %v1136
  %v1138 = vpop.f32.mrf.mxu0
  %1139 = vmatprep.mubr.bf16.mxu0 %v470
  %1140 = vmatmul.mubr.bf16.gmra.mxu0 %v469
  %v1141 = vpop.f32.mrf.mxu0
  %v1142 = vadd.f32 %v1054, %v1141
  %v1143 = vpop.f32.mrf.mxu0
  %v1144 = vpop.f32.mrf.mxu0
  %v1145 = vpop.f32.mrf.mxu0
  %1146 = vdwg.mxu0
  %1147 = vmatprep.subr.bf16.mxu0 0
  %1148 = vmatpush1.bf16.msra.mxu0 %v866
  %1149 = vmatprep.subr.bf16.mxu0 0
  %1150 = vmatpush1.bf16.msra.mxu0 %v865
  %1151 = vmatprep.subr.bf16.mxu0 0
  %1152 = vmatpush1.bf16.msra.mxu0 %v864
  %1153 = vmatprep.subr.bf16.mxu0 0
  %1154 = vmatpush1.bf16.msra.mxu0 %v863
  %1155 = vmatprep.subr.bf16.mxu0 0
  %1156 = vmatpush1.bf16.msra.mxu0 %v862
  %1157 = vmatprep.subr.bf16.mxu0 0
  %1158 = vmatpush1.bf16.msra.mxu0 %v861
  %1159 = vmatprep.subr.bf16.mxu0 0
  %1160 = vmatpush1.bf16.msra.mxu0 %v860
  %1161 = vmatprep.subr.bf16.mxu0 0
  %1162 = vmatpush1.bf16.msra.mxu0 %v859
  %1163 = vmatprep.subr.bf16.mxu0 0
  %1164 = vmatpush2.bf16.msra.mxu0 %v874
  %1165 = vmatprep.subr.bf16.mxu0 0
  %1166 = vmatpush2.bf16.msra.mxu0 %v873
  %1167 = vmatprep.subr.bf16.mxu0 0
  %1168 = vmatpush2.bf16.msra.mxu0 %v872
  %1169 = vmatprep.subr.bf16.mxu0 0
  %1170 = vmatpush2.bf16.msra.mxu0 %v871
  %1171 = vmatprep.subr.bf16.mxu0 0
  %1172 = vmatpush2.bf16.msra.mxu0 %v870
  %1173 = vmatprep.subr.bf16.mxu0 0
  %1174 = vmatpush2.bf16.msra.mxu0 %v869
  %1175 = vmatprep.subr.bf16.mxu0 0
  %1176 = vmatpush2.bf16.msra.mxu0 %v868
  %1177 = vmatprep.subr.bf16.mxu0 0
  %1178 = vmatpush2.bf16.msra.mxu0 %v867
  %1179 = vmatprep.mubr.bf16.mxu0 %v418
  %1180 = vmatmul.mubr.bf16.gmra.mxu0 %v417
  %v1181 = vpop.f32.mrf.mxu0
  %v1182 = vadd.f32 %v1094, %v1181
  %v1183 = vpop.f32.mrf.mxu0
  %v1184 = vpop.f32.mrf.mxu0
  %v1185 = vadd.f32 %v1097, %v1184
  %v1186 = vpop.f32.mrf.mxu0
  %1187 = vmatprep.mubr.bf16.mxu0 %v427
  %1188 = vmatmul.mubr.bf16.gmra.mxu0 %v426
  %v1189 = vpop.f32.mrf.mxu0
  %v1190 = vadd.f32 %v1102, %v1189
  %v1191 = vpop.f32.mrf.mxu0
  %v1192 = vpop.f32.mrf.mxu0
  %v1193 = vadd.f32 %v1105, %v1192
  %v1194 = vpop.f32.mrf.mxu0
  %1195 = vmatprep.mubr.bf16.mxu0 %v436
  %1196 = vmatmul.mubr.bf16.gmra.mxu0 %v435
  %v1197 = vpop.f32.mrf.mxu0
  %v1198 = vadd.f32 %v1110, %v1197
  %v1199 = vpop.f32.mrf.mxu0
  %v1200 = vpop.f32.mrf.mxu0
  %v1201 = vadd.f32 %v1113, %v1200
  %v1202 = vpop.f32.mrf.mxu0
  %1203 = vmatprep.mubr.bf16.mxu0 %v445
  %1204 = vmatmul.mubr.bf16.gmra.mxu0 %v444
  %v1205 = vpop.f32.mrf.mxu0
  %v1206 = vadd.f32 %v1118, %v1205
  %v1207 = vpop.f32.mrf.mxu0
  %v1208 = vpop.f32.mrf.mxu0
  %v1209 = vadd.f32 %v1121, %v1208
  %v1210 = vpop.f32.mrf.mxu0
  %1211 = vmatprep.mubr.bf16.mxu0 %v454
  %1212 = vmatmul.mubr.bf16.gmra.mxu0 %v453
  %v1213 = vpop.f32.mrf.mxu0
  %v1214 = vadd.f32 %v1126, %v1213
  %v1215 = vpop.f32.mrf.mxu0
  %v1216 = vpop.f32.mrf.mxu0
  %v1217 = vadd.f32 %v1129, %v1216
  %v1218 = vpop.f32.mrf.mxu0
  %1219 = vmatprep.mubr.bf16.mxu0 %v463
  %1220 = vmatmul.mubr.bf16.gmra.mxu0 %v462
  %v1221 = vpop.f32.mrf.mxu0
  %v1222 = vadd.f32 %v1134, %v1221
  %v1223 = vpop.f32.mrf.mxu0
  %v1224 = vpop.f32.mrf.mxu0
  %v1225 = vadd.f32 %v1137, %v1224
  %v1226 = vpop.f32.mrf.mxu0
  %1227 = vmatprep.mubr.bf16.mxu0 %v472
  %1228 = vmatmul.mubr.bf16.gmra.mxu0 %v471
  %v1229 = vpop.f32.mrf.mxu0
  %v1230 = vadd.f32 %v1142, %v1229
  %v1231 = vpop.f32.mrf.mxu0
  %v1232 = vpop.f32.mrf.mxu0
  %v1233 = vpop.f32.mrf.mxu0
  %1234 = vdwg.mxu0
  %1235 = vmatprep.subr.bf16.mxu0 0
  %1236 = vmatpush1.bf16.msra.mxu0 %v882
  %1237 = vmatprep.subr.bf16.mxu0 0
  %1238 = vmatpush1.bf16.msra.mxu0 %v881
  %1239 = vmatprep.subr.bf16.mxu0 0
  %1240 = vmatpush1.bf16.msra.mxu0 %v880
  %1241 = vmatprep.subr.bf16.mxu0 0
  %1242 = vmatpush1.bf16.msra.mxu0 %v879
  %1243 = vmatprep.subr.bf16.mxu0 0
  %1244 = vmatpush1.bf16.msra.mxu0 %v878
  %1245 = vmatprep.subr.bf16.mxu0 0
  %1246 = vmatpush1.bf16.msra.mxu0 %v877
  %1247 = vmatprep.subr.bf16.mxu0 0
  %1248 = vmatpush1.bf16.msra.mxu0 %v876
  %1249 = vmatprep.subr.bf16.mxu0 0
  %1250 = vmatpush1.bf16.msra.mxu0 %v875
  %1251 = vmatprep.subr.bf16.mxu0 0
  %1252 = vmatpush2.bf16.msra.mxu0 %v890
  %1253 = vmatprep.subr.bf16.mxu0 0
  %1254 = vmatpush2.bf16.msra.mxu0 %v889
  %1255 = vmatprep.subr.bf16.mxu0 0
  %1256 = vmatpush2.bf16.msra.mxu0 %v888
  %1257 = vmatprep.subr.bf16.mxu0 0
  %1258 = vmatpush2.bf16.msra.mxu0 %v887
  %1259 = vmatprep.subr.bf16.mxu0 0
  %1260 = vmatpush2.bf16.msra.mxu0 %v886
  %1261 = vmatprep.subr.bf16.mxu0 0
  %1262 = vmatpush2.bf16.msra.mxu0 %v885
  %1263 = vmatprep.subr.bf16.mxu0 0
  %1264 = vmatpush2.bf16.msra.mxu0 %v884
  %1265 = vmatprep.subr.bf16.mxu0 0
  %1266 = vmatpush2.bf16.msra.mxu0 %v883
  %1267 = vmatprep.mubr.bf16.mxu0 %v420
  %1268 = vmatmul.mubr.bf16.gmra.mxu0 %v419
  %v1269 = vpop.f32.mrf.mxu0
  %v1270 = vadd.f32 %v1182, %v1269
  %v1271 = vpop.f32.mrf.mxu0
  %v1272 = vpop.f32.mrf.mxu0
  %v1273 = vadd.f32 %v1185, %v1272
  %v1274 = vpop.f32.mrf.mxu0
  %1275 = vmatprep.mubr.bf16.mxu0 %v429
  %1276 = vmatmul.mubr.bf16.gmra.mxu0 %v428
  %v1277 = vpop.f32.mrf.mxu0
  %v1278 = vadd.f32 %v1190, %v1277
  %v1279 = vpop.f32.mrf.mxu0
  %v1280 = vpop.f32.mrf.mxu0
  %v1281 = vadd.f32 %v1193, %v1280
  %v1282 = vpop.f32.mrf.mxu0
  %1283 = vmatprep.mubr.bf16.mxu0 %v438
  %1284 = vmatmul.mubr.bf16.gmra.mxu0 %v437
  %v1285 = vpop.f32.mrf.mxu0
  %v1286 = vadd.f32 %v1198, %v1285
  %v1287 = vpop.f32.mrf.mxu0
  %v1288 = vpop.f32.mrf.mxu0
  %v1289 = vadd.f32 %v1201, %v1288
  %v1290 = vpop.f32.mrf.mxu0
  %1291 = vmatprep.mubr.bf16.mxu0 %v447
  %1292 = vmatmul.mubr.bf16.gmra.mxu0 %v446
  %v1293 = vpop.f32.mrf.mxu0
  %v1294 = vadd.f32 %v1206, %v1293
  %v1295 = vpop.f32.mrf.mxu0
  %v1296 = vpop.f32.mrf.mxu0
  %v1297 = vadd.f32 %v1209, %v1296
  %v1298 = vpop.f32.mrf.mxu0
  %1299 = vmatprep.mubr.bf16.mxu0 %v456
  %1300 = vmatmul.mubr.bf16.gmra.mxu0 %v455
  %v1301 = vpop.f32.mrf.mxu0
  %v1302 = vadd.f32 %v1214, %v1301
  %v1303 = vpop.f32.mrf.mxu0
  %v1304 = vpop.f32.mrf.mxu0
  %v1305 = vadd.f32 %v1217, %v1304
  %v1306 = vpop.f32.mrf.mxu0
  %1307 = vmatprep.mubr.bf16.mxu0 %v465
  %1308 = vmatmul.mubr.bf16.gmra.mxu0 %v464
  %v1309 = vpop.f32.mrf.mxu0
  %v1310 = vadd.f32 %v1222, %v1309
  %v1311 = vpop.f32.mrf.mxu0
  %v1312 = vpop.f32.mrf.mxu0
  %v1313 = vadd.f32 %v1225, %v1312
  %v1314 = vpop.f32.mrf.mxu0
  %1315 = vmatprep.mubr.bf16.mxu0 %v474
  %1316 = vmatmul.mubr.bf16.gmra.mxu0 %v473
  %v1317 = vpop.f32.mrf.mxu0
  %v1318 = vadd.f32 %v1230, %v1317
  %v1319 = vpop.f32.mrf.mxu0
  %v1320 = vpop.f32.mrf.mxu0
  %v1321 = vpop.f32.mrf.mxu0
  %1322 = vdwg.mxu0
  %1323 = vmatprep.subr.bf16.mxu0 0
  %1324 = vmatpush1.bf16.msra.mxu0 %v898
  %1325 = vmatprep.subr.bf16.mxu0 0
  %1326 = vmatpush1.bf16.msra.mxu0 %v897
  %1327 = vmatprep.subr.bf16.mxu0 0
  %1328 = vmatpush1.bf16.msra.mxu0 %v896
  %1329 = vmatprep.subr.bf16.mxu0 0
  %1330 = vmatpush1.bf16.msra.mxu0 %v895
  %1331 = vmatprep.subr.bf16.mxu0 0
  %1332 = vmatpush1.bf16.msra.mxu0 %v894
  %1333 = vmatprep.subr.bf16.mxu0 0
  %1334 = vmatpush1.bf16.msra.mxu0 %v893
  %1335 = vmatprep.subr.bf16.mxu0 0
  %1336 = vmatpush1.bf16.msra.mxu0 %v892
  %1337 = vmatprep.subr.bf16.mxu0 0
  %1338 = vmatpush1.bf16.msra.mxu0 %v891
  %1339 = vmatprep.subr.bf16.mxu0 0
  %1340 = vmatpush2.bf16.msra.mxu0 0
  %1341 = vmatprep.subr.bf16.mxu0 0
  %1342 = vmatpush2.bf16.msra.mxu0 0
  %1343 = vmatprep.subr.bf16.mxu0 0
  %1344 = vmatpush2.bf16.msra.mxu0 0
  %1345 = vmatprep.subr.bf16.mxu0 0
  %1346 = vmatpush2.bf16.msra.mxu0 0
  %1347 = vmatprep.subr.bf16.mxu0 0
  %1348 = vmatpush2.bf16.msra.mxu0 0
  %1349 = vmatprep.subr.bf16.mxu0 0
  %1350 = vmatpush2.bf16.msra.mxu0 0
  %1351 = vmatprep.subr.bf16.mxu0 0
  %1352 = vmatpush2.bf16.msra.mxu0 0
  %1353 = vmatprep.subr.bf16.mxu0 0
  %1354 = vmatpush2.bf16.msra.mxu0 0
  %1355 = vmatprep.mubr.bf16.mxu0 0
  %1356 = vmatmul.mubr.bf16.gmra.mxu0 %v421
  %v1357 = vpop.f32.mrf.mxu0
  %v1358 = vadd.f32 %v1270, %v1357
  %v1359 = vpop.f32.mrf.mxu0
  %v1360 = vpop.f32.mrf.mxu0
  %v1361 = vadd.f32 %v1273, %v1360
  %v1362 = vpop.f32.mrf.mxu0
  %1363 = vmatprep.mubr.bf16.mxu0 0
  %1364 = vmatmul.mubr.bf16.gmra.mxu0 %v430
  %v1365 = vpop.f32.mrf.mxu0
  %v1366 = vadd.f32 %v1278, %v1365
  %v1367 = vpop.f32.mrf.mxu0
  %v1368 = vpop.f32.mrf.mxu0
  %v1369 = vadd.f32 %v1281, %v1368
  %v1370 = vpop.f32.mrf.mxu0
  %1371 = vmatprep.mubr.bf16.mxu0 0
  %1372 = vmatmul.mubr.bf16.gmra.mxu0 %v439
  %v1373 = vpop.f32.mrf.mxu0
  %v1374 = vadd.f32 %v1286, %v1373
  %v1375 = vpop.f32.mrf.mxu0
  %v1376 = vpop.f32.mrf.mxu0
  %v1377 = vadd.f32 %v1289, %v1376
  %v1378 = vpop.f32.mrf.mxu0
  %1379 = vmatprep.mubr.bf16.mxu0 0
  %1380 = vmatmul.mubr.bf16.gmra.mxu0 %v448
  %v1381 = vpop.f32.mrf.mxu0
  %v1382 = vadd.f32 %v1294, %v1381
  %v1383 = vpop.f32.mrf.mxu0
  %v1384 = vpop.f32.mrf.mxu0
  %v1385 = vadd.f32 %v1297, %v1384
  %v1386 = vpop.f32.mrf.mxu0
  %1387 = vmatprep.mubr.bf16.mxu0 0
  %1388 = vmatmul.mubr.bf16.gmra.mxu0 %v457
  %v1389 = vpop.f32.mrf.mxu0
  %v1390 = vadd.f32 %v1302, %v1389
  %v1391 = vpop.f32.mrf.mxu0
  %v1392 = vpop.f32.mrf.mxu0
  %v1393 = vadd.f32 %v1305, %v1392
  %v1394 = vpop.f32.mrf.mxu0
  %1395 = vmatprep.mubr.bf16.mxu0 0
  %1396 = vmatmul.mubr.bf16.gmra.mxu0 %v466
  %v1397 = vpop.f32.mrf.mxu0
  %v1398 = vadd.f32 %v1310, %v1397
  %v1399 = vpop.f32.mrf.mxu0
  %v1400 = vpop.f32.mrf.mxu0
  %v1401 = vadd.f32 %v1313, %v1400
  %v1402 = vpop.f32.mrf.mxu0
  %1403 = vmatprep.mubr.bf16.mxu0 0
  %1404 = vmatmul.mubr.bf16.gmra.mxu0 %v475
  %v1405 = vpop.f32.mrf.mxu0
  %v1406 = vadd.f32 %v1318, %v1405
  %v1407 = vpop.f32.mrf.mxu0
  %v1408 = vpop.f32.mrf.mxu0
  %v1409 = vpop.f32.mrf.mxu0
  %1410 = vdwg.mxu0
  %vm1411 = vcmp.gt.f32.partialorder %v1358, 0.0
  %vm1412 = vcmp.gt.f32.partialorder %v1361, 0.0
  %vm1413 = vcmp.gt.f32.partialorder %v1366, 0.0
  %vm1414 = vcmp.gt.f32.partialorder %v1369, 0.0
  %vm1415 = vcmp.gt.f32.partialorder %v1374, 0.0
  %vm1416 = vcmp.gt.f32.partialorder %v1377, 0.0
  %vm1417 = vcmp.gt.f32.partialorder %v1382, 0.0
  %vm1418 = vcmp.gt.f32.partialorder %v1385, 0.0
  %vm1419 = vcmp.gt.f32.partialorder %v1390, 0.0
  %vm1420 = vcmp.gt.f32.partialorder %v1393, 0.0
  %vm1421 = vcmp.gt.f32.partialorder %v1398, 0.0
  %vm1422 = vcmp.gt.f32.partialorder %v1401, 0.0
  %vm1423 = vcmp.gt.f32.partialorder %v1406, 0.0
  %v1424 = vmul.f32 %v1358, 0.01
  %v1425 = vmul.f32 %v1361, 0.01
  %v1426 = vmul.f32 %v1366, 0.01
  %v1427 = vmul.f32 %v1369, 0.01
  %v1428 = vmul.f32 %v1374, 0.01
  %v1429 = vmul.f32 %v1377, 0.01
  %v1430 = vmul.f32 %v1382, 0.01
  %v1431 = vmul.f32 %v1385, 0.01
  %v1432 = vmul.f32 %v1390, 0.01
  %v1433 = vmul.f32 %v1393, 0.01
  %v1434 = vmul.f32 %v1398, 0.01
  %v1435 = vmul.f32 %v1401, 0.01
  %v1436 = vmul.f32 %v1406, 0.01
  %v1437 = vsel %vm1411, %v1358, %v1424
  %v1438 = vsel %vm1412, %v1361, %v1425
  %v1439 = vsel %vm1413, %v1366, %v1426
  %v1440 = vsel %vm1414, %v1369, %v1427
  %v1441 = vsel %vm1415, %v1374, %v1428
  %v1442 = vsel %vm1416, %v1377, %v1429
  %v1443 = vsel %vm1417, %v1382, %v1430
  %v1444 = vsel %vm1418, %v1385, %v1431
  %v1445 = vsel %vm1419, %v1390, %v1432
  %v1446 = vsel %vm1420, %v1393, %v1433
  %v1447 = vsel %vm1421, %v1398, %v1434
  %v1448 = vsel %vm1422, %v1401, %v1435
  %v1449 = vsel %vm1423, %v1406, %v1436
  %v1450 = vpack.c.bf16 %v1438, %v1437
  %v1451 = vpack.c.bf16 %v1440, %v1439
  %v1452 = vpack.c.bf16 %v1442, %v1441
  %v1453 = vpack.c.bf16 %v1444, %v1443
  %v1454 = vpack.c.bf16 %v1446, %v1445
  %v1455 = vpack.c.bf16 %v1448, %v1447
  %v1456 = vpack.c.bf16 %v1449, %v1449
  %v1464 = vunpack.c.l.b16 %v1450
  %v1465 = vunpack.c.h.b16 %v1450
  %v1466 = vunpack.c.l.b16 %v1451
  %v1467 = vunpack.c.h.b16 %v1451
  %v1468 = vunpack.c.l.b16 %v1452
  %v1469 = vunpack.c.h.b16 %v1452
  %v1470 = vunpack.c.l.b16 %v1453
  %v1471 = vunpack.c.h.b16 %v1453
  %v1472 = vunpack.c.l.b16 %v1454
  %v1473 = vunpack.c.h.b16 %v1454
  %v1474 = vunpack.c.l.b16 %v1455
  %v1475 = vunpack.c.h.b16 %v1455
  %v1476 = vunpack.c.l.b16 %v1456
  %v1477 = vpack.c.b16 %v1464, %v1464
  %v1478 = vpack.c.b16 %v1465, %v1465
  %v1479 = vpack.c.b16 %v1466, %v1466
  %v1480 = vpack.c.b16 %v1467, %v1467
  %v1481 = vpack.c.b16 %v1468, %v1468
  %v1482 = vpack.c.b16 %v1469, %v1469
  %v1483 = vpack.c.b16 %v1470, %v1470
  %v1484 = vpack.c.b16 %v1471, %v1471
  %v1485 = vpack.c.b16 %v1472, %v1472
  %v1486 = vpack.c.b16 %v1473, %v1473
  %v1487 = vpack.c.b16 %v1474, %v1474
  %v1488 = vpack.c.b16 %v1475, %v1475
  %v1489 = vpack.c.b16 %v1476, %v1476
  %1503 = vst [vmem:[%s3] sm:$0xf] %v1477
  %1504 = vst [vmem:[%s3 + $0x4] sm:$0xf] %v1478
  %1505 = vst [vmem:[%s3 + $0x8] sm:$0xf] %v1479
  %1506 = vst [vmem:[%s3 + $0xc] sm:$0xf] %v1480
  %1507 = vst [vmem:[%s3 + $0x10] sm:$0xf] %v1481
  %1508 = vst [vmem:[%s3 + $0x14] sm:$0xf] %v1482
  %1509 = vst [vmem:[%s3 + $0x18] sm:$0xf] %v1483
  %1510 = vst [vmem:[%s3 + $0x1c] sm:$0xf] %v1484
  %1511 = vst [vmem:[%s3 + $0x20] sm:$0xf] %v1485
  %1512 = vst [vmem:[%s3 + $0x24] sm:$0xf] %v1486
  %1513 = vst [vmem:[%s3 + $0x28] sm:$0xf] %v1487
  %1514 = vst [vmem:[%s3 + $0x2c] sm:$0xf] %v1488
  %1515 = vst [vmem:[%s3 + $0x30] sm:$0x1] %v1489
  // Predicated region
  $region14: #{rnd_forward.6} parent=0 // pred_check
    _
  $region15: #{rnd_forward.6} parent=0 // pred_check_branch
    %1517 = sbr.rel (0) target = $region17
  $region16: #{rnd_forward.6} parent=0 // pred_region
    _
  $region17: #{rnd_forward.6} parent=0 // pred_fallthru
    _
  // Predicated region
  $region18: #{rnd_forward.6} parent=0 // pred_check
    _
  $region19: #{rnd_forward.6} parent=0 // pred_check_branch
    %1519 = sbr.rel (0) target = $region21
  $region20: #{rnd_forward.6} parent=0 // pred_region
    _
  $region21: #{rnd_forward.6} parent=0 // pred_fallthru
    _

// kernel: rnd_forward.7
$region0: #{rnd_forward.7}
  #allocation0 [shape = 'u32[]', space=smem, size = 0x4, offset = 0x4, fixed_abs, tag = 'smem constant byte address 0x4 - core index']
  #allocation1 [shape = 'u32[144,128]{1,0:T(1,128)}', space=vmem, size = 0x12000, scoped, tag = 'internal scratch']
  %s0 = inlined_call_operand.vmem [shape: bf16[2,2,3136], index: 0, kind: input, shape index: {}]
  %s1 = inlined_call_operand.vmem [shape: bf16[2,3136,512], index: 1, kind: input, shape index: {}]
  %s2 = inlined_call_operand.vmem [shape: f32[2,1,512], index: 2, kind: input, shape index: {}]
  %s3 = inlined_call_operand.vmem [shape: bf16[512,512], index: 3, kind: input, shape index: {}]
  %s4 = inlined_call_operand.vmem [shape: f32[1,512], index: 4, kind: input, shape index: {}]
  %s5 = inlined_call_operand.vmem [shape: bf16[512,512], index: 5, kind: input, shape index: {}]
  %s6 = inlined_call_operand.vmem [shape: f32[1,512], index: 6, kind: input, shape index: {}]
  %s7 = inlined_call_operand.vmem [shape: f32[2,2,512], index: 7, kind: output, shape index: {}]
  %s8 = sld [smem:[#allocation0]]
  $region69: #{rnd_forward.7} parent=0
    _
  %s10 = ssub.s32 1, %s8
  %s11 = scalar_select 0, %s10, %s8
  loop: start=0, step=1, limit=4
  $region2: #{rnd_forward.7} parent=0 // loop_pre_header
    _
  $region3: #{rnd_forward.7} parent=0 // loop_header
    %s13 = sphi 0, %s17
    %p14 = scmp.ge.s32.totalorder %s13, 4
    %s23 = sphi 0, %s25
    %s26 = sphi 0, %s23
    %s27 = sphi 0, %s26
    %s43 = sphi 0, %s27
    %s49 = sphi 0, %s51
    %s52 = sphi 0, %s49
    %s53 = sphi 0, %s52
    %s69 = sphi 0, %s53
    %s75 = sphi 0, %s77
    %s78 = sphi 0, %s75
    %s79 = sphi 0, %s78
    %s95 = sphi 0, %s79
    %s99 = sphi 0, %s99
    %s101 = sphi 0, %s99
    %s102 = sphi 0, %s101
    %s116 = sphi 0, %s102
    %s120 = sphi 0, %s120
    %s122 = sphi 0, %s120
    %s123 = sphi 0, %s122
    %s137 = sphi 0, %s123
    %s141 = sphi 0, %s141
    %s143 = sphi 0, %s141
    %s144 = sphi 0, %s143
    %s158 = sphi 0, %s144
    %s162 = sphi 0, %s162
    %s164 = sphi 0, %s162
    %s165 = sphi 0, %s164
    %s179 = sphi 0, %s165
    %s185 = sphi 0, %s187
    %s188 = sphi 0, %s185
    %s189 = sphi 0, %s188
    %s205 = sphi 0, %s189
  $region4: #{rnd_forward.7} parent=0 // loop_header_branch
    %16 = sbr.rel (%p14) target = $region8
  $region5: #{rnd_forward.7} parent=0 // loop_body
    %s18 = ssub.s32 %s13, 1
    %s19 = ssub.s32 %s13, 2
    %s20 = sadd.s32 %s13, 1
    %s21 = ssub.s32 %s13, %s20
    %p22 = scmp.eq.s32.totalorder %s21, 0
    %s24 = sadd.s32 %s23, 1
    %s25 = scalar_select %p22, %s23, %s24
    %p28 = pneg %p22
    %p29 = scmp.eq.s32.totalorder %s13, 1
    %p30 = por %p28, %p29
    %p31 = scmp.ne.s32.totalorder %s23, %s26
    %p32 = scmp.eq.s32.totalorder %s13, 0
    %p33 = por %p31, %p32
    %p34 = scmp.ne.s32.totalorder %s23, %s26
    %p35 = scmp.eq.s32.totalorder %s18, 1
    %p36 = por %p34, %p35
    %p37 = scmp.ne.s32.totalorder %s26, %s27
    %p38 = scmp.eq.s32.totalorder %s18, 0
    %p39 = por %p37, %p38
    %p40 = scmp.ne.s32.totalorder %s26, %s27
    %p41 = scmp.eq.s32.totalorder %s19, 1
    %p42 = por %p40, %p41
    %p44 = scmp.ne.s32.totalorder %s27, %s43
    %p45 = scmp.eq.s32.totalorder %s19, 0
    %p46 = por %p44, %p45
    %s47 = ssub.s32 %s13, %s20
    %p48 = scmp.eq.s32.totalorder %s47, 0
    %s50 = sadd.s32 %s49, 1
    %s51 = scalar_select %p48, %s49, %s50
    %p54 = pneg %p48
    %p55 = scmp.eq.s32.totalorder %s13, 1
    %p56 = por %p54, %p55
    %p57 = scmp.ne.s32.totalorder %s49, %s52
    %p58 = scmp.eq.s32.totalorder %s13, 0
    %p59 = por %p57, %p58
    %p60 = scmp.ne.s32.totalorder %s49, %s52
    %p61 = scmp.eq.s32.totalorder %s18, 1
    %p62 = por %p60, %p61
    %p63 = scmp.ne.s32.totalorder %s52, %s53
    %p64 = scmp.eq.s32.totalorder %s18, 0
    %p65 = por %p63, %p64
    %p66 = scmp.ne.s32.totalorder %s52, %s53
    %p67 = scmp.eq.s32.totalorder %s19, 1
    %p68 = por %p66, %p67
    %p70 = scmp.ne.s32.totalorder %s53, %s69
    %p71 = scmp.eq.s32.totalorder %s19, 0
    %p72 = por %p70, %p71
    %s73 = ssub.s32 %s13, %s20
    %p74 = scmp.eq.s32.totalorder %s73, 0
    %s76 = sadd.s32 %s75, 1
    %s77 = scalar_select %p74, %s75, %s76
    %p80 = pneg %p74
    %p81 = scmp.eq.s32.totalorder %s13, 1
    %p82 = por %p80, %p81
    %p83 = scmp.ne.s32.totalorder %s75, %s78
    %p84 = scmp.eq.s32.totalorder %s13, 0
    %p85 = por %p83, %p84
    %p86 = scmp.ne.s32.totalorder %s75, %s78
    %p87 = scmp.eq.s32.totalorder %s18, 1
    %p88 = por %p86, %p87
    %p89 = scmp.ne.s32.totalorder %s78, %s79
    %p90 = scmp.eq.s32.totalorder %s18, 0
    %p91 = por %p89, %p90
    %p92 = scmp.ne.s32.totalorder %s78, %s79
    %p93 = scmp.eq.s32.totalorder %s19, 1
    %p94 = por %p92, %p93
    %p96 = scmp.ne.s32.totalorder %s79, %s95
    %p97 = scmp.eq.s32.totalorder %s19, 0
    %p98 = por %p96, %p97
    %s100 = sadd.s32 %s99, 1
    %p103 = scmp.eq.s32.totalorder %s13, 1
    %p104 = scmp.ne.s32.totalorder %s99, %s101
    %p105 = scmp.eq.s32.totalorder %s13, 0
    %p106 = por %p104, %p105
    %p107 = scmp.ne.s32.totalorder %s99, %s101
    %p108 = scmp.eq.s32.totalorder %s18, 1
    %p109 = por %p107, %p108
    %p110 = scmp.ne.s32.totalorder %s101, %s102
    %p111 = scmp.eq.s32.totalorder %s18, 0
    %p112 = por %p110, %p111
    %p113 = scmp.ne.s32.totalorder %s101, %s102
    %p114 = scmp.eq.s32.totalorder %s19, 1
    %p115 = por %p113, %p114
    %p117 = scmp.ne.s32.totalorder %s102, %s116
    %p118 = scmp.eq.s32.totalorder %s19, 0
    %p119 = por %p117, %p118
    %s121 = sadd.s32 %s120, 1
    %p124 = scmp.eq.s32.totalorder %s13, 1
    %p125 = scmp.ne.s32.totalorder %s120, %s122
    %p126 = scmp.eq.s32.totalorder %s13, 0
    %p127 = por %p125, %p126
    %p128 = scmp.ne.s32.totalorder %s120, %s122
    %p129 = scmp.eq.s32.totalorder %s18, 1
    %p130 = por %p128, %p129
    %p131 = scmp.ne.s32.totalorder %s122, %s123
    %p132 = scmp.eq.s32.totalorder %s18, 0
    %p133 = por %p131, %p132
    %p134 = scmp.ne.s32.totalorder %s122, %s123
    %p135 = scmp.eq.s32.totalorder %s19, 1
    %p136 = por %p134, %p135
    %p138 = scmp.ne.s32.totalorder %s123, %s137
    %p139 = scmp.eq.s32.totalorder %s19, 0
    %p140 = por %p138, %p139
    %s142 = sadd.s32 %s141, 1
    %p145 = scmp.eq.s32.totalorder %s13, 1
    %p146 = scmp.ne.s32.totalorder %s141, %s143
    %p147 = scmp.eq.s32.totalorder %s13, 0
    %p148 = por %p146, %p147
    %p149 = scmp.ne.s32.totalorder %s141, %s143
    %p150 = scmp.eq.s32.totalorder %s18, 1
    %p151 = por %p149, %p150
    %p152 = scmp.ne.s32.totalorder %s143, %s144
    %p153 = scmp.eq.s32.totalorder %s18, 0
    %p154 = por %p152, %p153
    %p155 = scmp.ne.s32.totalorder %s143, %s144
    %p156 = scmp.eq.s32.totalorder %s19, 1
    %p157 = por %p155, %p156
    %p159 = scmp.ne.s32.totalorder %s144, %s158
    %p160 = scmp.eq.s32.totalorder %s19, 0
    %p161 = por %p159, %p160
    %s163 = sadd.s32 %s162, 1
    %p166 = scmp.eq.s32.totalorder %s13, 1
    %p167 = scmp.ne.s32.totalorder %s162, %s164
    %p168 = scmp.eq.s32.totalorder %s13, 0
    %p169 = por %p167, %p168
    %p170 = scmp.ne.s32.totalorder %s162, %s164
    %p171 = scmp.eq.s32.totalorder %s18, 1
    %p172 = por %p170, %p171
    %p173 = scmp.ne.s32.totalorder %s164, %s165
    %p174 = scmp.eq.s32.totalorder %s18, 0
    %p175 = por %p173, %p174
    %p176 = scmp.ne.s32.totalorder %s164, %s165
    %p177 = scmp.eq.s32.totalorder %s19, 1
    %p178 = por %p176, %p177
    %p180 = scmp.ne.s32.totalorder %s165, %s179
    %p181 = scmp.eq.s32.totalorder %s19, 0
    %p182 = por %p180, %p181
    %s183 = ssub.s32 %s13, %s20
    %p184 = scmp.eq.s32.totalorder %s183, 0
    %s186 = sadd.s32 %s185, 1
    %s187 = scalar_select %p184, %s185, %s186
    %p190 = pneg %p184
    %p191 = scmp.eq.s32.totalorder %s13, 1
    %p192 = por %p190, %p191
    %p193 = scmp.ne.s32.totalorder %s185, %s188
    %p194 = scmp.eq.s32.totalorder %s13, 0
    %p195 = por %p193, %p194
    %p196 = scmp.ne.s32.totalorder %s185, %s188
    %p197 = scmp.eq.s32.totalorder %s18, 1
    %p198 = por %p196, %p197
    %p199 = scmp.ne.s32.totalorder %s188, %s189
    %p200 = scmp.eq.s32.totalorder %s18, 0
    %p201 = por %p199, %p200
    %p202 = scmp.ne.s32.totalorder %s188, %s189
    %p203 = scmp.eq.s32.totalorder %s19, 1
    %p204 = por %p202, %p203
    %p206 = scmp.ne.s32.totalorder %s189, %s205
    %p207 = scmp.eq.s32.totalorder %s19, 0
    %p208 = por %p206, %p207
    %p209 = scmp.le.s32.totalorder 1, %s13
    %p210 = scmp.lt.s32.totalorder %s13, 3
    %p211 = pnand %p209, %p210
    %p212 = pneg %p211
    // Predicated region
    $region9: #{rnd_forward.7} parent=5 // pred_check
      _
    $region10: #{rnd_forward.7} parent=5 // pred_check_branch
      %214 = sbr.rel (%p211) target = $region12
    $region11: #{rnd_forward.7} parent=5 // pred_region
      %s215 = ssub.s32 %s13, 1
      // Predicated region
      $region13: #{rnd_forward.7} parent=11 // pred_check
        %p216 = pneg %p112
      $region14: #{rnd_forward.7} parent=11 // pred_check_branch
        %218 = sbr.rel (%p216) target = $region16
      $region15: #{rnd_forward.7} parent=11 // pred_region
        _
      $region16: #{rnd_forward.7} parent=11 // pred_fallthru
        _
      // Predicated region
      $region17: #{rnd_forward.7} parent=11 // pred_check
        %p219 = pneg %p133
      $region18: #{rnd_forward.7} parent=11 // pred_check_branch
        %221 = sbr.rel (%p219) target = $region20
      $region19: #{rnd_forward.7} parent=11 // pred_region
        _
      $region20: #{rnd_forward.7} parent=11 // pred_fallthru
        _
      // Predicated region
      $region21: #{rnd_forward.7} parent=11 // pred_check
        %p222 = pneg %p154
      $region22: #{rnd_forward.7} parent=11 // pred_check_branch
        %224 = sbr.rel (%p222) target = $region24
      $region23: #{rnd_forward.7} parent=11 // pred_region
        _
      $region24: #{rnd_forward.7} parent=11 // pred_fallthru
        _
      // Predicated region
      $region25: #{rnd_forward.7} parent=11 // pred_check
        %p225 = pneg %p175
      $region26: #{rnd_forward.7} parent=11 // pred_check_branch
        %227 = sbr.rel (%p225) target = $region28
      $region27: #{rnd_forward.7} parent=11 // pred_region
        _
      $region28: #{rnd_forward.7} parent=11 // pred_fallthru
        _
    $region12: #{rnd_forward.7} parent=5 // pred_fallthru
      _
    %p228 = scmp.lt.s32.totalorder %s13, 2
    // Predicated region
    $region29: #{rnd_forward.7} parent=5 // pred_check
      %p229 = pneg %p228
    $region30: #{rnd_forward.7} parent=5 // pred_check_branch
      %231 = sbr.rel (%p229) target = $region32
    $region31: #{rnd_forward.7} parent=5 // pred_region
      // Predicated region
      $region33: #{rnd_forward.7} parent=31 // pred_check
        %p232 = pneg %p33
      $region34: #{rnd_forward.7} parent=31 // pred_check_branch
        %234 = sbr.rel (%p232) target = $region36
      $region35: #{rnd_forward.7} parent=31 // pred_region
        %p235 = scmp.lt.s32.totalorder %s13, 1
        %s236 = scalar_select %p235, %s13, 1
        %s237 = smul.addr %s236, 25
        %s238 = scalar_lea.vmem %s0, %s237
      $region36: #{rnd_forward.7} parent=31 // pred_fallthru
        _
      // Predicated region
      $region37: #{rnd_forward.7} parent=31 // pred_check
        %p239 = pneg %p59
      $region38: #{rnd_forward.7} parent=31 // pred_check_branch
        %241 = sbr.rel (%p239) target = $region40
      $region39: #{rnd_forward.7} parent=31 // pred_region
        %p242 = scmp.lt.s32.totalorder %s13, 1
        %s243 = scalar_select %p242, %s13, 1
        %s244 = smul.addr %s243, 1568
        %s245 = smul.addr %s244, 4
        %s246 = scalar_lea.vmem %s1, %s245
      $region40: #{rnd_forward.7} parent=31 // pred_fallthru
        _
      // Predicated region
      $region41: #{rnd_forward.7} parent=31 // pred_check
        %p247 = pneg %p85
      $region42: #{rnd_forward.7} parent=31 // pred_check_branch
        %249 = sbr.rel (%p247) target = $region44
      $region43: #{rnd_forward.7} parent=31 // pred_region
        %p250 = scmp.lt.s32.totalorder %s13, 1
        %s251 = scalar_select %p250, %s13, 1
        %s252 = smul.addr %s251, 4
        %s253 = scalar_lea.vmem %s2, %s252
      $region44: #{rnd_forward.7} parent=31 // pred_fallthru
        _
    $region32: #{rnd_forward.7} parent=5 // pred_fallthru
      _
    %p254 = scmp.le.s32.totalorder 1, %s13
    %p255 = scmp.lt.s32.totalorder %s13, 3
    %p256 = pnand %p254, %p255
    %p257 = pneg %p256
    // Predicated region
    $region45: #{rnd_forward.7} parent=5 // pred_check
      _
    $region46: #{rnd_forward.7} parent=5 // pred_check_branch
      %259 = sbr.rel (%p256) target = $region48
    $region47: #{rnd_forward.7} parent=5 // pred_region
      %s260 = ssub.s32 %s13, 1
      %p261 = scmp.lt.s32.totalorder %s18, 1
      %s262 = scalar_select %p261, %s18, 1
      %s263 = smul.addr %s262, 25
      %s264 = scalar_lea.vmem %s0, %s263
      %p265 = pneg %p39
      %p266 = pneg %p36
      %p267 = scmp.lt.s32.totalorder %s18, 1
      %s268 = scalar_select %p267, %s18, 1
      %s269 = smul.addr %s268, 1568
      %s270 = smul.addr %s269, 4
      %s271 = scalar_lea.vmem %s1, %s270
      %p272 = pneg %p65
      %p273 = pneg %p62
      %p274 = scmp.lt.s32.totalorder %s18, 1
      %s275 = scalar_select %p274, %s18, 1
      %s276 = smul.addr %s275, 4
      %s277 = scalar_lea.vmem %s2, %s276
      %p278 = pneg %p91
      %p279 = pneg %p88
      %p280 = pneg %p112
      %p281 = pneg %p109
      %p282 = pneg %p133
      %p283 = pneg %p130
      %p284 = pneg %p154
      %p285 = pneg %p151
      %p286 = pneg %p175
      %p287 = pneg %p172
      %p288 = pneg %p201
      %p289 = pneg %p198
      %p290 = scmp.lt.s32.totalorder %s18, 1
      %s291 = scalar_select %p290, %s18, 1
      %s292 = smul.addr %s291, 4
      %s293 = smul.addr %s292, 2
      %s294 = scalar_lea.vmem %s7, %s293
      %p295 = scmp.lt.s32.totalorder %s18, 1
      %s296 = scalar_select %p295, %s18, 1
      %s297 = smul.addr %s296, 25
      %s298 = scalar_lea.vmem %s0, %s297
      %p299 = scmp.lt.s32.totalorder %s18, 1
      %s300 = scalar_select %p299, %s18, 1
      %s301 = smul.addr %s300, 1568
      %s302 = smul.addr %s301, 4
      %s303 = scalar_lea.vmem %s1, %s302
      %p304 = scmp.lt.s32.totalorder %s18, 1
      %s305 = scalar_select %p304, %s18, 1
      %s306 = smul.addr %s305, 4
      %s307 = scalar_lea.vmem %s2, %s306
      %p308 = scmp.lt.s32.totalorder %s18, 1
      %s309 = scalar_select %p308, %s18, 1
      %s310 = smul.addr %s309, 4
      %s311 = smul.addr %s310, 2
      %s312 = scalar_lea.vmem %s7, %s311
      %v314 = vld [vmem:[%s298] sm:$0xff]
      %v315 = vld [vmem:[%s298 + $0x8] sm:$0xff]
      %v316 = vld [vmem:[%s298 + $0x10] sm:$0xff]
      %v317 = vld [vmem:[%s298 + $0x18] sm:$0x1]
      %v318 = vld [vmem:[%s303] sm:$0xff]
      %v319 = vld [vmem:[%s303 + $0x8] sm:$0xff]
      %v320 = vld [vmem:[%s303 + $0x10] sm:$0xff]
      %v321 = vld [vmem:[%s303 + $0x18] sm:$0xff]
      %v322 = vld [vmem:[%s303 + $0x20] sm:$0xff]
      %v323 = vld [vmem:[%s303 + $0x28] sm:$0xff]
      %v324 = vld [vmem:[%s303 + $0x30] sm:$0xff]
      %v325 = vld [vmem:[%s303 + $0x38] sm:$0xff]
      %v326 = vld [vmem:[%s303 + $0x40] sm:$0xff]
      %v327 = vld [vmem:[%s303 + $0x48] sm:$0xff]
      %v328 = vld [vmem:[%s303 + $0x50] sm:$0xff]
      %v329 = vld [vmem:[%s303 + $0x58] sm:$0xff]
      %v330 = vld [vmem:[%s303 + $0x60] sm:$0xff]
      %v331 = vld [vmem:[%s303 + $0x68] sm:$0xff]
      %v332 = vld [vmem:[%s303 + $0x70] sm:$0xff]
      %v333 = vld [vmem:[%s303 + $0x78] sm:$0xff]
      %v334 = vld [vmem:[%s303 + $0x80] sm:$0xff]
      %v335 = vld [vmem:[%s303 + $0x88] sm:$0xff]
      %v336 = vld [vmem:[%s303 + $0x90] sm:$0xff]
      %v337 = vld [vmem:[%s303 + $0x98] sm:$0xff]
      %v338 = vld [vmem:[%s303 + $0xa0] sm:$0xff]
      %v339 = vld [vmem:[%s303 + $0xa8] sm:$0xff]
      %v340 = vld [vmem:[%s303 + $0xb0] sm:$0xff]
      %v341 = vld [vmem:[%s303 + $0xb8] sm:$0xff]
      %v342 = vld [vmem:[%s303 + $0xc0] sm:$0xff]
      %v343 = vld [vmem:[%s303 + $0xc8] sm:$0xff]
      %v344 = vld [vmem:[%s303 + $0xd0] sm:$0xff]
      %v345 = vld [vmem:[%s303 + $0xd8] sm:$0xff]
      %v346 = vld [vmem:[%s303 + $0xe0] sm:$0xff]
      %v347 = vld [vmem:[%s303 + $0xe8] sm:$0xff]
      %v348 = vld [vmem:[%s303 + $0xf0] sm:$0xff]
      %v349 = vld [vmem:[%s303 + $0xf8] sm:$0xff]
      %v350 = vld [vmem:[%s303 + $0x100] sm:$0xff]
      %v351 = vld [vmem:[%s303 + $0x108] sm:$0xff]
      %v352 = vld [vmem:[%s303 + $0x110] sm:$0xff]
      %v353 = vld [vmem:[%s303 + $0x118] sm:$0xff]
      %v354 = vld [vmem:[%s303 + $0x120] sm:$0xff]
      %v355 = vld [vmem:[%s303 + $0x128] sm:$0xff]
      %v356 = vld [vmem:[%s303 + $0x130] sm:$0xff]
      %v357 = vld [vmem:[%s303 + $0x138] sm:$0xff]
      %v358 = vld [vmem:[%s303 + $0x140] sm:$0xff]
      %v359 = vld [vmem:[%s303 + $0x148] sm:$0xff]
      %v360 = vld [vmem:[%s303 + $0x150] sm:$0xff]
      %v361 = vld [vmem:[%s303 + $0x158] sm:$0xff]
      %v362 = vld [vmem:[%s303 + $0x160] sm:$0xff]
      %v363 = vld [vmem:[%s303 + $0x168] sm:$0xff]
      %v364 = vld [vmem:[%s303 + $0x170] sm:$0xff]
      %v365 = vld [vmem:[%s303 + $0x178] sm:$0xff]
      %v366 = vld [vmem:[%s303 + $0x180] sm:$0xff]
      %v367 = vld [vmem:[%s303 + $0x188] sm:$0xff]
      %v368 = vld [vmem:[%s303 + $0x190] sm:$0xff]
      %v369 = vld [vmem:[%s303 + $0x198] sm:$0xff]
      %v370 = vld [vmem:[%s303 + $0x1a0] sm:$0xff]
      %v371 = vld [vmem:[%s303 + $0x1a8] sm:$0xff]
      %v372 = vld [vmem:[%s303 + $0x1b0] sm:$0xff]
      %v373 = vld [vmem:[%s303 + $0x1b8] sm:$0xff]
      %v374 = vld [vmem:[%s303 + $0x1c0] sm:$0xff]
      %v375 = vld [vmem:[%s303 + $0x1c8] sm:$0xff]
      %v376 = vld [vmem:[%s303 + $0x1d0] sm:$0xff]
      %v377 = vld [vmem:[%s303 + $0x1d8] sm:$0xff]
      %v378 = vld [vmem:[%s303 + $0x1e0] sm:$0xff]
      %v379 = vld [vmem:[%s303 + $0x1e8] sm:$0xff]
      %v380 = vld [vmem:[%s303 + $0x1f0] sm:$0xff]
      %v381 = vld [vmem:[%s303 + $0x1f8] sm:$0xff]
      %v382 = vld [vmem:[%s303 + $0x200] sm:$0xff]
      %v383 = vld [vmem:[%s303 + $0x208] sm:$0xff]
      %v384 = vld [vmem:[%s303 + $0x210] sm:$0xff]
      %v385 = vld [vmem:[%s303 + $0x218] sm:$0xff]
      %v386 = vld [vmem:[%s303 + $0x220] sm:$0xff]
      %v387 = vld [vmem:[%s303 + $0x228] sm:$0xff]
      %v388 = vld [vmem:[%s303 + $0x230] sm:$0xff]
      %v389 = vld [vmem:[%s303 + $0x238] sm:$0xff]
      %v390 = vld [vmem:[%s303 + $0x240] sm:$0xff]
      %v391 = vld [vmem:[%s303 + $0x248] sm:$0xff]
      %v392 = vld [vmem:[%s303 + $0x250] sm:$0xff]
      %v393 = vld [vmem:[%s303 + $0x258] sm:$0xff]
      %v394 = vld [vmem:[%s303 + $0x260] sm:$0xff]
      %v395 = vld [vmem:[%s303 + $0x268] sm:$0xff]
      %v396 = vld [vmem:[%s303 + $0x270] sm:$0xff]
      %v397 = vld [vmem:[%s303 + $0x278] sm:$0xff]
      %v398 = vld [vmem:[%s303 + $0x280] sm:$0xff]
      %v399 = vld [vmem:[%s303 + $0x288] sm:$0xff]
      %v400 = vld [vmem:[%s303 + $0x290] sm:$0xff]
      %v401 = vld [vmem:[%s303 + $0x298] sm:$0xff]
      %v402 = vld [vmem:[%s303 + $0x2a0] sm:$0xff]
      %v403 = vld [vmem:[%s303 + $0x2a8] sm:$0xff]
      %v404 = vld [vmem:[%s303 + $0x2b0] sm:$0xff]
      %v405 = vld [vmem:[%s303 + $0x2b8] sm:$0xff]
      %v406 = vld [vmem:[%s303 + $0x2c0] sm:$0xff]
      %v407 = vld [vmem:[%s303 + $0x2c8] sm:$0xff]
      %v408 = vld [vmem:[%s303 + $0x2d0] sm:$0xff]
      %v409 = vld [vmem:[%s303 + $0x2d8] sm:$0xff]
      %v410 = vld [vmem:[%s303 + $0x2e0] sm:$0xff]
      %v411 = vld [vmem:[%s303 + $0x2e8] sm:$0xff]
      %v412 = vld [vmem:[%s303 + $0x2f0] sm:$0xff]
      %v413 = vld [vmem:[%s303 + $0x2f8] sm:$0xff]
      %v414 = vld [vmem:[%s303 + $0x300] sm:$0xff]
      %v415 = vld [vmem:[%s303 + $0x308] sm:$0xff]
      %v416 = vld [vmem:[%s303 + $0x310] sm:$0xff]
      %v417 = vld [vmem:[%s303 + $0x318] sm:$0xff]
      %v418 = vld [vmem:[%s303 + $0x320] sm:$0xff]
      %v419 = vld [vmem:[%s303 + $0x328] sm:$0xff]
      %v420 = vld [vmem:[%s303 + $0x330] sm:$0xff]
      %v421 = vld [vmem:[%s303 + $0x338] sm:$0xff]
      %v422 = vld [vmem:[%s303 + $0x340] sm:$0xff]
      %v423 = vld [vmem:[%s303 + $0x348] sm:$0xff]
      %v424 = vld [vmem:[%s303 + $0x350] sm:$0xff]
      %v425 = vld [vmem:[%s303 + $0x358] sm:$0xff]
      %v426 = vld [vmem:[%s303 + $0x360] sm:$0xff]
      %v427 = vld [vmem:[%s303 + $0x368] sm:$0xff]
      %v428 = vld [vmem:[%s303 + $0x370] sm:$0xff]
      %v429 = vld [vmem:[%s303 + $0x378] sm:$0xff]
      %v430 = vld [vmem:[%s303 + $0x380] sm:$0xff]
      %v431 = vld [vmem:[%s303 + $0x388] sm:$0xff]
      %v432 = vld [vmem:[%s303 + $0x390] sm:$0xff]
      %v433 = vld [vmem:[%s303 + $0x398] sm:$0xff]
      %v434 = vld [vmem:[%s303 + $0x3a0] sm:$0xff]
      %v435 = vld [vmem:[%s303 + $0x3a8] sm:$0xff]
      %v436 = vld [vmem:[%s303 + $0x3b0] sm:$0xff]
      %v437 = vld [vmem:[%s303 + $0x3b8] sm:$0xff]
      %v438 = vld [vmem:[%s303 + $0x3c0] sm:$0xff]
      %v439 = vld [vmem:[%s303 + $0x3c8] sm:$0xff]
      %v440 = vld [vmem:[%s303 + $0x3d0] sm:$0xff]
      %v441 = vld [vmem:[%s303 + $0x3d8] sm:$0xff]
      %v442 = vld [vmem:[%s303 + $0x3e0] sm:$0xff]
      %v443 = vld [vmem:[%s303 + $0x3e8] sm:$0xff]
      %v444 = vld [vmem:[%s303 + $0x3f0] sm:$0xff]
      %v445 = vld [vmem:[%s303 + $0x3f8] sm:$0xff]
      %v446 = vld [vmem:[%s303 + $0x400] sm:$0xff]
      %v447 = vld [vmem:[%s303 + $0x408] sm:$0xff]
      %v448 = vld [vmem:[%s303 + $0x410] sm:$0xff]
      %v449 = vld [vmem:[%s303 + $0x418] sm:$0xff]
      %v450 = vld [vmem:[%s303 + $0x420] sm:$0xff]
      %v451 = vld [vmem:[%s303 + $0x428] sm:$0xff]
      %v452 = vld [vmem:[%s303 + $0x430] sm:$0xff]
      %v453 = vld [vmem:[%s303 + $0x438] sm:$0xff]
      %v454 = vld [vmem:[%s303 + $0x440] sm:$0xff]
      %v455 = vld [vmem:[%s303 + $0x448] sm:$0xff]
      %v456 = vld [vmem:[%s303 + $0x450] sm:$0xff]
      %v457 = vld [vmem:[%s303 + $0x458] sm:$0xff]
      %v458 = vld [vmem:[%s303 + $0x460] sm:$0xff]
      %v459 = vld [vmem:[%s303 + $0x468] sm:$0xff]
      %v460 = vld [vmem:[%s303 + $0x470] sm:$0xff]
      %v461 = vld [vmem:[%s303 + $0x478] sm:$0xff]
      %v462 = vld [vmem:[%s303 + $0x480] sm:$0xff]
      %v463 = vld [vmem:[%s303 + $0x488] sm:$0xff]
      %v464 = vld [vmem:[%s303 + $0x490] sm:$0xff]
      %v465 = vld [vmem:[%s303 + $0x498] sm:$0xff]
      %v466 = vld [vmem:[%s303 + $0x4a0] sm:$0xff]
      %v467 = vld [vmem:[%s303 + $0x4a8] sm:$0xff]
      %v468 = vld [vmem:[%s303 + $0x4b0] sm:$0xff]
      %v469 = vld [vmem:[%s303 + $0x4b8] sm:$0xff]
      %v470 = vld [vmem:[%s303 + $0x4c0] sm:$0xff]
      %v471 = vld [vmem:[%s303 + $0x4c8] sm:$0xff]
      %v472 = vld [vmem:[%s303 + $0x4d0] sm:$0xff]
      %v473 = vld [vmem:[%s303 + $0x4d8] sm:$0xff]
      %v474 = vld [vmem:[%s303 + $0x4e0] sm:$0xff]
      %v475 = vld [vmem:[%s303 + $0x4e8] sm:$0xff]
      %v476 = vld [vmem:[%s303 + $0x4f0] sm:$0xff]
      %v477 = vld [vmem:[%s303 + $0x4f8] sm:$0xff]
      %v478 = vld [vmem:[%s303 + $0x500] sm:$0xff]
      %v479 = vld [vmem:[%s303 + $0x508] sm:$0xff]
      %v480 = vld [vmem:[%s303 + $0x510] sm:$0xff]
      %v481 = vld [vmem:[%s303 + $0x518] sm:$0xff]
      %v482 = vld [vmem:[%s303 + $0x520] sm:$0xff]
      %v483 = vld [vmem:[%s303 + $0x528] sm:$0xff]
      %v484 = vld [vmem:[%s303 + $0x530] sm:$0xff]
      %v485 = vld [vmem:[%s303 + $0x538] sm:$0xff]
      %v486 = vld [vmem:[%s303 + $0x540] sm:$0xff]
      %v487 = vld [vmem:[%s303 + $0x548] sm:$0xff]
      %v488 = vld [vmem:[%s303 + $0x550] sm:$0xff]
      %v489 = vld [vmem:[%s303 + $0x558] sm:$0xff]
      %v490 = vld [vmem:[%s303 + $0x560] sm:$0xff]
      %v491 = vld [vmem:[%s303 + $0x568] sm:$0xff]
      %v492 = vld [vmem:[%s303 + $0x570] sm:$0xff]
      %v493 = vld [vmem:[%s303 + $0x578] sm:$0xff]
      %v494 = vld [vmem:[%s303 + $0x580] sm:$0xff]
      %v495 = vld [vmem:[%s303 + $0x588] sm:$0xff]
      %v496 = vld [vmem:[%s303 + $0x590] sm:$0xff]
      %v497 = vld [vmem:[%s303 + $0x598] sm:$0xff]
      %v498 = vld [vmem:[%s303 + $0x5a0] sm:$0xff]
      %v499 = vld [vmem:[%s303 + $0x5a8] sm:$0xff]
      %v500 = vld [vmem:[%s303 + $0x5b0] sm:$0xff]
      %v501 = vld [vmem:[%s303 + $0x5b8] sm:$0xff]
      %v502 = vld [vmem:[%s303 + $0x5c0] sm:$0xff]
      %v503 = vld [vmem:[%s303 + $0x5c8] sm:$0xff]
      %v504 = vld [vmem:[%s303 + $0x5d0] sm:$0xff]
      %v505 = vld [vmem:[%s303 + $0x5d8] sm:$0xff]
      %v506 = vld [vmem:[%s303 + $0x5e0] sm:$0xff]
      %v507 = vld [vmem:[%s303 + $0x5e8] sm:$0xff]
      %v508 = vld [vmem:[%s303 + $0x5f0] sm:$0xff]
      %v509 = vld [vmem:[%s303 + $0x5f8] sm:$0xff]
      %v510 = vld [vmem:[%s303 + $0x600] sm:$0xff]
      %v511 = vld [vmem:[%s303 + $0x608] sm:$0xff]
      %v512 = vld [vmem:[%s303 + $0x610] sm:$0xff]
      %v513 = vld [vmem:[%s303 + $0x618] sm:$0xff]
      %v514 = vld [vmem:[%s303 + $0x620] sm:$0xff]
      %v515 = vld [vmem:[%s303 + $0x628] sm:$0xff]
      %v516 = vld [vmem:[%s303 + $0x630] sm:$0xff]
      %v517 = vld [vmem:[%s303 + $0x638] sm:$0xff]
      %v518 = vld [vmem:[%s303 + $0x640] sm:$0xff]
      %v519 = vld [vmem:[%s303 + $0x648] sm:$0xff]
      %v520 = vld [vmem:[%s303 + $0x650] sm:$0xff]
      %v521 = vld [vmem:[%s303 + $0x658] sm:$0xff]
      %v522 = vld [vmem:[%s303 + $0x660] sm:$0xff]
      %v523 = vld [vmem:[%s303 + $0x668] sm:$0xff]
      %v524 = vld [vmem:[%s303 + $0x670] sm:$0xff]
      %v525 = vld [vmem:[%s303 + $0x678] sm:$0xff]
      %v526 = vld [vmem:[%s303 + $0x680] sm:$0xff]
      %v527 = vld [vmem:[%s303 + $0x688] sm:$0xff]
      %v528 = vld [vmem:[%s303 + $0x690] sm:$0xff]
      %v529 = vld [vmem:[%s303 + $0x698] sm:$0xff]
      %v530 = vld [vmem:[%s303 + $0x6a0] sm:$0xff]
      %v531 = vld [vmem:[%s303 + $0x6a8] sm:$0xff]
      %v532 = vld [vmem:[%s303 + $0x6b0] sm:$0xff]
      %v533 = vld [vmem:[%s303 + $0x6b8] sm:$0xff]
      %v534 = vld [vmem:[%s303 + $0x6c0] sm:$0xff]
      %v535 = vld [vmem:[%s303 + $0x6c8] sm:$0xff]
      %v536 = vld [vmem:[%s303 + $0x6d0] sm:$0xff]
      %v537 = vld [vmem:[%s303 + $0x6d8] sm:$0xff]
      %v538 = vld [vmem:[%s303 + $0x6e0] sm:$0xff]
      %v539 = vld [vmem:[%s303 + $0x6e8] sm:$0xff]
      %v540 = vld [vmem:[%s303 + $0x6f0] sm:$0xff]
      %v541 = vld [vmem:[%s303 + $0x6f8] sm:$0xff]
      %v542 = vld [vmem:[%s303 + $0x700] sm:$0xff]
      %v543 = vld [vmem:[%s303 + $0x708] sm:$0xff]
      %v544 = vld [vmem:[%s303 + $0x710] sm:$0xff]
      %v545 = vld [vmem:[%s303 + $0x718] sm:$0xff]
      %v546 = vld [vmem:[%s303 + $0x720] sm:$0xff]
      %v547 = vld [vmem:[%s303 + $0x728] sm:$0xff]
      %v548 = vld [vmem:[%s303 + $0x730] sm:$0xff]
      %v549 = vld [vmem:[%s303 + $0x738] sm:$0xff]
      %v550 = vld [vmem:[%s303 + $0x740] sm:$0xff]
      %v551 = vld [vmem:[%s303 + $0x748] sm:$0xff]
      %v552 = vld [vmem:[%s303 + $0x750] sm:$0xff]
      %v553 = vld [vmem:[%s303 + $0x758] sm:$0xff]
      %v554 = vld [vmem:[%s303 + $0x760] sm:$0xff]
      %v555 = vld [vmem:[%s303 + $0x768] sm:$0xff]
      %v556 = vld [vmem:[%s303 + $0x770] sm:$0xff]
      %v557 = vld [vmem:[%s303 + $0x778] sm:$0xff]
      %v558 = vld [vmem:[%s303 + $0x780] sm:$0xff]
      %v559 = vld [vmem:[%s303 + $0x788] sm:$0xff]
      %v560 = vld [vmem:[%s303 + $0x790] sm:$0xff]
      %v561 = vld [vmem:[%s303 + $0x798] sm:$0xff]
      %v562 = vld [vmem:[%s303 + $0x7a0] sm:$0xff]
      %v563 = vld [vmem:[%s303 + $0x7a8] sm:$0xff]
      %v564 = vld [vmem:[%s303 + $0x7b0] sm:$0xff]
      %v565 = vld [vmem:[%s303 + $0x7b8] sm:$0xff]
      %v566 = vld [vmem:[%s303 + $0x7c0] sm:$0xff]
      %v567 = vld [vmem:[%s303 + $0x7c8] sm:$0xff]
      %v568 = vld [vmem:[%s303 + $0x7d0] sm:$0xff]
      %v569 = vld [vmem:[%s303 + $0x7d8] sm:$0xff]
      %v570 = vld [vmem:[%s303 + $0x7e0] sm:$0xff]
      %v571 = vld [vmem:[%s303 + $0x7e8] sm:$0xff]
      %v572 = vld [vmem:[%s303 + $0x7f0] sm:$0xff]
      %v573 = vld [vmem:[%s303 + $0x7f8] sm:$0xff]
      %v574 = vld [vmem:[%s303 + $0x800] sm:$0xff]
      %v575 = vld [vmem:[%s303 + $0x808] sm:$0xff]
      %v576 = vld [vmem:[%s303 + $0x810] sm:$0xff]
      %v577 = vld [vmem:[%s303 + $0x818] sm:$0xff]
      %v578 = vld [vmem:[%s303 + $0x820] sm:$0xff]
      %v579 = vld [vmem:[%s303 + $0x828] sm:$0xff]
      %v580 = vld [vmem:[%s303 + $0x830] sm:$0xff]
      %v581 = vld [vmem:[%s303 + $0x838] sm:$0xff]
      %v582 = vld [vmem:[%s303 + $0x840] sm:$0xff]
      %v583 = vld [vmem:[%s303 + $0x848] sm:$0xff]
      %v584 = vld [vmem:[%s303 + $0x850] sm:$0xff]
      %v585 = vld [vmem:[%s303 + $0x858] sm:$0xff]
      %v586 = vld [vmem:[%s303 + $0x860] sm:$0xff]
      %v587 = vld [vmem:[%s303 + $0x868] sm:$0xff]
      %v588 = vld [vmem:[%s303 + $0x870] sm:$0xff]
      %v589 = vld [vmem:[%s303 + $0x878] sm:$0xff]
      %v590 = vld [vmem:[%s303 + $0x880] sm:$0xff]
      %v591 = vld [vmem:[%s303 + $0x888] sm:$0xff]
      %v592 = vld [vmem:[%s303 + $0x890] sm:$0xff]
      %v593 = vld [vmem:[%s303 + $0x898] sm:$0xff]
      %v594 = vld [vmem:[%s303 + $0x8a0] sm:$0xff]
      %v595 = vld [vmem:[%s303 + $0x8a8] sm:$0xff]
      %v596 = vld [vmem:[%s303 + $0x8b0] sm:$0xff]
      %v597 = vld [vmem:[%s303 + $0x8b8] sm:$0xff]
      %v598 = vld [vmem:[%s303 + $0x8c0] sm:$0xff]
      %v599 = vld [vmem:[%s303 + $0x8c8] sm:$0xff]
      %v600 = vld [vmem:[%s303 + $0x8d0] sm:$0xff]
      %v601 = vld [vmem:[%s303 + $0x8d8] sm:$0xff]
      %v602 = vld [vmem:[%s303 + $0x8e0] sm:$0xff]
      %v603 = vld [vmem:[%s303 + $0x8e8] sm:$0xff]
      %v604 = vld [vmem:[%s303 + $0x8f0] sm:$0xff]
      %v605 = vld [vmem:[%s303 + $0x8f8] sm:$0xff]
      %v606 = vld [vmem:[%s303 + $0x900] sm:$0xff]
      %v607 = vld [vmem:[%s303 + $0x908] sm:$0xff]
      %v608 = vld [vmem:[%s303 + $0x910] sm:$0xff]
      %v609 = vld [vmem:[%s303 + $0x918] sm:$0xff]
      %v610 = vld [vmem:[%s303 + $0x920] sm:$0xff]
      %v611 = vld [vmem:[%s303 + $0x928] sm:$0xff]
      %v612 = vld [vmem:[%s303 + $0x930] sm:$0xff]
      %v613 = vld [vmem:[%s303 + $0x938] sm:$0xff]
      %v614 = vld [vmem:[%s303 + $0x940] sm:$0xff]
      %v615 = vld [vmem:[%s303 + $0x948] sm:$0xff]
      %v616 = vld [vmem:[%s303 + $0x950] sm:$0xff]
      %v617 = vld [vmem:[%s303 + $0x958] sm:$0xff]
      %v618 = vld [vmem:[%s303 + $0x960] sm:$0xff]
      %v619 = vld [vmem:[%s303 + $0x968] sm:$0xff]
      %v620 = vld [vmem:[%s303 + $0x970] sm:$0xff]
      %v621 = vld [vmem:[%s303 + $0x978] sm:$0xff]
      %v622 = vld [vmem:[%s303 + $0x980] sm:$0xff]
      %v623 = vld [vmem:[%s303 + $0x988] sm:$0xff]
      %v624 = vld [vmem:[%s303 + $0x990] sm:$0xff]
      %v625 = vld [vmem:[%s303 + $0x998] sm:$0xff]
      %v626 = vld [vmem:[%s303 + $0x9a0] sm:$0xff]
      %v627 = vld [vmem:[%s303 + $0x9a8] sm:$0xff]
      %v628 = vld [vmem:[%s303 + $0x9b0] sm:$0xff]
      %v629 = vld [vmem:[%s303 + $0x9b8] sm:$0xff]
      %v630 = vld [vmem:[%s303 + $0x9c0] sm:$0xff]
      %v631 = vld [vmem:[%s303 + $0x9c8] sm:$0xff]
      %v632 = vld [vmem:[%s303 + $0x9d0] sm:$0xff]
      %v633 = vld [vmem:[%s303 + $0x9d8] sm:$0xff]
      %v634 = vld [vmem:[%s303 + $0x9e0] sm:$0xff]
      %v635 = vld [vmem:[%s303 + $0x9e8] sm:$0xff]
      %v636 = vld [vmem:[%s303 + $0x9f0] sm:$0xff]
      %v637 = vld [vmem:[%s303 + $0x9f8] sm:$0xff]
      %v638 = vld [vmem:[%s303 + $0xa00] sm:$0xff]
      %v639 = vld [vmem:[%s303 + $0xa08] sm:$0xff]
      %v640 = vld [vmem:[%s303 + $0xa10] sm:$0xff]
      %v641 = vld [vmem:[%s303 + $0xa18] sm:$0xff]
      %v642 = vld [vmem:[%s303 + $0xa20] sm:$0xff]
      %v643 = vld [vmem:[%s303 + $0xa28] sm:$0xff]
      %v644 = vld [vmem:[%s303 + $0xa30] sm:$0xff]
      %v645 = vld [vmem:[%s303 + $0xa38] sm:$0xff]
      %v646 = vld [vmem:[%s303 + $0xa40] sm:$0xff]
      %v647 = vld [vmem:[%s303 + $0xa48] sm:$0xff]
      %v648 = vld [vmem:[%s303 + $0xa50] sm:$0xff]
      %v649 = vld [vmem:[%s303 + $0xa58] sm:$0xff]
      %v650 = vld [vmem:[%s303 + $0xa60] sm:$0xff]
      %v651 = vld [vmem:[%s303 + $0xa68] sm:$0xff]
      %v652 = vld [vmem:[%s303 + $0xa70] sm:$0xff]
      %v653 = vld [vmem:[%s303 + $0xa78] sm:$0xff]
      %v654 = vld [vmem:[%s303 + $0xa80] sm:$0xff]
      %v655 = vld [vmem:[%s303 + $0xa88] sm:$0xff]
      %v656 = vld [vmem:[%s303 + $0xa90] sm:$0xff]
      %v657 = vld [vmem:[%s303 + $0xa98] sm:$0xff]
      %v658 = vld [vmem:[%s303 + $0xaa0] sm:$0xff]
      %v659 = vld [vmem:[%s303 + $0xaa8] sm:$0xff]
      %v660 = vld [vmem:[%s303 + $0xab0] sm:$0xff]
      %v661 = vld [vmem:[%s303 + $0xab8] sm:$0xff]
      %v662 = vld [vmem:[%s303 + $0xac0] sm:$0xff]
      %v663 = vld [vmem:[%s303 + $0xac8] sm:$0xff]
      %v664 = vld [vmem:[%s303 + $0xad0] sm:$0xff]
      %v665 = vld [vmem:[%s303 + $0xad8] sm:$0xff]
      %v666 = vld [vmem:[%s303 + $0xae0] sm:$0xff]
      %v667 = vld [vmem:[%s303 + $0xae8] sm:$0xff]
      %v668 = vld [vmem:[%s303 + $0xaf0] sm:$0xff]
      %v669 = vld [vmem:[%s303 + $0xaf8] sm:$0xff]
      %v670 = vld [vmem:[%s303 + $0xb00] sm:$0xff]
      %v671 = vld [vmem:[%s303 + $0xb08] sm:$0xff]
      %v672 = vld [vmem:[%s303 + $0xb10] sm:$0xff]
      %v673 = vld [vmem:[%s303 + $0xb18] sm:$0xff]
      %v674 = vld [vmem:[%s303 + $0xb20] sm:$0xff]
      %v675 = vld [vmem:[%s303 + $0xb28] sm:$0xff]
      %v676 = vld [vmem:[%s303 + $0xb30] sm:$0xff]
      %v677 = vld [vmem:[%s303 + $0xb38] sm:$0xff]
      %v678 = vld [vmem:[%s303 + $0xb40] sm:$0xff]
      %v679 = vld [vmem:[%s303 + $0xb48] sm:$0xff]
      %v680 = vld [vmem:[%s303 + $0xb50] sm:$0xff]
      %v681 = vld [vmem:[%s303 + $0xb58] sm:$0xff]
      %v682 = vld [vmem:[%s303 + $0xb60] sm:$0xff]
      %v683 = vld [vmem:[%s303 + $0xb68] sm:$0xff]
      %v684 = vld [vmem:[%s303 + $0xb70] sm:$0xff]
      %v685 = vld [vmem:[%s303 + $0xb78] sm:$0xff]
      %v686 = vld [vmem:[%s303 + $0xb80] sm:$0xff]
      %v687 = vld [vmem:[%s303 + $0xb88] sm:$0xff]
      %v688 = vld [vmem:[%s303 + $0xb90] sm:$0xff]
      %v689 = vld [vmem:[%s303 + $0xb98] sm:$0xff]
      %v690 = vld [vmem:[%s303 + $0xba0] sm:$0xff]
      %v691 = vld [vmem:[%s303 + $0xba8] sm:$0xff]
      %v692 = vld [vmem:[%s303 + $0xbb0] sm:$0xff]
      %v693 = vld [vmem:[%s303 + $0xbb8] sm:$0xff]
      %v694 = vld [vmem:[%s303 + $0xbc0] sm:$0xff]
      %v695 = vld [vmem:[%s303 + $0xbc8] sm:$0xff]
      %v696 = vld [vmem:[%s303 + $0xbd0] sm:$0xff]
      %v697 = vld [vmem:[%s303 + $0xbd8] sm:$0xff]
      %v698 = vld [vmem:[%s303 + $0xbe0] sm:$0xff]
      %v699 = vld [vmem:[%s303 + $0xbe8] sm:$0xff]
      %v700 = vld [vmem:[%s303 + $0xbf0] sm:$0xff]
      %v701 = vld [vmem:[%s303 + $0xbf8] sm:$0xff]
      %v702 = vld [vmem:[%s303 + $0xc00] sm:$0xff]
      %v703 = vld [vmem:[%s303 + $0xc08] sm:$0xff]
      %v704 = vld [vmem:[%s303 + $0xc10] sm:$0xff]
      %v705 = vld [vmem:[%s303 + $0xc18] sm:$0xff]
      %v706 = vld [vmem:[%s303 + $0xc20] sm:$0xff]
      %v707 = vld [vmem:[%s303 + $0xc28] sm:$0xff]
      %v708 = vld [vmem:[%s303 + $0xc30] sm:$0xff]
      %v709 = vld [vmem:[%s303 + $0xc38] sm:$0xff]
      %v710 = vld [vmem:[%s303 + $0xc40] sm:$0xff]
      %v711 = vld [vmem:[%s303 + $0xc48] sm:$0xff]
      %v712 = vld [vmem:[%s303 + $0xc50] sm:$0xff]
      %v713 = vld [vmem:[%s303 + $0xc58] sm:$0xff]
      %v714 = vld [vmem:[%s303 + $0xc60] sm:$0xff]
      %v715 = vld [vmem:[%s303 + $0xc68] sm:$0xff]
      %v716 = vld [vmem:[%s303 + $0xc70] sm:$0xff]
      %v717 = vld [vmem:[%s303 + $0xc78] sm:$0xff]
      %v718 = vld [vmem:[%s303 + $0xc80] sm:$0xff]
      %v719 = vld [vmem:[%s303 + $0xc88] sm:$0xff]
      %v720 = vld [vmem:[%s303 + $0xc90] sm:$0xff]
      %v721 = vld [vmem:[%s303 + $0xc98] sm:$0xff]
      %v722 = vld [vmem:[%s303 + $0xca0] sm:$0xff]
      %v723 = vld [vmem:[%s303 + $0xca8] sm:$0xff]
      %v724 = vld [vmem:[%s303 + $0xcb0] sm:$0xff]
      %v725 = vld [vmem:[%s303 + $0xcb8] sm:$0xff]
      %v726 = vld [vmem:[%s303 + $0xcc0] sm:$0xff]
      %v727 = vld [vmem:[%s303 + $0xcc8] sm:$0xff]
      %v728 = vld [vmem:[%s303 + $0xcd0] sm:$0xff]
      %v729 = vld [vmem:[%s303 + $0xcd8] sm:$0xff]
      %v730 = vld [vmem:[%s303 + $0xce0] sm:$0xff]
      %v731 = vld [vmem:[%s303 + $0xce8] sm:$0xff]
      %v732 = vld [vmem:[%s303 + $0xcf0] sm:$0xff]
      %v733 = vld [vmem:[%s303 + $0xcf8] sm:$0xff]
      %v734 = vld [vmem:[%s303 + $0xd00] sm:$0xff]
      %v735 = vld [vmem:[%s303 + $0xd08] sm:$0xff]
      %v736 = vld [vmem:[%s303 + $0xd10] sm:$0xff]
      %v737 = vld [vmem:[%s303 + $0xd18] sm:$0xff]
      %v738 = vld [vmem:[%s303 + $0xd20] sm:$0xff]
      %v739 = vld [vmem:[%s303 + $0xd28] sm:$0xff]
      %v740 = vld [vmem:[%s303 + $0xd30] sm:$0xff]
      %v741 = vld [vmem:[%s303 + $0xd38] sm:$0xff]
      %v742 = vld [vmem:[%s303 + $0xd40] sm:$0xff]
      %v743 = vld [vmem:[%s303 + $0xd48] sm:$0xff]
      %v744 = vld [vmem:[%s303 + $0xd50] sm:$0xff]
      %v745 = vld [vmem:[%s303 + $0xd58] sm:$0xff]
      %v746 = vld [vmem:[%s303 + $0xd60] sm:$0xff]
      %v747 = vld [vmem:[%s303 + $0xd68] sm:$0xff]
      %v748 = vld [vmem:[%s303 + $0xd70] sm:$0xff]
      %v749 = vld [vmem:[%s303 + $0xd78] sm:$0xff]
      %v750 = vld [vmem:[%s303 + $0xd80] sm:$0xff]
      %v751 = vld [vmem:[%s303 + $0xd88] sm:$0xff]
      %v752 = vld [vmem:[%s303 + $0xd90] sm:$0xff]
      %v753 = vld [vmem:[%s303 + $0xd98] sm:$0xff]
      %v754 = vld [vmem:[%s303 + $0xda0] sm:$0xff]
      %v755 = vld [vmem:[%s303 + $0xda8] sm:$0xff]
      %v756 = vld [vmem:[%s303 + $0xdb0] sm:$0xff]
      %v757 = vld [vmem:[%s303 + $0xdb8] sm:$0xff]
      %v758 = vld [vmem:[%s303 + $0xdc0] sm:$0xff]
      %v759 = vld [vmem:[%s303 + $0xdc8] sm:$0xff]
      %v760 = vld [vmem:[%s303 + $0xdd0] sm:$0xff]
      %v761 = vld [vmem:[%s303 + $0xdd8] sm:$0xff]
      %v762 = vld [vmem:[%s303 + $0xde0] sm:$0xff]
      %v763 = vld [vmem:[%s303 + $0xde8] sm:$0xff]
      %v764 = vld [vmem:[%s303 + $0xdf0] sm:$0xff]
      %v765 = vld [vmem:[%s303 + $0xdf8] sm:$0xff]
      %v766 = vld [vmem:[%s303 + $0xe00] sm:$0xff]
      %v767 = vld [vmem:[%s303 + $0xe08] sm:$0xff]
      %v768 = vld [vmem:[%s303 + $0xe10] sm:$0xff]
      %v769 = vld [vmem:[%s303 + $0xe18] sm:$0xff]
      %v770 = vld [vmem:[%s303 + $0xe20] sm:$0xff]
      %v771 = vld [vmem:[%s303 + $0xe28] sm:$0xff]
      %v772 = vld [vmem:[%s303 + $0xe30] sm:$0xff]
      %v773 = vld [vmem:[%s303 + $0xe38] sm:$0xff]
      %v774 = vld [vmem:[%s303 + $0xe40] sm:$0xff]
      %v775 = vld [vmem:[%s303 + $0xe48] sm:$0xff]
      %v776 = vld [vmem:[%s303 + $0xe50] sm:$0xff]
      %v777 = vld [vmem:[%s303 + $0xe58] sm:$0xff]
      %v778 = vld [vmem:[%s303 + $0xe60] sm:$0xff]
      %v779 = vld [vmem:[%s303 + $0xe68] sm:$0xff]
      %v780 = vld [vmem:[%s303 + $0xe70] sm:$0xff]
      %v781 = vld [vmem:[%s303 + $0xe78] sm:$0xff]
      %v782 = vld [vmem:[%s303 + $0xe80] sm:$0xff]
      %v783 = vld [vmem:[%s303 + $0xe88] sm:$0xff]
      %v784 = vld [vmem:[%s303 + $0xe90] sm:$0xff]
      %v785 = vld [vmem:[%s303 + $0xe98] sm:$0xff]
      %v786 = vld [vmem:[%s303 + $0xea0] sm:$0xff]
      %v787 = vld [vmem:[%s303 + $0xea8] sm:$0xff]
      %v788 = vld [vmem:[%s303 + $0xeb0] sm:$0xff]
      %v789 = vld [vmem:[%s303 + $0xeb8] sm:$0xff]
      %v790 = vld [vmem:[%s303 + $0xec0] sm:$0xff]
      %v791 = vld [vmem:[%s303 + $0xec8] sm:$0xff]
      %v792 = vld [vmem:[%s303 + $0xed0] sm:$0xff]
      %v793 = vld [vmem:[%s303 + $0xed8] sm:$0xff]
      %v794 = vld [vmem:[%s303 + $0xee0] sm:$0xff]
      %v795 = vld [vmem:[%s303 + $0xee8] sm:$0xff]
      %v796 = vld [vmem:[%s303 + $0xef0] sm:$0xff]
      %v797 = vld [vmem:[%s303 + $0xef8] sm:$0xff]
      %v798 = vld [vmem:[%s303 + $0xf00] sm:$0xff]
      %v799 = vld [vmem:[%s303 + $0xf08] sm:$0xff]
      %v800 = vld [vmem:[%s303 + $0xf10] sm:$0xff]
      %v801 = vld [vmem:[%s303 + $0xf18] sm:$0xff]
      %v802 = vld [vmem:[%s303 + $0xf20] sm:$0xff]
      %v803 = vld [vmem:[%s303 + $0xf28] sm:$0xff]
      %v804 = vld [vmem:[%s303 + $0xf30] sm:$0xff]
      %v805 = vld [vmem:[%s303 + $0xf38] sm:$0xff]
      %v806 = vld [vmem:[%s303 + $0xf40] sm:$0xff]
      %v807 = vld [vmem:[%s303 + $0xf48] sm:$0xff]
      %v808 = vld [vmem:[%s303 + $0xf50] sm:$0xff]
      %v809 = vld [vmem:[%s303 + $0xf58] sm:$0xff]
      %v810 = vld [vmem:[%s303 + $0xf60] sm:$0xff]
      %v811 = vld [vmem:[%s303 + $0xf68] sm:$0xff]
      %v812 = vld [vmem:[%s303 + $0xf70] sm:$0xff]
      %v813 = vld [vmem:[%s303 + $0xf78] sm:$0xff]
      %v814 = vld [vmem:[%s303 + $0xf80] sm:$0xff]
      %v815 = vld [vmem:[%s303 + $0xf88] sm:$0xff]
      %v816 = vld [vmem:[%s303 + $0xf90] sm:$0xff]
      %v817 = vld [vmem:[%s303 + $0xf98] sm:$0xff]
      %v818 = vld [vmem:[%s303 + $0xfa0] sm:$0xff]
      %v819 = vld [vmem:[%s303 + $0xfa8] sm:$0xff]
      %v820 = vld [vmem:[%s303 + $0xfb0] sm:$0xff]
      %v821 = vld [vmem:[%s303 + $0xfb8] sm:$0xff]
      %v822 = vld [vmem:[%s303 + $0xfc0] sm:$0xff]
      %v823 = vld [vmem:[%s303 + $0xfc8] sm:$0xff]
      %v824 = vld [vmem:[%s303 + $0xfd0] sm:$0xff]
      %v825 = vld [vmem:[%s303 + $0xfd8] sm:$0xff]
      %v826 = vld [vmem:[%s303 + $0xfe0] sm:$0xff]
      %v827 = vld [vmem:[%s303 + $0xfe8] sm:$0xff]
      %v828 = vld [vmem:[%s303 + $0xff0] sm:$0xff]
      %v829 = vld [vmem:[%s303 + $0xff8] sm:$0xff]
      %v830 = vld [vmem:[%s303 + $0x1000] sm:$0xff]
      %v831 = vld [vmem:[%s303 + $0x1008] sm:$0xff]
      %v832 = vld [vmem:[%s303 + $0x1010] sm:$0xff]
      %v833 = vld [vmem:[%s303 + $0x1018] sm:$0xff]
      %v834 = vld [vmem:[%s303 + $0x1020] sm:$0xff]
      %v835 = vld [vmem:[%s303 + $0x1028] sm:$0xff]
      %v836 = vld [vmem:[%s303 + $0x1030] sm:$0xff]
      %v837 = vld [vmem:[%s303 + $0x1038] sm:$0xff]
      %v838 = vld [vmem:[%s303 + $0x1040] sm:$0xff]
      %v839 = vld [vmem:[%s303 + $0x1048] sm:$0xff]
      %v840 = vld [vmem:[%s303 + $0x1050] sm:$0xff]
      %v841 = vld [vmem:[%s303 + $0x1058] sm:$0xff]
      %v842 = vld [vmem:[%s303 + $0x1060] sm:$0xff]
      %v843 = vld [vmem:[%s303 + $0x1068] sm:$0xff]
      %v844 = vld [vmem:[%s303 + $0x1070] sm:$0xff]
      %v845 = vld [vmem:[%s303 + $0x1078] sm:$0xff]
      %v846 = vld [vmem:[%s303 + $0x1080] sm:$0xff]
      %v847 = vld [vmem:[%s303 + $0x1088] sm:$0xff]
      %v848 = vld [vmem:[%s303 + $0x1090] sm:$0xff]
      %v849 = vld [vmem:[%s303 + $0x1098] sm:$0xff]
      %v850 = vld [vmem:[%s303 + $0x10a0] sm:$0xff]
      %v851 = vld [vmem:[%s303 + $0x10a8] sm:$0xff]
      %v852 = vld [vmem:[%s303 + $0x10b0] sm:$0xff]
      %v853 = vld [vmem:[%s303 + $0x10b8] sm:$0xff]
      %v854 = vld [vmem:[%s303 + $0x10c0] sm:$0xff]
      %v855 = vld [vmem:[%s303 + $0x10c8] sm:$0xff]
      %v856 = vld [vmem:[%s303 + $0x10d0] sm:$0xff]
      %v857 = vld [vmem:[%s303 + $0x10d8] sm:$0xff]
      %v858 = vld [vmem:[%s303 + $0x10e0] sm:$0xff]
      %v859 = vld [vmem:[%s303 + $0x10e8] sm:$0xff]
      %v860 = vld [vmem:[%s303 + $0x10f0] sm:$0xff]
      %v861 = vld [vmem:[%s303 + $0x10f8] sm:$0xff]
      %v862 = vld [vmem:[%s303 + $0x1100] sm:$0xff]
      %v863 = vld [vmem:[%s303 + $0x1108] sm:$0xff]
      %v864 = vld [vmem:[%s303 + $0x1110] sm:$0xff]
      %v865 = vld [vmem:[%s303 + $0x1118] sm:$0xff]
      %v866 = vld [vmem:[%s303 + $0x1120] sm:$0xff]
      %v867 = vld [vmem:[%s303 + $0x1128] sm:$0xff]
      %v868 = vld [vmem:[%s303 + $0x1130] sm:$0xff]
      %v869 = vld [vmem:[%s303 + $0x1138] sm:$0xff]
      %v870 = vld [vmem:[%s303 + $0x1140] sm:$0xff]
      %v871 = vld [vmem:[%s303 + $0x1148] sm:$0xff]
      %v872 = vld [vmem:[%s303 + $0x1150] sm:$0xff]
      %v873 = vld [vmem:[%s303 + $0x1158] sm:$0xff]
      %v874 = vld [vmem:[%s303 + $0x1160] sm:$0xff]
      %v875 = vld [vmem:[%s303 + $0x1168] sm:$0xff]
      %v876 = vld [vmem:[%s303 + $0x1170] sm:$0xff]
      %v877 = vld [vmem:[%s303 + $0x1178] sm:$0xff]
      %v878 = vld [vmem:[%s303 + $0x1180] sm:$0xff]
      %v879 = vld [vmem:[%s303 + $0x1188] sm:$0xff]
      %v880 = vld [vmem:[%s303 + $0x1190] sm:$0xff]
      %v881 = vld [vmem:[%s303 + $0x1198] sm:$0xff]
      %v882 = vld [vmem:[%s303 + $0x11a0] sm:$0xff]
      %v883 = vld [vmem:[%s303 + $0x11a8] sm:$0xff]
      %v884 = vld [vmem:[%s303 + $0x11b0] sm:$0xff]
      %v885 = vld [vmem:[%s303 + $0x11b8] sm:$0xff]
      %v886 = vld [vmem:[%s303 + $0x11c0] sm:$0xff]
      %v887 = vld [vmem:[%s303 + $0x11c8] sm:$0xff]
      %v888 = vld [vmem:[%s303 + $0x11d0] sm:$0xff]
      %v889 = vld [vmem:[%s303 + $0x11d8] sm:$0xff]
      %v890 = vld [vmem:[%s303 + $0x11e0] sm:$0xff]
      %v891 = vld [vmem:[%s303 + $0x11e8] sm:$0xff]
      %v892 = vld [vmem:[%s303 + $0x11f0] sm:$0xff]
      %v893 = vld [vmem:[%s303 + $0x11f8] sm:$0xff]
      %v894 = vld [vmem:[%s303 + $0x1200] sm:$0xff]
      %v895 = vld [vmem:[%s303 + $0x1208] sm:$0xff]
      %v896 = vld [vmem:[%s303 + $0x1210] sm:$0xff]
      %v897 = vld [vmem:[%s303 + $0x1218] sm:$0xff]
      %v898 = vld [vmem:[%s303 + $0x1220] sm:$0xff]
      %v899 = vld [vmem:[%s303 + $0x1228] sm:$0xff]
      %v900 = vld [vmem:[%s303 + $0x1230] sm:$0xff]
      %v901 = vld [vmem:[%s303 + $0x1238] sm:$0xff]
      %v902 = vld [vmem:[%s303 + $0x1240] sm:$0xff]
      %v903 = vld [vmem:[%s303 + $0x1248] sm:$0xff]
      %v904 = vld [vmem:[%s303 + $0x1250] sm:$0xff]
      %v905 = vld [vmem:[%s303 + $0x1258] sm:$0xff]
      %v906 = vld [vmem:[%s303 + $0x1260] sm:$0xff]
      %v907 = vld [vmem:[%s303 + $0x1268] sm:$0xff]
      %v908 = vld [vmem:[%s303 + $0x1270] sm:$0xff]
      %v909 = vld [vmem:[%s303 + $0x1278] sm:$0xff]
      %v910 = vld [vmem:[%s303 + $0x1280] sm:$0xff]
      %v911 = vld [vmem:[%s303 + $0x1288] sm:$0xff]
      %v912 = vld [vmem:[%s303 + $0x1290] sm:$0xff]
      %v913 = vld [vmem:[%s303 + $0x1298] sm:$0xff]
      %v914 = vld [vmem:[%s303 + $0x12a0] sm:$0xff]
      %v915 = vld [vmem:[%s303 + $0x12a8] sm:$0xff]
      %v916 = vld [vmem:[%s303 + $0x12b0] sm:$0xff]
      %v917 = vld [vmem:[%s303 + $0x12b8] sm:$0xff]
      %v918 = vld [vmem:[%s303 + $0x12c0] sm:$0xff]
      %v919 = vld [vmem:[%s303 + $0x12c8] sm:$0xff]
      %v920 = vld [vmem:[%s303 + $0x12d0] sm:$0xff]
      %v921 = vld [vmem:[%s303 + $0x12d8] sm:$0xff]
      %v922 = vld [vmem:[%s303 + $0x12e0] sm:$0xff]
      %v923 = vld [vmem:[%s303 + $0x12e8] sm:$0xff]
      %v924 = vld [vmem:[%s303 + $0x12f0] sm:$0xff]
      %v925 = vld [vmem:[%s303 + $0x12f8] sm:$0xff]
      %v926 = vld [vmem:[%s303 + $0x1300] sm:$0xff]
      %v927 = vld [vmem:[%s303 + $0x1308] sm:$0xff]
      %v928 = vld [vmem:[%s303 + $0x1310] sm:$0xff]
      %v929 = vld [vmem:[%s303 + $0x1318] sm:$0xff]
      %v930 = vld [vmem:[%s303 + $0x1320] sm:$0xff]
      %v931 = vld [vmem:[%s303 + $0x1328] sm:$0xff]
      %v932 = vld [vmem:[%s303 + $0x1330] sm:$0xff]
      %v933 = vld [vmem:[%s303 + $0x1338] sm:$0xff]
      %v934 = vld [vmem:[%s303 + $0x1340] sm:$0xff]
      %v935 = vld [vmem:[%s303 + $0x1348] sm:$0xff]
      %v936 = vld [vmem:[%s303 + $0x1350] sm:$0xff]
      %v937 = vld [vmem:[%s303 + $0x1358] sm:$0xff]
      %v938 = vld [vmem:[%s303 + $0x1360] sm:$0xff]
      %v939 = vld [vmem:[%s303 + $0x1368] sm:$0xff]
      %v940 = vld [vmem:[%s303 + $0x1370] sm:$0xff]
      %v941 = vld [vmem:[%s303 + $0x1378] sm:$0xff]
      %v942 = vld [vmem:[%s303 + $0x1380] sm:$0xff]
      %v943 = vld [vmem:[%s303 + $0x1388] sm:$0xff]
      %v944 = vld [vmem:[%s303 + $0x1390] sm:$0xff]
      %v945 = vld [vmem:[%s303 + $0x1398] sm:$0xff]
      %v946 = vld [vmem:[%s303 + $0x13a0] sm:$0xff]
      %v947 = vld [vmem:[%s303 + $0x13a8] sm:$0xff]
      %v948 = vld [vmem:[%s303 + $0x13b0] sm:$0xff]
      %v949 = vld [vmem:[%s303 + $0x13b8] sm:$0xff]
      %v950 = vld [vmem:[%s303 + $0x13c0] sm:$0xff]
      %v951 = vld [vmem:[%s303 + $0x13c8] sm:$0xff]
      %v952 = vld [vmem:[%s303 + $0x13d0] sm:$0xff]
      %v953 = vld [vmem:[%s303 + $0x13d8] sm:$0xff]
      %v954 = vld [vmem:[%s303 + $0x13e0] sm:$0xff]
      %v955 = vld [vmem:[%s303 + $0x13e8] sm:$0xff]
      %v956 = vld [vmem:[%s303 + $0x13f0] sm:$0xff]
      %v957 = vld [vmem:[%s303 + $0x13f8] sm:$0xff]
      %v958 = vld [vmem:[%s303 + $0x1400] sm:$0xff]
      %v959 = vld [vmem:[%s303 + $0x1408] sm:$0xff]
      %v960 = vld [vmem:[%s303 + $0x1410] sm:$0xff]
      %v961 = vld [vmem:[%s303 + $0x1418] sm:$0xff]
      %v962 = vld [vmem:[%s303 + $0x1420] sm:$0xff]
      %v963 = vld [vmem:[%s303 + $0x1428] sm:$0xff]
      %v964 = vld [vmem:[%s303 + $0x1430] sm:$0xff]
      %v965 = vld [vmem:[%s303 + $0x1438] sm:$0xff]
      %v966 = vld [vmem:[%s303 + $0x1440] sm:$0xff]
      %v967 = vld [vmem:[%s303 + $0x1448] sm:$0xff]
      %v968 = vld [vmem:[%s303 + $0x1450] sm:$0xff]
      %v969 = vld [vmem:[%s303 + $0x1458] sm:$0xff]
      %v970 = vld [vmem:[%s303 + $0x1460] sm:$0xff]
      %v971 = vld [vmem:[%s303 + $0x1468] sm:$0xff]
      %v972 = vld [vmem:[%s303 + $0x1470] sm:$0xff]
      %v973 = vld [vmem:[%s303 + $0x1478] sm:$0xff]
      %v974 = vld [vmem:[%s303 + $0x1480] sm:$0xff]
      %v975 = vld [vmem:[%s303 + $0x1488] sm:$0xff]
      %v976 = vld [vmem:[%s303 + $0x1490] sm:$0xff]
      %v977 = vld [vmem:[%s303 + $0x1498] sm:$0xff]
      %v978 = vld [vmem:[%s303 + $0x14a0] sm:$0xff]
      %v979 = vld [vmem:[%s303 + $0x14a8] sm:$0xff]
      %v980 = vld [vmem:[%s303 + $0x14b0] sm:$0xff]
      %v981 = vld [vmem:[%s303 + $0x14b8] sm:$0xff]
      %v982 = vld [vmem:[%s303 + $0x14c0] sm:$0xff]
      %v983 = vld [vmem:[%s303 + $0x14c8] sm:$0xff]
      %v984 = vld [vmem:[%s303 + $0x14d0] sm:$0xff]
      %v985 = vld [vmem:[%s303 + $0x14d8] sm:$0xff]
      %v986 = vld [vmem:[%s303 + $0x14e0] sm:$0xff]
      %v987 = vld [vmem:[%s303 + $0x14e8] sm:$0xff]
      %v988 = vld [vmem:[%s303 + $0x14f0] sm:$0xff]
      %v989 = vld [vmem:[%s303 + $0x14f8] sm:$0xff]
      %v990 = vld [vmem:[%s303 + $0x1500] sm:$0xff]
      %v991 = vld [vmem:[%s303 + $0x1508] sm:$0xff]
      %v992 = vld [vmem:[%s303 + $0x1510] sm:$0xff]
      %v993 = vld [vmem:[%s303 + $0x1518] sm:$0xff]
      %v994 = vld [vmem:[%s303 + $0x1520] sm:$0xff]
      %v995 = vld [vmem:[%s303 + $0x1528] sm:$0xff]
      %v996 = vld [vmem:[%s303 + $0x1530] sm:$0xff]
      %v997 = vld [vmem:[%s303 + $0x1538] sm:$0xff]
      %v998 = vld [vmem:[%s303 + $0x1540] sm:$0xff]
      %v999 = vld [vmem:[%s303 + $0x1548] sm:$0xff]
      %v1000 = vld [vmem:[%s303 + $0x1550] sm:$0xff]
      %v1001 = vld [vmem:[%s303 + $0x1558] sm:$0xff]
      %v1002 = vld [vmem:[%s303 + $0x1560] sm:$0xff]
      %v1003 = vld [vmem:[%s303 + $0x1568] sm:$0xff]
      %v1004 = vld [vmem:[%s303 + $0x1570] sm:$0xff]
      %v1005 = vld [vmem:[%s303 + $0x1578] sm:$0xff]
      %v1006 = vld [vmem:[%s303 + $0x1580] sm:$0xff]
      %v1007 = vld [vmem:[%s303 + $0x1588] sm:$0xff]
      %v1008 = vld [vmem:[%s303 + $0x1590] sm:$0xff]
      %v1009 = vld [vmem:[%s303 + $0x1598] sm:$0xff]
      %v1010 = vld [vmem:[%s303 + $0x15a0] sm:$0xff]
      %v1011 = vld [vmem:[%s303 + $0x15a8] sm:$0xff]
      %v1012 = vld [vmem:[%s303 + $0x15b0] sm:$0xff]
      %v1013 = vld [vmem:[%s303 + $0x15b8] sm:$0xff]
      %v1014 = vld [vmem:[%s303 + $0x15c0] sm:$0xff]
      %v1015 = vld [vmem:[%s303 + $0x15c8] sm:$0xff]
      %v1016 = vld [vmem:[%s303 + $0x15d0] sm:$0xff]
      %v1017 = vld [vmem:[%s303 + $0x15d8] sm:$0xff]
      %v1018 = vld [vmem:[%s303 + $0x15e0] sm:$0xff]
      %v1019 = vld [vmem:[%s303 + $0x15e8] sm:$0xff]
      %v1020 = vld [vmem:[%s303 + $0x15f0] sm:$0xff]
      %v1021 = vld [vmem:[%s303 + $0x15f8] sm:$0xff]
      %v1022 = vld [vmem:[%s303 + $0x1600] sm:$0xff]
      %v1023 = vld [vmem:[%s303 + $0x1608] sm:$0xff]
      %v1024 = vld [vmem:[%s303 + $0x1610] sm:$0xff]
      %v1025 = vld [vmem:[%s303 + $0x1618] sm:$0xff]
      %v1026 = vld [vmem:[%s303 + $0x1620] sm:$0xff]
      %v1027 = vld [vmem:[%s303 + $0x1628] sm:$0xff]
      %v1028 = vld [vmem:[%s303 + $0x1630] sm:$0xff]
      %v1029 = vld [vmem:[%s303 + $0x1638] sm:$0xff]
      %v1030 = vld [vmem:[%s303 + $0x1640] sm:$0xff]
      %v1031 = vld [vmem:[%s303 + $0x1648] sm:$0xff]
      %v1032 = vld [vmem:[%s303 + $0x1650] sm:$0xff]
      %v1033 = vld [vmem:[%s303 + $0x1658] sm:$0xff]
      %v1034 = vld [vmem:[%s303 + $0x1660] sm:$0xff]
      %v1035 = vld [vmem:[%s303 + $0x1668] sm:$0xff]
      %v1036 = vld [vmem:[%s303 + $0x1670] sm:$0xff]
      %v1037 = vld [vmem:[%s303 + $0x1678] sm:$0xff]
      %v1038 = vld [vmem:[%s303 + $0x1680] sm:$0xff]
      %v1039 = vld [vmem:[%s303 + $0x1688] sm:$0xff]
      %v1040 = vld [vmem:[%s303 + $0x1690] sm:$0xff]
      %v1041 = vld [vmem:[%s303 + $0x1698] sm:$0xff]
      %v1042 = vld [vmem:[%s303 + $0x16a0] sm:$0xff]
      %v1043 = vld [vmem:[%s303 + $0x16a8] sm:$0xff]
      %v1044 = vld [vmem:[%s303 + $0x16b0] sm:$0xff]
      %v1045 = vld [vmem:[%s303 + $0x16b8] sm:$0xff]
      %v1046 = vld [vmem:[%s303 + $0x16c0] sm:$0xff]
      %v1047 = vld [vmem:[%s303 + $0x16c8] sm:$0xff]
      %v1048 = vld [vmem:[%s303 + $0x16d0] sm:$0xff]
      %v1049 = vld [vmem:[%s303 + $0x16d8] sm:$0xff]
      %v1050 = vld [vmem:[%s303 + $0x16e0] sm:$0xff]
      %v1051 = vld [vmem:[%s303 + $0x16e8] sm:$0xff]
      %v1052 = vld [vmem:[%s303 + $0x16f0] sm:$0xff]
      %v1053 = vld [vmem:[%s303 + $0x16f8] sm:$0xff]
      %v1054 = vld [vmem:[%s303 + $0x1700] sm:$0xff]
      %v1055 = vld [vmem:[%s303 + $0x1708] sm:$0xff]
      %v1056 = vld [vmem:[%s303 + $0x1710] sm:$0xff]
      %v1057 = vld [vmem:[%s303 + $0x1718] sm:$0xff]
      %v1058 = vld [vmem:[%s303 + $0x1720] sm:$0xff]
      %v1059 = vld [vmem:[%s303 + $0x1728] sm:$0xff]
      %v1060 = vld [vmem:[%s303 + $0x1730] sm:$0xff]
      %v1061 = vld [vmem:[%s303 + $0x1738] sm:$0xff]
      %v1062 = vld [vmem:[%s303 + $0x1740] sm:$0xff]
      %v1063 = vld [vmem:[%s303 + $0x1748] sm:$0xff]
      %v1064 = vld [vmem:[%s303 + $0x1750] sm:$0xff]
      %v1065 = vld [vmem:[%s303 + $0x1758] sm:$0xff]
      %v1066 = vld [vmem:[%s303 + $0x1760] sm:$0xff]
      %v1067 = vld [vmem:[%s303 + $0x1768] sm:$0xff]
      %v1068 = vld [vmem:[%s303 + $0x1770] sm:$0xff]
      %v1069 = vld [vmem:[%s303 + $0x1778] sm:$0xff]
      %v1070 = vld [vmem:[%s303 + $0x1780] sm:$0xff]
      %v1071 = vld [vmem:[%s303 + $0x1788] sm:$0xff]
      %v1072 = vld [vmem:[%s303 + $0x1790] sm:$0xff]
      %v1073 = vld [vmem:[%s303 + $0x1798] sm:$0xff]
      %v1074 = vld [vmem:[%s303 + $0x17a0] sm:$0xff]
      %v1075 = vld [vmem:[%s303 + $0x17a8] sm:$0xff]
      %v1076 = vld [vmem:[%s303 + $0x17b0] sm:$0xff]
      %v1077 = vld [vmem:[%s303 + $0x17b8] sm:$0xff]
      %v1078 = vld [vmem:[%s303 + $0x17c0] sm:$0xff]
      %v1079 = vld [vmem:[%s303 + $0x17c8] sm:$0xff]
      %v1080 = vld [vmem:[%s303 + $0x17d0] sm:$0xff]
      %v1081 = vld [vmem:[%s303 + $0x17d8] sm:$0xff]
      %v1082 = vld [vmem:[%s303 + $0x17e0] sm:$0xff]
      %v1083 = vld [vmem:[%s303 + $0x17e8] sm:$0xff]
      %v1084 = vld [vmem:[%s303 + $0x17f0] sm:$0xff]
      %v1085 = vld [vmem:[%s303 + $0x17f8] sm:$0xff]
      %v1086 = vld [vmem:[%s303 + $0x1800] sm:$0xff]
      %v1087 = vld [vmem:[%s303 + $0x1808] sm:$0xff]
      %v1088 = vld [vmem:[%s303 + $0x1810] sm:$0xff]
      %v1089 = vld [vmem:[%s303 + $0x1818] sm:$0xff]
      %v1090 = vld [vmem:[%s303 + $0x1820] sm:$0xff]
      %v1091 = vld [vmem:[%s303 + $0x1828] sm:$0xff]
      %v1092 = vld [vmem:[%s303 + $0x1830] sm:$0xff]
      %v1093 = vld [vmem:[%s303 + $0x1838] sm:$0xff]
      %v1094 = vld [vmem:[%s303 + $0x1840] sm:$0xff]
      %v1095 = vld [vmem:[%s303 + $0x1848] sm:$0xff]
      %v1096 = vld [vmem:[%s303 + $0x1850] sm:$0xff]
      %v1097 = vld [vmem:[%s303 + $0x1858] sm:$0xff]
      %v1098 = vld [vmem:[%s303 + $0x1860] sm:$0xff]
      %v1099 = vld [vmem:[%s303 + $0x1868] sm:$0xff]
      %v1100 = vld [vmem:[%s303 + $0x1870] sm:$0xff]
      %v1101 = vld [vmem:[%s303 + $0x1878] sm:$0xff]
      %v1102 = vld [vmem:[%s307] sm:$0xf]
      %v1104 = vlaneseq
      %v1105 = vshrl.u32 %v1104, 7
      %v1106 = vsub.s32 0, %v1105
      %v1107 = vrot.slane %v1102, %v1106
      %v1108 = vlaneseq
      %v1109 = vshrl.u32 %v1108, 7
      %v1110 = vsub.s32 1, %v1109
      %v1111 = vrot.slane %v1102, %v1110
      %v1112 = vlaneseq
      %v1113 = vshrl.u32 %v1112, 7
      %v1114 = vsub.s32 2, %v1113
      %v1115 = vrot.slane %v1102, %v1114
      %v1116 = vlaneseq
      %v1117 = vshrl.u32 %v1116, 7
      %v1118 = vsub.s32 3, %v1117
      %v1119 = vrot.slane %v1102, %v1118
      %v1128 = vcombine.high %v314, %v314
      %v1130 = vunpack.c.l.s4 1966171168
      %v1131 = vunpack.c.0.s8 %v1130
      %v1132 = vlaneseq
      %v1133 = vshrl.u32 %v1132, 7
      %v1134 = vsub.s32 %v1131, %v1133
      %v1135 = vrot.slane %v314, %v1134
      %v1137 = vunpack.c.l.s4 1966171168
      %v1138 = vunpack.c.0.s8 %v1137
      %v1139 = vlaneseq
      %v1140 = vshrl.u32 %v1139, 7
      %v1141 = vsub.s32 %v1138, %v1140
      %v1142 = vrot.slane %v1128, %v1141
      %v1143 = vcombine.high %v1135, %v1135
      %v1144 = vcombine.high %v1142, %v1142
      %v1146 = vunpack.c.l.s4 1966171168
      %v1147 = vunpack.c.0.s8 %v1146
      %v1148 = vlaneseq
      %v1149 = vshrl.u32 %v1148, 7
      %v1150 = vsub.s32 %v1147, %v1149
      %v1151 = vrot.slane %v1135, %v1150
      %v1153 = vunpack.c.l.s4 1966171168
      %v1154 = vunpack.c.0.s8 %v1153
      %v1155 = vlaneseq
      %v1156 = vshrl.u32 %v1155, 7
      %v1157 = vsub.s32 %v1154, %v1156
      %v1158 = vrot.slane %v1142, %v1157
      %v1160 = vunpack.c.l.s4 1966171168
      %v1161 = vunpack.c.0.s8 %v1160
      %v1162 = vlaneseq
      %v1163 = vshrl.u32 %v1162, 7
      %v1164 = vsub.s32 %v1161, %v1163
      %v1165 = vrot.slane %v1143, %v1164
      %v1167 = vunpack.c.l.s4 1966171168
      %v1168 = vunpack.c.0.s8 %v1167
      %v1169 = vlaneseq
      %v1170 = vshrl.u32 %v1169, 7
      %v1171 = vsub.s32 %v1168, %v1170
      %v1172 = vrot.slane %v1144, %v1171
      %v1173 = vcombine.high %v1151, %v1151
      %v1174 = vcombine.high %v1158, %v1158
      %v1175 = vcombine.high %v1165, %v1165
      %v1176 = vcombine.high %v1172, %v1172
      %v1177 = vcombine.high %v315, %v315
      %v1179 = vunpack.c.l.s4 1966171168
      %v1180 = vunpack.c.0.s8 %v1179
      %v1181 = vlaneseq
      %v1182 = vshrl.u32 %v1181, 7
      %v1183 = vsub.s32 %v1180, %v1182
      %v1184 = vrot.slane %v315, %v1183
      %v1186 = vunpack.c.l.s4 1966171168
      %v1187 = vunpack.c.0.s8 %v1186
      %v1188 = vlaneseq
      %v1189 = vshrl.u32 %v1188, 7
      %v1190 = vsub.s32 %v1187, %v1189
      %v1191 = vrot.slane %v1177, %v1190
      %v1192 = vcombine.high %v1184, %v1184
      %v1193 = vcombine.high %v1191, %v1191
      %v1195 = vunpack.c.l.s4 1966171168
      %v1196 = vunpack.c.0.s8 %v1195
      %v1197 = vlaneseq
      %v1198 = vshrl.u32 %v1197, 7
      %v1199 = vsub.s32 %v1196, %v1198
      %v1200 = vrot.slane %v1184, %v1199
      %v1202 = vunpack.c.l.s4 1966171168
      %v1203 = vunpack.c.0.s8 %v1202
      %v1204 = vlaneseq
      %v1205 = vshrl.u32 %v1204, 7
      %v1206 = vsub.s32 %v1203, %v1205
      %v1207 = vrot.slane %v1191, %v1206
      %v1209 = vunpack.c.l.s4 1966171168
      %v1210 = vunpack.c.0.s8 %v1209
      %v1211 = vlaneseq
      %v1212 = vshrl.u32 %v1211, 7
      %v1213 = vsub.s32 %v1210, %v1212
      %v1214 = vrot.slane %v1192, %v1213
      %v1216 = vunpack.c.l.s4 1966171168
      %v1217 = vunpack.c.0.s8 %v1216
      %v1218 = vlaneseq
      %v1219 = vshrl.u32 %v1218, 7
      %v1220 = vsub.s32 %v1217, %v1219
      %v1221 = vrot.slane %v1193, %v1220
      %v1222 = vcombine.high %v1200, %v1200
      %v1223 = vcombine.high %v1207, %v1207
      %v1224 = vcombine.high %v1214, %v1214
      %v1225 = vcombine.high %v1221, %v1221
      %v1226 = vcombine.high %v316, %v316
      %v1228 = vunpack.c.l.s4 1966171168
      %v1229 = vunpack.c.0.s8 %v1228
      %v1230 = vlaneseq
      %v1231 = vshrl.u32 %v1230, 7
      %v1232 = vsub.s32 %v1229, %v1231
      %v1233 = vrot.slane %v316, %v1232
      %v1235 = vunpack.c.l.s4 1966171168
      %v1236 = vunpack.c.0.s8 %v1235
      %v1237 = vlaneseq
      %v1238 = vshrl.u32 %v1237, 7
      %v1239 = vsub.s32 %v1236, %v1238
      %v1240 = vrot.slane %v1226, %v1239
      %v1241 = vcombine.high %v1233, %v1233
      %v1242 = vcombine.high %v1240, %v1240
      %v1244 = vunpack.c.l.s4 1966171168
      %v1245 = vunpack.c.0.s8 %v1244
      %v1246 = vlaneseq
      %v1247 = vshrl.u32 %v1246, 7
      %v1248 = vsub.s32 %v1245, %v1247
      %v1249 = vrot.slane %v1233, %v1248
      %v1251 = vunpack.c.l.s4 1966171168
      %v1252 = vunpack.c.0.s8 %v1251
      %v1253 = vlaneseq
      %v1254 = vshrl.u32 %v1253, 7
      %v1255 = vsub.s32 %v1252, %v1254
      %v1256 = vrot.slane %v1240, %v1255
      %v1258 = vunpack.c.l.s4 1966171168
      %v1259 = vunpack.c.0.s8 %v1258
      %v1260 = vlaneseq
      %v1261 = vshrl.u32 %v1260, 7
      %v1262 = vsub.s32 %v1259, %v1261
      %v1263 = vrot.slane %v1241, %v1262
      %v1265 = vunpack.c.l.s4 1966171168
      %v1266 = vunpack.c.0.s8 %v1265
      %v1267 = vlaneseq
      %v1268 = vshrl.u32 %v1267, 7
      %v1269 = vsub.s32 %v1266, %v1268
      %v1270 = vrot.slane %v1242, %v1269
      %v1271 = vcombine.high %v1249, %v1249
      %v1272 = vcombine.high %v1256, %v1256
      %v1273 = vcombine.high %v1263, %v1263
      %v1274 = vcombine.high %v1270, %v1270
      %v1276 = vunpack.c.l.s4 1966171168
      %v1277 = vunpack.c.0.s8 %v1276
      %v1278 = vlaneseq
      %v1279 = vshrl.u32 %v1278, 7
      %v1280 = vsub.s32 %v1277, %v1279
      %v1281 = vrot.slane %v317, %v1280
      %v1283 = vunpack.c.l.s4 1966171168
      %v1284 = vunpack.c.0.s8 %v1283
      %v1285 = vlaneseq
      %v1286 = vshrl.u32 %v1285, 7
      %v1287 = vsub.s32 %v1284, %v1286
      %v1288 = vrot.slane %v1281, %v1287
      %v2097 = vunpack.c.l.b16 %v318
      %v2098 = vunpack.c.h.b16 %v318
      %v2099 = vunpack.c.l.b16 %v319
      %v2100 = vunpack.c.h.b16 %v319
      %v2101 = vunpack.c.l.b16 %v320
      %v2102 = vunpack.c.h.b16 %v320
      %v2103 = vunpack.c.l.b16 %v321
      %v2104 = vunpack.c.h.b16 %v321
      %v2105 = vunpack.c.l.b16 %v322
      %v2106 = vunpack.c.h.b16 %v322
      %v2107 = vunpack.c.l.b16 %v323
      %v2108 = vunpack.c.h.b16 %v323
      %v2109 = vunpack.c.l.b16 %v324
      %v2110 = vunpack.c.h.b16 %v324
      %v2111 = vunpack.c.l.b16 %v325
      %v2112 = vunpack.c.h.b16 %v325
      %v2113 = vunpack.c.l.b16 %v326
      %v2114 = vunpack.c.h.b16 %v326
      %v2115 = vunpack.c.l.b16 %v327
      %v2116 = vunpack.c.h.b16 %v327
      %v2117 = vunpack.c.l.b16 %v328
      %v2118 = vunpack.c.h.b16 %v328
      %v2119 = vunpack.c.l.b16 %v329
      %v2120 = vunpack.c.h.b16 %v329
      %v2121 = vunpack.c.l.b16 %v330
      %v2122 = vunpack.c.h.b16 %v330
      %v2123 = vunpack.c.l.b16 %v331
      %v2124 = vunpack.c.h.b16 %v331
      %v2125 = vunpack.c.l.b16 %v332
      %v2126 = vunpack.c.h.b16 %v332
      %v2127 = vunpack.c.l.b16 %v333
      %v2128 = vunpack.c.h.b16 %v333
      %v2129 = vunpack.c.l.b16 %v334
      %v2130 = vunpack.c.h.b16 %v334
      %v2131 = vunpack.c.l.b16 %v335
      %v2132 = vunpack.c.h.b16 %v335
      %v2133 = vunpack.c.l.b16 %v336
      %v2134 = vunpack.c.h.b16 %v336
      %v2135 = vunpack.c.l.b16 %v337
      %v2136 = vunpack.c.h.b16 %v337
      %v2137 = vunpack.c.l.b16 %v338
      %v2138 = vunpack.c.h.b16 %v338
      %v2139 = vunpack.c.l.b16 %v339
      %v2140 = vunpack.c.h.b16 %v339
      %v2141 = vunpack.c.l.b16 %v340
      %v2142 = vunpack.c.h.b16 %v340
      %v2143 = vunpack.c.l.b16 %v341
      %v2144 = vunpack.c.h.b16 %v341
      %v2145 = vunpack.c.l.b16 %v342
      %v2146 = vunpack.c.h.b16 %v342
      %v2147 = vunpack.c.l.b16 %v343
      %v2148 = vunpack.c.h.b16 %v343
      %v2149 = vunpack.c.l.b16 %v344
      %v2150 = vunpack.c.h.b16 %v344
      %v2151 = vunpack.c.l.b16 %v345
      %v2152 = vunpack.c.h.b16 %v345
      %v2153 = vunpack.c.l.b16 %v346
      %v2154 = vunpack.c.h.b16 %v346
      %v2155 = vunpack.c.l.b16 %v347
      %v2156 = vunpack.c.h.b16 %v347
      %v2157 = vunpack.c.l.b16 %v348
      %v2158 = vunpack.c.h.b16 %v348
      %v2159 = vunpack.c.l.b16 %v349
      %v2160 = vunpack.c.h.b16 %v349
      %v2161 = vunpack.c.l.b16 %v350
      %v2162 = vunpack.c.h.b16 %v350
      %v2163 = vunpack.c.l.b16 %v351
      %v2164 = vunpack.c.h.b16 %v351
      %v2165 = vunpack.c.l.b16 %v352
      %v2166 = vunpack.c.h.b16 %v352
      %v2167 = vunpack.c.l.b16 %v353
      %v2168 = vunpack.c.h.b16 %v353
      %v2169 = vunpack.c.l.b16 %v354
      %v2170 = vunpack.c.h.b16 %v354
      %v2171 = vunpack.c.l.b16 %v355
      %v2172 = vunpack.c.h.b16 %v355
      %v2173 = vunpack.c.l.b16 %v356
      %v2174 = vunpack.c.h.b16 %v356
      %v2175 = vunpack.c.l.b16 %v357
      %v2176 = vunpack.c.h.b16 %v357
      %v2177 = vunpack.c.l.b16 %v358
      %v2178 = vunpack.c.h.b16 %v358
      %v2179 = vunpack.c.l.b16 %v359
      %v2180 = vunpack.c.h.b16 %v359
      %v2181 = vunpack.c.l.b16 %v360
      %v2182 = vunpack.c.h.b16 %v360
      %v2183 = vunpack.c.l.b16 %v361
      %v2184 = vunpack.c.h.b16 %v361
      %v2185 = vunpack.c.l.b16 %v362
      %v2186 = vunpack.c.h.b16 %v362
      %v2187 = vunpack.c.l.b16 %v363
      %v2188 = vunpack.c.h.b16 %v363
      %v2189 = vunpack.c.l.b16 %v364
      %v2190 = vunpack.c.h.b16 %v364
      %v2191 = vunpack.c.l.b16 %v365
      %v2192 = vunpack.c.h.b16 %v365
      %v2193 = vunpack.c.l.b16 %v366
      %v2194 = vunpack.c.h.b16 %v366
      %v2195 = vunpack.c.l.b16 %v367
      %v2196 = vunpack.c.h.b16 %v367
      %v2197 = vunpack.c.l.b16 %v368
      %v2198 = vunpack.c.h.b16 %v368
      %v2199 = vunpack.c.l.b16 %v369
      %v2200 = vunpack.c.h.b16 %v369
      %v2201 = vunpack.c.l.b16 %v370
      %v2202 = vunpack.c.h.b16 %v370
      %v2203 = vunpack.c.l.b16 %v371
      %v2204 = vunpack.c.h.b16 %v371
      %v2205 = vunpack.c.l.b16 %v372
      %v2206 = vunpack.c.h.b16 %v372
      %v2207 = vunpack.c.l.b16 %v373
      %v2208 = vunpack.c.h.b16 %v373
      %v2209 = vunpack.c.l.b16 %v374
      %v2210 = vunpack.c.h.b16 %v374
      %v2211 = vunpack.c.l.b16 %v375
      %v2212 = vunpack.c.h.b16 %v375
      %v2213 = vunpack.c.l.b16 %v376
      %v2214 = vunpack.c.h.b16 %v376
      %v2215 = vunpack.c.l.b16 %v377
      %v2216 = vunpack.c.h.b16 %v377
      %v2217 = vunpack.c.l.b16 %v378
      %v2218 = vunpack.c.h.b16 %v378
      %v2219 = vunpack.c.l.b16 %v379
      %v2220 = vunpack.c.h.b16 %v379
      %v2221 = vunpack.c.l.b16 %v380
      %v2222 = vunpack.c.h.b16 %v380
      %v2223 = vunpack.c.l.b16 %v381
      %v2224 = vunpack.c.h.b16 %v381
      %v2225 = vunpack.c.l.b16 %v382
      %v2226 = vunpack.c.h.b16 %v382
      %v2227 = vunpack.c.l.b16 %v383
      %v2228 = vunpack.c.h.b16 %v383
      %v2229 = vunpack.c.l.b16 %v384
      %v2230 = vunpack.c.h.b16 %v384
      %v2231 = vunpack.c.l.b16 %v385
      %v2232 = vunpack.c.h.b16 %v385
      %v2233 = vunpack.c.l.b16 %v386
      %v2234 = vunpack.c.h.b16 %v386
      %v2235 = vunpack.c.l.b16 %v387
      %v2236 = vunpack.c.h.b16 %v387
      %v2237 = vunpack.c.l.b16 %v388
      %v2238 = vunpack.c.h.b16 %v388
      %v2239 = vunpack.c.l.b16 %v389
      %v2240 = vunpack.c.h.b16 %v389
      %v2241 = vunpack.c.l.b16 %v390
      %v2242 = vunpack.c.h.b16 %v390
      %v2243 = vunpack.c.l.b16 %v391
      %v2244 = vunpack.c.h.b16 %v391
      %v2245 = vunpack.c.l.b16 %v392
      %v2246 = vunpack.c.h.b16 %v392
      %v2247 = vunpack.c.l.b16 %v393
      %v2248 = vunpack.c.h.b16 %v393
      %v2249 = vunpack.c.l.b16 %v394
      %v2250 = vunpack.c.h.b16 %v394
      %v2251 = vunpack.c.l.b16 %v395
      %v2252 = vunpack.c.h.b16 %v395
      %v2253 = vunpack.c.l.b16 %v396
      %v2254 = vunpack.c.h.b16 %v396
      %v2255 = vunpack.c.l.b16 %v397
      %v2256 = vunpack.c.h.b16 %v397
      %v2257 = vunpack.c.l.b16 %v398
      %v2258 = vunpack.c.h.b16 %v398
      %v2259 = vunpack.c.l.b16 %v399
      %v2260 = vunpack.c.h.b16 %v399
      %v2261 = vunpack.c.l.b16 %v400
      %v2262 = vunpack.c.h.b16 %v400
      %v2263 = vunpack.c.l.b16 %v401
      %v2264 = vunpack.c.h.b16 %v401
      %v2265 = vunpack.c.l.b16 %v402
      %v2266 = vunpack.c.h.b16 %v402
      %v2267 = vunpack.c.l.b16 %v403
      %v2268 = vunpack.c.h.b16 %v403
      %v2269 = vunpack.c.l.b16 %v404
      %v2270 = vunpack.c.h.b16 %v404
      %v2271 = vunpack.c.l.b16 %v405
      %v2272 = vunpack.c.h.b16 %v405
      %v2273 = vunpack.c.l.b16 %v406
      %v2274 = vunpack.c.h.b16 %v406
      %v2275 = vunpack.c.l.b16 %v407
      %v2276 = vunpack.c.h.b16 %v407
      %v2277 = vunpack.c.l.b16 %v408
      %v2278 = vunpack.c.h.b16 %v408
      %v2279 = vunpack.c.l.b16 %v409
      %v2280 = vunpack.c.h.b16 %v409
      %v2281 = vunpack.c.l.b16 %v410
      %v2282 = vunpack.c.h.b16 %v410
      %v2283 = vunpack.c.l.b16 %v411
      %v2284 = vunpack.c.h.b16 %v411
      %v2285 = vunpack.c.l.b16 %v412
      %v2286 = vunpack.c.h.b16 %v412
      %v2287 = vunpack.c.l.b16 %v413
      %v2288 = vunpack.c.h.b16 %v413
      %v2289 = vunpack.c.l.b16 %v414
      %v2290 = vunpack.c.h.b16 %v414
      %v2291 = vunpack.c.l.b16 %v415
      %v2292 = vunpack.c.h.b16 %v415
      %v2293 = vunpack.c.l.b16 %v416
      %v2294 = vunpack.c.h.b16 %v416
      %v2295 = vunpack.c.l.b16 %v417
      %v2296 = vunpack.c.h.b16 %v417
      %v2297 = vunpack.c.l.b16 %v418
      %v2298 = vunpack.c.h.b16 %v418
      %v2299 = vunpack.c.l.b16 %v419
      %v2300 = vunpack.c.h.b16 %v419
      %v2301 = vunpack.c.l.b16 %v420
      %v2302 = vunpack.c.h.b16 %v420
      %v2303 = vunpack.c.l.b16 %v421
      %v2304 = vunpack.c.h.b16 %v421
      %v2305 = vunpack.c.l.b16 %v422
      %v2306 = vunpack.c.h.b16 %v422
      %v2307 = vunpack.c.l.b16 %v423
      %v2308 = vunpack.c.h.b16 %v423
      %v2309 = vunpack.c.l.b16 %v424
      %v2310 = vunpack.c.h.b16 %v424
      %v2311 = vunpack.c.l.b16 %v425
      %v2312 = vunpack.c.h.b16 %v425
      %v2313 = vunpack.c.l.b16 %v426
      %v2314 = vunpack.c.h.b16 %v426
      %v2315 = vunpack.c.l.b16 %v427
      %v2316 = vunpack.c.h.b16 %v427
      %v2317 = vunpack.c.l.b16 %v428
      %v2318 = vunpack.c.h.b16 %v428
      %v2319 = vunpack.c.l.b16 %v429
      %v2320 = vunpack.c.h.b16 %v429
      %v2321 = vunpack.c.l.b16 %v430
      %v2322 = vunpack.c.h.b16 %v430
      %v2323 = vunpack.c.l.b16 %v431
      %v2324 = vunpack.c.h.b16 %v431
      %v2325 = vunpack.c.l.b16 %v432
      %v2326 = vunpack.c.h.b16 %v432
      %v2327 = vunpack.c.l.b16 %v433
      %v2328 = vunpack.c.h.b16 %v433
      %v2329 = vunpack.c.l.b16 %v434
      %v2330 = vunpack.c.h.b16 %v434
      %v2331 = vunpack.c.l.b16 %v435
      %v2332 = vunpack.c.h.b16 %v435
      %v2333 = vunpack.c.l.b16 %v436
      %v2334 = vunpack.c.h.b16 %v436
      %v2335 = vunpack.c.l.b16 %v437
      %v2336 = vunpack.c.h.b16 %v437
      %v2337 = vunpack.c.l.b16 %v438
      %v2338 = vunpack.c.h.b16 %v438
      %v2339 = vunpack.c.l.b16 %v439
      %v2340 = vunpack.c.h.b16 %v439
      %v2341 = vunpack.c.l.b16 %v440
      %v2342 = vunpack.c.h.b16 %v440
      %v2343 = vunpack.c.l.b16 %v441
      %v2344 = vunpack.c.h.b16 %v441
      %v2345 = vunpack.c.l.b16 %v442
      %v2346 = vunpack.c.h.b16 %v442
      %v2347 = vunpack.c.l.b16 %v443
      %v2348 = vunpack.c.h.b16 %v443
      %v2349 = vunpack.c.l.b16 %v444
      %v2350 = vunpack.c.h.b16 %v444
      %v2351 = vunpack.c.l.b16 %v445
      %v2352 = vunpack.c.h.b16 %v445
      %v2353 = vunpack.c.l.b16 %v446
      %v2354 = vunpack.c.h.b16 %v446
      %v2355 = vunpack.c.l.b16 %v447
      %v2356 = vunpack.c.h.b16 %v447
      %v2357 = vunpack.c.l.b16 %v448
      %v2358 = vunpack.c.h.b16 %v448
      %v2359 = vunpack.c.l.b16 %v449
      %v2360 = vunpack.c.h.b16 %v449
      %v2361 = vunpack.c.l.b16 %v450
      %v2362 = vunpack.c.h.b16 %v450
      %v2363 = vunpack.c.l.b16 %v451
      %v2364 = vunpack.c.h.b16 %v451
      %v2365 = vunpack.c.l.b16 %v452
      %v2366 = vunpack.c.h.b16 %v452
      %v2367 = vunpack.c.l.b16 %v453
      %v2368 = vunpack.c.h.b16 %v453
      %v2369 = vunpack.c.l.b16 %v454
      %v2370 = vunpack.c.h.b16 %v454
      %v2371 = vunpack.c.l.b16 %v455
      %v2372 = vunpack.c.h.b16 %v455
      %v2373 = vunpack.c.l.b16 %v456
      %v2374 = vunpack.c.h.b16 %v456
      %v2375 = vunpack.c.l.b16 %v457
      %v2376 = vunpack.c.h.b16 %v457
      %v2377 = vunpack.c.l.b16 %v458
      %v2378 = vunpack.c.h.b16 %v458
      %v2379 = vunpack.c.l.b16 %v459
      %v2380 = vunpack.c.h.b16 %v459
      %v2381 = vunpack.c.l.b16 %v460
      %v2382 = vunpack.c.h.b16 %v460
      %v2383 = vunpack.c.l.b16 %v461
      %v2384 = vunpack.c.h.b16 %v461
      %v2385 = vunpack.c.l.b16 %v462
      %v2386 = vunpack.c.h.b16 %v462
      %v2387 = vunpack.c.l.b16 %v463
      %v2388 = vunpack.c.h.b16 %v463
      %v2389 = vunpack.c.l.b16 %v464
      %v2390 = vunpack.c.h.b16 %v464
      %v2391 = vunpack.c.l.b16 %v465
      %v2392 = vunpack.c.h.b16 %v465
      %v2393 = vunpack.c.l.b16 %v466
      %v2394 = vunpack.c.h.b16 %v466
      %v2395 = vunpack.c.l.b16 %v467
      %v2396 = vunpack.c.h.b16 %v467
      %v2397 = vunpack.c.l.b16 %v468
      %v2398 = vunpack.c.h.b16 %v468
      %v2399 = vunpack.c.l.b16 %v469
      %v2400 = vunpack.c.h.b16 %v469
      %v2401 = vunpack.c.l.b16 %v470
      %v2402 = vunpack.c.h.b16 %v470
      %v2403 = vunpack.c.l.b16 %v471
      %v2404 = vunpack.c.h.b16 %v471
      %v2405 = vunpack.c.l.b16 %v472
      %v2406 = vunpack.c.h.b16 %v472
      %v2407 = vunpack.c.l.b16 %v473
      %v2408 = vunpack.c.h.b16 %v473
      %v2409 = vunpack.c.l.b16 %v474
      %v2410 = vunpack.c.h.b16 %v474
      %v2411 = vunpack.c.l.b16 %v475
      %v2412 = vunpack.c.h.b16 %v475
      %v2413 = vunpack.c.l.b16 %v476
      %v2414 = vunpack.c.h.b16 %v476
      %v2415 = vunpack.c.l.b16 %v477
      %v2416 = vunpack.c.h.b16 %v477
      %v2417 = vunpack.c.l.b16 %v478
      %v2418 = vunpack.c.h.b16 %v478
      %v2419 = vunpack.c.l.b16 %v479
      %v2420 = vunpack.c.h.b16 %v479
      %v2421 = vunpack.c.l.b16 %v480
      %v2422 = vunpack.c.h.b16 %v480
      %v2423 = vunpack.c.l.b16 %v481
      %v2424 = vunpack.c.h.b16 %v481
      %v2425 = vunpack.c.l.b16 %v482
      %v2426 = vunpack.c.h.b16 %v482
      %v2427 = vunpack.c.l.b16 %v483
      %v2428 = vunpack.c.h.b16 %v483
      %v2429 = vunpack.c.l.b16 %v484
      %v2430 = vunpack.c.h.b16 %v484
      %v2431 = vunpack.c.l.b16 %v485
      %v2432 = vunpack.c.h.b16 %v485
      %v2433 = vunpack.c.l.b16 %v486
      %v2434 = vunpack.c.h.b16 %v486
      %v2435 = vunpack.c.l.b16 %v487
      %v2436 = vunpack.c.h.b16 %v487
      %v2437 = vunpack.c.l.b16 %v488
      %v2438 = vunpack.c.h.b16 %v488
      %v2439 = vunpack.c.l.b16 %v489
      %v2440 = vunpack.c.h.b16 %v489
      %v2441 = vunpack.c.l.b16 %v490
      %v2442 = vunpack.c.h.b16 %v490
      %v2443 = vunpack.c.l.b16 %v491
      %v2444 = vunpack.c.h.b16 %v491
      %v2445 = vunpack.c.l.b16 %v492
      %v2446 = vunpack.c.h.b16 %v492
      %v2447 = vunpack.c.l.b16 %v493
      %v2448 = vunpack.c.h.b16 %v493
      %v2449 = vunpack.c.l.b16 %v494
      %v2450 = vunpack.c.h.b16 %v494
      %v2451 = vunpack.c.l.b16 %v495
      %v2452 = vunpack.c.h.b16 %v495
      %v2453 = vunpack.c.l.b16 %v496
      %v2454 = vunpack.c.h.b16 %v496
      %v2455 = vunpack.c.l.b16 %v497
      %v2456 = vunpack.c.h.b16 %v497
      %v2457 = vunpack.c.l.b16 %v498
      %v2458 = vunpack.c.h.b16 %v498
      %v2459 = vunpack.c.l.b16 %v499
      %v2460 = vunpack.c.h.b16 %v499
      %v2461 = vunpack.c.l.b16 %v500
      %v2462 = vunpack.c.h.b16 %v500
      %v2463 = vunpack.c.l.b16 %v501
      %v2464 = vunpack.c.h.b16 %v501
      %v2465 = vunpack.c.l.b16 %v502
      %v2466 = vunpack.c.h.b16 %v502
      %v2467 = vunpack.c.l.b16 %v503
      %v2468 = vunpack.c.h.b16 %v503
      %v2469 = vunpack.c.l.b16 %v504
      %v2470 = vunpack.c.h.b16 %v504
      %v2471 = vunpack.c.l.b16 %v505
      %v2472 = vunpack.c.h.b16 %v505
      %v2473 = vunpack.c.l.b16 %v506
      %v2474 = vunpack.c.h.b16 %v506
      %v2475 = vunpack.c.l.b16 %v507
      %v2476 = vunpack.c.h.b16 %v507
      %v2477 = vunpack.c.l.b16 %v508
      %v2478 = vunpack.c.h.b16 %v508
      %v2479 = vunpack.c.l.b16 %v509
      %v2480 = vunpack.c.h.b16 %v509
      %v2481 = vunpack.c.l.b16 %v510
      %v2482 = vunpack.c.h.b16 %v510
      %v2483 = vunpack.c.l.b16 %v511
      %v2484 = vunpack.c.h.b16 %v511
      %v2485 = vunpack.c.l.b16 %v512
      %v2486 = vunpack.c.h.b16 %v512
      %v2487 = vunpack.c.l.b16 %v513
      %v2488 = vunpack.c.h.b16 %v513
      %v2489 = vunpack.c.l.b16 %v514
      %v2490 = vunpack.c.h.b16 %v514
      %v2491 = vunpack.c.l.b16 %v515
      %v2492 = vunpack.c.h.b16 %v515
      %v2493 = vunpack.c.l.b16 %v516
      %v2494 = vunpack.c.h.b16 %v516
      %v2495 = vunpack.c.l.b16 %v517
      %v2496 = vunpack.c.h.b16 %v517
      %v2497 = vunpack.c.l.b16 %v518
      %v2498 = vunpack.c.h.b16 %v518
      %v2499 = vunpack.c.l.b16 %v519
      %v2500 = vunpack.c.h.b16 %v519
      %v2501 = vunpack.c.l.b16 %v520
      %v2502 = vunpack.c.h.b16 %v520
      %v2503 = vunpack.c.l.b16 %v521
      %v2504 = vunpack.c.h.b16 %v521
      %v2505 = vunpack.c.l.b16 %v522
      %v2506 = vunpack.c.h.b16 %v522
      %v2507 = vunpack.c.l.b16 %v523
      %v2508 = vunpack.c.h.b16 %v523
      %v2509 = vunpack.c.l.b16 %v524
      %v2510 = vunpack.c.h.b16 %v524
      %v2511 = vunpack.c.l.b16 %v525
      %v2512 = vunpack.c.h.b16 %v525
      %v2513 = vunpack.c.l.b16 %v526
      %v2514 = vunpack.c.h.b16 %v526
      %v2515 = vunpack.c.l.b16 %v527
      %v2516 = vunpack.c.h.b16 %v527
      %v2517 = vunpack.c.l.b16 %v528
      %v2518 = vunpack.c.h.b16 %v528
      %v2519 = vunpack.c.l.b16 %v529
      %v2520 = vunpack.c.h.b16 %v529
      %v2521 = vunpack.c.l.b16 %v530
      %v2522 = vunpack.c.h.b16 %v530
      %v2523 = vunpack.c.l.b16 %v531
      %v2524 = vunpack.c.h.b16 %v531
      %v2525 = vunpack.c.l.b16 %v532
      %v2526 = vunpack.c.h.b16 %v532
      %v2527 = vunpack.c.l.b16 %v533
      %v2528 = vunpack.c.h.b16 %v533
      %v2529 = vunpack.c.l.b16 %v534
      %v2530 = vunpack.c.h.b16 %v534
      %v2531 = vunpack.c.l.b16 %v535
      %v2532 = vunpack.c.h.b16 %v535
      %v2533 = vunpack.c.l.b16 %v536
      %v2534 = vunpack.c.h.b16 %v536
      %v2535 = vunpack.c.l.b16 %v537
      %v2536 = vunpack.c.h.b16 %v537
      %v2537 = vunpack.c.l.b16 %v538
      %v2538 = vunpack.c.h.b16 %v538
      %v2539 = vunpack.c.l.b16 %v539
      %v2540 = vunpack.c.h.b16 %v539
      %v2541 = vunpack.c.l.b16 %v540
      %v2542 = vunpack.c.h.b16 %v540
      %v2543 = vunpack.c.l.b16 %v541
      %v2544 = vunpack.c.h.b16 %v541
      %v2545 = vunpack.c.l.b16 %v542
      %v2546 = vunpack.c.h.b16 %v542
      %v2547 = vunpack.c.l.b16 %v543
      %v2548 = vunpack.c.h.b16 %v543
      %v2549 = vunpack.c.l.b16 %v544
      %v2550 = vunpack.c.h.b16 %v544
      %v2551 = vunpack.c.l.b16 %v545
      %v2552 = vunpack.c.h.b16 %v545
      %v2553 = vunpack.c.l.b16 %v546
      %v2554 = vunpack.c.h.b16 %v546
      %v2555 = vunpack.c.l.b16 %v547
      %v2556 = vunpack.c.h.b16 %v547
      %v2557 = vunpack.c.l.b16 %v548
      %v2558 = vunpack.c.h.b16 %v548
      %v2559 = vunpack.c.l.b16 %v549
      %v2560 = vunpack.c.h.b16 %v549
      %v2561 = vunpack.c.l.b16 %v550
      %v2562 = vunpack.c.h.b16 %v550
      %v2563 = vunpack.c.l.b16 %v551
      %v2564 = vunpack.c.h.b16 %v551
      %v2565 = vunpack.c.l.b16 %v552
      %v2566 = vunpack.c.h.b16 %v552
      %v2567 = vunpack.c.l.b16 %v553
      %v2568 = vunpack.c.h.b16 %v553
      %v2569 = vunpack.c.l.b16 %v554
      %v2570 = vunpack.c.h.b16 %v554
      %v2571 = vunpack.c.l.b16 %v555
      %v2572 = vunpack.c.h.b16 %v555
      %v2573 = vunpack.c.l.b16 %v556
      %v2574 = vunpack.c.h.b16 %v556
      %v2575 = vunpack.c.l.b16 %v557
      %v2576 = vunpack.c.h.b16 %v557
      %v2577 = vunpack.c.l.b16 %v558
      %v2578 = vunpack.c.h.b16 %v558
      %v2579 = vunpack.c.l.b16 %v559
      %v2580 = vunpack.c.h.b16 %v559
      %v2581 = vunpack.c.l.b16 %v560
      %v2582 = vunpack.c.h.b16 %v560
      %v2583 = vunpack.c.l.b16 %v561
      %v2584 = vunpack.c.h.b16 %v561
      %v2585 = vunpack.c.l.b16 %v562
      %v2586 = vunpack.c.h.b16 %v562
      %v2587 = vunpack.c.l.b16 %v563
      %v2588 = vunpack.c.h.b16 %v563
      %v2589 = vunpack.c.l.b16 %v564
      %v2590 = vunpack.c.h.b16 %v564
      %v2591 = vunpack.c.l.b16 %v565
      %v2592 = vunpack.c.h.b16 %v565
      %v2593 = vunpack.c.l.b16 %v566
      %v2594 = vunpack.c.h.b16 %v566
      %v2595 = vunpack.c.l.b16 %v567
      %v2596 = vunpack.c.h.b16 %v567
      %v2597 = vunpack.c.l.b16 %v568
      %v2598 = vunpack.c.h.b16 %v568
      %v2599 = vunpack.c.l.b16 %v569
      %v2600 = vunpack.c.h.b16 %v569
      %v2601 = vunpack.c.l.b16 %v570
      %v2602 = vunpack.c.h.b16 %v570
      %v2603 = vunpack.c.l.b16 %v571
      %v2604 = vunpack.c.h.b16 %v571
      %v2605 = vunpack.c.l.b16 %v572
      %v2606 = vunpack.c.h.b16 %v572
      %v2607 = vunpack.c.l.b16 %v573
      %v2608 = vunpack.c.h.b16 %v573
      %v2609 = vunpack.c.l.b16 %v574
      %v2610 = vunpack.c.h.b16 %v574
      %v2611 = vunpack.c.l.b16 %v575
      %v2612 = vunpack.c.h.b16 %v575
      %v2613 = vunpack.c.l.b16 %v576
      %v2614 = vunpack.c.h.b16 %v576
      %v2615 = vunpack.c.l.b16 %v577
      %v2616 = vunpack.c.h.b16 %v577
      %v2617 = vunpack.c.l.b16 %v578
      %v2618 = vunpack.c.h.b16 %v578
      %v2619 = vunpack.c.l.b16 %v579
      %v2620 = vunpack.c.h.b16 %v579
      %v2621 = vunpack.c.l.b16 %v580
      %v2622 = vunpack.c.h.b16 %v580
      %v2623 = vunpack.c.l.b16 %v581
      %v2624 = vunpack.c.h.b16 %v581
      %v2625 = vunpack.c.l.b16 %v582
      %v2626 = vunpack.c.h.b16 %v582
      %v2627 = vunpack.c.l.b16 %v583
      %v2628 = vunpack.c.h.b16 %v583
      %v2629 = vunpack.c.l.b16 %v584
      %v2630 = vunpack.c.h.b16 %v584
      %v2631 = vunpack.c.l.b16 %v585
      %v2632 = vunpack.c.h.b16 %v585
      %v2633 = vunpack.c.l.b16 %v586
      %v2634 = vunpack.c.h.b16 %v586
      %v2635 = vunpack.c.l.b16 %v587
      %v2636 = vunpack.c.h.b16 %v587
      %v2637 = vunpack.c.l.b16 %v588
      %v2638 = vunpack.c.h.b16 %v588
      %v2639 = vunpack.c.l.b16 %v589
      %v2640 = vunpack.c.h.b16 %v589
      %v2641 = vunpack.c.l.b16 %v590
      %v2642 = vunpack.c.h.b16 %v590
      %v2643 = vunpack.c.l.b16 %v591
      %v2644 = vunpack.c.h.b16 %v591
      %v2645 = vunpack.c.l.b16 %v592
      %v2646 = vunpack.c.h.b16 %v592
      %v2647 = vunpack.c.l.b16 %v593
      %v2648 = vunpack.c.h.b16 %v593
      %v2649 = vunpack.c.l.b16 %v594
      %v2650 = vunpack.c.h.b16 %v594
      %v2651 = vunpack.c.l.b16 %v595
      %v2652 = vunpack.c.h.b16 %v595
      %v2653 = vunpack.c.l.b16 %v596
      %v2654 = vunpack.c.h.b16 %v596
      %v2655 = vunpack.c.l.b16 %v597
      %v2656 = vunpack.c.h.b16 %v597
      %v2657 = vunpack.c.l.b16 %v598
      %v2658 = vunpack.c.h.b16 %v598
      %v2659 = vunpack.c.l.b16 %v599
      %v2660 = vunpack.c.h.b16 %v599
      %v2661 = vunpack.c.l.b16 %v600
      %v2662 = vunpack.c.h.b16 %v600
      %v2663 = vunpack.c.l.b16 %v601
      %v2664 = vunpack.c.h.b16 %v601
      %v2665 = vunpack.c.l.b16 %v602
      %v2666 = vunpack.c.h.b16 %v602
      %v2667 = vunpack.c.l.b16 %v603
      %v2668 = vunpack.c.h.b16 %v603
      %v2669 = vunpack.c.l.b16 %v604
      %v2670 = vunpack.c.h.b16 %v604
      %v2671 = vunpack.c.l.b16 %v605
      %v2672 = vunpack.c.h.b16 %v605
      %v2673 = vunpack.c.l.b16 %v606
      %v2674 = vunpack.c.h.b16 %v606
      %v2675 = vunpack.c.l.b16 %v607
      %v2676 = vunpack.c.h.b16 %v607
      %v2677 = vunpack.c.l.b16 %v608
      %v2678 = vunpack.c.h.b16 %v608
      %v2679 = vunpack.c.l.b16 %v609
      %v2680 = vunpack.c.h.b16 %v609
      %v2681 = vunpack.c.l.b16 %v610
      %v2682 = vunpack.c.h.b16 %v610
      %v2683 = vunpack.c.l.b16 %v611
      %v2684 = vunpack.c.h.b16 %v611
      %v2685 = vunpack.c.l.b16 %v612
      %v2686 = vunpack.c.h.b16 %v612
      %v2687 = vunpack.c.l.b16 %v613
      %v2688 = vunpack.c.h.b16 %v613
      %v2689 = vunpack.c.l.b16 %v614
      %v2690 = vunpack.c.h.b16 %v614
      %v2691 = vunpack.c.l.b16 %v615
      %v2692 = vunpack.c.h.b16 %v615
      %v2693 = vunpack.c.l.b16 %v616
      %v2694 = vunpack.c.h.b16 %v616
      %v2695 = vunpack.c.l.b16 %v617
      %v2696 = vunpack.c.h.b16 %v617
      %v2697 = vunpack.c.l.b16 %v618
      %v2698 = vunpack.c.h.b16 %v618
      %v2699 = vunpack.c.l.b16 %v619
      %v2700 = vunpack.c.h.b16 %v619
      %v2701 = vunpack.c.l.b16 %v620
      %v2702 = vunpack.c.h.b16 %v620
      %v2703 = vunpack.c.l.b16 %v621
      %v2704 = vunpack.c.h.b16 %v621
      %v2705 = vunpack.c.l.b16 %v622
      %v2706 = vunpack.c.h.b16 %v622
      %v2707 = vunpack.c.l.b16 %v623
      %v2708 = vunpack.c.h.b16 %v623
      %v2709 = vunpack.c.l.b16 %v624
      %v2710 = vunpack.c.h.b16 %v624
      %v2711 = vunpack.c.l.b16 %v625
      %v2712 = vunpack.c.h.b16 %v625
      %v2713 = vunpack.c.l.b16 %v626
      %v2714 = vunpack.c.h.b16 %v626
      %v2715 = vunpack.c.l.b16 %v627
      %v2716 = vunpack.c.h.b16 %v627
      %v2717 = vunpack.c.l.b16 %v628
      %v2718 = vunpack.c.h.b16 %v628
      %v2719 = vunpack.c.l.b16 %v629
      %v2720 = vunpack.c.h.b16 %v629
      %v2721 = vunpack.c.l.b16 %v630
      %v2722 = vunpack.c.h.b16 %v630
      %v2723 = vunpack.c.l.b16 %v631
      %v2724 = vunpack.c.h.b16 %v631
      %v2725 = vunpack.c.l.b16 %v632
      %v2726 = vunpack.c.h.b16 %v632
      %v2727 = vunpack.c.l.b16 %v633
      %v2728 = vunpack.c.h.b16 %v633
      %v2729 = vunpack.c.l.b16 %v634
      %v2730 = vunpack.c.h.b16 %v634
      %v2731 = vunpack.c.l.b16 %v635
      %v2732 = vunpack.c.h.b16 %v635
      %v2733 = vunpack.c.l.b16 %v636
      %v2734 = vunpack.c.h.b16 %v636
      %v2735 = vunpack.c.l.b16 %v637
      %v2736 = vunpack.c.h.b16 %v637
      %v2737 = vunpack.c.l.b16 %v638
      %v2738 = vunpack.c.h.b16 %v638
      %v2739 = vunpack.c.l.b16 %v639
      %v2740 = vunpack.c.h.b16 %v639
      %v2741 = vunpack.c.l.b16 %v640
      %v2742 = vunpack.c.h.b16 %v640
      %v2743 = vunpack.c.l.b16 %v641
      %v2744 = vunpack.c.h.b16 %v641
      %v2745 = vunpack.c.l.b16 %v642
      %v2746 = vunpack.c.h.b16 %v642
      %v2747 = vunpack.c.l.b16 %v643
      %v2748 = vunpack.c.h.b16 %v643
      %v2749 = vunpack.c.l.b16 %v644
      %v2750 = vunpack.c.h.b16 %v644
      %v2751 = vunpack.c.l.b16 %v645
      %v2752 = vunpack.c.h.b16 %v645
      %v2753 = vunpack.c.l.b16 %v646
      %v2754 = vunpack.c.h.b16 %v646
      %v2755 = vunpack.c.l.b16 %v647
      %v2756 = vunpack.c.h.b16 %v647
      %v2757 = vunpack.c.l.b16 %v648
      %v2758 = vunpack.c.h.b16 %v648
      %v2759 = vunpack.c.l.b16 %v649
      %v2760 = vunpack.c.h.b16 %v649
      %v2761 = vunpack.c.l.b16 %v650
      %v2762 = vunpack.c.h.b16 %v650
      %v2763 = vunpack.c.l.b16 %v651
      %v2764 = vunpack.c.h.b16 %v651
      %v2765 = vunpack.c.l.b16 %v652
      %v2766 = vunpack.c.h.b16 %v652
      %v2767 = vunpack.c.l.b16 %v653
      %v2768 = vunpack.c.h.b16 %v653
      %v2769 = vunpack.c.l.b16 %v654
      %v2770 = vunpack.c.h.b16 %v654
      %v2771 = vunpack.c.l.b16 %v655
      %v2772 = vunpack.c.h.b16 %v655
      %v2773 = vunpack.c.l.b16 %v656
      %v2774 = vunpack.c.h.b16 %v656
      %v2775 = vunpack.c.l.b16 %v657
      %v2776 = vunpack.c.h.b16 %v657
      %v2777 = vunpack.c.l.b16 %v658
      %v2778 = vunpack.c.h.b16 %v658
      %v2779 = vunpack.c.l.b16 %v659
      %v2780 = vunpack.c.h.b16 %v659
      %v2781 = vunpack.c.l.b16 %v660
      %v2782 = vunpack.c.h.b16 %v660
      %v2783 = vunpack.c.l.b16 %v661
      %v2784 = vunpack.c.h.b16 %v661
      %v2785 = vunpack.c.l.b16 %v662
      %v2786 = vunpack.c.h.b16 %v662
      %v2787 = vunpack.c.l.b16 %v663
      %v2788 = vunpack.c.h.b16 %v663
      %v2789 = vunpack.c.l.b16 %v664
      %v2790 = vunpack.c.h.b16 %v664
      %v2791 = vunpack.c.l.b16 %v665
      %v2792 = vunpack.c.h.b16 %v665
      %v2793 = vunpack.c.l.b16 %v666
      %v2794 = vunpack.c.h.b16 %v666
      %v2795 = vunpack.c.l.b16 %v667
      %v2796 = vunpack.c.h.b16 %v667
      %v2797 = vunpack.c.l.b16 %v668
      %v2798 = vunpack.c.h.b16 %v668
      %v2799 = vunpack.c.l.b16 %v669
      %v2800 = vunpack.c.h.b16 %v669
      %v2801 = vunpack.c.l.b16 %v670
      %v2802 = vunpack.c.h.b16 %v670
      %v2803 = vunpack.c.l.b16 %v671
      %v2804 = vunpack.c.h.b16 %v671
      %v2805 = vunpack.c.l.b16 %v672
      %v2806 = vunpack.c.h.b16 %v672
      %v2807 = vunpack.c.l.b16 %v673
      %v2808 = vunpack.c.h.b16 %v673
      %v2809 = vunpack.c.l.b16 %v674
      %v2810 = vunpack.c.h.b16 %v674
      %v2811 = vunpack.c.l.b16 %v675
      %v2812 = vunpack.c.h.b16 %v675
      %v2813 = vunpack.c.l.b16 %v676
      %v2814 = vunpack.c.h.b16 %v676
      %v2815 = vunpack.c.l.b16 %v677
      %v2816 = vunpack.c.h.b16 %v677
      %v2817 = vunpack.c.l.b16 %v678
      %v2818 = vunpack.c.h.b16 %v678
      %v2819 = vunpack.c.l.b16 %v679
      %v2820 = vunpack.c.h.b16 %v679
      %v2821 = vunpack.c.l.b16 %v680
      %v2822 = vunpack.c.h.b16 %v680
      %v2823 = vunpack.c.l.b16 %v681
      %v2824 = vunpack.c.h.b16 %v681
      %v2825 = vunpack.c.l.b16 %v682
      %v2826 = vunpack.c.h.b16 %v682
      %v2827 = vunpack.c.l.b16 %v683
      %v2828 = vunpack.c.h.b16 %v683
      %v2829 = vunpack.c.l.b16 %v684
      %v2830 = vunpack.c.h.b16 %v684
      %v2831 = vunpack.c.l.b16 %v685
      %v2832 = vunpack.c.h.b16 %v685
      %v2833 = vunpack.c.l.b16 %v686
      %v2834 = vunpack.c.h.b16 %v686
      %v2835 = vunpack.c.l.b16 %v687
      %v2836 = vunpack.c.h.b16 %v687
      %v2837 = vunpack.c.l.b16 %v688
      %v2838 = vunpack.c.h.b16 %v688
      %v2839 = vunpack.c.l.b16 %v689
      %v2840 = vunpack.c.h.b16 %v689
      %v2841 = vunpack.c.l.b16 %v690
      %v2842 = vunpack.c.h.b16 %v690
      %v2843 = vunpack.c.l.b16 %v691
      %v2844 = vunpack.c.h.b16 %v691
      %v2845 = vunpack.c.l.b16 %v692
      %v2846 = vunpack.c.h.b16 %v692
      %v2847 = vunpack.c.l.b16 %v693
      %v2848 = vunpack.c.h.b16 %v693
      %v2849 = vunpack.c.l.b16 %v694
      %v2850 = vunpack.c.h.b16 %v694
      %v2851 = vunpack.c.l.b16 %v695
      %v2852 = vunpack.c.h.b16 %v695
      %v2853 = vunpack.c.l.b16 %v696
      %v2854 = vunpack.c.h.b16 %v696
      %v2855 = vunpack.c.l.b16 %v697
      %v2856 = vunpack.c.h.b16 %v697
      %v2857 = vunpack.c.l.b16 %v698
      %v2858 = vunpack.c.h.b16 %v698
      %v2859 = vunpack.c.l.b16 %v699
      %v2860 = vunpack.c.h.b16 %v699
      %v2861 = vunpack.c.l.b16 %v700
      %v2862 = vunpack.c.h.b16 %v700
      %v2863 = vunpack.c.l.b16 %v701
      %v2864 = vunpack.c.h.b16 %v701
      %v2865 = vunpack.c.l.b16 %v702
      %v2866 = vunpack.c.h.b16 %v702
      %v2867 = vunpack.c.l.b16 %v703
      %v2868 = vunpack.c.h.b16 %v703
      %v2869 = vunpack.c.l.b16 %v704
      %v2870 = vunpack.c.h.b16 %v704
      %v2871 = vunpack.c.l.b16 %v705
      %v2872 = vunpack.c.h.b16 %v705
      %v2873 = vunpack.c.l.b16 %v706
      %v2874 = vunpack.c.h.b16 %v706
      %v2875 = vunpack.c.l.b16 %v707
      %v2876 = vunpack.c.h.b16 %v707
      %v2877 = vunpack.c.l.b16 %v708
      %v2878 = vunpack.c.h.b16 %v708
      %v2879 = vunpack.c.l.b16 %v709
      %v2880 = vunpack.c.h.b16 %v709
      %v2881 = vunpack.c.l.b16 %v710
      %v2882 = vunpack.c.h.b16 %v710
      %v2883 = vunpack.c.l.b16 %v711
      %v2884 = vunpack.c.h.b16 %v711
      %v2885 = vunpack.c.l.b16 %v712
      %v2886 = vunpack.c.h.b16 %v712
      %v2887 = vunpack.c.l.b16 %v713
      %v2888 = vunpack.c.h.b16 %v713
      %v2889 = vunpack.c.l.b16 %v714
      %v2890 = vunpack.c.h.b16 %v714
      %v2891 = vunpack.c.l.b16 %v715
      %v2892 = vunpack.c.h.b16 %v715
      %v2893 = vunpack.c.l.b16 %v716
      %v2894 = vunpack.c.h.b16 %v716
      %v2895 = vunpack.c.l.b16 %v717
      %v2896 = vunpack.c.h.b16 %v717
      %v2897 = vunpack.c.l.b16 %v718
      %v2898 = vunpack.c.h.b16 %v718
      %v2899 = vunpack.c.l.b16 %v719
      %v2900 = vunpack.c.h.b16 %v719
      %v2901 = vunpack.c.l.b16 %v720
      %v2902 = vunpack.c.h.b16 %v720
      %v2903 = vunpack.c.l.b16 %v721
      %v2904 = vunpack.c.h.b16 %v721
      %v2905 = vunpack.c.l.b16 %v722
      %v2906 = vunpack.c.h.b16 %v722
      %v2907 = vunpack.c.l.b16 %v723
      %v2908 = vunpack.c.h.b16 %v723
      %v2909 = vunpack.c.l.b16 %v724
      %v2910 = vunpack.c.h.b16 %v724
      %v2911 = vunpack.c.l.b16 %v725
      %v2912 = vunpack.c.h.b16 %v725
      %v2913 = vunpack.c.l.b16 %v726
      %v2914 = vunpack.c.h.b16 %v726
      %v2915 = vunpack.c.l.b16 %v727
      %v2916 = vunpack.c.h.b16 %v727
      %v2917 = vunpack.c.l.b16 %v728
      %v2918 = vunpack.c.h.b16 %v728
      %v2919 = vunpack.c.l.b16 %v729
      %v2920 = vunpack.c.h.b16 %v729
      %v2921 = vunpack.c.l.b16 %v730
      %v2922 = vunpack.c.h.b16 %v730
      %v2923 = vunpack.c.l.b16 %v731
      %v2924 = vunpack.c.h.b16 %v731
      %v2925 = vunpack.c.l.b16 %v732
      %v2926 = vunpack.c.h.b16 %v732
      %v2927 = vunpack.c.l.b16 %v733
      %v2928 = vunpack.c.h.b16 %v733
      %v2929 = vunpack.c.l.b16 %v734
      %v2930 = vunpack.c.h.b16 %v734
      %v2931 = vunpack.c.l.b16 %v735
      %v2932 = vunpack.c.h.b16 %v735
      %v2933 = vunpack.c.l.b16 %v736
      %v2934 = vunpack.c.h.b16 %v736
      %v2935 = vunpack.c.l.b16 %v737
      %v2936 = vunpack.c.h.b16 %v737
      %v2937 = vunpack.c.l.b16 %v738
      %v2938 = vunpack.c.h.b16 %v738
      %v2939 = vunpack.c.l.b16 %v739
      %v2940 = vunpack.c.h.b16 %v739
      %v2941 = vunpack.c.l.b16 %v740
      %v2942 = vunpack.c.h.b16 %v740
      %v2943 = vunpack.c.l.b16 %v741
      %v2944 = vunpack.c.h.b16 %v741
      %v2945 = vunpack.c.l.b16 %v742
      %v2946 = vunpack.c.h.b16 %v742
      %v2947 = vunpack.c.l.b16 %v743
      %v2948 = vunpack.c.h.b16 %v743
      %v2949 = vunpack.c.l.b16 %v744
      %v2950 = vunpack.c.h.b16 %v744
      %v2951 = vunpack.c.l.b16 %v745
      %v2952 = vunpack.c.h.b16 %v745
      %v2953 = vunpack.c.l.b16 %v746
      %v2954 = vunpack.c.h.b16 %v746
      %v2955 = vunpack.c.l.b16 %v747
      %v2956 = vunpack.c.h.b16 %v747
      %v2957 = vunpack.c.l.b16 %v748
      %v2958 = vunpack.c.h.b16 %v748
      %v2959 = vunpack.c.l.b16 %v749
      %v2960 = vunpack.c.h.b16 %v749
      %v2961 = vunpack.c.l.b16 %v750
      %v2962 = vunpack.c.h.b16 %v750
      %v2963 = vunpack.c.l.b16 %v751
      %v2964 = vunpack.c.h.b16 %v751
      %v2965 = vunpack.c.l.b16 %v752
      %v2966 = vunpack.c.h.b16 %v752
      %v2967 = vunpack.c.l.b16 %v753
      %v2968 = vunpack.c.h.b16 %v753
      %v2969 = vunpack.c.l.b16 %v754
      %v2970 = vunpack.c.h.b16 %v754
      %v2971 = vunpack.c.l.b16 %v755
      %v2972 = vunpack.c.h.b16 %v755
      %v2973 = vunpack.c.l.b16 %v756
      %v2974 = vunpack.c.h.b16 %v756
      %v2975 = vunpack.c.l.b16 %v757
      %v2976 = vunpack.c.h.b16 %v757
      %v2977 = vunpack.c.l.b16 %v758
      %v2978 = vunpack.c.h.b16 %v758
      %v2979 = vunpack.c.l.b16 %v759
      %v2980 = vunpack.c.h.b16 %v759
      %v2981 = vunpack.c.l.b16 %v760
      %v2982 = vunpack.c.h.b16 %v760
      %v2983 = vunpack.c.l.b16 %v761
      %v2984 = vunpack.c.h.b16 %v761
      %v2985 = vunpack.c.l.b16 %v762
      %v2986 = vunpack.c.h.b16 %v762
      %v2987 = vunpack.c.l.b16 %v763
      %v2988 = vunpack.c.h.b16 %v763
      %v2989 = vunpack.c.l.b16 %v764
      %v2990 = vunpack.c.h.b16 %v764
      %v2991 = vunpack.c.l.b16 %v765
      %v2992 = vunpack.c.h.b16 %v765
      %v2993 = vunpack.c.l.b16 %v766
      %v2994 = vunpack.c.h.b16 %v766
      %v2995 = vunpack.c.l.b16 %v767
      %v2996 = vunpack.c.h.b16 %v767
      %v2997 = vunpack.c.l.b16 %v768
      %v2998 = vunpack.c.h.b16 %v768
      %v2999 = vunpack.c.l.b16 %v769
      %v3000 = vunpack.c.h.b16 %v769
      %v3001 = vunpack.c.l.b16 %v770
      %v3002 = vunpack.c.h.b16 %v770
      %v3003 = vunpack.c.l.b16 %v771
      %v3004 = vunpack.c.h.b16 %v771
      %v3005 = vunpack.c.l.b16 %v772
      %v3006 = vunpack.c.h.b16 %v772
      %v3007 = vunpack.c.l.b16 %v773
      %v3008 = vunpack.c.h.b16 %v773
      %v3009 = vunpack.c.l.b16 %v774
      %v3010 = vunpack.c.h.b16 %v774
      %v3011 = vunpack.c.l.b16 %v775
      %v3012 = vunpack.c.h.b16 %v775
      %v3013 = vunpack.c.l.b16 %v776
      %v3014 = vunpack.c.h.b16 %v776
      %v3015 = vunpack.c.l.b16 %v777
      %v3016 = vunpack.c.h.b16 %v777
      %v3017 = vunpack.c.l.b16 %v778
      %v3018 = vunpack.c.h.b16 %v778
      %v3019 = vunpack.c.l.b16 %v779
      %v3020 = vunpack.c.h.b16 %v779
      %v3021 = vunpack.c.l.b16 %v780
      %v3022 = vunpack.c.h.b16 %v780
      %v3023 = vunpack.c.l.b16 %v781
      %v3024 = vunpack.c.h.b16 %v781
      %v3025 = vunpack.c.l.b16 %v782
      %v3026 = vunpack.c.h.b16 %v782
      %v3027 = vunpack.c.l.b16 %v783
      %v3028 = vunpack.c.h.b16 %v783
      %v3029 = vunpack.c.l.b16 %v784
      %v3030 = vunpack.c.h.b16 %v784
      %v3031 = vunpack.c.l.b16 %v785
      %v3032 = vunpack.c.h.b16 %v785
      %v3033 = vunpack.c.l.b16 %v786
      %v3034 = vunpack.c.h.b16 %v786
      %v3035 = vunpack.c.l.b16 %v787
      %v3036 = vunpack.c.h.b16 %v787
      %v3037 = vunpack.c.l.b16 %v788
      %v3038 = vunpack.c.h.b16 %v788
      %v3039 = vunpack.c.l.b16 %v789
      %v3040 = vunpack.c.h.b16 %v789
      %v3041 = vunpack.c.l.b16 %v790
      %v3042 = vunpack.c.h.b16 %v790
      %v3043 = vunpack.c.l.b16 %v791
      %v3044 = vunpack.c.h.b16 %v791
      %v3045 = vunpack.c.l.b16 %v792
      %v3046 = vunpack.c.h.b16 %v792
      %v3047 = vunpack.c.l.b16 %v793
      %v3048 = vunpack.c.h.b16 %v793
      %v3049 = vunpack.c.l.b16 %v794
      %v3050 = vunpack.c.h.b16 %v794
      %v3051 = vunpack.c.l.b16 %v795
      %v3052 = vunpack.c.h.b16 %v795
      %v3053 = vunpack.c.l.b16 %v796
      %v3054 = vunpack.c.h.b16 %v796
      %v3055 = vunpack.c.l.b16 %v797
      %v3056 = vunpack.c.h.b16 %v797
      %v3057 = vunpack.c.l.b16 %v798
      %v3058 = vunpack.c.h.b16 %v798
      %v3059 = vunpack.c.l.b16 %v799
      %v3060 = vunpack.c.h.b16 %v799
      %v3061 = vunpack.c.l.b16 %v800
      %v3062 = vunpack.c.h.b16 %v800
      %v3063 = vunpack.c.l.b16 %v801
      %v3064 = vunpack.c.h.b16 %v801
      %v3065 = vunpack.c.l.b16 %v802
      %v3066 = vunpack.c.h.b16 %v802
      %v3067 = vunpack.c.l.b16 %v803
      %v3068 = vunpack.c.h.b16 %v803
      %v3069 = vunpack.c.l.b16 %v804
      %v3070 = vunpack.c.h.b16 %v804
      %v3071 = vunpack.c.l.b16 %v805
      %v3072 = vunpack.c.h.b16 %v805
      %v3073 = vunpack.c.l.b16 %v806
      %v3074 = vunpack.c.h.b16 %v806
      %v3075 = vunpack.c.l.b16 %v807
      %v3076 = vunpack.c.h.b16 %v807
      %v3077 = vunpack.c.l.b16 %v808
      %v3078 = vunpack.c.h.b16 %v808
      %v3079 = vunpack.c.l.b16 %v809
      %v3080 = vunpack.c.h.b16 %v809
      %v3081 = vunpack.c.l.b16 %v810
      %v3082 = vunpack.c.h.b16 %v810
      %v3083 = vunpack.c.l.b16 %v811
      %v3084 = vunpack.c.h.b16 %v811
      %v3085 = vunpack.c.l.b16 %v812
      %v3086 = vunpack.c.h.b16 %v812
      %v3087 = vunpack.c.l.b16 %v813
      %v3088 = vunpack.c.h.b16 %v813
      %v3089 = vunpack.c.l.b16 %v814
      %v3090 = vunpack.c.h.b16 %v814
      %v3091 = vunpack.c.l.b16 %v815
      %v3092 = vunpack.c.h.b16 %v815
      %v3093 = vunpack.c.l.b16 %v816
      %v3094 = vunpack.c.h.b16 %v816
      %v3095 = vunpack.c.l.b16 %v817
      %v3096 = vunpack.c.h.b16 %v817
      %v3097 = vunpack.c.l.b16 %v818
      %v3098 = vunpack.c.h.b16 %v818
      %v3099 = vunpack.c.l.b16 %v819
      %v3100 = vunpack.c.h.b16 %v819
      %v3101 = vunpack.c.l.b16 %v820
      %v3102 = vunpack.c.h.b16 %v820
      %v3103 = vunpack.c.l.b16 %v821
      %v3104 = vunpack.c.h.b16 %v821
      %v3105 = vunpack.c.l.b16 %v822
      %v3106 = vunpack.c.h.b16 %v822
      %v3107 = vunpack.c.l.b16 %v823
      %v3108 = vunpack.c.h.b16 %v823
      %v3109 = vunpack.c.l.b16 %v824
      %v3110 = vunpack.c.h.b16 %v824
      %v3111 = vunpack.c.l.b16 %v825
      %v3112 = vunpack.c.h.b16 %v825
      %v3113 = vunpack.c.l.b16 %v826
      %v3114 = vunpack.c.h.b16 %v826
      %v3115 = vunpack.c.l.b16 %v827
      %v3116 = vunpack.c.h.b16 %v827
      %v3117 = vunpack.c.l.b16 %v828
      %v3118 = vunpack.c.h.b16 %v828
      %v3119 = vunpack.c.l.b16 %v829
      %v3120 = vunpack.c.h.b16 %v829
      %v3121 = vunpack.c.l.b16 %v830
      %v3122 = vunpack.c.h.b16 %v830
      %v3123 = vunpack.c.l.b16 %v831
      %v3124 = vunpack.c.h.b16 %v831
      %v3125 = vunpack.c.l.b16 %v832
      %v3126 = vunpack.c.h.b16 %v832
      %v3127 = vunpack.c.l.b16 %v833
      %v3128 = vunpack.c.h.b16 %v833
      %v3129 = vunpack.c.l.b16 %v834
      %v3130 = vunpack.c.h.b16 %v834
      %v3131 = vunpack.c.l.b16 %v835
      %v3132 = vunpack.c.h.b16 %v835
      %v3133 = vunpack.c.l.b16 %v836
      %v3134 = vunpack.c.h.b16 %v836
      %v3135 = vunpack.c.l.b16 %v837
      %v3136 = vunpack.c.h.b16 %v837
      %v3137 = vunpack.c.l.b16 %v838
      %v3138 = vunpack.c.h.b16 %v838
      %v3139 = vunpack.c.l.b16 %v839
      %v3140 = vunpack.c.h.b16 %v839
      %v3141 = vunpack.c.l.b16 %v840
      %v3142 = vunpack.c.h.b16 %v840
      %v3143 = vunpack.c.l.b16 %v841
      %v3144 = vunpack.c.h.b16 %v841
      %v3145 = vunpack.c.l.b16 %v842
      %v3146 = vunpack.c.h.b16 %v842
      %v3147 = vunpack.c.l.b16 %v843
      %v3148 = vunpack.c.h.b16 %v843
      %v3149 = vunpack.c.l.b16 %v844
      %v3150 = vunpack.c.h.b16 %v844
      %v3151 = vunpack.c.l.b16 %v845
      %v3152 = vunpack.c.h.b16 %v845
      %v3153 = vunpack.c.l.b16 %v846
      %v3154 = vunpack.c.h.b16 %v846
      %v3155 = vunpack.c.l.b16 %v847
      %v3156 = vunpack.c.h.b16 %v847
      %v3157 = vunpack.c.l.b16 %v848
      %v3158 = vunpack.c.h.b16 %v848
      %v3159 = vunpack.c.l.b16 %v849
      %v3160 = vunpack.c.h.b16 %v849
      %v3161 = vunpack.c.l.b16 %v850
      %v3162 = vunpack.c.h.b16 %v850
      %v3163 = vunpack.c.l.b16 %v851
      %v3164 = vunpack.c.h.b16 %v851
      %v3165 = vunpack.c.l.b16 %v852
      %v3166 = vunpack.c.h.b16 %v852
      %v3167 = vunpack.c.l.b16 %v853
      %v3168 = vunpack.c.h.b16 %v853
      %v3169 = vunpack.c.l.b16 %v854
      %v3170 = vunpack.c.h.b16 %v854
      %v3171 = vunpack.c.l.b16 %v855
      %v3172 = vunpack.c.h.b16 %v855
      %v3173 = vunpack.c.l.b16 %v856
      %v3174 = vunpack.c.h.b16 %v856
      %v3175 = vunpack.c.l.b16 %v857
      %v3176 = vunpack.c.h.b16 %v857
      %v3177 = vunpack.c.l.b16 %v858
      %v3178 = vunpack.c.h.b16 %v858
      %v3179 = vunpack.c.l.b16 %v859
      %v3180 = vunpack.c.h.b16 %v859
      %v3181 = vunpack.c.l.b16 %v860
      %v3182 = vunpack.c.h.b16 %v860
      %v3183 = vunpack.c.l.b16 %v861
      %v3184 = vunpack.c.h.b16 %v861
      %v3185 = vunpack.c.l.b16 %v862
      %v3186 = vunpack.c.h.b16 %v862
      %v3187 = vunpack.c.l.b16 %v863
      %v3188 = vunpack.c.h.b16 %v863
      %v3189 = vunpack.c.l.b16 %v864
      %v3190 = vunpack.c.h.b16 %v864
      %v3191 = vunpack.c.l.b16 %v865
      %v3192 = vunpack.c.h.b16 %v865
      %v3193 = vunpack.c.l.b16 %v866
      %v3194 = vunpack.c.h.b16 %v866
      %v3195 = vunpack.c.l.b16 %v867
      %v3196 = vunpack.c.h.b16 %v867
      %v3197 = vunpack.c.l.b16 %v868
      %v3198 = vunpack.c.h.b16 %v868
      %v3199 = vunpack.c.l.b16 %v869
      %v3200 = vunpack.c.h.b16 %v869
      %v3201 = vunpack.c.l.b16 %v870
      %v3202 = vunpack.c.h.b16 %v870
      %v3203 = vunpack.c.l.b16 %v871
      %v3204 = vunpack.c.h.b16 %v871
      %v3205 = vunpack.c.l.b16 %v872
      %v3206 = vunpack.c.h.b16 %v872
      %v3207 = vunpack.c.l.b16 %v873
      %v3208 = vunpack.c.h.b16 %v873
      %v3209 = vunpack.c.l.b16 %v874
      %v3210 = vunpack.c.h.b16 %v874
      %v3211 = vunpack.c.l.b16 %v875
      %v3212 = vunpack.c.h.b16 %v875
      %v3213 = vunpack.c.l.b16 %v876
      %v3214 = vunpack.c.h.b16 %v876
      %v3215 = vunpack.c.l.b16 %v877
      %v3216 = vunpack.c.h.b16 %v877
      %v3217 = vunpack.c.l.b16 %v878
      %v3218 = vunpack.c.h.b16 %v878
      %v3219 = vunpack.c.l.b16 %v879
      %v3220 = vunpack.c.h.b16 %v879
      %v3221 = vunpack.c.l.b16 %v880
      %v3222 = vunpack.c.h.b16 %v880
      %v3223 = vunpack.c.l.b16 %v881
      %v3224 = vunpack.c.h.b16 %v881
      %v3225 = vunpack.c.l.b16 %v882
      %v3226 = vunpack.c.h.b16 %v882
      %v3227 = vunpack.c.l.b16 %v883
      %v3228 = vunpack.c.h.b16 %v883
      %v3229 = vunpack.c.l.b16 %v884
      %v3230 = vunpack.c.h.b16 %v884
      %v3231 = vunpack.c.l.b16 %v885
      %v3232 = vunpack.c.h.b16 %v885
      %v3233 = vunpack.c.l.b16 %v886
      %v3234 = vunpack.c.h.b16 %v886
      %v3235 = vunpack.c.l.b16 %v887
      %v3236 = vunpack.c.h.b16 %v887
      %v3237 = vunpack.c.l.b16 %v888
      %v3238 = vunpack.c.h.b16 %v888
      %v3239 = vunpack.c.l.b16 %v889
      %v3240 = vunpack.c.h.b16 %v889
      %v3241 = vunpack.c.l.b16 %v890
      %v3242 = vunpack.c.h.b16 %v890
      %v3243 = vunpack.c.l.b16 %v891
      %v3244 = vunpack.c.h.b16 %v891
      %v3245 = vunpack.c.l.b16 %v892
      %v3246 = vunpack.c.h.b16 %v892
      %v3247 = vunpack.c.l.b16 %v893
      %v3248 = vunpack.c.h.b16 %v893
      %v3249 = vunpack.c.l.b16 %v894
      %v3250 = vunpack.c.h.b16 %v894
      %v3251 = vunpack.c.l.b16 %v895
      %v3252 = vunpack.c.h.b16 %v895
      %v3253 = vunpack.c.l.b16 %v896
      %v3254 = vunpack.c.h.b16 %v896
      %v3255 = vunpack.c.l.b16 %v897
      %v3256 = vunpack.c.h.b16 %v897
      %v3257 = vunpack.c.l.b16 %v898
      %v3258 = vunpack.c.h.b16 %v898
      %v3259 = vunpack.c.l.b16 %v899
      %v3260 = vunpack.c.h.b16 %v899
      %v3261 = vunpack.c.l.b16 %v900
      %v3262 = vunpack.c.h.b16 %v900
      %v3263 = vunpack.c.l.b16 %v901
      %v3264 = vunpack.c.h.b16 %v901
      %v3265 = vunpack.c.l.b16 %v902
      %v3266 = vunpack.c.h.b16 %v902
      %v3267 = vunpack.c.l.b16 %v903
      %v3268 = vunpack.c.h.b16 %v903
      %v3269 = vunpack.c.l.b16 %v904
      %v3270 = vunpack.c.h.b16 %v904
      %v3271 = vunpack.c.l.b16 %v905
      %v3272 = vunpack.c.h.b16 %v905
      %v3273 = vunpack.c.l.b16 %v906
      %v3274 = vunpack.c.h.b16 %v906
      %v3275 = vunpack.c.l.b16 %v907
      %v3276 = vunpack.c.h.b16 %v907
      %v3277 = vunpack.c.l.b16 %v908
      %v3278 = vunpack.c.h.b16 %v908
      %v3279 = vunpack.c.l.b16 %v909
      %v3280 = vunpack.c.h.b16 %v909
      %v3281 = vunpack.c.l.b16 %v910
      %v3282 = vunpack.c.h.b16 %v910
      %v3283 = vunpack.c.l.b16 %v911
      %v3284 = vunpack.c.h.b16 %v911
      %v3285 = vunpack.c.l.b16 %v912
      %v3286 = vunpack.c.h.b16 %v912
      %v3287 = vunpack.c.l.b16 %v913
      %v3288 = vunpack.c.h.b16 %v913
      %v3289 = vunpack.c.l.b16 %v914
      %v3290 = vunpack.c.h.b16 %v914
      %v3291 = vunpack.c.l.b16 %v915
      %v3292 = vunpack.c.h.b16 %v915
      %v3293 = vunpack.c.l.b16 %v916
      %v3294 = vunpack.c.h.b16 %v916
      %v3295 = vunpack.c.l.b16 %v917
      %v3296 = vunpack.c.h.b16 %v917
      %v3297 = vunpack.c.l.b16 %v918
      %v3298 = vunpack.c.h.b16 %v918
      %v3299 = vunpack.c.l.b16 %v919
      %v3300 = vunpack.c.h.b16 %v919
      %v3301 = vunpack.c.l.b16 %v920
      %v3302 = vunpack.c.h.b16 %v920
      %v3303 = vunpack.c.l.b16 %v921
      %v3304 = vunpack.c.h.b16 %v921
      %v3305 = vunpack.c.l.b16 %v922
      %v3306 = vunpack.c.h.b16 %v922
      %v3307 = vunpack.c.l.b16 %v923
      %v3308 = vunpack.c.h.b16 %v923
      %v3309 = vunpack.c.l.b16 %v924
      %v3310 = vunpack.c.h.b16 %v924
      %v3311 = vunpack.c.l.b16 %v925
      %v3312 = vunpack.c.h.b16 %v925
      %v3313 = vunpack.c.l.b16 %v926
      %v3314 = vunpack.c.h.b16 %v926
      %v3315 = vunpack.c.l.b16 %v927
      %v3316 = vunpack.c.h.b16 %v927
      %v3317 = vunpack.c.l.b16 %v928
      %v3318 = vunpack.c.h.b16 %v928
      %v3319 = vunpack.c.l.b16 %v929
      %v3320 = vunpack.c.h.b16 %v929
      %v3321 = vunpack.c.l.b16 %v930
      %v3322 = vunpack.c.h.b16 %v930
      %v3323 = vunpack.c.l.b16 %v931
      %v3324 = vunpack.c.h.b16 %v931
      %v3325 = vunpack.c.l.b16 %v932
      %v3326 = vunpack.c.h.b16 %v932
      %v3327 = vunpack.c.l.b16 %v933
      %v3328 = vunpack.c.h.b16 %v933
      %v3329 = vunpack.c.l.b16 %v934
      %v3330 = vunpack.c.h.b16 %v934
      %v3331 = vunpack.c.l.b16 %v935
      %v3332 = vunpack.c.h.b16 %v935
      %v3333 = vunpack.c.l.b16 %v936
      %v3334 = vunpack.c.h.b16 %v936
      %v3335 = vunpack.c.l.b16 %v937
      %v3336 = vunpack.c.h.b16 %v937
      %v3337 = vunpack.c.l.b16 %v938
      %v3338 = vunpack.c.h.b16 %v938
      %v3339 = vunpack.c.l.b16 %v939
      %v3340 = vunpack.c.h.b16 %v939
      %v3341 = vunpack.c.l.b16 %v940
      %v3342 = vunpack.c.h.b16 %v940
      %v3343 = vunpack.c.l.b16 %v941
      %v3344 = vunpack.c.h.b16 %v941
      %v3345 = vunpack.c.l.b16 %v942
      %v3346 = vunpack.c.h.b16 %v942
      %v3347 = vunpack.c.l.b16 %v943
      %v3348 = vunpack.c.h.b16 %v943
      %v3349 = vunpack.c.l.b16 %v944
      %v3350 = vunpack.c.h.b16 %v944
      %v3351 = vunpack.c.l.b16 %v945
      %v3352 = vunpack.c.h.b16 %v945
      %v3353 = vunpack.c.l.b16 %v946
      %v3354 = vunpack.c.h.b16 %v946
      %v3355 = vunpack.c.l.b16 %v947
      %v3356 = vunpack.c.h.b16 %v947
      %v3357 = vunpack.c.l.b16 %v948
      %v3358 = vunpack.c.h.b16 %v948
      %v3359 = vunpack.c.l.b16 %v949
      %v3360 = vunpack.c.h.b16 %v949
      %v3361 = vunpack.c.l.b16 %v950
      %v3362 = vunpack.c.h.b16 %v950
      %v3363 = vunpack.c.l.b16 %v951
      %v3364 = vunpack.c.h.b16 %v951
      %v3365 = vunpack.c.l.b16 %v952
      %v3366 = vunpack.c.h.b16 %v952
      %v3367 = vunpack.c.l.b16 %v953
      %v3368 = vunpack.c.h.b16 %v953
      %v3369 = vunpack.c.l.b16 %v954
      %v3370 = vunpack.c.h.b16 %v954
      %v3371 = vunpack.c.l.b16 %v955
      %v3372 = vunpack.c.h.b16 %v955
      %v3373 = vunpack.c.l.b16 %v956
      %v3374 = vunpack.c.h.b16 %v956
      %v3375 = vunpack.c.l.b16 %v957
      %v3376 = vunpack.c.h.b16 %v957
      %v3377 = vunpack.c.l.b16 %v958
      %v3378 = vunpack.c.h.b16 %v958
      %v3379 = vunpack.c.l.b16 %v959
      %v3380 = vunpack.c.h.b16 %v959
      %v3381 = vunpack.c.l.b16 %v960
      %v3382 = vunpack.c.h.b16 %v960
      %v3383 = vunpack.c.l.b16 %v961
      %v3384 = vunpack.c.h.b16 %v961
      %v3385 = vunpack.c.l.b16 %v962
      %v3386 = vunpack.c.h.b16 %v962
      %v3387 = vunpack.c.l.b16 %v963
      %v3388 = vunpack.c.h.b16 %v963
      %v3389 = vunpack.c.l.b16 %v964
      %v3390 = vunpack.c.h.b16 %v964
      %v3391 = vunpack.c.l.b16 %v965
      %v3392 = vunpack.c.h.b16 %v965
      %v3393 = vunpack.c.l.b16 %v966
      %v3394 = vunpack.c.h.b16 %v966
      %v3395 = vunpack.c.l.b16 %v967
      %v3396 = vunpack.c.h.b16 %v967
      %v3397 = vunpack.c.l.b16 %v968
      %v3398 = vunpack.c.h.b16 %v968
      %v3399 = vunpack.c.l.b16 %v969
      %v3400 = vunpack.c.h.b16 %v969
      %v3401 = vunpack.c.l.b16 %v970
      %v3402 = vunpack.c.h.b16 %v970
      %v3403 = vunpack.c.l.b16 %v971
      %v3404 = vunpack.c.h.b16 %v971
      %v3405 = vunpack.c.l.b16 %v972
      %v3406 = vunpack.c.h.b16 %v972
      %v3407 = vunpack.c.l.b16 %v973
      %v3408 = vunpack.c.h.b16 %v973
      %v3409 = vunpack.c.l.b16 %v974
      %v3410 = vunpack.c.h.b16 %v974
      %v3411 = vunpack.c.l.b16 %v975
      %v3412 = vunpack.c.h.b16 %v975
      %v3413 = vunpack.c.l.b16 %v976
      %v3414 = vunpack.c.h.b16 %v976
      %v3415 = vunpack.c.l.b16 %v977
      %v3416 = vunpack.c.h.b16 %v977
      %v3417 = vunpack.c.l.b16 %v978
      %v3418 = vunpack.c.h.b16 %v978
      %v3419 = vunpack.c.l.b16 %v979
      %v3420 = vunpack.c.h.b16 %v979
      %v3421 = vunpack.c.l.b16 %v980
      %v3422 = vunpack.c.h.b16 %v980
      %v3423 = vunpack.c.l.b16 %v981
      %v3424 = vunpack.c.h.b16 %v981
      %v3425 = vunpack.c.l.b16 %v982
      %v3426 = vunpack.c.h.b16 %v982
      %v3427 = vunpack.c.l.b16 %v983
      %v3428 = vunpack.c.h.b16 %v983
      %v3429 = vunpack.c.l.b16 %v984
      %v3430 = vunpack.c.h.b16 %v984
      %v3431 = vunpack.c.l.b16 %v985
      %v3432 = vunpack.c.h.b16 %v985
      %v3433 = vunpack.c.l.b16 %v986
      %v3434 = vunpack.c.h.b16 %v986
      %v3435 = vunpack.c.l.b16 %v987
      %v3436 = vunpack.c.h.b16 %v987
      %v3437 = vunpack.c.l.b16 %v988
      %v3438 = vunpack.c.h.b16 %v988
      %v3439 = vunpack.c.l.b16 %v989
      %v3440 = vunpack.c.h.b16 %v989
      %v3441 = vunpack.c.l.b16 %v990
      %v3442 = vunpack.c.h.b16 %v990
      %v3443 = vunpack.c.l.b16 %v991
      %v3444 = vunpack.c.h.b16 %v991
      %v3445 = vunpack.c.l.b16 %v992
      %v3446 = vunpack.c.h.b16 %v992
      %v3447 = vunpack.c.l.b16 %v993
      %v3448 = vunpack.c.h.b16 %v993
      %v3449 = vunpack.c.l.b16 %v994
      %v3450 = vunpack.c.h.b16 %v994
      %v3451 = vunpack.c.l.b16 %v995
      %v3452 = vunpack.c.h.b16 %v995
      %v3453 = vunpack.c.l.b16 %v996
      %v3454 = vunpack.c.h.b16 %v996
      %v3455 = vunpack.c.l.b16 %v997
      %v3456 = vunpack.c.h.b16 %v997
      %v3457 = vunpack.c.l.b16 %v998
      %v3458 = vunpack.c.h.b16 %v998
      %v3459 = vunpack.c.l.b16 %v999
      %v3460 = vunpack.c.h.b16 %v999
      %v3461 = vunpack.c.l.b16 %v1000
      %v3462 = vunpack.c.h.b16 %v1000
      %v3463 = vunpack.c.l.b16 %v1001
      %v3464 = vunpack.c.h.b16 %v1001
      %v3465 = vunpack.c.l.b16 %v1002
      %v3466 = vunpack.c.h.b16 %v1002
      %v3467 = vunpack.c.l.b16 %v1003
      %v3468 = vunpack.c.h.b16 %v1003
      %v3469 = vunpack.c.l.b16 %v1004
      %v3470 = vunpack.c.h.b16 %v1004
      %v3471 = vunpack.c.l.b16 %v1005
      %v3472 = vunpack.c.h.b16 %v1005
      %v3473 = vunpack.c.l.b16 %v1006
      %v3474 = vunpack.c.h.b16 %v1006
      %v3475 = vunpack.c.l.b16 %v1007
      %v3476 = vunpack.c.h.b16 %v1007
      %v3477 = vunpack.c.l.b16 %v1008
      %v3478 = vunpack.c.h.b16 %v1008
      %v3479 = vunpack.c.l.b16 %v1009
      %v3480 = vunpack.c.h.b16 %v1009
      %v3481 = vunpack.c.l.b16 %v1010
      %v3482 = vunpack.c.h.b16 %v1010
      %v3483 = vunpack.c.l.b16 %v1011
      %v3484 = vunpack.c.h.b16 %v1011
      %v3485 = vunpack.c.l.b16 %v1012
      %v3486 = vunpack.c.h.b16 %v1012
      %v3487 = vunpack.c.l.b16 %v1013
      %v3488 = vunpack.c.h.b16 %v1013
      %v3489 = vunpack.c.l.b16 %v1014
      %v3490 = vunpack.c.h.b16 %v1014
      %v3491 = vunpack.c.l.b16 %v1015
      %v3492 = vunpack.c.h.b16 %v1015
      %v3493 = vunpack.c.l.b16 %v1016
      %v3494 = vunpack.c.h.b16 %v1016
      %v3495 = vunpack.c.l.b16 %v1017
      %v3496 = vunpack.c.h.b16 %v1017
      %v3497 = vunpack.c.l.b16 %v1018
      %v3498 = vunpack.c.h.b16 %v1018
      %v3499 = vunpack.c.l.b16 %v1019
      %v3500 = vunpack.c.h.b16 %v1019
      %v3501 = vunpack.c.l.b16 %v1020
      %v3502 = vunpack.c.h.b16 %v1020
      %v3503 = vunpack.c.l.b16 %v1021
      %v3504 = vunpack.c.h.b16 %v1021
      %v3505 = vunpack.c.l.b16 %v1022
      %v3506 = vunpack.c.h.b16 %v1022
      %v3507 = vunpack.c.l.b16 %v1023
      %v3508 = vunpack.c.h.b16 %v1023
      %v3509 = vunpack.c.l.b16 %v1024
      %v3510 = vunpack.c.h.b16 %v1024
      %v3511 = vunpack.c.l.b16 %v1025
      %v3512 = vunpack.c.h.b16 %v1025
      %v3513 = vunpack.c.l.b16 %v1026
      %v3514 = vunpack.c.h.b16 %v1026
      %v3515 = vunpack.c.l.b16 %v1027
      %v3516 = vunpack.c.h.b16 %v1027
      %v3517 = vunpack.c.l.b16 %v1028
      %v3518 = vunpack.c.h.b16 %v1028
      %v3519 = vunpack.c.l.b16 %v1029
      %v3520 = vunpack.c.h.b16 %v1029
      %v3521 = vunpack.c.l.b16 %v1030
      %v3522 = vunpack.c.h.b16 %v1030
      %v3523 = vunpack.c.l.b16 %v1031
      %v3524 = vunpack.c.h.b16 %v1031
      %v3525 = vunpack.c.l.b16 %v1032
      %v3526 = vunpack.c.h.b16 %v1032
      %v3527 = vunpack.c.l.b16 %v1033
      %v3528 = vunpack.c.h.b16 %v1033
      %v3529 = vunpack.c.l.b16 %v1034
      %v3530 = vunpack.c.h.b16 %v1034
      %v3531 = vunpack.c.l.b16 %v1035
      %v3532 = vunpack.c.h.b16 %v1035
      %v3533 = vunpack.c.l.b16 %v1036
      %v3534 = vunpack.c.h.b16 %v1036
      %v3535 = vunpack.c.l.b16 %v1037
      %v3536 = vunpack.c.h.b16 %v1037
      %v3537 = vunpack.c.l.b16 %v1038
      %v3538 = vunpack.c.h.b16 %v1038
      %v3539 = vunpack.c.l.b16 %v1039
      %v3540 = vunpack.c.h.b16 %v1039
      %v3541 = vunpack.c.l.b16 %v1040
      %v3542 = vunpack.c.h.b16 %v1040
      %v3543 = vunpack.c.l.b16 %v1041
      %v3544 = vunpack.c.h.b16 %v1041
      %v3545 = vunpack.c.l.b16 %v1042
      %v3546 = vunpack.c.h.b16 %v1042
      %v3547 = vunpack.c.l.b16 %v1043
      %v3548 = vunpack.c.h.b16 %v1043
      %v3549 = vunpack.c.l.b16 %v1044
      %v3550 = vunpack.c.h.b16 %v1044
      %v3551 = vunpack.c.l.b16 %v1045
      %v3552 = vunpack.c.h.b16 %v1045
      %v3553 = vunpack.c.l.b16 %v1046
      %v3554 = vunpack.c.h.b16 %v1046
      %v3555 = vunpack.c.l.b16 %v1047
      %v3556 = vunpack.c.h.b16 %v1047
      %v3557 = vunpack.c.l.b16 %v1048
      %v3558 = vunpack.c.h.b16 %v1048
      %v3559 = vunpack.c.l.b16 %v1049
      %v3560 = vunpack.c.h.b16 %v1049
      %v3561 = vunpack.c.l.b16 %v1050
      %v3562 = vunpack.c.h.b16 %v1050
      %v3563 = vunpack.c.l.b16 %v1051
      %v3564 = vunpack.c.h.b16 %v1051
      %v3565 = vunpack.c.l.b16 %v1052
      %v3566 = vunpack.c.h.b16 %v1052
      %v3567 = vunpack.c.l.b16 %v1053
      %v3568 = vunpack.c.h.b16 %v1053
      %v3569 = vunpack.c.l.b16 %v1054
      %v3570 = vunpack.c.h.b16 %v1054
      %v3571 = vunpack.c.l.b16 %v1055
      %v3572 = vunpack.c.h.b16 %v1055
      %v3573 = vunpack.c.l.b16 %v1056
      %v3574 = vunpack.c.h.b16 %v1056
      %v3575 = vunpack.c.l.b16 %v1057
      %v3576 = vunpack.c.h.b16 %v1057
      %v3577 = vunpack.c.l.b16 %v1058
      %v3578 = vunpack.c.h.b16 %v1058
      %v3579 = vunpack.c.l.b16 %v1059
      %v3580 = vunpack.c.h.b16 %v1059
      %v3581 = vunpack.c.l.b16 %v1060
      %v3582 = vunpack.c.h.b16 %v1060
      %v3583 = vunpack.c.l.b16 %v1061
      %v3584 = vunpack.c.h.b16 %v1061
      %v3585 = vunpack.c.l.b16 %v1062
      %v3586 = vunpack.c.h.b16 %v1062
      %v3587 = vunpack.c.l.b16 %v1063
      %v3588 = vunpack.c.h.b16 %v1063
      %v3589 = vunpack.c.l.b16 %v1064
      %v3590 = vunpack.c.h.b16 %v1064
      %v3591 = vunpack.c.l.b16 %v1065
      %v3592 = vunpack.c.h.b16 %v1065
      %v3593 = vunpack.c.l.b16 %v1066
      %v3594 = vunpack.c.h.b16 %v1066
      %v3595 = vunpack.c.l.b16 %v1067
      %v3596 = vunpack.c.h.b16 %v1067
      %v3597 = vunpack.c.l.b16 %v1068
      %v3598 = vunpack.c.h.b16 %v1068
      %v3599 = vunpack.c.l.b16 %v1069
      %v3600 = vunpack.c.h.b16 %v1069
      %v3601 = vunpack.c.l.b16 %v1070
      %v3602 = vunpack.c.h.b16 %v1070
      %v3603 = vunpack.c.l.b16 %v1071
      %v3604 = vunpack.c.h.b16 %v1071
      %v3605 = vunpack.c.l.b16 %v1072
      %v3606 = vunpack.c.h.b16 %v1072
      %v3607 = vunpack.c.l.b16 %v1073
      %v3608 = vunpack.c.h.b16 %v1073
      %v3609 = vunpack.c.l.b16 %v1074
      %v3610 = vunpack.c.h.b16 %v1074
      %v3611 = vunpack.c.l.b16 %v1075
      %v3612 = vunpack.c.h.b16 %v1075
      %v3613 = vunpack.c.l.b16 %v1076
      %v3614 = vunpack.c.h.b16 %v1076
      %v3615 = vunpack.c.l.b16 %v1077
      %v3616 = vunpack.c.h.b16 %v1077
      %v3617 = vunpack.c.l.b16 %v1078
      %v3618 = vunpack.c.h.b16 %v1078
      %v3619 = vunpack.c.l.b16 %v1079
      %v3620 = vunpack.c.h.b16 %v1079
      %v3621 = vunpack.c.l.b16 %v1080
      %v3622 = vunpack.c.h.b16 %v1080
      %v3623 = vunpack.c.l.b16 %v1081
      %v3624 = vunpack.c.h.b16 %v1081
      %v3625 = vunpack.c.l.b16 %v1082
      %v3626 = vunpack.c.h.b16 %v1082
      %v3627 = vunpack.c.l.b16 %v1083
      %v3628 = vunpack.c.h.b16 %v1083
      %v3629 = vunpack.c.l.b16 %v1084
      %v3630 = vunpack.c.h.b16 %v1084
      %v3631 = vunpack.c.l.b16 %v1085
      %v3632 = vunpack.c.h.b16 %v1085
      %v3633 = vunpack.c.l.b16 %v1086
      %v3634 = vunpack.c.h.b16 %v1086
      %v3635 = vunpack.c.l.b16 %v1087
      %v3636 = vunpack.c.h.b16 %v1087
      %v3637 = vunpack.c.l.b16 %v1088
      %v3638 = vunpack.c.h.b16 %v1088
      %v3639 = vunpack.c.l.b16 %v1089
      %v3640 = vunpack.c.h.b16 %v1089
      %v3641 = vunpack.c.l.b16 %v1090
      %v3642 = vunpack.c.h.b16 %v1090
      %v3643 = vunpack.c.l.b16 %v1091
      %v3644 = vunpack.c.h.b16 %v1091
      %v3645 = vunpack.c.l.b16 %v1092
      %v3646 = vunpack.c.h.b16 %v1092
      %v3647 = vunpack.c.l.b16 %v1093
      %v3648 = vunpack.c.h.b16 %v1093
      %v3649 = vunpack.c.l.b16 %v1094
      %v3650 = vunpack.c.h.b16 %v1094
      %v3651 = vunpack.c.l.b16 %v1095
      %v3652 = vunpack.c.h.b16 %v1095
      %v3653 = vunpack.c.l.b16 %v1096
      %v3654 = vunpack.c.h.b16 %v1096
      %v3655 = vunpack.c.l.b16 %v1097
      %v3656 = vunpack.c.h.b16 %v1097
      %v3657 = vunpack.c.l.b16 %v1098
      %v3658 = vunpack.c.h.b16 %v1098
      %v3659 = vunpack.c.l.b16 %v1099
      %v3660 = vunpack.c.h.b16 %v1099
      %v3661 = vunpack.c.l.b16 %v1100
      %v3662 = vunpack.c.h.b16 %v1100
      %v3663 = vunpack.c.l.b16 %v1101
      %v3664 = vunpack.c.h.b16 %v1101
      %v3665 = vpack.c.b16 %v2101, %v2097
      %v3666 = vpack.c.b16 %v2102, %v2098
      %v3667 = vpack.c.b16 %v2103, %v2099
      %v3668 = vpack.c.b16 %v2104, %v2100
      %v3669 = vpack.c.b16 %v2109, %v2105
      %v3670 = vpack.c.b16 %v2110, %v2106
      %v3671 = vpack.c.b16 %v2111, %v2107
      %v3672 = vpack.c.b16 %v2112, %v2108
      %v3673 = vpack.c.b16 %v2117, %v2113
      %v3674 = vpack.c.b16 %v2118, %v2114
      %v3675 = vpack.c.b16 %v2119, %v2115
      %v3676 = vpack.c.b16 %v2120, %v2116
      %v3677 = vpack.c.b16 %v2125, %v2121
      %v3678 = vpack.c.b16 %v2126, %v2122
      %v3679 = vpack.c.b16 %v2127, %v2123
      %v3680 = vpack.c.b16 %v2128, %v2124
      %v3681 = vpack.c.b16 %v2133, %v2129
      %v3682 = vpack.c.b16 %v2134, %v2130
      %v3683 = vpack.c.b16 %v2135, %v2131
      %v3684 = vpack.c.b16 %v2136, %v2132
      %v3685 = vpack.c.b16 %v2141, %v2137
      %v3686 = vpack.c.b16 %v2142, %v2138
      %v3687 = vpack.c.b16 %v2143, %v2139
      %v3688 = vpack.c.b16 %v2144, %v2140
      %v3689 = vpack.c.b16 %v2149, %v2145
      %v3690 = vpack.c.b16 %v2150, %v2146
      %v3691 = vpack.c.b16 %v2151, %v2147
      %v3692 = vpack.c.b16 %v2152, %v2148
      %v3693 = vpack.c.b16 %v2157, %v2153
      %v3694 = vpack.c.b16 %v2158, %v2154
      %v3695 = vpack.c.b16 %v2159, %v2155
      %v3696 = vpack.c.b16 %v2160, %v2156
      %v3697 = vpack.c.b16 %v2165, %v2161
      %v3698 = vpack.c.b16 %v2166, %v2162
      %v3699 = vpack.c.b16 %v2167, %v2163
      %v3700 = vpack.c.b16 %v2168, %v2164
      %v3701 = vpack.c.b16 %v2173, %v2169
      %v3702 = vpack.c.b16 %v2174, %v2170
      %v3703 = vpack.c.b16 %v2175, %v2171
      %v3704 = vpack.c.b16 %v2176, %v2172
      %v3705 = vpack.c.b16 %v2181, %v2177
      %v3706 = vpack.c.b16 %v2182, %v2178
      %v3707 = vpack.c.b16 %v2183, %v2179
      %v3708 = vpack.c.b16 %v2184, %v2180
      %v3709 = vpack.c.b16 %v2189, %v2185
      %v3710 = vpack.c.b16 %v2190, %v2186
      %v3711 = vpack.c.b16 %v2191, %v2187
      %v3712 = vpack.c.b16 %v2192, %v2188
      %v3713 = vpack.c.b16 %v2197, %v2193
      %v3714 = vpack.c.b16 %v2198, %v2194
      %v3715 = vpack.c.b16 %v2199, %v2195
      %v3716 = vpack.c.b16 %v2200, %v2196
      %v3717 = vpack.c.b16 %v2205, %v2201
      %v3718 = vpack.c.b16 %v2206, %v2202
      %v3719 = vpack.c.b16 %v2207, %v2203
      %v3720 = vpack.c.b16 %v2208, %v2204
      %v3721 = vpack.c.b16 %v2213, %v2209
      %v3722 = vpack.c.b16 %v2214, %v2210
      %v3723 = vpack.c.b16 %v2215, %v2211
      %v3724 = vpack.c.b16 %v2216, %v2212
      %v3725 = vpack.c.b16 %v2221, %v2217
      %v3726 = vpack.c.b16 %v2222, %v2218
      %v3727 = vpack.c.b16 %v2223, %v2219
      %v3728 = vpack.c.b16 %v2224, %v2220
      %v3729 = vpack.c.b16 %v2229, %v2225
      %v3730 = vpack.c.b16 %v2230, %v2226
      %v3731 = vpack.c.b16 %v2231, %v2227
      %v3732 = vpack.c.b16 %v2232, %v2228
      %v3733 = vpack.c.b16 %v2237, %v2233
      %v3734 = vpack.c.b16 %v2238, %v2234
      %v3735 = vpack.c.b16 %v2239, %v2235
      %v3736 = vpack.c.b16 %v2240, %v2236
      %v3737 = vpack.c.b16 %v2245, %v2241
      %v3738 = vpack.c.b16 %v2246, %v2242
      %v3739 = vpack.c.b16 %v2247, %v2243
      %v3740 = vpack.c.b16 %v2248, %v2244
      %v3741 = vpack.c.b16 %v2253, %v2249
      %v3742 = vpack.c.b16 %v2254, %v2250
      %v3743 = vpack.c.b16 %v2255, %v2251
      %v3744 = vpack.c.b16 %v2256, %v2252
      %v3745 = vpack.c.b16 %v2261, %v2257
      %v3746 = vpack.c.b16 %v2262, %v2258
      %v3747 = vpack.c.b16 %v2263, %v2259
      %v3748 = vpack.c.b16 %v2264, %v2260
      %v3749 = vpack.c.b16 %v2269, %v2265
      %v3750 = vpack.c.b16 %v2270, %v2266
      %v3751 = vpack.c.b16 %v2271, %v2267
      %v3752 = vpack.c.b16 %v2272, %v2268
      %v3753 = vpack.c.b16 %v2277, %v2273
      %v3754 = vpack.c.b16 %v2278, %v2274
      %v3755 = vpack.c.b16 %v2279, %v2275
      %v3756 = vpack.c.b16 %v2280, %v2276
      %v3757 = vpack.c.b16 %v2285, %v2281
      %v3758 = vpack.c.b16 %v2286, %v2282
      %v3759 = vpack.c.b16 %v2287, %v2283
      %v3760 = vpack.c.b16 %v2288, %v2284
      %v3761 = vpack.c.b16 %v2293, %v2289
      %v3762 = vpack.c.b16 %v2294, %v2290
      %v3763 = vpack.c.b16 %v2295, %v2291
      %v3764 = vpack.c.b16 %v2296, %v2292
      %v3765 = vpack.c.b16 %v2301, %v2297
      %v3766 = vpack.c.b16 %v2302, %v2298
      %v3767 = vpack.c.b16 %v2303, %v2299
      %v3768 = vpack.c.b16 %v2304, %v2300
      %v3769 = vpack.c.b16 %v2309, %v2305
      %v3770 = vpack.c.b16 %v2310, %v2306
      %v3771 = vpack.c.b16 %v2311, %v2307
      %v3772 = vpack.c.b16 %v2312, %v2308
      %v3773 = vpack.c.b16 %v2317, %v2313
      %v3774 = vpack.c.b16 %v2318, %v2314
      %v3775 = vpack.c.b16 %v2319, %v2315
      %v3776 = vpack.c.b16 %v2320, %v2316
      %v3777 = vpack.c.b16 %v2325, %v2321
      %v3778 = vpack.c.b16 %v2326, %v2322
      %v3779 = vpack.c.b16 %v2327, %v2323
      %v3780 = vpack.c.b16 %v2328, %v2324
      %v3781 = vpack.c.b16 %v2333, %v2329
      %v3782 = vpack.c.b16 %v2334, %v2330
      %v3783 = vpack.c.b16 %v2335, %v2331
      %v3784 = vpack.c.b16 %v2336, %v2332
      %v3785 = vpack.c.b16 %v2341, %v2337
      %v3786 = vpack.c.b16 %v2342, %v2338
      %v3787 = vpack.c.b16 %v2343, %v2339
      %v3788 = vpack.c.b16 %v2344, %v2340
      %v3789 = vpack.c.b16 %v2349, %v2345
      %v3790 = vpack.c.b16 %v2350, %v2346
      %v3791 = vpack.c.b16 %v2351, %v2347
      %v3792 = vpack.c.b16 %v2352, %v2348
      %v3793 = vpack.c.b16 %v2357, %v2353
      %v3794 = vpack.c.b16 %v2358, %v2354
      %v3795 = vpack.c.b16 %v2359, %v2355
      %v3796 = vpack.c.b16 %v2360, %v2356
      %v3797 = vpack.c.b16 %v2365, %v2361
      %v3798 = vpack.c.b16 %v2366, %v2362
      %v3799 = vpack.c.b16 %v2367, %v2363
      %v3800 = vpack.c.b16 %v2368, %v2364
      %v3801 = vpack.c.b16 %v2373, %v2369
      %v3802 = vpack.c.b16 %v2374, %v2370
      %v3803 = vpack.c.b16 %v2375, %v2371
      %v3804 = vpack.c.b16 %v2376, %v2372
      %v3805 = vpack.c.b16 %v2381, %v2377
      %v3806 = vpack.c.b16 %v2382, %v2378
      %v3807 = vpack.c.b16 %v2383, %v2379
      %v3808 = vpack.c.b16 %v2384, %v2380
      %v3809 = vpack.c.b16 %v2389, %v2385
      %v3810 = vpack.c.b16 %v2390, %v2386
      %v3811 = vpack.c.b16 %v2391, %v2387
      %v3812 = vpack.c.b16 %v2392, %v2388
      %v3813 = vpack.c.b16 %v2397, %v2393
      %v3814 = vpack.c.b16 %v2398, %v2394
      %v3815 = vpack.c.b16 %v2399, %v2395
      %v3816 = vpack.c.b16 %v2400, %v2396
      %v3817 = vpack.c.b16 %v2405, %v2401
      %v3818 = vpack.c.b16 %v2406, %v2402
      %v3819 = vpack.c.b16 %v2407, %v2403
      %v3820 = vpack.c.b16 %v2408, %v2404
      %v3821 = vpack.c.b16 %v2413, %v2409
      %v3822 = vpack.c.b16 %v2414, %v2410
      %v3823 = vpack.c.b16 %v2415, %v2411
      %v3824 = vpack.c.b16 %v2416, %v2412
      %v3825 = vpack.c.b16 %v2421, %v2417
      %v3826 = vpack.c.b16 %v2422, %v2418
      %v3827 = vpack.c.b16 %v2423, %v2419
      %v3828 = vpack.c.b16 %v2424, %v2420
      %v3829 = vpack.c.b16 %v2429, %v2425
      %v3830 = vpack.c.b16 %v2430, %v2426
      %v3831 = vpack.c.b16 %v2431, %v2427
      %v3832 = vpack.c.b16 %v2432, %v2428
      %v3833 = vpack.c.b16 %v2437, %v2433
      %v3834 = vpack.c.b16 %v2438, %v2434
      %v3835 = vpack.c.b16 %v2439, %v2435
      %v3836 = vpack.c.b16 %v2440, %v2436
      %v3837 = vpack.c.b16 %v2445, %v2441
      %v3838 = vpack.c.b16 %v2446, %v2442
      %v3839 = vpack.c.b16 %v2447, %v2443
      %v3840 = vpack.c.b16 %v2448, %v2444
      %v3841 = vpack.c.b16 %v2453, %v2449
      %v3842 = vpack.c.b16 %v2454, %v2450
      %v3843 = vpack.c.b16 %v2455, %v2451
      %v3844 = vpack.c.b16 %v2456, %v2452
      %v3845 = vpack.c.b16 %v2461, %v2457
      %v3846 = vpack.c.b16 %v2462, %v2458
      %v3847 = vpack.c.b16 %v2463, %v2459
      %v3848 = vpack.c.b16 %v2464, %v2460
      %v3849 = vpack.c.b16 %v2469, %v2465
      %v3850 = vpack.c.b16 %v2470, %v2466
      %v3851 = vpack.c.b16 %v2471, %v2467
      %v3852 = vpack.c.b16 %v2472, %v2468
      %v3853 = vpack.c.b16 %v2477, %v2473
      %v3854 = vpack.c.b16 %v2478, %v2474
      %v3855 = vpack.c.b16 %v2479, %v2475
      %v3856 = vpack.c.b16 %v2480, %v2476
      %v3857 = vpack.c.b16 %v2485, %v2481
      %v3858 = vpack.c.b16 %v2486, %v2482
      %v3859 = vpack.c.b16 %v2487, %v2483
      %v3860 = vpack.c.b16 %v2488, %v2484
      %v3861 = vpack.c.b16 %v2493, %v2489
      %v3862 = vpack.c.b16 %v2494, %v2490
      %v3863 = vpack.c.b16 %v2495, %v2491
      %v3864 = vpack.c.b16 %v2496, %v2492
      %v3865 = vpack.c.b16 %v2501, %v2497
      %v3866 = vpack.c.b16 %v2502, %v2498
      %v3867 = vpack.c.b16 %v2503, %v2499
      %v3868 = vpack.c.b16 %v2504, %v2500
      %v3869 = vpack.c.b16 %v2509, %v2505
      %v3870 = vpack.c.b16 %v2510, %v2506
      %v3871 = vpack.c.b16 %v2511, %v2507
      %v3872 = vpack.c.b16 %v2512, %v2508
      %v3873 = vpack.c.b16 %v2517, %v2513
      %v3874 = vpack.c.b16 %v2518, %v2514
      %v3875 = vpack.c.b16 %v2519, %v2515
      %v3876 = vpack.c.b16 %v2520, %v2516
      %v3877 = vpack.c.b16 %v2525, %v2521
      %v3878 = vpack.c.b16 %v2526, %v2522
      %v3879 = vpack.c.b16 %v2527, %v2523
      %v3880 = vpack.c.b16 %v2528, %v2524
      %v3881 = vpack.c.b16 %v2533, %v2529
      %v3882 = vpack.c.b16 %v2534, %v2530
      %v3883 = vpack.c.b16 %v2535, %v2531
      %v3884 = vpack.c.b16 %v2536, %v2532
      %v3885 = vpack.c.b16 %v2541, %v2537
      %v3886 = vpack.c.b16 %v2542, %v2538
      %v3887 = vpack.c.b16 %v2543, %v2539
      %v3888 = vpack.c.b16 %v2544, %v2540
      %v3889 = vpack.c.b16 %v2549, %v2545
      %v3890 = vpack.c.b16 %v2550, %v2546
      %v3891 = vpack.c.b16 %v2551, %v2547
      %v3892 = vpack.c.b16 %v2552, %v2548
      %v3893 = vpack.c.b16 %v2557, %v2553
      %v3894 = vpack.c.b16 %v2558, %v2554
      %v3895 = vpack.c.b16 %v2559, %v2555
      %v3896 = vpack.c.b16 %v2560, %v2556
      %v3897 = vpack.c.b16 %v2565, %v2561
      %v3898 = vpack.c.b16 %v2566, %v2562
      %v3899 = vpack.c.b16 %v2567, %v2563
      %v3900 = vpack.c.b16 %v2568, %v2564
      %v3901 = vpack.c.b16 %v2573, %v2569
      %v3902 = vpack.c.b16 %v2574, %v2570
      %v3903 = vpack.c.b16 %v2575, %v2571
      %v3904 = vpack.c.b16 %v2576, %v2572
      %v3905 = vpack.c.b16 %v2581, %v2577
      %v3906 = vpack.c.b16 %v2582, %v2578
      %v3907 = vpack.c.b16 %v2583, %v2579
      %v3908 = vpack.c.b16 %v2584, %v2580
      %v3909 = vpack.c.b16 %v2589, %v2585
      %v3910 = vpack.c.b16 %v2590, %v2586
      %v3911 = vpack.c.b16 %v2591, %v2587
      %v3912 = vpack.c.b16 %v2592, %v2588
      %v3913 = vpack.c.b16 %v2597, %v2593
      %v3914 = vpack.c.b16 %v2598, %v2594
      %v3915 = vpack.c.b16 %v2599, %v2595
      %v3916 = vpack.c.b16 %v2600, %v2596
      %v3917 = vpack.c.b16 %v2605, %v2601
      %v3918 = vpack.c.b16 %v2606, %v2602
      %v3919 = vpack.c.b16 %v2607, %v2603
      %v3920 = vpack.c.b16 %v2608, %v2604
      %v3921 = vpack.c.b16 %v2613, %v2609
      %v3922 = vpack.c.b16 %v2614, %v2610
      %v3923 = vpack.c.b16 %v2615, %v2611
      %v3924 = vpack.c.b16 %v2616, %v2612
      %v3925 = vpack.c.b16 %v2621, %v2617
      %v3926 = vpack.c.b16 %v2622, %v2618
      %v3927 = vpack.c.b16 %v2623, %v2619
      %v3928 = vpack.c.b16 %v2624, %v2620
      %v3929 = vpack.c.b16 %v2629, %v2625
      %v3930 = vpack.c.b16 %v2630, %v2626
      %v3931 = vpack.c.b16 %v2631, %v2627
      %v3932 = vpack.c.b16 %v2632, %v2628
      %v3933 = vpack.c.b16 %v2637, %v2633
      %v3934 = vpack.c.b16 %v2638, %v2634
      %v3935 = vpack.c.b16 %v2639, %v2635
      %v3936 = vpack.c.b16 %v2640, %v2636
      %v3937 = vpack.c.b16 %v2645, %v2641
      %v3938 = vpack.c.b16 %v2646, %v2642
      %v3939 = vpack.c.b16 %v2647, %v2643
      %v3940 = vpack.c.b16 %v2648, %v2644
      %v3941 = vpack.c.b16 %v2653, %v2649
      %v3942 = vpack.c.b16 %v2654, %v2650
      %v3943 = vpack.c.b16 %v2655, %v2651
      %v3944 = vpack.c.b16 %v2656, %v2652
      %v3945 = vpack.c.b16 %v2661, %v2657
      %v3946 = vpack.c.b16 %v2662, %v2658
      %v3947 = vpack.c.b16 %v2663, %v2659
      %v3948 = vpack.c.b16 %v2664, %v2660
      %v3949 = vpack.c.b16 %v2669, %v2665
      %v3950 = vpack.c.b16 %v2670, %v2666
      %v3951 = vpack.c.b16 %v2671, %v2667
      %v3952 = vpack.c.b16 %v2672, %v2668
      %v3953 = vpack.c.b16 %v2677, %v2673
      %v3954 = vpack.c.b16 %v2678, %v2674
      %v3955 = vpack.c.b16 %v2679, %v2675
      %v3956 = vpack.c.b16 %v2680, %v2676
      %v3957 = vpack.c.b16 %v2685, %v2681
      %v3958 = vpack.c.b16 %v2686, %v2682
      %v3959 = vpack.c.b16 %v2687, %v2683
      %v3960 = vpack.c.b16 %v2688, %v2684
      %v3961 = vpack.c.b16 %v2693, %v2689
      %v3962 = vpack.c.b16 %v2694, %v2690
      %v3963 = vpack.c.b16 %v2695, %v2691
      %v3964 = vpack.c.b16 %v2696, %v2692
      %v3965 = vpack.c.b16 %v2701, %v2697
      %v3966 = vpack.c.b16 %v2702, %v2698
      %v3967 = vpack.c.b16 %v2703, %v2699
      %v3968 = vpack.c.b16 %v2704, %v2700
      %v3969 = vpack.c.b16 %v2709, %v2705
      %v3970 = vpack.c.b16 %v2710, %v2706
      %v3971 = vpack.c.b16 %v2711, %v2707
      %v3972 = vpack.c.b16 %v2712, %v2708
      %v3973 = vpack.c.b16 %v2717, %v2713
      %v3974 = vpack.c.b16 %v2718, %v2714
      %v3975 = vpack.c.b16 %v2719, %v2715
      %v3976 = vpack.c.b16 %v2720, %v2716
      %v3977 = vpack.c.b16 %v2725, %v2721
      %v3978 = vpack.c.b16 %v2726, %v2722
      %v3979 = vpack.c.b16 %v2727, %v2723
      %v3980 = vpack.c.b16 %v2728, %v2724
      %v3981 = vpack.c.b16 %v2733, %v2729
      %v3982 = vpack.c.b16 %v2734, %v2730
      %v3983 = vpack.c.b16 %v2735, %v2731
      %v3984 = vpack.c.b16 %v2736, %v2732
      %v3985 = vpack.c.b16 %v2741, %v2737
      %v3986 = vpack.c.b16 %v2742, %v2738
      %v3987 = vpack.c.b16 %v2743, %v2739
      %v3988 = vpack.c.b16 %v2744, %v2740
      %v3989 = vpack.c.b16 %v2749, %v2745
      %v3990 = vpack.c.b16 %v2750, %v2746
      %v3991 = vpack.c.b16 %v2751, %v2747
      %v3992 = vpack.c.b16 %v2752, %v2748
      %v3993 = vpack.c.b16 %v2757, %v2753
      %v3994 = vpack.c.b16 %v2758, %v2754
      %v3995 = vpack.c.b16 %v2759, %v2755
      %v3996 = vpack.c.b16 %v2760, %v2756
      %v3997 = vpack.c.b16 %v2765, %v2761
      %v3998 = vpack.c.b16 %v2766, %v2762
      %v3999 = vpack.c.b16 %v2767, %v2763
      %v4000 = vpack.c.b16 %v2768, %v2764
      %v4001 = vpack.c.b16 %v2773, %v2769
      %v4002 = vpack.c.b16 %v2774, %v2770
      %v4003 = vpack.c.b16 %v2775, %v2771
      %v4004 = vpack.c.b16 %v2776, %v2772
      %v4005 = vpack.c.b16 %v2781, %v2777
      %v4006 = vpack.c.b16 %v2782, %v2778
      %v4007 = vpack.c.b16 %v2783, %v2779
      %v4008 = vpack.c.b16 %v2784, %v2780
      %v4009 = vpack.c.b16 %v2789, %v2785
      %v4010 = vpack.c.b16 %v2790, %v2786
      %v4011 = vpack.c.b16 %v2791, %v2787
      %v4012 = vpack.c.b16 %v2792, %v2788
      %v4013 = vpack.c.b16 %v2797, %v2793
      %v4014 = vpack.c.b16 %v2798, %v2794
      %v4015 = vpack.c.b16 %v2799, %v2795
      %v4016 = vpack.c.b16 %v2800, %v2796
      %v4017 = vpack.c.b16 %v2805, %v2801
      %v4018 = vpack.c.b16 %v2806, %v2802
      %v4019 = vpack.c.b16 %v2807, %v2803
      %v4020 = vpack.c.b16 %v2808, %v2804
      %v4021 = vpack.c.b16 %v2813, %v2809
      %v4022 = vpack.c.b16 %v2814, %v2810
      %v4023 = vpack.c.b16 %v2815, %v2811
      %v4024 = vpack.c.b16 %v2816, %v2812
      %v4025 = vpack.c.b16 %v2821, %v2817
      %v4026 = vpack.c.b16 %v2822, %v2818
      %v4027 = vpack.c.b16 %v2823, %v2819
      %v4028 = vpack.c.b16 %v2824, %v2820
      %v4029 = vpack.c.b16 %v2829, %v2825
      %v4030 = vpack.c.b16 %v2830, %v2826
      %v4031 = vpack.c.b16 %v2831, %v2827
      %v4032 = vpack.c.b16 %v2832, %v2828
      %v4033 = vpack.c.b16 %v2837, %v2833
      %v4034 = vpack.c.b16 %v2838, %v2834
      %v4035 = vpack.c.b16 %v2839, %v2835
      %v4036 = vpack.c.b16 %v2840, %v2836
      %v4037 = vpack.c.b16 %v2845, %v2841
      %v4038 = vpack.c.b16 %v2846, %v2842
      %v4039 = vpack.c.b16 %v2847, %v2843
      %v4040 = vpack.c.b16 %v2848, %v2844
      %v4041 = vpack.c.b16 %v2853, %v2849
      %v4042 = vpack.c.b16 %v2854, %v2850
      %v4043 = vpack.c.b16 %v2855, %v2851
      %v4044 = vpack.c.b16 %v2856, %v2852
      %v4045 = vpack.c.b16 %v2861, %v2857
      %v4046 = vpack.c.b16 %v2862, %v2858
      %v4047 = vpack.c.b16 %v2863, %v2859
      %v4048 = vpack.c.b16 %v2864, %v2860
      %v4049 = vpack.c.b16 %v2869, %v2865
      %v4050 = vpack.c.b16 %v2870, %v2866
      %v4051 = vpack.c.b16 %v2871, %v2867
      %v4052 = vpack.c.b16 %v2872, %v2868
      %v4053 = vpack.c.b16 %v2877, %v2873
      %v4054 = vpack.c.b16 %v2878, %v2874
      %v4055 = vpack.c.b16 %v2879, %v2875
      %v4056 = vpack.c.b16 %v2880, %v2876
      %v4057 = vpack.c.b16 %v2885, %v2881
      %v4058 = vpack.c.b16 %v2886, %v2882
      %v4059 = vpack.c.b16 %v2887, %v2883
      %v4060 = vpack.c.b16 %v2888, %v2884
      %v4061 = vpack.c.b16 %v2893, %v2889
      %v4062 = vpack.c.b16 %v2894, %v2890
      %v4063 = vpack.c.b16 %v2895, %v2891
      %v4064 = vpack.c.b16 %v2896, %v2892
      %v4065 = vpack.c.b16 %v2901, %v2897
      %v4066 = vpack.c.b16 %v2902, %v2898
      %v4067 = vpack.c.b16 %v2903, %v2899
      %v4068 = vpack.c.b16 %v2904, %v2900
      %v4069 = vpack.c.b16 %v2909, %v2905
      %v4070 = vpack.c.b16 %v2910, %v2906
      %v4071 = vpack.c.b16 %v2911, %v2907
      %v4072 = vpack.c.b16 %v2912, %v2908
      %v4073 = vpack.c.b16 %v2917, %v2913
      %v4074 = vpack.c.b16 %v2918, %v2914
      %v4075 = vpack.c.b16 %v2919, %v2915
      %v4076 = vpack.c.b16 %v2920, %v2916
      %v4077 = vpack.c.b16 %v2925, %v2921
      %v4078 = vpack.c.b16 %v2926, %v2922
      %v4079 = vpack.c.b16 %v2927, %v2923
      %v4080 = vpack.c.b16 %v2928, %v2924
      %v4081 = vpack.c.b16 %v2933, %v2929
      %v4082 = vpack.c.b16 %v2934, %v2930
      %v4083 = vpack.c.b16 %v2935, %v2931
      %v4084 = vpack.c.b16 %v2936, %v2932
      %v4085 = vpack.c.b16 %v2941, %v2937
      %v4086 = vpack.c.b16 %v2942, %v2938
      %v4087 = vpack.c.b16 %v2943, %v2939
      %v4088 = vpack.c.b16 %v2944, %v2940
      %v4089 = vpack.c.b16 %v2949, %v2945
      %v4090 = vpack.c.b16 %v2950, %v2946
      %v4091 = vpack.c.b16 %v2951, %v2947
      %v4092 = vpack.c.b16 %v2952, %v2948
      %v4093 = vpack.c.b16 %v2957, %v2953
      %v4094 = vpack.c.b16 %v2958, %v2954
      %v4095 = vpack.c.b16 %v2959, %v2955
      %v4096 = vpack.c.b16 %v2960, %v2956
      %v4097 = vpack.c.b16 %v2965, %v2961
      %v4098 = vpack.c.b16 %v2966, %v2962
      %v4099 = vpack.c.b16 %v2967, %v2963
      %v4100 = vpack.c.b16 %v2968, %v2964
      %v4101 = vpack.c.b16 %v2973, %v2969
      %v4102 = vpack.c.b16 %v2974, %v2970
      %v4103 = vpack.c.b16 %v2975, %v2971
      %v4104 = vpack.c.b16 %v2976, %v2972
      %v4105 = vpack.c.b16 %v2981, %v2977
      %v4106 = vpack.c.b16 %v2982, %v2978
      %v4107 = vpack.c.b16 %v2983, %v2979
      %v4108 = vpack.c.b16 %v2984, %v2980
      %v4109 = vpack.c.b16 %v2989, %v2985
      %v4110 = vpack.c.b16 %v2990, %v2986
      %v4111 = vpack.c.b16 %v2991, %v2987
      %v4112 = vpack.c.b16 %v2992, %v2988
      %v4113 = vpack.c.b16 %v2997, %v2993
      %v4114 = vpack.c.b16 %v2998, %v2994
      %v4115 = vpack.c.b16 %v2999, %v2995
      %v4116 = vpack.c.b16 %v3000, %v2996
      %v4117 = vpack.c.b16 %v3005, %v3001
      %v4118 = vpack.c.b16 %v3006, %v3002
      %v4119 = vpack.c.b16 %v3007, %v3003
      %v4120 = vpack.c.b16 %v3008, %v3004
      %v4121 = vpack.c.b16 %v3013, %v3009
      %v4122 = vpack.c.b16 %v3014, %v3010
      %v4123 = vpack.c.b16 %v3015, %v3011
      %v4124 = vpack.c.b16 %v3016, %v3012
      %v4125 = vpack.c.b16 %v3021, %v3017
      %v4126 = vpack.c.b16 %v3022, %v3018
      %v4127 = vpack.c.b16 %v3023, %v3019
      %v4128 = vpack.c.b16 %v3024, %v3020
      %v4129 = vpack.c.b16 %v3029, %v3025
      %v4130 = vpack.c.b16 %v3030, %v3026
      %v4131 = vpack.c.b16 %v3031, %v3027
      %v4132 = vpack.c.b16 %v3032, %v3028
      %v4133 = vpack.c.b16 %v3037, %v3033
      %v4134 = vpack.c.b16 %v3038, %v3034
      %v4135 = vpack.c.b16 %v3039, %v3035
      %v4136 = vpack.c.b16 %v3040, %v3036
      %v4137 = vpack.c.b16 %v3045, %v3041
      %v4138 = vpack.c.b16 %v3046, %v3042
      %v4139 = vpack.c.b16 %v3047, %v3043
      %v4140 = vpack.c.b16 %v3048, %v3044
      %v4141 = vpack.c.b16 %v3053, %v3049
      %v4142 = vpack.c.b16 %v3054, %v3050
      %v4143 = vpack.c.b16 %v3055, %v3051
      %v4144 = vpack.c.b16 %v3056, %v3052
      %v4145 = vpack.c.b16 %v3061, %v3057
      %v4146 = vpack.c.b16 %v3062, %v3058
      %v4147 = vpack.c.b16 %v3063, %v3059
      %v4148 = vpack.c.b16 %v3064, %v3060
      %v4149 = vpack.c.b16 %v3069, %v3065
      %v4150 = vpack.c.b16 %v3070, %v3066
      %v4151 = vpack.c.b16 %v3071, %v3067
      %v4152 = vpack.c.b16 %v3072, %v3068
      %v4153 = vpack.c.b16 %v3077, %v3073
      %v4154 = vpack.c.b16 %v3078, %v3074
      %v4155 = vpack.c.b16 %v3079, %v3075
      %v4156 = vpack.c.b16 %v3080, %v3076
      %v4157 = vpack.c.b16 %v3085, %v3081
      %v4158 = vpack.c.b16 %v3086, %v3082
      %v4159 = vpack.c.b16 %v3087, %v3083
      %v4160 = vpack.c.b16 %v3088, %v3084
      %v4161 = vpack.c.b16 %v3093, %v3089
      %v4162 = vpack.c.b16 %v3094, %v3090
      %v4163 = vpack.c.b16 %v3095, %v3091
      %v4164 = vpack.c.b16 %v3096, %v3092
      %v4165 = vpack.c.b16 %v3101, %v3097
      %v4166 = vpack.c.b16 %v3102, %v3098
      %v4167 = vpack.c.b16 %v3103, %v3099
      %v4168 = vpack.c.b16 %v3104, %v3100
      %v4169 = vpack.c.b16 %v3109, %v3105
      %v4170 = vpack.c.b16 %v3110, %v3106
      %v4171 = vpack.c.b16 %v3111, %v3107
      %v4172 = vpack.c.b16 %v3112, %v3108
      %v4173 = vpack.c.b16 %v3117, %v3113
      %v4174 = vpack.c.b16 %v3118, %v3114
      %v4175 = vpack.c.b16 %v3119, %v3115
      %v4176 = vpack.c.b16 %v3120, %v3116
      %v4177 = vpack.c.b16 %v3125, %v3121
      %v4178 = vpack.c.b16 %v3126, %v3122
      %v4179 = vpack.c.b16 %v3127, %v3123
      %v4180 = vpack.c.b16 %v3128, %v3124
      %v4181 = vpack.c.b16 %v3133, %v3129
      %v4182 = vpack.c.b16 %v3134, %v3130
      %v4183 = vpack.c.b16 %v3135, %v3131
      %v4184 = vpack.c.b16 %v3136, %v3132
      %v4185 = vpack.c.b16 %v3141, %v3137
      %v4186 = vpack.c.b16 %v3142, %v3138
      %v4187 = vpack.c.b16 %v3143, %v3139
      %v4188 = vpack.c.b16 %v3144, %v3140
      %v4189 = vpack.c.b16 %v3149, %v3145
      %v4190 = vpack.c.b16 %v3150, %v3146
      %v4191 = vpack.c.b16 %v3151, %v3147
      %v4192 = vpack.c.b16 %v3152, %v3148
      %v4193 = vpack.c.b16 %v3157, %v3153
      %v4194 = vpack.c.b16 %v3158, %v3154
      %v4195 = vpack.c.b16 %v3159, %v3155
      %v4196 = vpack.c.b16 %v3160, %v3156
      %v4197 = vpack.c.b16 %v3165, %v3161
      %v4198 = vpack.c.b16 %v3166, %v3162
      %v4199 = vpack.c.b16 %v3167, %v3163
      %v4200 = vpack.c.b16 %v3168, %v3164
      %v4201 = vpack.c.b16 %v3173, %v3169
      %v4202 = vpack.c.b16 %v3174, %v3170
      %v4203 = vpack.c.b16 %v3175, %v3171
      %v4204 = vpack.c.b16 %v3176, %v3172
      %v4205 = vpack.c.b16 %v3181, %v3177
      %v4206 = vpack.c.b16 %v3182, %v3178
      %v4207 = vpack.c.b16 %v3183, %v3179
      %v4208 = vpack.c.b16 %v3184, %v3180
      %v4209 = vpack.c.b16 %v3189, %v3185
      %v4210 = vpack.c.b16 %v3190, %v3186
      %v4211 = vpack.c.b16 %v3191, %v3187
      %v4212 = vpack.c.b16 %v3192, %v3188
      %v4213 = vpack.c.b16 %v3197, %v3193
      %v4214 = vpack.c.b16 %v3198, %v3194
      %v4215 = vpack.c.b16 %v3199, %v3195
      %v4216 = vpack.c.b16 %v3200, %v3196
      %v4217 = vpack.c.b16 %v3205, %v3201
      %v4218 = vpack.c.b16 %v3206, %v3202
      %v4219 = vpack.c.b16 %v3207, %v3203
      %v4220 = vpack.c.b16 %v3208, %v3204
      %v4221 = vpack.c.b16 %v3213, %v3209
      %v4222 = vpack.c.b16 %v3214, %v3210
      %v4223 = vpack.c.b16 %v3215, %v3211
      %v4224 = vpack.c.b16 %v3216, %v3212
      %v4225 = vpack.c.b16 %v3221, %v3217
      %v4226 = vpack.c.b16 %v3222, %v3218
      %v4227 = vpack.c.b16 %v3223, %v3219
      %v4228 = vpack.c.b16 %v3224, %v3220
      %v4229 = vpack.c.b16 %v3229, %v3225
      %v4230 = vpack.c.b16 %v3230, %v3226
      %v4231 = vpack.c.b16 %v3231, %v3227
      %v4232 = vpack.c.b16 %v3232, %v3228
      %v4233 = vpack.c.b16 %v3237, %v3233
      %v4234 = vpack.c.b16 %v3238, %v3234
      %v4235 = vpack.c.b16 %v3239, %v3235
      %v4236 = vpack.c.b16 %v3240, %v3236
      %v4237 = vpack.c.b16 %v3245, %v3241
      %v4238 = vpack.c.b16 %v3246, %v3242
      %v4239 = vpack.c.b16 %v3247, %v3243
      %v4240 = vpack.c.b16 %v3248, %v3244
      %v4241 = vpack.c.b16 %v3253, %v3249
      %v4242 = vpack.c.b16 %v3254, %v3250
      %v4243 = vpack.c.b16 %v3255, %v3251
      %v4244 = vpack.c.b16 %v3256, %v3252
      %v4245 = vpack.c.b16 %v3261, %v3257
      %v4246 = vpack.c.b16 %v3262, %v3258
      %v4247 = vpack.c.b16 %v3263, %v3259
      %v4248 = vpack.c.b16 %v3264, %v3260
      %v4249 = vpack.c.b16 %v3269, %v3265
      %v4250 = vpack.c.b16 %v3270, %v3266
      %v4251 = vpack.c.b16 %v3271, %v3267
      %v4252 = vpack.c.b16 %v3272, %v3268
      %v4253 = vpack.c.b16 %v3277, %v3273
      %v4254 = vpack.c.b16 %v3278, %v3274
      %v4255 = vpack.c.b16 %v3279, %v3275
      %v4256 = vpack.c.b16 %v3280, %v3276
      %v4257 = vpack.c.b16 %v3285, %v3281
      %v4258 = vpack.c.b16 %v3286, %v3282
      %v4259 = vpack.c.b16 %v3287, %v3283
      %v4260 = vpack.c.b16 %v3288, %v3284
      %v4261 = vpack.c.b16 %v3293, %v3289
      %v4262 = vpack.c.b16 %v3294, %v3290
      %v4263 = vpack.c.b16 %v3295, %v3291
      %v4264 = vpack.c.b16 %v3296, %v3292
      %v4265 = vpack.c.b16 %v3301, %v3297
      %v4266 = vpack.c.b16 %v3302, %v3298
      %v4267 = vpack.c.b16 %v3303, %v3299
      %v4268 = vpack.c.b16 %v3304, %v3300
      %v4269 = vpack.c.b16 %v3309, %v3305
      %v4270 = vpack.c.b16 %v3310, %v3306
      %v4271 = vpack.c.b16 %v3311, %v3307
      %v4272 = vpack.c.b16 %v3312, %v3308
      %v4273 = vpack.c.b16 %v3317, %v3313
      %v4274 = vpack.c.b16 %v3318, %v3314
      %v4275 = vpack.c.b16 %v3319, %v3315
      %v4276 = vpack.c.b16 %v3320, %v3316
      %v4277 = vpack.c.b16 %v3325, %v3321
      %v4278 = vpack.c.b16 %v3326, %v3322
      %v4279 = vpack.c.b16 %v3327, %v3323
      %v4280 = vpack.c.b16 %v3328, %v3324
      %v4281 = vpack.c.b16 %v3333, %v3329
      %v4282 = vpack.c.b16 %v3334, %v3330
      %v4283 = vpack.c.b16 %v3335, %v3331
      %v4284 = vpack.c.b16 %v3336, %v3332
      %v4285 = vpack.c.b16 %v3341, %v3337
      %v4286 = vpack.c.b16 %v3342, %v3338
      %v4287 = vpack.c.b16 %v3343, %v3339
      %v4288 = vpack.c.b16 %v3344, %v3340
      %v4289 = vpack.c.b16 %v3349, %v3345
      %v4290 = vpack.c.b16 %v3350, %v3346
      %v4291 = vpack.c.b16 %v3351, %v3347
      %v4292 = vpack.c.b16 %v3352, %v3348
      %v4293 = vpack.c.b16 %v3357, %v3353
      %v4294 = vpack.c.b16 %v3358, %v3354
      %v4295 = vpack.c.b16 %v3359, %v3355
      %v4296 = vpack.c.b16 %v3360, %v3356
      %v4297 = vpack.c.b16 %v3365, %v3361
      %v4298 = vpack.c.b16 %v3366, %v3362
      %v4299 = vpack.c.b16 %v3367, %v3363
      %v4300 = vpack.c.b16 %v3368, %v3364
      %v4301 = vpack.c.b16 %v3373, %v3369
      %v4302 = vpack.c.b16 %v3374, %v3370
      %v4303 = vpack.c.b16 %v3375, %v3371
      %v4304 = vpack.c.b16 %v3376, %v3372
      %v4305 = vpack.c.b16 %v3381, %v3377
      %v4306 = vpack.c.b16 %v3382, %v3378
      %v4307 = vpack.c.b16 %v3383, %v3379
      %v4308 = vpack.c.b16 %v3384, %v3380
      %v4309 = vpack.c.b16 %v3389, %v3385
      %v4310 = vpack.c.b16 %v3390, %v3386
      %v4311 = vpack.c.b16 %v3391, %v3387
      %v4312 = vpack.c.b16 %v3392, %v3388
      %v4313 = vpack.c.b16 %v3397, %v3393
      %v4314 = vpack.c.b16 %v3398, %v3394
      %v4315 = vpack.c.b16 %v3399, %v3395
      %v4316 = vpack.c.b16 %v3400, %v3396
      %v4317 = vpack.c.b16 %v3405, %v3401
      %v4318 = vpack.c.b16 %v3406, %v3402
      %v4319 = vpack.c.b16 %v3407, %v3403
      %v4320 = vpack.c.b16 %v3408, %v3404
      %v4321 = vpack.c.b16 %v3413, %v3409
      %v4322 = vpack.c.b16 %v3414, %v3410
      %v4323 = vpack.c.b16 %v3415, %v3411
      %v4324 = vpack.c.b16 %v3416, %v3412
      %v4325 = vpack.c.b16 %v3421, %v3417
      %v4326 = vpack.c.b16 %v3422, %v3418
      %v4327 = vpack.c.b16 %v3423, %v3419
      %v4328 = vpack.c.b16 %v3424, %v3420
      %v4329 = vpack.c.b16 %v3429, %v3425
      %v4330 = vpack.c.b16 %v3430, %v3426
      %v4331 = vpack.c.b16 %v3431, %v3427
      %v4332 = vpack.c.b16 %v3432, %v3428
      %v4333 = vpack.c.b16 %v3437, %v3433
      %v4334 = vpack.c.b16 %v3438, %v3434
      %v4335 = vpack.c.b16 %v3439, %v3435
      %v4336 = vpack.c.b16 %v3440, %v3436
      %v4337 = vpack.c.b16 %v3445, %v3441
      %v4338 = vpack.c.b16 %v3446, %v3442
      %v4339 = vpack.c.b16 %v3447, %v3443
      %v4340 = vpack.c.b16 %v3448, %v3444
      %v4341 = vpack.c.b16 %v3453, %v3449
      %v4342 = vpack.c.b16 %v3454, %v3450
      %v4343 = vpack.c.b16 %v3455, %v3451
      %v4344 = vpack.c.b16 %v3456, %v3452
      %v4345 = vpack.c.b16 %v3461, %v3457
      %v4346 = vpack.c.b16 %v3462, %v3458
      %v4347 = vpack.c.b16 %v3463, %v3459
      %v4348 = vpack.c.b16 %v3464, %v3460
      %v4349 = vpack.c.b16 %v3469, %v3465
      %v4350 = vpack.c.b16 %v3470, %v3466
      %v4351 = vpack.c.b16 %v3471, %v3467
      %v4352 = vpack.c.b16 %v3472, %v3468
      %v4353 = vpack.c.b16 %v3477, %v3473
      %v4354 = vpack.c.b16 %v3478, %v3474
      %v4355 = vpack.c.b16 %v3479, %v3475
      %v4356 = vpack.c.b16 %v3480, %v3476
      %v4357 = vpack.c.b16 %v3485, %v3481
      %v4358 = vpack.c.b16 %v3486, %v3482
      %v4359 = vpack.c.b16 %v3487, %v3483
      %v4360 = vpack.c.b16 %v3488, %v3484
      %v4361 = vpack.c.b16 %v3493, %v3489
      %v4362 = vpack.c.b16 %v3494, %v3490
      %v4363 = vpack.c.b16 %v3495, %v3491
      %v4364 = vpack.c.b16 %v3496, %v3492
      %v4365 = vpack.c.b16 %v3501, %v3497
      %v4366 = vpack.c.b16 %v3502, %v3498
      %v4367 = vpack.c.b16 %v3503, %v3499
      %v4368 = vpack.c.b16 %v3504, %v3500
      %v4369 = vpack.c.b16 %v3509, %v3505
      %v4370 = vpack.c.b16 %v3510, %v3506
      %v4371 = vpack.c.b16 %v3511, %v3507
      %v4372 = vpack.c.b16 %v3512, %v3508
      %v4373 = vpack.c.b16 %v3517, %v3513
      %v4374 = vpack.c.b16 %v3518, %v3514
      %v4375 = vpack.c.b16 %v3519, %v3515
      %v4376 = vpack.c.b16 %v3520, %v3516
      %v4377 = vpack.c.b16 %v3525, %v3521
      %v4378 = vpack.c.b16 %v3526, %v3522
      %v4379 = vpack.c.b16 %v3527, %v3523
      %v4380 = vpack.c.b16 %v3528, %v3524
      %v4381 = vpack.c.b16 %v3533, %v3529
      %v4382 = vpack.c.b16 %v3534, %v3530
      %v4383 = vpack.c.b16 %v3535, %v3531
      %v4384 = vpack.c.b16 %v3536, %v3532
      %v4385 = vpack.c.b16 %v3541, %v3537
      %v4386 = vpack.c.b16 %v3542, %v3538
      %v4387 = vpack.c.b16 %v3543, %v3539
      %v4388 = vpack.c.b16 %v3544, %v3540
      %v4389 = vpack.c.b16 %v3549, %v3545
      %v4390 = vpack.c.b16 %v3550, %v3546
      %v4391 = vpack.c.b16 %v3551, %v3547
      %v4392 = vpack.c.b16 %v3552, %v3548
      %v4393 = vpack.c.b16 %v3557, %v3553
      %v4394 = vpack.c.b16 %v3558, %v3554
      %v4395 = vpack.c.b16 %v3559, %v3555
      %v4396 = vpack.c.b16 %v3560, %v3556
      %v4397 = vpack.c.b16 %v3565, %v3561
      %v4398 = vpack.c.b16 %v3566, %v3562
      %v4399 = vpack.c.b16 %v3567, %v3563
      %v4400 = vpack.c.b16 %v3568, %v3564
      %v4401 = vpack.c.b16 %v3573, %v3569
      %v4402 = vpack.c.b16 %v3574, %v3570
      %v4403 = vpack.c.b16 %v3575, %v3571
      %v4404 = vpack.c.b16 %v3576, %v3572
      %v4405 = vpack.c.b16 %v3581, %v3577
      %v4406 = vpack.c.b16 %v3582, %v3578
      %v4407 = vpack.c.b16 %v3583, %v3579
      %v4408 = vpack.c.b16 %v3584, %v3580
      %v4409 = vpack.c.b16 %v3589, %v3585
      %v4410 = vpack.c.b16 %v3590, %v3586
      %v4411 = vpack.c.b16 %v3591, %v3587
      %v4412 = vpack.c.b16 %v3592, %v3588
      %v4413 = vpack.c.b16 %v3597, %v3593
      %v4414 = vpack.c.b16 %v3598, %v3594
      %v4415 = vpack.c.b16 %v3599, %v3595
      %v4416 = vpack.c.b16 %v3600, %v3596
      %v4417 = vpack.c.b16 %v3605, %v3601
      %v4418 = vpack.c.b16 %v3606, %v3602
      %v4419 = vpack.c.b16 %v3607, %v3603
      %v4420 = vpack.c.b16 %v3608, %v3604
      %v4421 = vpack.c.b16 %v3613, %v3609
      %v4422 = vpack.c.b16 %v3614, %v3610
      %v4423 = vpack.c.b16 %v3615, %v3611
      %v4424 = vpack.c.b16 %v3616, %v3612
      %v4425 = vpack.c.b16 %v3621, %v3617
      %v4426 = vpack.c.b16 %v3622, %v3618
      %v4427 = vpack.c.b16 %v3623, %v3619
      %v4428 = vpack.c.b16 %v3624, %v3620
      %v4429 = vpack.c.b16 %v3629, %v3625
      %v4430 = vpack.c.b16 %v3630, %v3626
      %v4431 = vpack.c.b16 %v3631, %v3627
      %v4432 = vpack.c.b16 %v3632, %v3628
      %v4433 = vpack.c.b16 %v3637, %v3633
      %v4434 = vpack.c.b16 %v3638, %v3634
      %v4435 = vpack.c.b16 %v3639, %v3635
      %v4436 = vpack.c.b16 %v3640, %v3636
      %v4437 = vpack.c.b16 %v3645, %v3641
      %v4438 = vpack.c.b16 %v3646, %v3642
      %v4439 = vpack.c.b16 %v3647, %v3643
      %v4440 = vpack.c.b16 %v3648, %v3644
      %v4441 = vpack.c.b16 %v3653, %v3649
      %v4442 = vpack.c.b16 %v3654, %v3650
      %v4443 = vpack.c.b16 %v3655, %v3651
      %v4444 = vpack.c.b16 %v3656, %v3652
      %v4445 = vpack.c.b16 %v3661, %v3657
      %v4446 = vpack.c.b16 %v3662, %v3658
      %v4447 = vpack.c.b16 %v3663, %v3659
      %v4448 = vpack.c.b16 %v3664, %v3660
      %vm5233 = vcmask 523264
      %v5235 = vsel %vm5233, %v1288, 0
      %5237 = vmatprep.subr.bf16.mxu0 %v3694
      %5238 = vmatpush1.bf16.msra.mxu0 %v3693
      %5239 = vmatprep.subr.bf16.mxu0 %v3690
      %5240 = vmatpush1.bf16.msra.mxu0 %v3689
      %5241 = vmatprep.subr.bf16.mxu0 %v3686
      %5242 = vmatpush1.bf16.msra.mxu0 %v3685
      %5243 = vmatprep.subr.bf16.mxu0 %v3682
      %5244 = vmatpush1.bf16.msra.mxu0 %v3681
      %5245 = vmatprep.subr.bf16.mxu0 %v3678
      %5246 = vmatpush1.bf16.msra.mxu0 %v3677
      %5247 = vmatprep.subr.bf16.mxu0 %v3674
      %5248 = vmatpush1.bf16.msra.mxu0 %v3673
      %5249 = vmatprep.subr.bf16.mxu0 %v3670
      %5250 = vmatpush1.bf16.msra.mxu0 %v3669
      %5251 = vmatprep.subr.bf16.mxu0 %v3666
      %5252 = vmatpush1.bf16.msra.mxu0 %v3665
      %5253 = vmatprep.subr.bf16.mxu0 %v3726
      %5254 = vmatpush2.bf16.msra.mxu0 %v3725
      %5255 = vmatprep.subr.bf16.mxu0 %v3722
      %5256 = vmatpush2.bf16.msra.mxu0 %v3721
      %5257 = vmatprep.subr.bf16.mxu0 %v3718
      %5258 = vmatpush2.bf16.msra.mxu0 %v3717
      %5259 = vmatprep.subr.bf16.mxu0 %v3714
      %5260 = vmatpush2.bf16.msra.mxu0 %v3713
      %5261 = vmatprep.subr.bf16.mxu0 %v3710
      %5262 = vmatpush2.bf16.msra.mxu0 %v3709
      %5263 = vmatprep.subr.bf16.mxu0 %v3706
      %5264 = vmatpush2.bf16.msra.mxu0 %v3705
      %5265 = vmatprep.subr.bf16.mxu0 %v3702
      %5266 = vmatpush2.bf16.msra.mxu0 %v3701
      %5267 = vmatprep.subr.bf16.mxu0 %v3698
      %5268 = vmatpush2.bf16.msra.mxu0 %v3697
      %5269 = vmatprep.mubr.bf16.mxu0 %v1165
      %5270 = vmatmul.mubr.bf16.gmra.mxu0 %v1151
      %v5271 = vpop.f32.mrf.mxu0
      %v5272 = vadd.f32 %v1107, %v5271
      %v5273 = vpop.f32.mrf.mxu0
      %v5274 = vadd.f32 %v1111, %v5273
      %v5275 = vpop.f32.mrf.mxu0
      %v5276 = vpop.f32.mrf.mxu0
      %5277 = vdwg.mxu0
      %5278 = vmatprep.subr.bf16.mxu0 %v3758
      %5279 = vmatpush1.bf16.msra.mxu0 %v3757
      %5280 = vmatprep.subr.bf16.mxu0 %v3754
      %5281 = vmatpush1.bf16.msra.mxu0 %v3753
      %5282 = vmatprep.subr.bf16.mxu0 %v3750
      %5283 = vmatpush1.bf16.msra.mxu0 %v3749
      %5284 = vmatprep.subr.bf16.mxu0 %v3746
      %5285 = vmatpush1.bf16.msra.mxu0 %v3745
      %5286 = vmatprep.subr.bf16.mxu0 %v3742
      %5287 = vmatpush1.bf16.msra.mxu0 %v3741
      %5288 = vmatprep.subr.bf16.mxu0 %v3738
      %5289 = vmatpush1.bf16.msra.mxu0 %v3737
      %5290 = vmatprep.subr.bf16.mxu0 %v3734
      %5291 = vmatpush1.bf16.msra.mxu0 %v3733
      %5292 = vmatprep.subr.bf16.mxu0 %v3730
      %5293 = vmatpush1.bf16.msra.mxu0 %v3729
      %5294 = vmatprep.subr.bf16.mxu0 %v3790
      %5295 = vmatpush2.bf16.msra.mxu0 %v3789
      %5296 = vmatprep.subr.bf16.mxu0 %v3786
      %5297 = vmatpush2.bf16.msra.mxu0 %v3785
      %5298 = vmatprep.subr.bf16.mxu0 %v3782
      %5299 = vmatpush2.bf16.msra.mxu0 %v3781
      %5300 = vmatprep.subr.bf16.mxu0 %v3778
      %5301 = vmatpush2.bf16.msra.mxu0 %v3777
      %5302 = vmatprep.subr.bf16.mxu0 %v3774
      %5303 = vmatpush2.bf16.msra.mxu0 %v3773
      %5304 = vmatprep.subr.bf16.mxu0 %v3770
      %5305 = vmatpush2.bf16.msra.mxu0 %v3769
      %5306 = vmatprep.subr.bf16.mxu0 %v3766
      %5307 = vmatpush2.bf16.msra.mxu0 %v3765
      %5308 = vmatprep.subr.bf16.mxu0 %v3762
      %5309 = vmatpush2.bf16.msra.mxu0 %v3761
      %5310 = vmatprep.mubr.bf16.mxu0 %v1175
      %5311 = vmatmul.mubr.bf16.gmra.mxu0 %v1173
      %v5312 = vpop.f32.mrf.mxu0
      %v5313 = vadd.f32 %v5272, %v5312
      %v5314 = vpop.f32.mrf.mxu0
      %v5315 = vadd.f32 %v5274, %v5314
      %v5316 = vpop.f32.mrf.mxu0
      %v5317 = vpop.f32.mrf.mxu0
      %5318 = vdwg.mxu0
      %5319 = vmatprep.subr.bf16.mxu0 %v3822
      %5320 = vmatpush1.bf16.msra.mxu0 %v3821
      %5321 = vmatprep.subr.bf16.mxu0 %v3818
      %5322 = vmatpush1.bf16.msra.mxu0 %v3817
      %5323 = vmatprep.subr.bf16.mxu0 %v3814
      %5324 = vmatpush1.bf16.msra.mxu0 %v3813
      %5325 = vmatprep.subr.bf16.mxu0 %v3810
      %5326 = vmatpush1.bf16.msra.mxu0 %v3809
      %5327 = vmatprep.subr.bf16.mxu0 %v3806
      %5328 = vmatpush1.bf16.msra.mxu0 %v3805
      %5329 = vmatprep.subr.bf16.mxu0 %v3802
      %5330 = vmatpush1.bf16.msra.mxu0 %v3801
      %5331 = vmatprep.subr.bf16.mxu0 %v3798
      %5332 = vmatpush1.bf16.msra.mxu0 %v3797
      %5333 = vmatprep.subr.bf16.mxu0 %v3794
      %5334 = vmatpush1.bf16.msra.mxu0 %v3793
      %5335 = vmatprep.subr.bf16.mxu0 %v3854
      %5336 = vmatpush2.bf16.msra.mxu0 %v3853
      %5337 = vmatprep.subr.bf16.mxu0 %v3850
      %5338 = vmatpush2.bf16.msra.mxu0 %v3849
      %5339 = vmatprep.subr.bf16.mxu0 %v3846
      %5340 = vmatpush2.bf16.msra.mxu0 %v3845
      %5341 = vmatprep.subr.bf16.mxu0 %v3842
      %5342 = vmatpush2.bf16.msra.mxu0 %v3841
      %5343 = vmatprep.subr.bf16.mxu0 %v3838
      %5344 = vmatpush2.bf16.msra.mxu0 %v3837
      %5345 = vmatprep.subr.bf16.mxu0 %v3834
      %5346 = vmatpush2.bf16.msra.mxu0 %v3833
      %5347 = vmatprep.subr.bf16.mxu0 %v3830
      %5348 = vmatpush2.bf16.msra.mxu0 %v3829
      %5349 = vmatprep.subr.bf16.mxu0 %v3826
      %5350 = vmatpush2.bf16.msra.mxu0 %v3825
      %5351 = vmatprep.mubr.bf16.mxu0 %v1172
      %5352 = vmatmul.mubr.bf16.gmra.mxu0 %v1158
      %v5353 = vpop.f32.mrf.mxu0
      %v5354 = vadd.f32 %v5313, %v5353
      %v5355 = vpop.f32.mrf.mxu0
      %v5356 = vadd.f32 %v5315, %v5355
      %v5357 = vpop.f32.mrf.mxu0
      %v5358 = vpop.f32.mrf.mxu0
      %5359 = vdwg.mxu0
      %5360 = vmatprep.subr.bf16.mxu0 %v3886
      %5361 = vmatpush1.bf16.msra.mxu0 %v3885
      %5362 = vmatprep.subr.bf16.mxu0 %v3882
      %5363 = vmatpush1.bf16.msra.mxu0 %v3881
      %5364 = vmatprep.subr.bf16.mxu0 %v3878
      %5365 = vmatpush1.bf16.msra.mxu0 %v3877
      %5366 = vmatprep.subr.bf16.mxu0 %v3874
      %5367 = vmatpush1.bf16.msra.mxu0 %v3873
      %5368 = vmatprep.subr.bf16.mxu0 %v3870
      %5369 = vmatpush1.bf16.msra.mxu0 %v3869
      %5370 = vmatprep.subr.bf16.mxu0 %v3866
      %5371 = vmatpush1.bf16.msra.mxu0 %v3865
      %5372 = vmatprep.subr.bf16.mxu0 %v3862
      %5373 = vmatpush1.bf16.msra.mxu0 %v3861
      %5374 = vmatprep.subr.bf16.mxu0 %v3858
      %5375 = vmatpush1.bf16.msra.mxu0 %v3857
      %5376 = vmatprep.subr.bf16.mxu0 %v3918
      %5377 = vmatpush2.bf16.msra.mxu0 %v3917
      %5378 = vmatprep.subr.bf16.mxu0 %v3914
      %5379 = vmatpush2.bf16.msra.mxu0 %v3913
      %5380 = vmatprep.subr.bf16.mxu0 %v3910
      %5381 = vmatpush2.bf16.msra.mxu0 %v3909
      %5382 = vmatprep.subr.bf16.mxu0 %v3906
      %5383 = vmatpush2.bf16.msra.mxu0 %v3905
      %5384 = vmatprep.subr.bf16.mxu0 %v3902
      %5385 = vmatpush2.bf16.msra.mxu0 %v3901
      %5386 = vmatprep.subr.bf16.mxu0 %v3898
      %5387 = vmatpush2.bf16.msra.mxu0 %v3897
      %5388 = vmatprep.subr.bf16.mxu0 %v3894
      %5389 = vmatpush2.bf16.msra.mxu0 %v3893
      %5390 = vmatprep.subr.bf16.mxu0 %v3890
      %5391 = vmatpush2.bf16.msra.mxu0 %v3889
      %5392 = vmatprep.mubr.bf16.mxu0 %v1176
      %5393 = vmatmul.mubr.bf16.gmra.mxu0 %v1174
      %v5394 = vpop.f32.mrf.mxu0
      %v5395 = vadd.f32 %v5354, %v5394
      %v5396 = vpop.f32.mrf.mxu0
      %v5397 = vadd.f32 %v5356, %v5396
      %v5398 = vpop.f32.mrf.mxu0
      %v5399 = vpop.f32.mrf.mxu0
      %5400 = vdwg.mxu0
      %5401 = vmatprep.subr.bf16.mxu0 %v3950
      %5402 = vmatpush1.bf16.msra.mxu0 %v3949
      %5403 = vmatprep.subr.bf16.mxu0 %v3946
      %5404 = vmatpush1.bf16.msra.mxu0 %v3945
      %5405 = vmatprep.subr.bf16.mxu0 %v3942
      %5406 = vmatpush1.bf16.msra.mxu0 %v3941
      %5407 = vmatprep.subr.bf16.mxu0 %v3938
      %5408 = vmatpush1.bf16.msra.mxu0 %v3937
      %5409 = vmatprep.subr.bf16.mxu0 %v3934
      %5410 = vmatpush1.bf16.msra.mxu0 %v3933
      %5411 = vmatprep.subr.bf16.mxu0 %v3930
      %5412 = vmatpush1.bf16.msra.mxu0 %v3929
      %5413 = vmatprep.subr.bf16.mxu0 %v3926
      %5414 = vmatpush1.bf16.msra.mxu0 %v3925
      %5415 = vmatprep.subr.bf16.mxu0 %v3922
      %5416 = vmatpush1.bf16.msra.mxu0 %v3921
      %5417 = vmatprep.subr.bf16.mxu0 %v3982
      %5418 = vmatpush2.bf16.msra.mxu0 %v3981
      %5419 = vmatprep.subr.bf16.mxu0 %v3978
      %5420 = vmatpush2.bf16.msra.mxu0 %v3977
      %5421 = vmatprep.subr.bf16.mxu0 %v3974
      %5422 = vmatpush2.bf16.msra.mxu0 %v3973
      %5423 = vmatprep.subr.bf16.mxu0 %v3970
      %5424 = vmatpush2.bf16.msra.mxu0 %v3969
      %5425 = vmatprep.subr.bf16.mxu0 %v3966
      %5426 = vmatpush2.bf16.msra.mxu0 %v3965
      %5427 = vmatprep.subr.bf16.mxu0 %v3962
      %5428 = vmatpush2.bf16.msra.mxu0 %v3961
      %5429 = vmatprep.subr.bf16.mxu0 %v3958
      %5430 = vmatpush2.bf16.msra.mxu0 %v3957
      %5431 = vmatprep.subr.bf16.mxu0 %v3954
      %5432 = vmatpush2.bf16.msra.mxu0 %v3953
      %5433 = vmatprep.mubr.bf16.mxu0 %v1214
      %5434 = vmatmul.mubr.bf16.gmra.mxu0 %v1200
      %v5435 = vpop.f32.mrf.mxu0
      %v5436 = vadd.f32 %v5395, %v5435
      %v5437 = vpop.f32.mrf.mxu0
      %v5438 = vadd.f32 %v5397, %v5437
      %v5439 = vpop.f32.mrf.mxu0
      %v5440 = vpop.f32.mrf.mxu0
      %5441 = vdwg.mxu0
      %5442 = vmatprep.subr.bf16.mxu0 %v4014
      %5443 = vmatpush1.bf16.msra.mxu0 %v4013
      %5444 = vmatprep.subr.bf16.mxu0 %v4010
      %5445 = vmatpush1.bf16.msra.mxu0 %v4009
      %5446 = vmatprep.subr.bf16.mxu0 %v4006
      %5447 = vmatpush1.bf16.msra.mxu0 %v4005
      %5448 = vmatprep.subr.bf16.mxu0 %v4002
      %5449 = vmatpush1.bf16.msra.mxu0 %v4001
      %5450 = vmatprep.subr.bf16.mxu0 %v3998
      %5451 = vmatpush1.bf16.msra.mxu0 %v3997
      %5452 = vmatprep.subr.bf16.mxu0 %v3994
      %5453 = vmatpush1.bf16.msra.mxu0 %v3993
      %5454 = vmatprep.subr.bf16.mxu0 %v3990
      %5455 = vmatpush1.bf16.msra.mxu0 %v3989
      %5456 = vmatprep.subr.bf16.mxu0 %v3986
      %5457 = vmatpush1.bf16.msra.mxu0 %v3985
      %5458 = vmatprep.subr.bf16.mxu0 %v4046
      %5459 = vmatpush2.bf16.msra.mxu0 %v4045
      %5460 = vmatprep.subr.bf16.mxu0 %v4042
      %5461 = vmatpush2.bf16.msra.mxu0 %v4041
      %5462 = vmatprep.subr.bf16.mxu0 %v4038
      %5463 = vmatpush2.bf16.msra.mxu0 %v4037
      %5464 = vmatprep.subr.bf16.mxu0 %v4034
      %5465 = vmatpush2.bf16.msra.mxu0 %v4033
      %5466 = vmatprep.subr.bf16.mxu0 %v4030
      %5467 = vmatpush2.bf16.msra.mxu0 %v4029
      %5468 = vmatprep.subr.bf16.mxu0 %v4026
      %5469 = vmatpush2.bf16.msra.mxu0 %v4025
      %5470 = vmatprep.subr.bf16.mxu0 %v4022
      %5471 = vmatpush2.bf16.msra.mxu0 %v4021
      %5472 = vmatprep.subr.bf16.mxu0 %v4018
      %5473 = vmatpush2.bf16.msra.mxu0 %v4017
      %5474 = vmatprep.mubr.bf16.mxu0 %v1224
      %5475 = vmatmul.mubr.bf16.gmra.mxu0 %v1222
      %v5476 = vpop.f32.mrf.mxu0
      %v5477 = vadd.f32 %v5436, %v5476
      %v5478 = vpop.f32.mrf.mxu0
      %v5479 = vadd.f32 %v5438, %v5478
      %v5480 = vpop.f32.mrf.mxu0
      %v5481 = vpop.f32.mrf.mxu0
      %5482 = vdwg.mxu0
      %5483 = vmatprep.subr.bf16.mxu0 %v4078
      %5484 = vmatpush1.bf16.msra.mxu0 %v4077
      %5485 = vmatprep.subr.bf16.mxu0 %v4074
      %5486 = vmatpush1.bf16.msra.mxu0 %v4073
      %5487 = vmatprep.subr.bf16.mxu0 %v4070
      %5488 = vmatpush1.bf16.msra.mxu0 %v4069
      %5489 = vmatprep.subr.bf16.mxu0 %v4066
      %5490 = vmatpush1.bf16.msra.mxu0 %v4065
      %5491 = vmatprep.subr.bf16.mxu0 %v4062
      %5492 = vmatpush1.bf16.msra.mxu0 %v4061
      %5493 = vmatprep.subr.bf16.mxu0 %v4058
      %5494 = vmatpush1.bf16.msra.mxu0 %v4057
      %5495 = vmatprep.subr.bf16.mxu0 %v4054
      %5496 = vmatpush1.bf16.msra.mxu0 %v4053
      %5497 = vmatprep.subr.bf16.mxu0 %v4050
      %5498 = vmatpush1.bf16.msra.mxu0 %v4049
      %5499 = vmatprep.subr.bf16.mxu0 %v4110
      %5500 = vmatpush2.bf16.msra.mxu0 %v4109
      %5501 = vmatprep.subr.bf16.mxu0 %v4106
      %5502 = vmatpush2.bf16.msra.mxu0 %v4105
      %5503 = vmatprep.subr.bf16.mxu0 %v4102
      %5504 = vmatpush2.bf16.msra.mxu0 %v4101
      %5505 = vmatprep.subr.bf16.mxu0 %v4098
      %5506 = vmatpush2.bf16.msra.mxu0 %v4097
      %5507 = vmatprep.subr.bf16.mxu0 %v4094
      %5508 = vmatpush2.bf16.msra.mxu0 %v4093
      %5509 = vmatprep.subr.bf16.mxu0 %v4090
      %5510 = vmatpush2.bf16.msra.mxu0 %v4089
      %5511 = vmatprep.subr.bf16.mxu0 %v4086
      %5512 = vmatpush2.bf16.msra.mxu0 %v4085
      %5513 = vmatprep.subr.bf16.mxu0 %v4082
      %5514 = vmatpush2.bf16.msra.mxu0 %v4081
      %5515 = vmatprep.mubr.bf16.mxu0 %v1221
      %5516 = vmatmul.mubr.bf16.gmra.mxu0 %v1207
      %v5517 = vpop.f32.mrf.mxu0
      %v5518 = vadd.f32 %v5477, %v5517
      %v5519 = vpop.f32.mrf.mxu0
      %v5520 = vadd.f32 %v5479, %v5519
      %v5521 = vpop.f32.mrf.mxu0
      %v5522 = vpop.f32.mrf.mxu0
      %5523 = vdwg.mxu0
      %5524 = vmatprep.subr.bf16.mxu0 %v4142
      %5525 = vmatpush1.bf16.msra.mxu0 %v4141
      %5526 = vmatprep.subr.bf16.mxu0 %v4138
      %5527 = vmatpush1.bf16.msra.mxu0 %v4137
      %5528 = vmatprep.subr.bf16.mxu0 %v4134
      %5529 = vmatpush1.bf16.msra.mxu0 %v4133
      %5530 = vmatprep.subr.bf16.mxu0 %v4130
      %5531 = vmatpush1.bf16.msra.mxu0 %v4129
      %5532 = vmatprep.subr.bf16.mxu0 %v4126
      %5533 = vmatpush1.bf16.msra.mxu0 %v4125
      %5534 = vmatprep.subr.bf16.mxu0 %v4122
      %5535 = vmatpush1.bf16.msra.mxu0 %v4121
      %5536 = vmatprep.subr.bf16.mxu0 %v4118
      %5537 = vmatpush1.bf16.msra.mxu0 %v4117
      %5538 = vmatprep.subr.bf16.mxu0 %v4114
      %5539 = vmatpush1.bf16.msra.mxu0 %v4113
      %5540 = vmatprep.subr.bf16.mxu0 %v4174
      %5541 = vmatpush2.bf16.msra.mxu0 %v4173
      %5542 = vmatprep.subr.bf16.mxu0 %v4170
      %5543 = vmatpush2.bf16.msra.mxu0 %v4169
      %5544 = vmatprep.subr.bf16.mxu0 %v4166
      %5545 = vmatpush2.bf16.msra.mxu0 %v4165
      %5546 = vmatprep.subr.bf16.mxu0 %v4162
      %5547 = vmatpush2.bf16.msra.mxu0 %v4161
      %5548 = vmatprep.subr.bf16.mxu0 %v4158
      %5549 = vmatpush2.bf16.msra.mxu0 %v4157
      %5550 = vmatprep.subr.bf16.mxu0 %v4154
      %5551 = vmatpush2.bf16.msra.mxu0 %v4153
      %5552 = vmatprep.subr.bf16.mxu0 %v4150
      %5553 = vmatpush2.bf16.msra.mxu0 %v4149
      %5554 = vmatprep.subr.bf16.mxu0 %v4146
      %5555 = vmatpush2.bf16.msra.mxu0 %v4145
      %5556 = vmatprep.mubr.bf16.mxu0 %v1225
      %5557 = vmatmul.mubr.bf16.gmra.mxu0 %v1223
      %v5558 = vpop.f32.mrf.mxu0
      %v5559 = vadd.f32 %v5518, %v5558
      %v5560 = vpop.f32.mrf.mxu0
      %v5561 = vadd.f32 %v5520, %v5560
      %v5562 = vpop.f32.mrf.mxu0
      %v5563 = vpop.f32.mrf.mxu0
      %5564 = vdwg.mxu0
      %5565 = vmatprep.subr.bf16.mxu0 %v4206
      %5566 = vmatpush1.bf16.msra.mxu0 %v4205
      %5567 = vmatprep.subr.bf16.mxu0 %v4202
      %5568 = vmatpush1.bf16.msra.mxu0 %v4201
      %5569 = vmatprep.subr.bf16.mxu0 %v4198
      %5570 = vmatpush1.bf16.msra.mxu0 %v4197
      %5571 = vmatprep.subr.bf16.mxu0 %v4194
      %5572 = vmatpush1.bf16.msra.mxu0 %v4193
      %5573 = vmatprep.subr.bf16.mxu0 %v4190
      %5574 = vmatpush1.bf16.msra.mxu0 %v4189
      %5575 = vmatprep.subr.bf16.mxu0 %v4186
      %5576 = vmatpush1.bf16.msra.mxu0 %v4185
      %5577 = vmatprep.subr.bf16.mxu0 %v4182
      %5578 = vmatpush1.bf16.msra.mxu0 %v4181
      %5579 = vmatprep.subr.bf16.mxu0 %v4178
      %5580 = vmatpush1.bf16.msra.mxu0 %v4177
      %5581 = vmatprep.subr.bf16.mxu0 %v4238
      %5582 = vmatpush2.bf16.msra.mxu0 %v4237
      %5583 = vmatprep.subr.bf16.mxu0 %v4234
      %5584 = vmatpush2.bf16.msra.mxu0 %v4233
      %5585 = vmatprep.subr.bf16.mxu0 %v4230
      %5586 = vmatpush2.bf16.msra.mxu0 %v4229
      %5587 = vmatprep.subr.bf16.mxu0 %v4226
      %5588 = vmatpush2.bf16.msra.mxu0 %v4225
      %5589 = vmatprep.subr.bf16.mxu0 %v4222
      %5590 = vmatpush2.bf16.msra.mxu0 %v4221
      %5591 = vmatprep.subr.bf16.mxu0 %v4218
      %5592 = vmatpush2.bf16.msra.mxu0 %v4217
      %5593 = vmatprep.subr.bf16.mxu0 %v4214
      %5594 = vmatpush2.bf16.msra.mxu0 %v4213
      %5595 = vmatprep.subr.bf16.mxu0 %v4210
      %5596 = vmatpush2.bf16.msra.mxu0 %v4209
      %5597 = vmatprep.mubr.bf16.mxu0 %v1263
      %5598 = vmatmul.mubr.bf16.gmra.mxu0 %v1249
      %v5599 = vpop.f32.mrf.mxu0
      %v5600 = vadd.f32 %v5559, %v5599
      %v5601 = vpop.f32.mrf.mxu0
      %v5602 = vadd.f32 %v5561, %v5601
      %v5603 = vpop.f32.mrf.mxu0
      %v5604 = vpop.f32.mrf.mxu0
      %5605 = vdwg.mxu0
      %5606 = vmatprep.subr.bf16.mxu0 %v4270
      %5607 = vmatpush1.bf16.msra.mxu0 %v4269
      %5608 = vmatprep.subr.bf16.mxu0 %v4266
      %5609 = vmatpush1.bf16.msra.mxu0 %v4265
      %5610 = vmatprep.subr.bf16.mxu0 %v4262
      %5611 = vmatpush1.bf16.msra.mxu0 %v4261
      %5612 = vmatprep.subr.bf16.mxu0 %v4258
      %5613 = vmatpush1.bf16.msra.mxu0 %v4257
      %5614 = vmatprep.subr.bf16.mxu0 %v4254
      %5615 = vmatpush1.bf16.msra.mxu0 %v4253
      %5616 = vmatprep.subr.bf16.mxu0 %v4250
      %5617 = vmatpush1.bf16.msra.mxu0 %v4249
      %5618 = vmatprep.subr.bf16.mxu0 %v4246
      %5619 = vmatpush1.bf16.msra.mxu0 %v4245
      %5620 = vmatprep.subr.bf16.mxu0 %v4242
      %5621 = vmatpush1.bf16.msra.mxu0 %v4241
      %5622 = vmatprep.subr.bf16.mxu0 %v4302
      %5623 = vmatpush2.bf16.msra.mxu0 %v4301
      %5624 = vmatprep.subr.bf16.mxu0 %v4298
      %5625 = vmatpush2.bf16.msra.mxu0 %v4297
      %5626 = vmatprep.subr.bf16.mxu0 %v4294
      %5627 = vmatpush2.bf16.msra.mxu0 %v4293
      %5628 = vmatprep.subr.bf16.mxu0 %v4290
      %5629 = vmatpush2.bf16.msra.mxu0 %v4289
      %5630 = vmatprep.subr.bf16.mxu0 %v4286
      %5631 = vmatpush2.bf16.msra.mxu0 %v4285
      %5632 = vmatprep.subr.bf16.mxu0 %v4282
      %5633 = vmatpush2.bf16.msra.mxu0 %v4281
      %5634 = vmatprep.subr.bf16.mxu0 %v4278
      %5635 = vmatpush2.bf16.msra.mxu0 %v4277
      %5636 = vmatprep.subr.bf16.mxu0 %v4274
      %5637 = vmatpush2.bf16.msra.mxu0 %v4273
      %5638 = vmatprep.mubr.bf16.mxu0 %v1273
      %5639 = vmatmul.mubr.bf16.gmra.mxu0 %v1271
      %v5640 = vpop.f32.mrf.mxu0
      %v5641 = vadd.f32 %v5600, %v5640
      %v5642 = vpop.f32.mrf.mxu0
      %v5643 = vadd.f32 %v5602, %v5642
      %v5644 = vpop.f32.mrf.mxu0
      %v5645 = vpop.f32.mrf.mxu0
      %5646 = vdwg.mxu0
      %5647 = vmatprep.subr.bf16.mxu0 %v4334
      %5648 = vmatpush1.bf16.msra.mxu0 %v4333
      %5649 = vmatprep.subr.bf16.mxu0 %v4330
      %5650 = vmatpush1.bf16.msra.mxu0 %v4329
      %5651 = vmatprep.subr.bf16.mxu0 %v4326
      %5652 = vmatpush1.bf16.msra.mxu0 %v4325
      %5653 = vmatprep.subr.bf16.mxu0 %v4322
      %5654 = vmatpush1.bf16.msra.mxu0 %v4321
      %5655 = vmatprep.subr.bf16.mxu0 %v4318
      %5656 = vmatpush1.bf16.msra.mxu0 %v4317
      %5657 = vmatprep.subr.bf16.mxu0 %v4314
      %5658 = vmatpush1.bf16.msra.mxu0 %v4313
      %5659 = vmatprep.subr.bf16.mxu0 %v4310
      %5660 = vmatpush1.bf16.msra.mxu0 %v4309
      %5661 = vmatprep.subr.bf16.mxu0 %v4306
      %5662 = vmatpush1.bf16.msra.mxu0 %v4305
      %5663 = vmatprep.subr.bf16.mxu0 %v4366
      %5664 = vmatpush2.bf16.msra.mxu0 %v4365
      %5665 = vmatprep.subr.bf16.mxu0 %v4362
      %5666 = vmatpush2.bf16.msra.mxu0 %v4361
      %5667 = vmatprep.subr.bf16.mxu0 %v4358
      %5668 = vmatpush2.bf16.msra.mxu0 %v4357
      %5669 = vmatprep.subr.bf16.mxu0 %v4354
      %5670 = vmatpush2.bf16.msra.mxu0 %v4353
      %5671 = vmatprep.subr.bf16.mxu0 %v4350
      %5672 = vmatpush2.bf16.msra.mxu0 %v4349
      %5673 = vmatprep.subr.bf16.mxu0 %v4346
      %5674 = vmatpush2.bf16.msra.mxu0 %v4345
      %5675 = vmatprep.subr.bf16.mxu0 %v4342
      %5676 = vmatpush2.bf16.msra.mxu0 %v4341
      %5677 = vmatprep.subr.bf16.mxu0 %v4338
      %5678 = vmatpush2.bf16.msra.mxu0 %v4337
      %5679 = vmatprep.mubr.bf16.mxu0 %v1270
      %5680 = vmatmul.mubr.bf16.gmra.mxu0 %v1256
      %v5681 = vpop.f32.mrf.mxu0
      %v5682 = vadd.f32 %v5641, %v5681
      %v5683 = vpop.f32.mrf.mxu0
      %v5684 = vadd.f32 %v5643, %v5683
      %v5685 = vpop.f32.mrf.mxu0
      %v5686 = vpop.f32.mrf.mxu0
      %5687 = vdwg.mxu0
      %5688 = vmatprep.subr.bf16.mxu0 %v4398
      %5689 = vmatpush1.bf16.msra.mxu0 %v4397
      %5690 = vmatprep.subr.bf16.mxu0 %v4394
      %5691 = vmatpush1.bf16.msra.mxu0 %v4393
      %5692 = vmatprep.subr.bf16.mxu0 %v4390
      %5693 = vmatpush1.bf16.msra.mxu0 %v4389
      %5694 = vmatprep.subr.bf16.mxu0 %v4386
      %5695 = vmatpush1.bf16.msra.mxu0 %v4385
      %5696 = vmatprep.subr.bf16.mxu0 %v4382
      %5697 = vmatpush1.bf16.msra.mxu0 %v4381
      %5698 = vmatprep.subr.bf16.mxu0 %v4378
      %5699 = vmatpush1.bf16.msra.mxu0 %v4377
      %5700 = vmatprep.subr.bf16.mxu0 %v4374
      %5701 = vmatpush1.bf16.msra.mxu0 %v4373
      %5702 = vmatprep.subr.bf16.mxu0 %v4370
      %5703 = vmatpush1.bf16.msra.mxu0 %v4369
      %5704 = vmatprep.subr.bf16.mxu0 %v4430
      %5705 = vmatpush2.bf16.msra.mxu0 %v4429
      %5706 = vmatprep.subr.bf16.mxu0 %v4426
      %5707 = vmatpush2.bf16.msra.mxu0 %v4425
      %5708 = vmatprep.subr.bf16.mxu0 %v4422
      %5709 = vmatpush2.bf16.msra.mxu0 %v4421
      %5710 = vmatprep.subr.bf16.mxu0 %v4418
      %5711 = vmatpush2.bf16.msra.mxu0 %v4417
      %5712 = vmatprep.subr.bf16.mxu0 %v4414
      %5713 = vmatpush2.bf16.msra.mxu0 %v4413
      %5714 = vmatprep.subr.bf16.mxu0 %v4410
      %5715 = vmatpush2.bf16.msra.mxu0 %v4409
      %5716 = vmatprep.subr.bf16.mxu0 %v4406
      %5717 = vmatpush2.bf16.msra.mxu0 %v4405
      %5718 = vmatprep.subr.bf16.mxu0 %v4402
      %5719 = vmatpush2.bf16.msra.mxu0 %v4401
      %5720 = vmatprep.mubr.bf16.mxu0 %v1274
      %5721 = vmatmul.mubr.bf16.gmra.mxu0 %v1272
      %v5722 = vpop.f32.mrf.mxu0
      %v5723 = vadd.f32 %v5682, %v5722
      %v5724 = vpop.f32.mrf.mxu0
      %v5725 = vadd.f32 %v5684, %v5724
      %v5726 = vpop.f32.mrf.mxu0
      %v5727 = vpop.f32.mrf.mxu0
      %5728 = vdwg.mxu0
      %5729 = vmatprep.subr.bf16.mxu0 0
      %5730 = vmatpush1.bf16.msra.mxu0 0
      %5731 = vmatprep.subr.bf16.mxu0 0
      %5732 = vmatpush1.bf16.msra.mxu0 0
      %5733 = vmatprep.subr.bf16.mxu0 0
      %5734 = vmatpush1.bf16.msra.mxu0 0
      %5735 = vmatprep.subr.bf16.mxu0 0
      %5736 = vmatpush1.bf16.msra.mxu0 0
      %5737 = vmatprep.subr.bf16.mxu0 %v4446
      %5738 = vmatpush1.bf16.msra.mxu0 %v4445
      %5739 = vmatprep.subr.bf16.mxu0 %v4442
      %5740 = vmatpush1.bf16.msra.mxu0 %v4441
      %5741 = vmatprep.subr.bf16.mxu0 %v4438
      %5742 = vmatpush1.bf16.msra.mxu0 %v4437
      %5743 = vmatprep.subr.bf16.mxu0 %v4434
      %5744 = vmatpush1.bf16.msra.mxu0 %v4433
      %5745 = vmatprep.subr.bf16.mxu0 0
      %5746 = vmatpush2.bf16.msra.mxu0 0
      %5747 = vmatprep.subr.bf16.mxu0 0
      %5748 = vmatpush2.bf16.msra.mxu0 0
      %5749 = vmatprep.subr.bf16.mxu0 0
      %5750 = vmatpush2.bf16.msra.mxu0 0
      %5751 = vmatprep.subr.bf16.mxu0 0
      %5752 = vmatpush2.bf16.msra.mxu0 0
      %5753 = vmatprep.subr.bf16.mxu0 0
      %5754 = vmatpush2.bf16.msra.mxu0 0
      %5755 = vmatprep.subr.bf16.mxu0 0
      %5756 = vmatpush2.bf16.msra.mxu0 0
      %5757 = vmatprep.subr.bf16.mxu0 0
      %5758 = vmatpush2.bf16.msra.mxu0 0
      %5759 = vmatprep.subr.bf16.mxu0 0
      %5760 = vmatpush2.bf16.msra.mxu0 0
      %5761 = vmatprep.mubr.bf16.mxu0 0
      %5762 = vmatmul.mubr.bf16.gmra.mxu0 %v5235
      %v5763 = vpop.f32.mrf.mxu0
      %v5764 = vadd.f32 %v5723, %v5763
      %v5765 = vpop.f32.mrf.mxu0
      %v5766 = vadd.f32 %v5725, %v5765
      %v5767 = vpop.f32.mrf.mxu0
      %v5768 = vpop.f32.mrf.mxu0
      %5769 = vdwg.mxu0
      %5770 = vmatprep.subr.bf16.mxu0 %v3696
      %5771 = vmatpush1.bf16.msra.mxu0 %v3695
      %5772 = vmatprep.subr.bf16.mxu0 %v3692
      %5773 = vmatpush1.bf16.msra.mxu0 %v3691
      %5774 = vmatprep.subr.bf16.mxu0 %v3688
      %5775 = vmatpush1.bf16.msra.mxu0 %v3687
      %5776 = vmatprep.subr.bf16.mxu0 %v3684
      %5777 = vmatpush1.bf16.msra.mxu0 %v3683
      %5778 = vmatprep.subr.bf16.mxu0 %v3680
      %5779 = vmatpush1.bf16.msra.mxu0 %v3679
      %5780 = vmatprep.subr.bf16.mxu0 %v3676
      %5781 = vmatpush1.bf16.msra.mxu0 %v3675
      %5782 = vmatprep.subr.bf16.mxu0 %v3672
      %5783 = vmatpush1.bf16.msra.mxu0 %v3671
      %5784 = vmatprep.subr.bf16.mxu0 %v3668
      %5785 = vmatpush1.bf16.msra.mxu0 %v3667
      %5786 = vmatprep.subr.bf16.mxu0 %v3728
      %5787 = vmatpush2.bf16.msra.mxu0 %v3727
      %5788 = vmatprep.subr.bf16.mxu0 %v3724
      %5789 = vmatpush2.bf16.msra.mxu0 %v3723
      %5790 = vmatprep.subr.bf16.mxu0 %v3720
      %5791 = vmatpush2.bf16.msra.mxu0 %v3719
      %5792 = vmatprep.subr.bf16.mxu0 %v3716
      %5793 = vmatpush2.bf16.msra.mxu0 %v3715
      %5794 = vmatprep.subr.bf16.mxu0 %v3712
      %5795 = vmatpush2.bf16.msra.mxu0 %v3711
      %5796 = vmatprep.subr.bf16.mxu0 %v3708
      %5797 = vmatpush2.bf16.msra.mxu0 %v3707
      %5798 = vmatprep.subr.bf16.mxu0 %v3704
      %5799 = vmatpush2.bf16.msra.mxu0 %v3703
      %5800 = vmatprep.subr.bf16.mxu0 %v3700
      %5801 = vmatpush2.bf16.msra.mxu0 %v3699
      %5802 = vmatprep.mubr.bf16.mxu0 %v1165
      %5803 = vmatmul.mubr.bf16.gmra.mxu0 %v1151
      %v5804 = vpop.f32.mrf.mxu0
      %v5805 = vadd.f32 %v1115, %v5804
      %v5806 = vpop.f32.mrf.mxu0
      %v5807 = vadd.f32 %v1119, %v5806
      %v5808 = vpop.f32.mrf.mxu0
      %v5809 = vpop.f32.mrf.mxu0
      %5810 = vdwg.mxu0
      %5811 = vmatprep.subr.bf16.mxu0 %v3760
      %5812 = vmatpush1.bf16.msra.mxu0 %v3759
      %5813 = vmatprep.subr.bf16.mxu0 %v3756
      %5814 = vmatpush1.bf16.msra.mxu0 %v3755
      %5815 = vmatprep.subr.bf16.mxu0 %v3752
      %5816 = vmatpush1.bf16.msra.mxu0 %v3751
      %5817 = vmatprep.subr.bf16.mxu0 %v3748
      %5818 = vmatpush1.bf16.msra.mxu0 %v3747
      %5819 = vmatprep.subr.bf16.mxu0 %v3744
      %5820 = vmatpush1.bf16.msra.mxu0 %v3743
      %5821 = vmatprep.subr.bf16.mxu0 %v3740
      %5822 = vmatpush1.bf16.msra.mxu0 %v3739
      %5823 = vmatprep.subr.bf16.mxu0 %v3736
      %5824 = vmatpush1.bf16.msra.mxu0 %v3735
      %5825 = vmatprep.subr.bf16.mxu0 %v3732
      %5826 = vmatpush1.bf16.msra.mxu0 %v3731
      %5827 = vmatprep.subr.bf16.mxu0 %v3792
      %5828 = vmatpush2.bf16.msra.mxu0 %v3791
      %5829 = vmatprep.subr.bf16.mxu0 %v3788
      %5830 = vmatpush2.bf16.msra.mxu0 %v3787
      %5831 = vmatprep.subr.bf16.mxu0 %v3784
      %5832 = vmatpush2.bf16.msra.mxu0 %v3783
      %5833 = vmatprep.subr.bf16.mxu0 %v3780
      %5834 = vmatpush2.bf16.msra.mxu0 %v3779
      %5835 = vmatprep.subr.bf16.mxu0 %v3776
      %5836 = vmatpush2.bf16.msra.mxu0 %v3775
      %5837 = vmatprep.subr.bf16.mxu0 %v3772
      %5838 = vmatpush2.bf16.msra.mxu0 %v3771
      %5839 = vmatprep.subr.bf16.mxu0 %v3768
      %5840 = vmatpush2.bf16.msra.mxu0 %v3767
      %5841 = vmatprep.subr.bf16.mxu0 %v3764
      %5842 = vmatpush2.bf16.msra.mxu0 %v3763
      %5843 = vmatprep.mubr.bf16.mxu0 %v1175
      %5844 = vmatmul.mubr.bf16.gmra.mxu0 %v1173
      %v5845 = vpop.f32.mrf.mxu0
      %v5846 = vadd.f32 %v5805, %v5845
      %v5847 = vpop.f32.mrf.mxu0
      %v5848 = vadd.f32 %v5807, %v5847
      %v5849 = vpop.f32.mrf.mxu0
      %v5850 = vpop.f32.mrf.mxu0
      %5851 = vdwg.mxu0
      %5852 = vmatprep.subr.bf16.mxu0 %v3824
      %5853 = vmatpush1.bf16.msra.mxu0 %v3823
      %5854 = vmatprep.subr.bf16.mxu0 %v3820
      %5855 = vmatpush1.bf16.msra.mxu0 %v3819
      %5856 = vmatprep.subr.bf16.mxu0 %v3816
      %5857 = vmatpush1.bf16.msra.mxu0 %v3815
      %5858 = vmatprep.subr.bf16.mxu0 %v3812
      %5859 = vmatpush1.bf16.msra.mxu0 %v3811
      %5860 = vmatprep.subr.bf16.mxu0 %v3808
      %5861 = vmatpush1.bf16.msra.mxu0 %v3807
      %5862 = vmatprep.subr.bf16.mxu0 %v3804
      %5863 = vmatpush1.bf16.msra.mxu0 %v3803
      %5864 = vmatprep.subr.bf16.mxu0 %v3800
      %5865 = vmatpush1.bf16.msra.mxu0 %v3799
      %5866 = vmatprep.subr.bf16.mxu0 %v3796
      %5867 = vmatpush1.bf16.msra.mxu0 %v3795
      %5868 = vmatprep.subr.bf16.mxu0 %v3856
      %5869 = vmatpush2.bf16.msra.mxu0 %v3855
      %5870 = vmatprep.subr.bf16.mxu0 %v3852
      %5871 = vmatpush2.bf16.msra.mxu0 %v3851
      %5872 = vmatprep.subr.bf16.mxu0 %v3848
      %5873 = vmatpush2.bf16.msra.mxu0 %v3847
      %5874 = vmatprep.subr.bf16.mxu0 %v3844
      %5875 = vmatpush2.bf16.msra.mxu0 %v3843
      %5876 = vmatprep.subr.bf16.mxu0 %v3840
      %5877 = vmatpush2.bf16.msra.mxu0 %v3839
      %5878 = vmatprep.subr.bf16.mxu0 %v3836
      %5879 = vmatpush2.bf16.msra.mxu0 %v3835
      %5880 = vmatprep.subr.bf16.mxu0 %v3832
      %5881 = vmatpush2.bf16.msra.mxu0 %v3831
      %5882 = vmatprep.subr.bf16.mxu0 %v3828
      %5883 = vmatpush2.bf16.msra.mxu0 %v3827
      %5884 = vmatprep.mubr.bf16.mxu0 %v1172
      %5885 = vmatmul.mubr.bf16.gmra.mxu0 %v1158
      %v5886 = vpop.f32.mrf.mxu0
      %v5887 = vadd.f32 %v5846, %v5886
      %v5888 = vpop.f32.mrf.mxu0
      %v5889 = vadd.f32 %v5848, %v5888
      %v5890 = vpop.f32.mrf.mxu0
      %v5891 = vpop.f32.mrf.mxu0
      %5892 = vdwg.mxu0
      %5893 = vmatprep.subr.bf16.mxu0 %v3888
      %5894 = vmatpush1.bf16.msra.mxu0 %v3887
      %5895 = vmatprep.subr.bf16.mxu0 %v3884
      %5896 = vmatpush1.bf16.msra.mxu0 %v3883
      %5897 = vmatprep.subr.bf16.mxu0 %v3880
      %5898 = vmatpush1.bf16.msra.mxu0 %v3879
      %5899 = vmatprep.subr.bf16.mxu0 %v3876
      %5900 = vmatpush1.bf16.msra.mxu0 %v3875
      %5901 = vmatprep.subr.bf16.mxu0 %v3872
      %5902 = vmatpush1.bf16.msra.mxu0 %v3871
      %5903 = vmatprep.subr.bf16.mxu0 %v3868
      %5904 = vmatpush1.bf16.msra.mxu0 %v3867
      %5905 = vmatprep.subr.bf16.mxu0 %v3864
      %5906 = vmatpush1.bf16.msra.mxu0 %v3863
      %5907 = vmatprep.subr.bf16.mxu0 %v3860
      %5908 = vmatpush1.bf16.msra.mxu0 %v3859
      %5909 = vmatprep.subr.bf16.mxu0 %v3920
      %5910 = vmatpush2.bf16.msra.mxu0 %v3919
      %5911 = vmatprep.subr.bf16.mxu0 %v3916
      %5912 = vmatpush2.bf16.msra.mxu0 %v3915
      %5913 = vmatprep.subr.bf16.mxu0 %v3912
      %5914 = vmatpush2.bf16.msra.mxu0 %v3911
      %5915 = vmatprep.subr.bf16.mxu0 %v3908
      %5916 = vmatpush2.bf16.msra.mxu0 %v3907
      %5917 = vmatprep.subr.bf16.mxu0 %v3904
      %5918 = vmatpush2.bf16.msra.mxu0 %v3903
      %5919 = vmatprep.subr.bf16.mxu0 %v3900
      %5920 = vmatpush2.bf16.msra.mxu0 %v3899
      %5921 = vmatprep.subr.bf16.mxu0 %v3896
      %5922 = vmatpush2.bf16.msra.mxu0 %v3895
      %5923 = vmatprep.subr.bf16.mxu0 %v3892
      %5924 = vmatpush2.bf16.msra.mxu0 %v3891
      %5925 = vmatprep.mubr.bf16.mxu0 %v1176
      %5926 = vmatmul.mubr.bf16.gmra.mxu0 %v1174
      %v5927 = vpop.f32.mrf.mxu0
      %v5928 = vadd.f32 %v5887, %v5927
      %v5929 = vpop.f32.mrf.mxu0
      %v5930 = vadd.f32 %v5889, %v5929
      %v5931 = vpop.f32.mrf.mxu0
      %v5932 = vpop.f32.mrf.mxu0
      %5933 = vdwg.mxu0
      %5934 = vmatprep.subr.bf16.mxu0 %v3952
      %5935 = vmatpush1.bf16.msra.mxu0 %v3951
      %5936 = vmatprep.subr.bf16.mxu0 %v3948
      %5937 = vmatpush1.bf16.msra.mxu0 %v3947
      %5938 = vmatprep.subr.bf16.mxu0 %v3944
      %5939 = vmatpush1.bf16.msra.mxu0 %v3943
      %5940 = vmatprep.subr.bf16.mxu0 %v3940
      %5941 = vmatpush1.bf16.msra.mxu0 %v3939
      %5942 = vmatprep.subr.bf16.mxu0 %v3936
      %5943 = vmatpush1.bf16.msra.mxu0 %v3935
      %5944 = vmatprep.subr.bf16.mxu0 %v3932
      %5945 = vmatpush1.bf16.msra.mxu0 %v3931
      %5946 = vmatprep.subr.bf16.mxu0 %v3928
      %5947 = vmatpush1.bf16.msra.mxu0 %v3927
      %5948 = vmatprep.subr.bf16.mxu0 %v3924
      %5949 = vmatpush1.bf16.msra.mxu0 %v3923
      %5950 = vmatprep.subr.bf16.mxu0 %v3984
      %5951 = vmatpush2.bf16.msra.mxu0 %v3983
      %5952 = vmatprep.subr.bf16.mxu0 %v3980
      %5953 = vmatpush2.bf16.msra.mxu0 %v3979
      %5954 = vmatprep.subr.bf16.mxu0 %v3976
      %5955 = vmatpush2.bf16.msra.mxu0 %v3975
      %5956 = vmatprep.subr.bf16.mxu0 %v3972
      %5957 = vmatpush2.bf16.msra.mxu0 %v3971
      %5958 = vmatprep.subr.bf16.mxu0 %v3968
      %5959 = vmatpush2.bf16.msra.mxu0 %v3967
      %5960 = vmatprep.subr.bf16.mxu0 %v3964
      %5961 = vmatpush2.bf16.msra.mxu0 %v3963
      %5962 = vmatprep.subr.bf16.mxu0 %v3960
      %5963 = vmatpush2.bf16.msra.mxu0 %v3959
      %5964 = vmatprep.subr.bf16.mxu0 %v3956
      %5965 = vmatpush2.bf16.msra.mxu0 %v3955
      %5966 = vmatprep.mubr.bf16.mxu0 %v1214
      %5967 = vmatmul.mubr.bf16.gmra.mxu0 %v1200
      %v5968 = vpop.f32.mrf.mxu0
      %v5969 = vadd.f32 %v5928, %v5968
      %v5970 = vpop.f32.mrf.mxu0
      %v5971 = vadd.f32 %v5930, %v5970
      %v5972 = vpop.f32.mrf.mxu0
      %v5973 = vpop.f32.mrf.mxu0
      %5974 = vdwg.mxu0
      %5975 = vmatprep.subr.bf16.mxu0 %v4016
      %5976 = vmatpush1.bf16.msra.mxu0 %v4015
      %5977 = vmatprep.subr.bf16.mxu0 %v4012
      %5978 = vmatpush1.bf16.msra.mxu0 %v4011
      %5979 = vmatprep.subr.bf16.mxu0 %v4008
      %5980 = vmatpush1.bf16.msra.mxu0 %v4007
      %5981 = vmatprep.subr.bf16.mxu0 %v4004
      %5982 = vmatpush1.bf16.msra.mxu0 %v4003
      %5983 = vmatprep.subr.bf16.mxu0 %v4000
      %5984 = vmatpush1.bf16.msra.mxu0 %v3999
      %5985 = vmatprep.subr.bf16.mxu0 %v3996
      %5986 = vmatpush1.bf16.msra.mxu0 %v3995
      %5987 = vmatprep.subr.bf16.mxu0 %v3992
      %5988 = vmatpush1.bf16.msra.mxu0 %v3991
      %5989 = vmatprep.subr.bf16.mxu0 %v3988
      %5990 = vmatpush1.bf16.msra.mxu0 %v3987
      %5991 = vmatprep.subr.bf16.mxu0 %v4048
      %5992 = vmatpush2.bf16.msra.mxu0 %v4047
      %5993 = vmatprep.subr.bf16.mxu0 %v4044
      %5994 = vmatpush2.bf16.msra.mxu0 %v4043
      %5995 = vmatprep.subr.bf16.mxu0 %v4040
      %5996 = vmatpush2.bf16.msra.mxu0 %v4039
      %5997 = vmatprep.subr.bf16.mxu0 %v4036
      %5998 = vmatpush2.bf16.msra.mxu0 %v4035
      %5999 = vmatprep.subr.bf16.mxu0 %v4032
      %6000 = vmatpush2.bf16.msra.mxu0 %v4031
      %6001 = vmatprep.subr.bf16.mxu0 %v4028
      %6002 = vmatpush2.bf16.msra.mxu0 %v4027
      %6003 = vmatprep.subr.bf16.mxu0 %v4024
      %6004 = vmatpush2.bf16.msra.mxu0 %v4023
      %6005 = vmatprep.subr.bf16.mxu0 %v4020
      %6006 = vmatpush2.bf16.msra.mxu0 %v4019
      %6007 = vmatprep.mubr.bf16.mxu0 %v1224
      %6008 = vmatmul.mubr.bf16.gmra.mxu0 %v1222
      %v6009 = vpop.f32.mrf.mxu0
      %v6010 = vadd.f32 %v5969, %v6009
      %v6011 = vpop.f32.mrf.mxu0
      %v6012 = vadd.f32 %v5971, %v6011
      %v6013 = vpop.f32.mrf.mxu0
      %v6014 = vpop.f32.mrf.mxu0
      %6015 = vdwg.mxu0
      %6016 = vmatprep.subr.bf16.mxu0 %v4080
      %6017 = vmatpush1.bf16.msra.mxu0 %v4079
      %6018 = vmatprep.subr.bf16.mxu0 %v4076
      %6019 = vmatpush1.bf16.msra.mxu0 %v4075
      %6020 = vmatprep.subr.bf16.mxu0 %v4072
      %6021 = vmatpush1.bf16.msra.mxu0 %v4071
      %6022 = vmatprep.subr.bf16.mxu0 %v4068
      %6023 = vmatpush1.bf16.msra.mxu0 %v4067
      %6024 = vmatprep.subr.bf16.mxu0 %v4064
      %6025 = vmatpush1.bf16.msra.mxu0 %v4063
      %6026 = vmatprep.subr.bf16.mxu0 %v4060
      %6027 = vmatpush1.bf16.msra.mxu0 %v4059
      %6028 = vmatprep.subr.bf16.mxu0 %v4056
      %6029 = vmatpush1.bf16.msra.mxu0 %v4055
      %6030 = vmatprep.subr.bf16.mxu0 %v4052
      %6031 = vmatpush1.bf16.msra.mxu0 %v4051
      %6032 = vmatprep.subr.bf16.mxu0 %v4112
      %6033 = vmatpush2.bf16.msra.mxu0 %v4111
      %6034 = vmatprep.subr.bf16.mxu0 %v4108
      %6035 = vmatpush2.bf16.msra.mxu0 %v4107
      %6036 = vmatprep.subr.bf16.mxu0 %v4104
      %6037 = vmatpush2.bf16.msra.mxu0 %v4103
      %6038 = vmatprep.subr.bf16.mxu0 %v4100
      %6039 = vmatpush2.bf16.msra.mxu0 %v4099
      %6040 = vmatprep.subr.bf16.mxu0 %v4096
      %6041 = vmatpush2.bf16.msra.mxu0 %v4095
      %6042 = vmatprep.subr.bf16.mxu0 %v4092
      %6043 = vmatpush2.bf16.msra.mxu0 %v4091
      %6044 = vmatprep.subr.bf16.mxu0 %v4088
      %6045 = vmatpush2.bf16.msra.mxu0 %v4087
      %6046 = vmatprep.subr.bf16.mxu0 %v4084
      %6047 = vmatpush2.bf16.msra.mxu0 %v4083
      %6048 = vmatprep.mubr.bf16.mxu0 %v1221
      %6049 = vmatmul.mubr.bf16.gmra.mxu0 %v1207
      %v6050 = vpop.f32.mrf.mxu0
      %v6051 = vadd.f32 %v6010, %v6050
      %v6052 = vpop.f32.mrf.mxu0
      %v6053 = vadd.f32 %v6012, %v6052
      %v6054 = vpop.f32.mrf.mxu0
      %v6055 = vpop.f32.mrf.mxu0
      %6056 = vdwg.mxu0
      %6057 = vmatprep.subr.bf16.mxu0 %v4144
      %6058 = vmatpush1.bf16.msra.mxu0 %v4143
      %6059 = vmatprep.subr.bf16.mxu0 %v4140
      %6060 = vmatpush1.bf16.msra.mxu0 %v4139
      %6061 = vmatprep.subr.bf16.mxu0 %v4136
      %6062 = vmatpush1.bf16.msra.mxu0 %v4135
      %6063 = vmatprep.subr.bf16.mxu0 %v4132
      %6064 = vmatpush1.bf16.msra.mxu0 %v4131
      %6065 = vmatprep.subr.bf16.mxu0 %v4128
      %6066 = vmatpush1.bf16.msra.mxu0 %v4127
      %6067 = vmatprep.subr.bf16.mxu0 %v4124
      %6068 = vmatpush1.bf16.msra.mxu0 %v4123
      %6069 = vmatprep.subr.bf16.mxu0 %v4120
      %6070 = vmatpush1.bf16.msra.mxu0 %v4119
      %6071 = vmatprep.subr.bf16.mxu0 %v4116
      %6072 = vmatpush1.bf16.msra.mxu0 %v4115
      %6073 = vmatprep.subr.bf16.mxu0 %v4176
      %6074 = vmatpush2.bf16.msra.mxu0 %v4175
      %6075 = vmatprep.subr.bf16.mxu0 %v4172
      %6076 = vmatpush2.bf16.msra.mxu0 %v4171
      %6077 = vmatprep.subr.bf16.mxu0 %v4168
      %6078 = vmatpush2.bf16.msra.mxu0 %v4167
      %6079 = vmatprep.subr.bf16.mxu0 %v4164
      %6080 = vmatpush2.bf16.msra.mxu0 %v4163
      %6081 = vmatprep.subr.bf16.mxu0 %v4160
      %6082 = vmatpush2.bf16.msra.mxu0 %v4159
      %6083 = vmatprep.subr.bf16.mxu0 %v4156
      %6084 = vmatpush2.bf16.msra.mxu0 %v4155
      %6085 = vmatprep.subr.bf16.mxu0 %v4152
      %6086 = vmatpush2.bf16.msra.mxu0 %v4151
      %6087 = vmatprep.subr.bf16.mxu0 %v4148
      %6088 = vmatpush2.bf16.msra.mxu0 %v4147
      %6089 = vmatprep.mubr.bf16.mxu0 %v1225
      %6090 = vmatmul.mubr.bf16.gmra.mxu0 %v1223
      %v6091 = vpop.f32.mrf.mxu0
      %v6092 = vadd.f32 %v6051, %v6091
      %v6093 = vpop.f32.mrf.mxu0
      %v6094 = vadd.f32 %v6053, %v6093
      %v6095 = vpop.f32.mrf.mxu0
      %v6096 = vpop.f32.mrf.mxu0
      %6097 = vdwg.mxu0
      %6098 = vmatprep.subr.bf16.mxu0 %v4208
      %6099 = vmatpush1.bf16.msra.mxu0 %v4207
      %6100 = vmatprep.subr.bf16.mxu0 %v4204
      %6101 = vmatpush1.bf16.msra.mxu0 %v4203
      %6102 = vmatprep.subr.bf16.mxu0 %v4200
      %6103 = vmatpush1.bf16.msra.mxu0 %v4199
      %6104 = vmatprep.subr.bf16.mxu0 %v4196
      %6105 = vmatpush1.bf16.msra.mxu0 %v4195
      %6106 = vmatprep.subr.bf16.mxu0 %v4192
      %6107 = vmatpush1.bf16.msra.mxu0 %v4191
      %6108 = vmatprep.subr.bf16.mxu0 %v4188
      %6109 = vmatpush1.bf16.msra.mxu0 %v4187
      %6110 = vmatprep.subr.bf16.mxu0 %v4184
      %6111 = vmatpush1.bf16.msra.mxu0 %v4183
      %6112 = vmatprep.subr.bf16.mxu0 %v4180
      %6113 = vmatpush1.bf16.msra.mxu0 %v4179
      %6114 = vmatprep.subr.bf16.mxu0 %v4240
      %6115 = vmatpush2.bf16.msra.mxu0 %v4239
      %6116 = vmatprep.subr.bf16.mxu0 %v4236
      %6117 = vmatpush2.bf16.msra.mxu0 %v4235
      %6118 = vmatprep.subr.bf16.mxu0 %v4232
      %6119 = vmatpush2.bf16.msra.mxu0 %v4231
      %6120 = vmatprep.subr.bf16.mxu0 %v4228
      %6121 = vmatpush2.bf16.msra.mxu0 %v4227
      %6122 = vmatprep.subr.bf16.mxu0 %v4224
      %6123 = vmatpush2.bf16.msra.mxu0 %v4223
      %6124 = vmatprep.subr.bf16.mxu0 %v4220
      %6125 = vmatpush2.bf16.msra.mxu0 %v4219
      %6126 = vmatprep.subr.bf16.mxu0 %v4216
      %6127 = vmatpush2.bf16.msra.mxu0 %v4215
      %6128 = vmatprep.subr.bf16.mxu0 %v4212
      %6129 = vmatpush2.bf16.msra.mxu0 %v4211
      %6130 = vmatprep.mubr.bf16.mxu0 %v1263
      %6131 = vmatmul.mubr.bf16.gmra.mxu0 %v1249
      %v6132 = vpop.f32.mrf.mxu0
      %v6133 = vadd.f32 %v6092, %v6132
      %v6134 = vpop.f32.mrf.mxu0
      %v6135 = vadd.f32 %v6094, %v6134
      %v6136 = vpop.f32.mrf.mxu0
      %v6137 = vpop.f32.mrf.mxu0
      %6138 = vdwg.mxu0
      %6139 = vmatprep.subr.bf16.mxu0 %v4272
      %6140 = vmatpush1.bf16.msra.mxu0 %v4271
      %6141 = vmatprep.subr.bf16.mxu0 %v4268
      %6142 = vmatpush1.bf16.msra.mxu0 %v4267
      %6143 = vmatprep.subr.bf16.mxu0 %v4264
      %6144 = vmatpush1.bf16.msra.mxu0 %v4263
      %6145 = vmatprep.subr.bf16.mxu0 %v4260
      %6146 = vmatpush1.bf16.msra.mxu0 %v4259
      %6147 = vmatprep.subr.bf16.mxu0 %v4256
      %6148 = vmatpush1.bf16.msra.mxu0 %v4255
      %6149 = vmatprep.subr.bf16.mxu0 %v4252
      %6150 = vmatpush1.bf16.msra.mxu0 %v4251
      %6151 = vmatprep.subr.bf16.mxu0 %v4248
      %6152 = vmatpush1.bf16.msra.mxu0 %v4247
      %6153 = vmatprep.subr.bf16.mxu0 %v4244
      %6154 = vmatpush1.bf16.msra.mxu0 %v4243
      %6155 = vmatprep.subr.bf16.mxu0 %v4304
      %6156 = vmatpush2.bf16.msra.mxu0 %v4303
      %6157 = vmatprep.subr.bf16.mxu0 %v4300
      %6158 = vmatpush2.bf16.msra.mxu0 %v4299
      %6159 = vmatprep.subr.bf16.mxu0 %v4296
      %6160 = vmatpush2.bf16.msra.mxu0 %v4295
      %6161 = vmatprep.subr.bf16.mxu0 %v4292
      %6162 = vmatpush2.bf16.msra.mxu0 %v4291
      %6163 = vmatprep.subr.bf16.mxu0 %v4288
      %6164 = vmatpush2.bf16.msra.mxu0 %v4287
      %6165 = vmatprep.subr.bf16.mxu0 %v4284
      %6166 = vmatpush2.bf16.msra.mxu0 %v4283
      %6167 = vmatprep.subr.bf16.mxu0 %v4280
      %6168 = vmatpush2.bf16.msra.mxu0 %v4279
      %6169 = vmatprep.subr.bf16.mxu0 %v4276
      %6170 = vmatpush2.bf16.msra.mxu0 %v4275
      %6171 = vmatprep.mubr.bf16.mxu0 %v1273
      %6172 = vmatmul.mubr.bf16.gmra.mxu0 %v1271
      %v6173 = vpop.f32.mrf.mxu0
      %v6174 = vadd.f32 %v6133, %v6173
      %v6175 = vpop.f32.mrf.mxu0
      %v6176 = vadd.f32 %v6135, %v6175
      %v6177 = vpop.f32.mrf.mxu0
      %v6178 = vpop.f32.mrf.mxu0
      %6179 = vdwg.mxu0
      %6180 = vmatprep.subr.bf16.mxu0 %v4336
      %6181 = vmatpush1.bf16.msra.mxu0 %v4335
      %6182 = vmatprep.subr.bf16.mxu0 %v4332
      %6183 = vmatpush1.bf16.msra.mxu0 %v4331
      %6184 = vmatprep.subr.bf16.mxu0 %v4328
      %6185 = vmatpush1.bf16.msra.mxu0 %v4327
      %6186 = vmatprep.subr.bf16.mxu0 %v4324
      %6187 = vmatpush1.bf16.msra.mxu0 %v4323
      %6188 = vmatprep.subr.bf16.mxu0 %v4320
      %6189 = vmatpush1.bf16.msra.mxu0 %v4319
      %6190 = vmatprep.subr.bf16.mxu0 %v4316
      %6191 = vmatpush1.bf16.msra.mxu0 %v4315
      %6192 = vmatprep.subr.bf16.mxu0 %v4312
      %6193 = vmatpush1.bf16.msra.mxu0 %v4311
      %6194 = vmatprep.subr.bf16.mxu0 %v4308
      %6195 = vmatpush1.bf16.msra.mxu0 %v4307
      %6196 = vmatprep.subr.bf16.mxu0 %v4368
      %6197 = vmatpush2.bf16.msra.mxu0 %v4367
      %6198 = vmatprep.subr.bf16.mxu0 %v4364
      %6199 = vmatpush2.bf16.msra.mxu0 %v4363
      %6200 = vmatprep.subr.bf16.mxu0 %v4360
      %6201 = vmatpush2.bf16.msra.mxu0 %v4359
      %6202 = vmatprep.subr.bf16.mxu0 %v4356
      %6203 = vmatpush2.bf16.msra.mxu0 %v4355
      %6204 = vmatprep.subr.bf16.mxu0 %v4352
      %6205 = vmatpush2.bf16.msra.mxu0 %v4351
      %6206 = vmatprep.subr.bf16.mxu0 %v4348
      %6207 = vmatpush2.bf16.msra.mxu0 %v4347
      %6208 = vmatprep.subr.bf16.mxu0 %v4344
      %6209 = vmatpush2.bf16.msra.mxu0 %v4343
      %6210 = vmatprep.subr.bf16.mxu0 %v4340
      %6211 = vmatpush2.bf16.msra.mxu0 %v4339
      %6212 = vmatprep.mubr.bf16.mxu0 %v1270
      %6213 = vmatmul.mubr.bf16.gmra.mxu0 %v1256
      %v6214 = vpop.f32.mrf.mxu0
      %v6215 = vadd.f32 %v6174, %v6214
      %v6216 = vpop.f32.mrf.mxu0
      %v6217 = vadd.f32 %v6176, %v6216
      %v6218 = vpop.f32.mrf.mxu0
      %v6219 = vpop.f32.mrf.mxu0
      %6220 = vdwg.mxu0
      %6221 = vmatprep.subr.bf16.mxu0 %v4400
      %6222 = vmatpush1.bf16.msra.mxu0 %v4399
      %6223 = vmatprep.subr.bf16.mxu0 %v4396
      %6224 = vmatpush1.bf16.msra.mxu0 %v4395
      %6225 = vmatprep.subr.bf16.mxu0 %v4392
      %6226 = vmatpush1.bf16.msra.mxu0 %v4391
      %6227 = vmatprep.subr.bf16.mxu0 %v4388
      %6228 = vmatpush1.bf16.msra.mxu0 %v4387
      %6229 = vmatprep.subr.bf16.mxu0 %v4384
      %6230 = vmatpush1.bf16.msra.mxu0 %v4383
      %6231 = vmatprep.subr.bf16.mxu0 %v4380
      %6232 = vmatpush1.bf16.msra.mxu0 %v4379
      %6233 = vmatprep.subr.bf16.mxu0 %v4376
      %6234 = vmatpush1.bf16.msra.mxu0 %v4375
      %6235 = vmatprep.subr.bf16.mxu0 %v4372
      %6236 = vmatpush1.bf16.msra.mxu0 %v4371
      %6237 = vmatprep.subr.bf16.mxu0 %v4432
      %6238 = vmatpush2.bf16.msra.mxu0 %v4431
      %6239 = vmatprep.subr.bf16.mxu0 %v4428
      %6240 = vmatpush2.bf16.msra.mxu0 %v4427
      %6241 = vmatprep.subr.bf16.mxu0 %v4424
      %6242 = vmatpush2.bf16.msra.mxu0 %v4423
      %6243 = vmatprep.subr.bf16.mxu0 %v4420
      %6244 = vmatpush2.bf16.msra.mxu0 %v4419
      %6245 = vmatprep.subr.bf16.mxu0 %v4416
      %6246 = vmatpush2.bf16.msra.mxu0 %v4415
      %6247 = vmatprep.subr.bf16.mxu0 %v4412
      %6248 = vmatpush2.bf16.msra.mxu0 %v4411
      %6249 = vmatprep.subr.bf16.mxu0 %v4408
      %6250 = vmatpush2.bf16.msra.mxu0 %v4407
      %6251 = vmatprep.subr.bf16.mxu0 %v4404
      %6252 = vmatpush2.bf16.msra.mxu0 %v4403
      %6253 = vmatprep.mubr.bf16.mxu0 %v1274
      %6254 = vmatmul.mubr.bf16.gmra.mxu0 %v1272
      %v6255 = vpop.f32.mrf.mxu0
      %v6256 = vadd.f32 %v6215, %v6255
      %v6257 = vpop.f32.mrf.mxu0
      %v6258 = vadd.f32 %v6217, %v6257
      %v6259 = vpop.f32.mrf.mxu0
      %v6260 = vpop.f32.mrf.mxu0
      %6261 = vdwg.mxu0
      %6262 = vmatprep.subr.bf16.mxu0 0
      %6263 = vmatpush1.bf16.msra.mxu0 0
      %6264 = vmatprep.subr.bf16.mxu0 0
      %6265 = vmatpush1.bf16.msra.mxu0 0
      %6266 = vmatprep.subr.bf16.mxu0 0
      %6267 = vmatpush1.bf16.msra.mxu0 0
      %6268 = vmatprep.subr.bf16.mxu0 0
      %6269 = vmatpush1.bf16.msra.mxu0 0
      %6270 = vmatprep.subr.bf16.mxu0 %v4448
      %6271 = vmatpush1.bf16.msra.mxu0 %v4447
      %6272 = vmatprep.subr.bf16.mxu0 %v4444
      %6273 = vmatpush1.bf16.msra.mxu0 %v4443
      %6274 = vmatprep.subr.bf16.mxu0 %v4440
      %6275 = vmatpush1.bf16.msra.mxu0 %v4439
      %6276 = vmatprep.subr.bf16.mxu0 %v4436
      %6277 = vmatpush1.bf16.msra.mxu0 %v4435
      %6278 = vmatprep.subr.bf16.mxu0 0
      %6279 = vmatpush2.bf16.msra.mxu0 0
      %6280 = vmatprep.subr.bf16.mxu0 0
      %6281 = vmatpush2.bf16.msra.mxu0 0
      %6282 = vmatprep.subr.bf16.mxu0 0
      %6283 = vmatpush2.bf16.msra.mxu0 0
      %6284 = vmatprep.subr.bf16.mxu0 0
      %6285 = vmatpush2.bf16.msra.mxu0 0
      %6286 = vmatprep.subr.bf16.mxu0 0
      %6287 = vmatpush2.bf16.msra.mxu0 0
      %6288 = vmatprep.subr.bf16.mxu0 0
      %6289 = vmatpush2.bf16.msra.mxu0 0
      %6290 = vmatprep.subr.bf16.mxu0 0
      %6291 = vmatpush2.bf16.msra.mxu0 0
      %6292 = vmatprep.subr.bf16.mxu0 0
      %6293 = vmatpush2.bf16.msra.mxu0 0
      %6294 = vmatprep.mubr.bf16.mxu0 0
      %6295 = vmatmul.mubr.bf16.gmra.mxu0 %v5235
      %v6296 = vpop.f32.mrf.mxu0
      %v6297 = vadd.f32 %v6256, %v6296
      %v6298 = vpop.f32.mrf.mxu0
      %v6299 = vadd.f32 %v6258, %v6298
      %v6300 = vpop.f32.mrf.mxu0
      %v6301 = vpop.f32.mrf.mxu0
      %6302 = vdwg.mxu0
      %p6303 = scmp.eq.s32.totalorder %s18, 0
      // Predicated region
      $region49: #{rnd_forward.7} parent=47 // pred_check
        %p6304 = pneg %p6303
      $region50: #{rnd_forward.7} parent=47 // pred_check_branch
        %6306 = sbr.rel (%p6304) target = $region52
      $region51: #{rnd_forward.7} parent=47 // pred_region
        %v6307 = vmax.f32 %v5764, 0.0
        %v6308 = vmax.f32 %v5766, 0.0
        %v6309 = vmax.f32 %v6297, 0.0
        %v6310 = vmax.f32 %v6299, 0.0
        %v6311 = vpack.c.bf16 %v6307, %v6307
        %v6312 = vpack.c.bf16 %v6308, %v6308
        %v6313 = vpack.c.bf16 %v6309, %v6309
        %v6314 = vpack.c.bf16 %v6310, %v6310
        %v6315 = vld [vmem:[%s3] sm:$0xff]
        %v6316 = vld [vmem:[%s3 + $0x8] sm:$0xff]
        %v6317 = vld [vmem:[%s3 + $0x10] sm:$0xff]
        %v6318 = vld [vmem:[%s3 + $0x18] sm:$0xff]
        %v6319 = vld [vmem:[%s3 + $0x20] sm:$0xff]
        %v6320 = vld [vmem:[%s3 + $0x28] sm:$0xff]
        %v6321 = vld [vmem:[%s3 + $0x30] sm:$0xff]
        %v6322 = vld [vmem:[%s3 + $0x38] sm:$0xff]
        %v6323 = vld [vmem:[%s3 + $0x40] sm:$0xff]
        %v6324 = vld [vmem:[%s3 + $0x48] sm:$0xff]
        %v6325 = vld [vmem:[%s3 + $0x50] sm:$0xff]
        %v6326 = vld [vmem:[%s3 + $0x58] sm:$0xff]
        %v6327 = vld [vmem:[%s3 + $0x60] sm:$0xff]
        %v6328 = vld [vmem:[%s3 + $0x68] sm:$0xff]
        %v6329 = vld [vmem:[%s3 + $0x70] sm:$0xff]
        %v6330 = vld [vmem:[%s3 + $0x78] sm:$0xff]
        %v6331 = vld [vmem:[%s3 + $0x80] sm:$0xff]
        %v6332 = vld [vmem:[%s3 + $0x88] sm:$0xff]
        %v6333 = vld [vmem:[%s3 + $0x90] sm:$0xff]
        %v6334 = vld [vmem:[%s3 + $0x98] sm:$0xff]
        %v6335 = vld [vmem:[%s3 + $0xa0] sm:$0xff]
        %v6336 = vld [vmem:[%s3 + $0xa8] sm:$0xff]
        %v6337 = vld [vmem:[%s3 + $0xb0] sm:$0xff]
        %v6338 = vld [vmem:[%s3 + $0xb8] sm:$0xff]
        %v6339 = vld [vmem:[%s3 + $0xc0] sm:$0xff]
        %v6340 = vld [vmem:[%s3 + $0xc8] sm:$0xff]
        %v6341 = vld [vmem:[%s3 + $0xd0] sm:$0xff]
        %v6342 = vld [vmem:[%s3 + $0xd8] sm:$0xff]
        %v6343 = vld [vmem:[%s3 + $0xe0] sm:$0xff]
        %v6344 = vld [vmem:[%s3 + $0xe8] sm:$0xff]
        %v6345 = vld [vmem:[%s3 + $0xf0] sm:$0xff]
        %v6346 = vld [vmem:[%s3 + $0xf8] sm:$0xff]
        %v6347 = vld [vmem:[%s3 + $0x100] sm:$0xff]
        %v6348 = vld [vmem:[%s3 + $0x108] sm:$0xff]
        %v6349 = vld [vmem:[%s3 + $0x110] sm:$0xff]
        %v6350 = vld [vmem:[%s3 + $0x118] sm:$0xff]
        %v6351 = vld [vmem:[%s3 + $0x120] sm:$0xff]
        %v6352 = vld [vmem:[%s3 + $0x128] sm:$0xff]
        %v6353 = vld [vmem:[%s3 + $0x130] sm:$0xff]
        %v6354 = vld [vmem:[%s3 + $0x138] sm:$0xff]
        %v6355 = vld [vmem:[%s3 + $0x140] sm:$0xff]
        %v6356 = vld [vmem:[%s3 + $0x148] sm:$0xff]
        %v6357 = vld [vmem:[%s3 + $0x150] sm:$0xff]
        %v6358 = vld [vmem:[%s3 + $0x158] sm:$0xff]
        %v6359 = vld [vmem:[%s3 + $0x160] sm:$0xff]
        %v6360 = vld [vmem:[%s3 + $0x168] sm:$0xff]
        %v6361 = vld [vmem:[%s3 + $0x170] sm:$0xff]
        %v6362 = vld [vmem:[%s3 + $0x178] sm:$0xff]
        %v6363 = vld [vmem:[%s3 + $0x180] sm:$0xff]
        %v6364 = vld [vmem:[%s3 + $0x188] sm:$0xff]
        %v6365 = vld [vmem:[%s3 + $0x190] sm:$0xff]
        %v6366 = vld [vmem:[%s3 + $0x198] sm:$0xff]
        %v6367 = vld [vmem:[%s3 + $0x1a0] sm:$0xff]
        %v6368 = vld [vmem:[%s3 + $0x1a8] sm:$0xff]
        %v6369 = vld [vmem:[%s3 + $0x1b0] sm:$0xff]
        %v6370 = vld [vmem:[%s3 + $0x1b8] sm:$0xff]
        %v6371 = vld [vmem:[%s3 + $0x1c0] sm:$0xff]
        %v6372 = vld [vmem:[%s3 + $0x1c8] sm:$0xff]
        %v6373 = vld [vmem:[%s3 + $0x1d0] sm:$0xff]
        %v6374 = vld [vmem:[%s3 + $0x1d8] sm:$0xff]
        %v6375 = vld [vmem:[%s3 + $0x1e0] sm:$0xff]
        %v6376 = vld [vmem:[%s3 + $0x1e8] sm:$0xff]
        %v6377 = vld [vmem:[%s3 + $0x1f0] sm:$0xff]
        %v6378 = vld [vmem:[%s3 + $0x1f8] sm:$0xff]
        %v6379 = vld [vmem:[%s3 + $0x200] sm:$0xff]
        %v6380 = vld [vmem:[%s3 + $0x208] sm:$0xff]
        %v6381 = vld [vmem:[%s3 + $0x210] sm:$0xff]
        %v6382 = vld [vmem:[%s3 + $0x218] sm:$0xff]
        %v6383 = vld [vmem:[%s3 + $0x220] sm:$0xff]
        %v6384 = vld [vmem:[%s3 + $0x228] sm:$0xff]
        %v6385 = vld [vmem:[%s3 + $0x230] sm:$0xff]
        %v6386 = vld [vmem:[%s3 + $0x238] sm:$0xff]
        %v6387 = vld [vmem:[%s3 + $0x240] sm:$0xff]
        %v6388 = vld [vmem:[%s3 + $0x248] sm:$0xff]
        %v6389 = vld [vmem:[%s3 + $0x250] sm:$0xff]
        %v6390 = vld [vmem:[%s3 + $0x258] sm:$0xff]
        %v6391 = vld [vmem:[%s3 + $0x260] sm:$0xff]
        %v6392 = vld [vmem:[%s3 + $0x268] sm:$0xff]
        %v6393 = vld [vmem:[%s3 + $0x270] sm:$0xff]
        %v6394 = vld [vmem:[%s3 + $0x278] sm:$0xff]
        %v6395 = vld [vmem:[%s3 + $0x280] sm:$0xff]
        %v6396 = vld [vmem:[%s3 + $0x288] sm:$0xff]
        %v6397 = vld [vmem:[%s3 + $0x290] sm:$0xff]
        %v6398 = vld [vmem:[%s3 + $0x298] sm:$0xff]
        %v6399 = vld [vmem:[%s3 + $0x2a0] sm:$0xff]
        %v6400 = vld [vmem:[%s3 + $0x2a8] sm:$0xff]
        %v6401 = vld [vmem:[%s3 + $0x2b0] sm:$0xff]
        %v6402 = vld [vmem:[%s3 + $0x2b8] sm:$0xff]
        %v6403 = vld [vmem:[%s3 + $0x2c0] sm:$0xff]
        %v6404 = vld [vmem:[%s3 + $0x2c8] sm:$0xff]
        %v6405 = vld [vmem:[%s3 + $0x2d0] sm:$0xff]
        %v6406 = vld [vmem:[%s3 + $0x2d8] sm:$0xff]
        %v6407 = vld [vmem:[%s3 + $0x2e0] sm:$0xff]
        %v6408 = vld [vmem:[%s3 + $0x2e8] sm:$0xff]
        %v6409 = vld [vmem:[%s3 + $0x2f0] sm:$0xff]
        %v6410 = vld [vmem:[%s3 + $0x2f8] sm:$0xff]
        %v6411 = vld [vmem:[%s3 + $0x300] sm:$0xff]
        %v6412 = vld [vmem:[%s3 + $0x308] sm:$0xff]
        %v6413 = vld [vmem:[%s3 + $0x310] sm:$0xff]
        %v6414 = vld [vmem:[%s3 + $0x318] sm:$0xff]
        %v6415 = vld [vmem:[%s3 + $0x320] sm:$0xff]
        %v6416 = vld [vmem:[%s3 + $0x328] sm:$0xff]
        %v6417 = vld [vmem:[%s3 + $0x330] sm:$0xff]
        %v6418 = vld [vmem:[%s3 + $0x338] sm:$0xff]
        %v6419 = vld [vmem:[%s3 + $0x340] sm:$0xff]
        %v6420 = vld [vmem:[%s3 + $0x348] sm:$0xff]
        %v6421 = vld [vmem:[%s3 + $0x350] sm:$0xff]
        %v6422 = vld [vmem:[%s3 + $0x358] sm:$0xff]
        %v6423 = vld [vmem:[%s3 + $0x360] sm:$0xff]
        %v6424 = vld [vmem:[%s3 + $0x368] sm:$0xff]
        %v6425 = vld [vmem:[%s3 + $0x370] sm:$0xff]
        %v6426 = vld [vmem:[%s3 + $0x378] sm:$0xff]
        %v6427 = vld [vmem:[%s3 + $0x380] sm:$0xff]
        %v6428 = vld [vmem:[%s3 + $0x388] sm:$0xff]
        %v6429 = vld [vmem:[%s3 + $0x390] sm:$0xff]
        %v6430 = vld [vmem:[%s3 + $0x398] sm:$0xff]
        %v6431 = vld [vmem:[%s3 + $0x3a0] sm:$0xff]
        %v6432 = vld [vmem:[%s3 + $0x3a8] sm:$0xff]
        %v6433 = vld [vmem:[%s3 + $0x3b0] sm:$0xff]
        %v6434 = vld [vmem:[%s3 + $0x3b8] sm:$0xff]
        %v6435 = vld [vmem:[%s3 + $0x3c0] sm:$0xff]
        %v6436 = vld [vmem:[%s3 + $0x3c8] sm:$0xff]
        %v6437 = vld [vmem:[%s3 + $0x3d0] sm:$0xff]
        %v6438 = vld [vmem:[%s3 + $0x3d8] sm:$0xff]
        %v6439 = vld [vmem:[%s3 + $0x3e0] sm:$0xff]
        %v6440 = vld [vmem:[%s3 + $0x3e8] sm:$0xff]
        %v6441 = vld [vmem:[%s3 + $0x3f0] sm:$0xff]
        %v6442 = vld [vmem:[%s3 + $0x3f8] sm:$0xff]
        %v6443 = vld [vmem:[%s4] sm:$0xf]
        %v6445 = vlaneseq
        %v6446 = vshrl.u32 %v6445, 7
        %v6447 = vsub.s32 0, %v6446
        %v6448 = vrot.slane %v6443, %v6447
        %v6449 = vlaneseq
        %v6450 = vshrl.u32 %v6449, 7
        %v6451 = vsub.s32 1, %v6450
        %v6452 = vrot.slane %v6443, %v6451
        %v6453 = vlaneseq
        %v6454 = vshrl.u32 %v6453, 7
        %v6455 = vsub.s32 2, %v6454
        %v6456 = vrot.slane %v6443, %v6455
        %v6457 = vlaneseq
        %v6458 = vshrl.u32 %v6457, 7
        %v6459 = vsub.s32 3, %v6458
        %v6460 = vrot.slane %v6443, %v6459
        %v6593 = vunpack.c.l.b16 %v6315
        %v6594 = vunpack.c.h.b16 %v6315
        %v6595 = vunpack.c.l.b16 %v6316
        %v6596 = vunpack.c.h.b16 %v6316
        %v6597 = vunpack.c.l.b16 %v6317
        %v6598 = vunpack.c.h.b16 %v6317
        %v6599 = vunpack.c.l.b16 %v6318
        %v6600 = vunpack.c.h.b16 %v6318
        %v6601 = vunpack.c.l.b16 %v6319
        %v6602 = vunpack.c.h.b16 %v6319
        %v6603 = vunpack.c.l.b16 %v6320
        %v6604 = vunpack.c.h.b16 %v6320
        %v6605 = vunpack.c.l.b16 %v6321
        %v6606 = vunpack.c.h.b16 %v6321
        %v6607 = vunpack.c.l.b16 %v6322
        %v6608 = vunpack.c.h.b16 %v6322
        %v6609 = vunpack.c.l.b16 %v6323
        %v6610 = vunpack.c.h.b16 %v6323
        %v6611 = vunpack.c.l.b16 %v6324
        %v6612 = vunpack.c.h.b16 %v6324
        %v6613 = vunpack.c.l.b16 %v6325
        %v6614 = vunpack.c.h.b16 %v6325
        %v6615 = vunpack.c.l.b16 %v6326
        %v6616 = vunpack.c.h.b16 %v6326
        %v6617 = vunpack.c.l.b16 %v6327
        %v6618 = vunpack.c.h.b16 %v6327
        %v6619 = vunpack.c.l.b16 %v6328
        %v6620 = vunpack.c.h.b16 %v6328
        %v6621 = vunpack.c.l.b16 %v6329
        %v6622 = vunpack.c.h.b16 %v6329
        %v6623 = vunpack.c.l.b16 %v6330
        %v6624 = vunpack.c.h.b16 %v6330
        %v6625 = vunpack.c.l.b16 %v6331
        %v6626 = vunpack.c.h.b16 %v6331
        %v6627 = vunpack.c.l.b16 %v6332
        %v6628 = vunpack.c.h.b16 %v6332
        %v6629 = vunpack.c.l.b16 %v6333
        %v6630 = vunpack.c.h.b16 %v6333
        %v6631 = vunpack.c.l.b16 %v6334
        %v6632 = vunpack.c.h.b16 %v6334
        %v6633 = vunpack.c.l.b16 %v6335
        %v6634 = vunpack.c.h.b16 %v6335
        %v6635 = vunpack.c.l.b16 %v6336
        %v6636 = vunpack.c.h.b16 %v6336
        %v6637 = vunpack.c.l.b16 %v6337
        %v6638 = vunpack.c.h.b16 %v6337
        %v6639 = vunpack.c.l.b16 %v6338
        %v6640 = vunpack.c.h.b16 %v6338
        %v6641 = vunpack.c.l.b16 %v6339
        %v6642 = vunpack.c.h.b16 %v6339
        %v6643 = vunpack.c.l.b16 %v6340
        %v6644 = vunpack.c.h.b16 %v6340
        %v6645 = vunpack.c.l.b16 %v6341
        %v6646 = vunpack.c.h.b16 %v6341
        %v6647 = vunpack.c.l.b16 %v6342
        %v6648 = vunpack.c.h.b16 %v6342
        %v6649 = vunpack.c.l.b16 %v6343
        %v6650 = vunpack.c.h.b16 %v6343
        %v6651 = vunpack.c.l.b16 %v6344
        %v6652 = vunpack.c.h.b16 %v6344
        %v6653 = vunpack.c.l.b16 %v6345
        %v6654 = vunpack.c.h.b16 %v6345
        %v6655 = vunpack.c.l.b16 %v6346
        %v6656 = vunpack.c.h.b16 %v6346
        %v6657 = vunpack.c.l.b16 %v6347
        %v6658 = vunpack.c.h.b16 %v6347
        %v6659 = vunpack.c.l.b16 %v6348
        %v6660 = vunpack.c.h.b16 %v6348
        %v6661 = vunpack.c.l.b16 %v6349
        %v6662 = vunpack.c.h.b16 %v6349
        %v6663 = vunpack.c.l.b16 %v6350
        %v6664 = vunpack.c.h.b16 %v6350
        %v6665 = vunpack.c.l.b16 %v6351
        %v6666 = vunpack.c.h.b16 %v6351
        %v6667 = vunpack.c.l.b16 %v6352
        %v6668 = vunpack.c.h.b16 %v6352
        %v6669 = vunpack.c.l.b16 %v6353
        %v6670 = vunpack.c.h.b16 %v6353
        %v6671 = vunpack.c.l.b16 %v6354
        %v6672 = vunpack.c.h.b16 %v6354
        %v6673 = vunpack.c.l.b16 %v6355
        %v6674 = vunpack.c.h.b16 %v6355
        %v6675 = vunpack.c.l.b16 %v6356
        %v6676 = vunpack.c.h.b16 %v6356
        %v6677 = vunpack.c.l.b16 %v6357
        %v6678 = vunpack.c.h.b16 %v6357
        %v6679 = vunpack.c.l.b16 %v6358
        %v6680 = vunpack.c.h.b16 %v6358
        %v6681 = vunpack.c.l.b16 %v6359
        %v6682 = vunpack.c.h.b16 %v6359
        %v6683 = vunpack.c.l.b16 %v6360
        %v6684 = vunpack.c.h.b16 %v6360
        %v6685 = vunpack.c.l.b16 %v6361
        %v6686 = vunpack.c.h.b16 %v6361
        %v6687 = vunpack.c.l.b16 %v6362
        %v6688 = vunpack.c.h.b16 %v6362
        %v6689 = vunpack.c.l.b16 %v6363
        %v6690 = vunpack.c.h.b16 %v6363
        %v6691 = vunpack.c.l.b16 %v6364
        %v6692 = vunpack.c.h.b16 %v6364
        %v6693 = vunpack.c.l.b16 %v6365
        %v6694 = vunpack.c.h.b16 %v6365
        %v6695 = vunpack.c.l.b16 %v6366
        %v6696 = vunpack.c.h.b16 %v6366
        %v6697 = vunpack.c.l.b16 %v6367
        %v6698 = vunpack.c.h.b16 %v6367
        %v6699 = vunpack.c.l.b16 %v6368
        %v6700 = vunpack.c.h.b16 %v6368
        %v6701 = vunpack.c.l.b16 %v6369
        %v6702 = vunpack.c.h.b16 %v6369
        %v6703 = vunpack.c.l.b16 %v6370
        %v6704 = vunpack.c.h.b16 %v6370
        %v6705 = vunpack.c.l.b16 %v6371
        %v6706 = vunpack.c.h.b16 %v6371
        %v6707 = vunpack.c.l.b16 %v6372
        %v6708 = vunpack.c.h.b16 %v6372
        %v6709 = vunpack.c.l.b16 %v6373
        %v6710 = vunpack.c.h.b16 %v6373
        %v6711 = vunpack.c.l.b16 %v6374
        %v6712 = vunpack.c.h.b16 %v6374
        %v6713 = vunpack.c.l.b16 %v6375
        %v6714 = vunpack.c.h.b16 %v6375
        %v6715 = vunpack.c.l.b16 %v6376
        %v6716 = vunpack.c.h.b16 %v6376
        %v6717 = vunpack.c.l.b16 %v6377
        %v6718 = vunpack.c.h.b16 %v6377
        %v6719 = vunpack.c.l.b16 %v6378
        %v6720 = vunpack.c.h.b16 %v6378
        %v6721 = vunpack.c.l.b16 %v6379
        %v6722 = vunpack.c.h.b16 %v6379
        %v6723 = vunpack.c.l.b16 %v6380
        %v6724 = vunpack.c.h.b16 %v6380
        %v6725 = vunpack.c.l.b16 %v6381
        %v6726 = vunpack.c.h.b16 %v6381
        %v6727 = vunpack.c.l.b16 %v6382
        %v6728 = vunpack.c.h.b16 %v6382
        %v6729 = vunpack.c.l.b16 %v6383
        %v6730 = vunpack.c.h.b16 %v6383
        %v6731 = vunpack.c.l.b16 %v6384
        %v6732 = vunpack.c.h.b16 %v6384
        %v6733 = vunpack.c.l.b16 %v6385
        %v6734 = vunpack.c.h.b16 %v6385
        %v6735 = vunpack.c.l.b16 %v6386
        %v6736 = vunpack.c.h.b16 %v6386
        %v6737 = vunpack.c.l.b16 %v6387
        %v6738 = vunpack.c.h.b16 %v6387
        %v6739 = vunpack.c.l.b16 %v6388
        %v6740 = vunpack.c.h.b16 %v6388
        %v6741 = vunpack.c.l.b16 %v6389
        %v6742 = vunpack.c.h.b16 %v6389
        %v6743 = vunpack.c.l.b16 %v6390
        %v6744 = vunpack.c.h.b16 %v6390
        %v6745 = vunpack.c.l.b16 %v6391
        %v6746 = vunpack.c.h.b16 %v6391
        %v6747 = vunpack.c.l.b16 %v6392
        %v6748 = vunpack.c.h.b16 %v6392
        %v6749 = vunpack.c.l.b16 %v6393
        %v6750 = vunpack.c.h.b16 %v6393
        %v6751 = vunpack.c.l.b16 %v6394
        %v6752 = vunpack.c.h.b16 %v6394
        %v6753 = vunpack.c.l.b16 %v6395
        %v6754 = vunpack.c.h.b16 %v6395
        %v6755 = vunpack.c.l.b16 %v6396
        %v6756 = vunpack.c.h.b16 %v6396
        %v6757 = vunpack.c.l.b16 %v6397
        %v6758 = vunpack.c.h.b16 %v6397
        %v6759 = vunpack.c.l.b16 %v6398
        %v6760 = vunpack.c.h.b16 %v6398
        %v6761 = vunpack.c.l.b16 %v6399
        %v6762 = vunpack.c.h.b16 %v6399
        %v6763 = vunpack.c.l.b16 %v6400
        %v6764 = vunpack.c.h.b16 %v6400
        %v6765 = vunpack.c.l.b16 %v6401
        %v6766 = vunpack.c.h.b16 %v6401
        %v6767 = vunpack.c.l.b16 %v6402
        %v6768 = vunpack.c.h.b16 %v6402
        %v6769 = vunpack.c.l.b16 %v6403
        %v6770 = vunpack.c.h.b16 %v6403
        %v6771 = vunpack.c.l.b16 %v6404
        %v6772 = vunpack.c.h.b16 %v6404
        %v6773 = vunpack.c.l.b16 %v6405
        %v6774 = vunpack.c.h.b16 %v6405
        %v6775 = vunpack.c.l.b16 %v6406
        %v6776 = vunpack.c.h.b16 %v6406
        %v6777 = vunpack.c.l.b16 %v6407
        %v6778 = vunpack.c.h.b16 %v6407
        %v6779 = vunpack.c.l.b16 %v6408
        %v6780 = vunpack.c.h.b16 %v6408
        %v6781 = vunpack.c.l.b16 %v6409
        %v6782 = vunpack.c.h.b16 %v6409
        %v6783 = vunpack.c.l.b16 %v6410
        %v6784 = vunpack.c.h.b16 %v6410
        %v6785 = vunpack.c.l.b16 %v6411
        %v6786 = vunpack.c.h.b16 %v6411
        %v6787 = vunpack.c.l.b16 %v6412
        %v6788 = vunpack.c.h.b16 %v6412
        %v6789 = vunpack.c.l.b16 %v6413
        %v6790 = vunpack.c.h.b16 %v6413
        %v6791 = vunpack.c.l.b16 %v6414
        %v6792 = vunpack.c.h.b16 %v6414
        %v6793 = vunpack.c.l.b16 %v6415
        %v6794 = vunpack.c.h.b16 %v6415
        %v6795 = vunpack.c.l.b16 %v6416
        %v6796 = vunpack.c.h.b16 %v6416
        %v6797 = vunpack.c.l.b16 %v6417
        %v6798 = vunpack.c.h.b16 %v6417
        %v6799 = vunpack.c.l.b16 %v6418
        %v6800 = vunpack.c.h.b16 %v6418
        %v6801 = vunpack.c.l.b16 %v6419
        %v6802 = vunpack.c.h.b16 %v6419
        %v6803 = vunpack.c.l.b16 %v6420
        %v6804 = vunpack.c.h.b16 %v6420
        %v6805 = vunpack.c.l.b16 %v6421
        %v6806 = vunpack.c.h.b16 %v6421
        %v6807 = vunpack.c.l.b16 %v6422
        %v6808 = vunpack.c.h.b16 %v6422
        %v6809 = vunpack.c.l.b16 %v6423
        %v6810 = vunpack.c.h.b16 %v6423
        %v6811 = vunpack.c.l.b16 %v6424
        %v6812 = vunpack.c.h.b16 %v6424
        %v6813 = vunpack.c.l.b16 %v6425
        %v6814 = vunpack.c.h.b16 %v6425
        %v6815 = vunpack.c.l.b16 %v6426
        %v6816 = vunpack.c.h.b16 %v6426
        %v6817 = vunpack.c.l.b16 %v6427
        %v6818 = vunpack.c.h.b16 %v6427
        %v6819 = vunpack.c.l.b16 %v6428
        %v6820 = vunpack.c.h.b16 %v6428
        %v6821 = vunpack.c.l.b16 %v6429
        %v6822 = vunpack.c.h.b16 %v6429
        %v6823 = vunpack.c.l.b16 %v6430
        %v6824 = vunpack.c.h.b16 %v6430
        %v6825 = vunpack.c.l.b16 %v6431
        %v6826 = vunpack.c.h.b16 %v6431
        %v6827 = vunpack.c.l.b16 %v6432
        %v6828 = vunpack.c.h.b16 %v6432
        %v6829 = vunpack.c.l.b16 %v6433
        %v6830 = vunpack.c.h.b16 %v6433
        %v6831 = vunpack.c.l.b16 %v6434
        %v6832 = vunpack.c.h.b16 %v6434
        %v6833 = vunpack.c.l.b16 %v6435
        %v6834 = vunpack.c.h.b16 %v6435
        %v6835 = vunpack.c.l.b16 %v6436
        %v6836 = vunpack.c.h.b16 %v6436
        %v6837 = vunpack.c.l.b16 %v6437
        %v6838 = vunpack.c.h.b16 %v6437
        %v6839 = vunpack.c.l.b16 %v6438
        %v6840 = vunpack.c.h.b16 %v6438
        %v6841 = vunpack.c.l.b16 %v6439
        %v6842 = vunpack.c.h.b16 %v6439
        %v6843 = vunpack.c.l.b16 %v6440
        %v6844 = vunpack.c.h.b16 %v6440
        %v6845 = vunpack.c.l.b16 %v6441
        %v6846 = vunpack.c.h.b16 %v6441
        %v6847 = vunpack.c.l.b16 %v6442
        %v6848 = vunpack.c.h.b16 %v6442
        %v6849 = vpack.c.b16 %v6597, %v6593
        %v6850 = vpack.c.b16 %v6598, %v6594
        %v6851 = vpack.c.b16 %v6599, %v6595
        %v6852 = vpack.c.b16 %v6600, %v6596
        %v6853 = vpack.c.b16 %v6605, %v6601
        %v6854 = vpack.c.b16 %v6606, %v6602
        %v6855 = vpack.c.b16 %v6607, %v6603
        %v6856 = vpack.c.b16 %v6608, %v6604
        %v6857 = vpack.c.b16 %v6613, %v6609
        %v6858 = vpack.c.b16 %v6614, %v6610
        %v6859 = vpack.c.b16 %v6615, %v6611
        %v6860 = vpack.c.b16 %v6616, %v6612
        %v6861 = vpack.c.b16 %v6621, %v6617
        %v6862 = vpack.c.b16 %v6622, %v6618
        %v6863 = vpack.c.b16 %v6623, %v6619
        %v6864 = vpack.c.b16 %v6624, %v6620
        %v6865 = vpack.c.b16 %v6629, %v6625
        %v6866 = vpack.c.b16 %v6630, %v6626
        %v6867 = vpack.c.b16 %v6631, %v6627
        %v6868 = vpack.c.b16 %v6632, %v6628
        %v6869 = vpack.c.b16 %v6637, %v6633
        %v6870 = vpack.c.b16 %v6638, %v6634
        %v6871 = vpack.c.b16 %v6639, %v6635
        %v6872 = vpack.c.b16 %v6640, %v6636
        %v6873 = vpack.c.b16 %v6645, %v6641
        %v6874 = vpack.c.b16 %v6646, %v6642
        %v6875 = vpack.c.b16 %v6647, %v6643
        %v6876 = vpack.c.b16 %v6648, %v6644
        %v6877 = vpack.c.b16 %v6653, %v6649
        %v6878 = vpack.c.b16 %v6654, %v6650
        %v6879 = vpack.c.b16 %v6655, %v6651
        %v6880 = vpack.c.b16 %v6656, %v6652
        %v6881 = vpack.c.b16 %v6661, %v6657
        %v6882 = vpack.c.b16 %v6662, %v6658
        %v6883 = vpack.c.b16 %v6663, %v6659
        %v6884 = vpack.c.b16 %v6664, %v6660
        %v6885 = vpack.c.b16 %v6669, %v6665
        %v6886 = vpack.c.b16 %v6670, %v6666
        %v6887 = vpack.c.b16 %v6671, %v6667
        %v6888 = vpack.c.b16 %v6672, %v6668
        %v6889 = vpack.c.b16 %v6677, %v6673
        %v6890 = vpack.c.b16 %v6678, %v6674
        %v6891 = vpack.c.b16 %v6679, %v6675
        %v6892 = vpack.c.b16 %v6680, %v6676
        %v6893 = vpack.c.b16 %v6685, %v6681
        %v6894 = vpack.c.b16 %v6686, %v6682
        %v6895 = vpack.c.b16 %v6687, %v6683
        %v6896 = vpack.c.b16 %v6688, %v6684
        %v6897 = vpack.c.b16 %v6693, %v6689
        %v6898 = vpack.c.b16 %v6694, %v6690
        %v6899 = vpack.c.b16 %v6695, %v6691
        %v6900 = vpack.c.b16 %v6696, %v6692
        %v6901 = vpack.c.b16 %v6701, %v6697
        %v6902 = vpack.c.b16 %v6702, %v6698
        %v6903 = vpack.c.b16 %v6703, %v6699
        %v6904 = vpack.c.b16 %v6704, %v6700
        %v6905 = vpack.c.b16 %v6709, %v6705
        %v6906 = vpack.c.b16 %v6710, %v6706
        %v6907 = vpack.c.b16 %v6711, %v6707
        %v6908 = vpack.c.b16 %v6712, %v6708
        %v6909 = vpack.c.b16 %v6717, %v6713
        %v6910 = vpack.c.b16 %v6718, %v6714
        %v6911 = vpack.c.b16 %v6719, %v6715
        %v6912 = vpack.c.b16 %v6720, %v6716
        %v6913 = vpack.c.b16 %v6725, %v6721
        %v6914 = vpack.c.b16 %v6726, %v6722
        %v6915 = vpack.c.b16 %v6727, %v6723
        %v6916 = vpack.c.b16 %v6728, %v6724
        %v6917 = vpack.c.b16 %v6733, %v6729
        %v6918 = vpack.c.b16 %v6734, %v6730
        %v6919 = vpack.c.b16 %v6735, %v6731
        %v6920 = vpack.c.b16 %v6736, %v6732
        %v6921 = vpack.c.b16 %v6741, %v6737
        %v6922 = vpack.c.b16 %v6742, %v6738
        %v6923 = vpack.c.b16 %v6743, %v6739
        %v6924 = vpack.c.b16 %v6744, %v6740
        %v6925 = vpack.c.b16 %v6749, %v6745
        %v6926 = vpack.c.b16 %v6750, %v6746
        %v6927 = vpack.c.b16 %v6751, %v6747
        %v6928 = vpack.c.b16 %v6752, %v6748
        %v6929 = vpack.c.b16 %v6757, %v6753
        %v6930 = vpack.c.b16 %v6758, %v6754
        %v6931 = vpack.c.b16 %v6759, %v6755
        %v6932 = vpack.c.b16 %v6760, %v6756
        %v6933 = vpack.c.b16 %v6765, %v6761
        %v6934 = vpack.c.b16 %v6766, %v6762
        %v6935 = vpack.c.b16 %v6767, %v6763
        %v6936 = vpack.c.b16 %v6768, %v6764
        %v6937 = vpack.c.b16 %v6773, %v6769
        %v6938 = vpack.c.b16 %v6774, %v6770
        %v6939 = vpack.c.b16 %v6775, %v6771
        %v6940 = vpack.c.b16 %v6776, %v6772
        %v6941 = vpack.c.b16 %v6781, %v6777
        %v6942 = vpack.c.b16 %v6782, %v6778
        %v6943 = vpack.c.b16 %v6783, %v6779
        %v6944 = vpack.c.b16 %v6784, %v6780
        %v6945 = vpack.c.b16 %v6789, %v6785
        %v6946 = vpack.c.b16 %v6790, %v6786
        %v6947 = vpack.c.b16 %v6791, %v6787
        %v6948 = vpack.c.b16 %v6792, %v6788
        %v6949 = vpack.c.b16 %v6797, %v6793
        %v6950 = vpack.c.b16 %v6798, %v6794
        %v6951 = vpack.c.b16 %v6799, %v6795
        %v6952 = vpack.c.b16 %v6800, %v6796
        %v6953 = vpack.c.b16 %v6805, %v6801
        %v6954 = vpack.c.b16 %v6806, %v6802
        %v6955 = vpack.c.b16 %v6807, %v6803
        %v6956 = vpack.c.b16 %v6808, %v6804
        %v6957 = vpack.c.b16 %v6813, %v6809
        %v6958 = vpack.c.b16 %v6814, %v6810
        %v6959 = vpack.c.b16 %v6815, %v6811
        %v6960 = vpack.c.b16 %v6816, %v6812
        %v6961 = vpack.c.b16 %v6821, %v6817
        %v6962 = vpack.c.b16 %v6822, %v6818
        %v6963 = vpack.c.b16 %v6823, %v6819
        %v6964 = vpack.c.b16 %v6824, %v6820
        %v6965 = vpack.c.b16 %v6829, %v6825
        %v6966 = vpack.c.b16 %v6830, %v6826
        %v6967 = vpack.c.b16 %v6831, %v6827
        %v6968 = vpack.c.b16 %v6832, %v6828
        %v6969 = vpack.c.b16 %v6837, %v6833
        %v6970 = vpack.c.b16 %v6838, %v6834
        %v6971 = vpack.c.b16 %v6839, %v6835
        %v6972 = vpack.c.b16 %v6840, %v6836
        %v6973 = vpack.c.b16 %v6845, %v6841
        %v6974 = vpack.c.b16 %v6846, %v6842
        %v6975 = vpack.c.b16 %v6847, %v6843
        %v6976 = vpack.c.b16 %v6848, %v6844
        %7105 = vmatprep.subr.bf16.mxu0 %v6878
        %7106 = vmatpush1.bf16.msra.mxu0 %v6877
        %7107 = vmatprep.subr.bf16.mxu0 %v6874
        %7108 = vmatpush1.bf16.msra.mxu0 %v6873
        %7109 = vmatprep.subr.bf16.mxu0 %v6870
        %7110 = vmatpush1.bf16.msra.mxu0 %v6869
        %7111 = vmatprep.subr.bf16.mxu0 %v6866
        %7112 = vmatpush1.bf16.msra.mxu0 %v6865
        %7113 = vmatprep.subr.bf16.mxu0 %v6862
        %7114 = vmatpush1.bf16.msra.mxu0 %v6861
        %7115 = vmatprep.subr.bf16.mxu0 %v6858
        %7116 = vmatpush1.bf16.msra.mxu0 %v6857
        %7117 = vmatprep.subr.bf16.mxu0 %v6854
        %7118 = vmatpush1.bf16.msra.mxu0 %v6853
        %7119 = vmatprep.subr.bf16.mxu0 %v6850
        %7120 = vmatpush1.bf16.msra.mxu0 %v6849
        %7121 = vmatprep.subr.bf16.mxu0 %v6910
        %7122 = vmatpush2.bf16.msra.mxu0 %v6909
        %7123 = vmatprep.subr.bf16.mxu0 %v6906
        %7124 = vmatpush2.bf16.msra.mxu0 %v6905
        %7125 = vmatprep.subr.bf16.mxu0 %v6902
        %7126 = vmatpush2.bf16.msra.mxu0 %v6901
        %7127 = vmatprep.subr.bf16.mxu0 %v6898
        %7128 = vmatpush2.bf16.msra.mxu0 %v6897
        %7129 = vmatprep.subr.bf16.mxu0 %v6894
        %7130 = vmatpush2.bf16.msra.mxu0 %v6893
        %7131 = vmatprep.subr.bf16.mxu0 %v6890
        %7132 = vmatpush2.bf16.msra.mxu0 %v6889
        %7133 = vmatprep.subr.bf16.mxu0 %v6886
        %7134 = vmatpush2.bf16.msra.mxu0 %v6885
        %7135 = vmatprep.subr.bf16.mxu0 %v6882
        %7136 = vmatpush2.bf16.msra.mxu0 %v6881
        %7137 = vmatprep.mubr.bf16.mxu0 %v6312
        %7138 = vmatmul.mubr.bf16.gmra.mxu0 %v6311
        %v7139 = vpop.f32.mrf.mxu0
        %v7140 = vadd.f32 %v6448, %v7139
        %v7141 = vpop.f32.mrf.mxu0
        %v7142 = vadd.f32 %v6452, %v7141
        %v7143 = vpop.f32.mrf.mxu0
        %v7144 = vpop.f32.mrf.mxu0
        %7145 = vdwg.mxu0
        %7146 = vmatprep.subr.bf16.mxu0 %v6942
        %7147 = vmatpush1.bf16.msra.mxu0 %v6941
        %7148 = vmatprep.subr.bf16.mxu0 %v6938
        %7149 = vmatpush1.bf16.msra.mxu0 %v6937
        %7150 = vmatprep.subr.bf16.mxu0 %v6934
        %7151 = vmatpush1.bf16.msra.mxu0 %v6933
        %7152 = vmatprep.subr.bf16.mxu0 %v6930
        %7153 = vmatpush1.bf16.msra.mxu0 %v6929
        %7154 = vmatprep.subr.bf16.mxu0 %v6926
        %7155 = vmatpush1.bf16.msra.mxu0 %v6925
        %7156 = vmatprep.subr.bf16.mxu0 %v6922
        %7157 = vmatpush1.bf16.msra.mxu0 %v6921
        %7158 = vmatprep.subr.bf16.mxu0 %v6918
        %7159 = vmatpush1.bf16.msra.mxu0 %v6917
        %7160 = vmatprep.subr.bf16.mxu0 %v6914
        %7161 = vmatpush1.bf16.msra.mxu0 %v6913
        %7162 = vmatprep.subr.bf16.mxu0 %v6974
        %7163 = vmatpush2.bf16.msra.mxu0 %v6973
        %7164 = vmatprep.subr.bf16.mxu0 %v6970
        %7165 = vmatpush2.bf16.msra.mxu0 %v6969
        %7166 = vmatprep.subr.bf16.mxu0 %v6966
        %7167 = vmatpush2.bf16.msra.mxu0 %v6965
        %7168 = vmatprep.subr.bf16.mxu0 %v6962
        %7169 = vmatpush2.bf16.msra.mxu0 %v6961
        %7170 = vmatprep.subr.bf16.mxu0 %v6958
        %7171 = vmatpush2.bf16.msra.mxu0 %v6957
        %7172 = vmatprep.subr.bf16.mxu0 %v6954
        %7173 = vmatpush2.bf16.msra.mxu0 %v6953
        %7174 = vmatprep.subr.bf16.mxu0 %v6950
        %7175 = vmatpush2.bf16.msra.mxu0 %v6949
        %7176 = vmatprep.subr.bf16.mxu0 %v6946
        %7177 = vmatpush2.bf16.msra.mxu0 %v6945
        %7178 = vmatprep.mubr.bf16.mxu0 %v6314
        %7179 = vmatmul.mubr.bf16.gmra.mxu0 %v6313
        %v7180 = vpop.f32.mrf.mxu0
        %v7181 = vadd.f32 %v7140, %v7180
        %v7182 = vpop.f32.mrf.mxu0
        %v7183 = vadd.f32 %v7142, %v7182
        %v7184 = vpop.f32.mrf.mxu0
        %v7185 = vpop.f32.mrf.mxu0
        %7186 = vdwg.mxu0
        %7187 = vmatprep.subr.bf16.mxu0 %v6880
        %7188 = vmatpush1.bf16.msra.mxu0 %v6879
        %7189 = vmatprep.subr.bf16.mxu0 %v6876
        %7190 = vmatpush1.bf16.msra.mxu0 %v6875
        %7191 = vmatprep.subr.bf16.mxu0 %v6872
        %7192 = vmatpush1.bf16.msra.mxu0 %v6871
        %7193 = vmatprep.subr.bf16.mxu0 %v6868
        %7194 = vmatpush1.bf16.msra.mxu0 %v6867
        %7195 = vmatprep.subr.bf16.mxu0 %v6864
        %7196 = vmatpush1.bf16.msra.mxu0 %v6863
        %7197 = vmatprep.subr.bf16.mxu0 %v6860
        %7198 = vmatpush1.bf16.msra.mxu0 %v6859
        %7199 = vmatprep.subr.bf16.mxu0 %v6856
        %7200 = vmatpush1.bf16.msra.mxu0 %v6855
        %7201 = vmatprep.subr.bf16.mxu0 %v6852
        %7202 = vmatpush1.bf16.msra.mxu0 %v6851
        %7203 = vmatprep.subr.bf16.mxu0 %v6912
        %7204 = vmatpush2.bf16.msra.mxu0 %v6911
        %7205 = vmatprep.subr.bf16.mxu0 %v6908
        %7206 = vmatpush2.bf16.msra.mxu0 %v6907
        %7207 = vmatprep.subr.bf16.mxu0 %v6904
        %7208 = vmatpush2.bf16.msra.mxu0 %v6903
        %7209 = vmatprep.subr.bf16.mxu0 %v6900
        %7210 = vmatpush2.bf16.msra.mxu0 %v6899
        %7211 = vmatprep.subr.bf16.mxu0 %v6896
        %7212 = vmatpush2.bf16.msra.mxu0 %v6895
        %7213 = vmatprep.subr.bf16.mxu0 %v6892
        %7214 = vmatpush2.bf16.msra.mxu0 %v6891
        %7215 = vmatprep.subr.bf16.mxu0 %v6888
        %7216 = vmatpush2.bf16.msra.mxu0 %v6887
        %7217 = vmatprep.subr.bf16.mxu0 %v6884
        %7218 = vmatpush2.bf16.msra.mxu0 %v6883
        %7219 = vmatprep.mubr.bf16.mxu0 %v6312
        %7220 = vmatmul.mubr.bf16.gmra.mxu0 %v6311
        %v7221 = vpop.f32.mrf.mxu0
        %v7222 = vadd.f32 %v6456, %v7221
        %v7223 = vpop.f32.mrf.mxu0
        %v7224 = vadd.f32 %v6460, %v7223
        %v7225 = vpop.f32.mrf.mxu0
        %v7226 = vpop.f32.mrf.mxu0
        %7227 = vdwg.mxu0
        %7228 = vmatprep.subr.bf16.mxu0 %v6944
        %7229 = vmatpush1.bf16.msra.mxu0 %v6943
        %7230 = vmatprep.subr.bf16.mxu0 %v6940
        %7231 = vmatpush1.bf16.msra.mxu0 %v6939
        %7232 = vmatprep.subr.bf16.mxu0 %v6936
        %7233 = vmatpush1.bf16.msra.mxu0 %v6935
        %7234 = vmatprep.subr.bf16.mxu0 %v6932
        %7235 = vmatpush1.bf16.msra.mxu0 %v6931
        %7236 = vmatprep.subr.bf16.mxu0 %v6928
        %7237 = vmatpush1.bf16.msra.mxu0 %v6927
        %7238 = vmatprep.subr.bf16.mxu0 %v6924
        %7239 = vmatpush1.bf16.msra.mxu0 %v6923
        %7240 = vmatprep.subr.bf16.mxu0 %v6920
        %7241 = vmatpush1.bf16.msra.mxu0 %v6919
        %7242 = vmatprep.subr.bf16.mxu0 %v6916
        %7243 = vmatpush1.bf16.msra.mxu0 %v6915
        %7244 = vmatprep.subr.bf16.mxu0 %v6976
        %7245 = vmatpush2.bf16.msra.mxu0 %v6975
        %7246 = vmatprep.subr.bf16.mxu0 %v6972
        %7247 = vmatpush2.bf16.msra.mxu0 %v6971
        %7248 = vmatprep.subr.bf16.mxu0 %v6968
        %7249 = vmatpush2.bf16.msra.mxu0 %v6967
        %7250 = vmatprep.subr.bf16.mxu0 %v6964
        %7251 = vmatpush2.bf16.msra.mxu0 %v6963
        %7252 = vmatprep.subr.bf16.mxu0 %v6960
        %7253 = vmatpush2.bf16.msra.mxu0 %v6959
        %7254 = vmatprep.subr.bf16.mxu0 %v6956
        %7255 = vmatpush2.bf16.msra.mxu0 %v6955
        %7256 = vmatprep.subr.bf16.mxu0 %v6952
        %7257 = vmatpush2.bf16.msra.mxu0 %v6951
        %7258 = vmatprep.subr.bf16.mxu0 %v6948
        %7259 = vmatpush2.bf16.msra.mxu0 %v6947
        %7260 = vmatprep.mubr.bf16.mxu0 %v6314
        %7261 = vmatmul.mubr.bf16.gmra.mxu0 %v6313
        %v7262 = vpop.f32.mrf.mxu0
        %v7263 = vadd.f32 %v7222, %v7262
        %v7264 = vpop.f32.mrf.mxu0
        %v7265 = vadd.f32 %v7224, %v7264
        %v7266 = vpop.f32.mrf.mxu0
        %v7267 = vpop.f32.mrf.mxu0
        %7268 = vdwg.mxu0
        %v7269 = vmax.f32 %v7181, 0.0
        %v7270 = vmax.f32 %v7183, 0.0
        %v7271 = vmax.f32 %v7263, 0.0
        %v7272 = vmax.f32 %v7265, 0.0
        %v7273 = vpack.c.bf16 %v7269, %v7269
        %v7274 = vpack.c.bf16 %v7270, %v7270
        %v7275 = vpack.c.bf16 %v7271, %v7271
        %v7276 = vpack.c.bf16 %v7272, %v7272
        %v7277 = vld [vmem:[%s5] sm:$0xff]
        %v7278 = vld [vmem:[%s5 + $0x8] sm:$0xff]
        %v7279 = vld [vmem:[%s5 + $0x10] sm:$0xff]
        %v7280 = vld [vmem:[%s5 + $0x18] sm:$0xff]
        %v7281 = vld [vmem:[%s5 + $0x20] sm:$0xff]
        %v7282 = vld [vmem:[%s5 + $0x28] sm:$0xff]
        %v7283 = vld [vmem:[%s5 + $0x30] sm:$0xff]
        %v7284 = vld [vmem:[%s5 + $0x38] sm:$0xff]
        %v7285 = vld [vmem:[%s5 + $0x40] sm:$0xff]
        %v7286 = vld [vmem:[%s5 + $0x48] sm:$0xff]
        %v7287 = vld [vmem:[%s5 + $0x50] sm:$0xff]
        %v7288 = vld [vmem:[%s5 + $0x58] sm:$0xff]
        %v7289 = vld [vmem:[%s5 + $0x60] sm:$0xff]
        %v7290 = vld [vmem:[%s5 + $0x68] sm:$0xff]
        %v7291 = vld [vmem:[%s5 + $0x70] sm:$0xff]
        %v7292 = vld [vmem:[%s5 + $0x78] sm:$0xff]
        %v7293 = vld [vmem:[%s5 + $0x80] sm:$0xff]
        %v7294 = vld [vmem:[%s5 + $0x88] sm:$0xff]
        %v7295 = vld [vmem:[%s5 + $0x90] sm:$0xff]
        %v7296 = vld [vmem:[%s5 + $0x98] sm:$0xff]
        %v7297 = vld [vmem:[%s5 + $0xa0] sm:$0xff]
        %v7298 = vld [vmem:[%s5 + $0xa8] sm:$0xff]
        %v7299 = vld [vmem:[%s5 + $0xb0] sm:$0xff]
        %v7300 = vld [vmem:[%s5 + $0xb8] sm:$0xff]
        %v7301 = vld [vmem:[%s5 + $0xc0] sm:$0xff]
        %v7302 = vld [vmem:[%s5 + $0xc8] sm:$0xff]
        %v7303 = vld [vmem:[%s5 + $0xd0] sm:$0xff]
        %v7304 = vld [vmem:[%s5 + $0xd8] sm:$0xff]
        %v7305 = vld [vmem:[%s5 + $0xe0] sm:$0xff]
        %v7306 = vld [vmem:[%s5 + $0xe8] sm:$0xff]
        %v7307 = vld [vmem:[%s5 + $0xf0] sm:$0xff]
        %v7308 = vld [vmem:[%s5 + $0xf8] sm:$0xff]
        %v7309 = vld [vmem:[%s5 + $0x100] sm:$0xff]
        %v7310 = vld [vmem:[%s5 + $0x108] sm:$0xff]
        %v7311 = vld [vmem:[%s5 + $0x110] sm:$0xff]
        %v7312 = vld [vmem:[%s5 + $0x118] sm:$0xff]
        %v7313 = vld [vmem:[%s5 + $0x120] sm:$0xff]
        %v7314 = vld [vmem:[%s5 + $0x128] sm:$0xff]
        %v7315 = vld [vmem:[%s5 + $0x130] sm:$0xff]
        %v7316 = vld [vmem:[%s5 + $0x138] sm:$0xff]
        %v7317 = vld [vmem:[%s5 + $0x140] sm:$0xff]
        %v7318 = vld [vmem:[%s5 + $0x148] sm:$0xff]
        %v7319 = vld [vmem:[%s5 + $0x150] sm:$0xff]
        %v7320 = vld [vmem:[%s5 + $0x158] sm:$0xff]
        %v7321 = vld [vmem:[%s5 + $0x160] sm:$0xff]
        %v7322 = vld [vmem:[%s5 + $0x168] sm:$0xff]
        %v7323 = vld [vmem:[%s5 + $0x170] sm:$0xff]
        %v7324 = vld [vmem:[%s5 + $0x178] sm:$0xff]
        %v7325 = vld [vmem:[%s5 + $0x180] sm:$0xff]
        %v7326 = vld [vmem:[%s5 + $0x188] sm:$0xff]
        %v7327 = vld [vmem:[%s5 + $0x190] sm:$0xff]
        %v7328 = vld [vmem:[%s5 + $0x198] sm:$0xff]
        %v7329 = vld [vmem:[%s5 + $0x1a0] sm:$0xff]
        %v7330 = vld [vmem:[%s5 + $0x1a8] sm:$0xff]
        %v7331 = vld [vmem:[%s5 + $0x1b0] sm:$0xff]
        %v7332 = vld [vmem:[%s5 + $0x1b8] sm:$0xff]
        %v7333 = vld [vmem:[%s5 + $0x1c0] sm:$0xff]
        %v7334 = vld [vmem:[%s5 + $0x1c8] sm:$0xff]
        %v7335 = vld [vmem:[%s5 + $0x1d0] sm:$0xff]
        %v7336 = vld [vmem:[%s5 + $0x1d8] sm:$0xff]
        %v7337 = vld [vmem:[%s5 + $0x1e0] sm:$0xff]
        %v7338 = vld [vmem:[%s5 + $0x1e8] sm:$0xff]
        %v7339 = vld [vmem:[%s5 + $0x1f0] sm:$0xff]
        %v7340 = vld [vmem:[%s5 + $0x1f8] sm:$0xff]
        %v7341 = vld [vmem:[%s5 + $0x200] sm:$0xff]
        %v7342 = vld [vmem:[%s5 + $0x208] sm:$0xff]
        %v7343 = vld [vmem:[%s5 + $0x210] sm:$0xff]
        %v7344 = vld [vmem:[%s5 + $0x218] sm:$0xff]
        %v7345 = vld [vmem:[%s5 + $0x220] sm:$0xff]
        %v7346 = vld [vmem:[%s5 + $0x228] sm:$0xff]
        %v7347 = vld [vmem:[%s5 + $0x230] sm:$0xff]
        %v7348 = vld [vmem:[%s5 + $0x238] sm:$0xff]
        %v7349 = vld [vmem:[%s5 + $0x240] sm:$0xff]
        %v7350 = vld [vmem:[%s5 + $0x248] sm:$0xff]
        %v7351 = vld [vmem:[%s5 + $0x250] sm:$0xff]
        %v7352 = vld [vmem:[%s5 + $0x258] sm:$0xff]
        %v7353 = vld [vmem:[%s5 + $0x260] sm:$0xff]
        %v7354 = vld [vmem:[%s5 + $0x268] sm:$0xff]
        %v7355 = vld [vmem:[%s5 + $0x270] sm:$0xff]
        %v7356 = vld [vmem:[%s5 + $0x278] sm:$0xff]
        %v7357 = vld [vmem:[%s5 + $0x280] sm:$0xff]
        %v7358 = vld [vmem:[%s5 + $0x288] sm:$0xff]
        %v7359 = vld [vmem:[%s5 + $0x290] sm:$0xff]
        %v7360 = vld [vmem:[%s5 + $0x298] sm:$0xff]
        %v7361 = vld [vmem:[%s5 + $0x2a0] sm:$0xff]
        %v7362 = vld [vmem:[%s5 + $0x2a8] sm:$0xff]
        %v7363 = vld [vmem:[%s5 + $0x2b0] sm:$0xff]
        %v7364 = vld [vmem:[%s5 + $0x2b8] sm:$0xff]
        %v7365 = vld [vmem:[%s5 + $0x2c0] sm:$0xff]
        %v7366 = vld [vmem:[%s5 + $0x2c8] sm:$0xff]
        %v7367 = vld [vmem:[%s5 + $0x2d0] sm:$0xff]
        %v7368 = vld [vmem:[%s5 + $0x2d8] sm:$0xff]
        %v7369 = vld [vmem:[%s5 + $0x2e0] sm:$0xff]
        %v7370 = vld [vmem:[%s5 + $0x2e8] sm:$0xff]
        %v7371 = vld [vmem:[%s5 + $0x2f0] sm:$0xff]
        %v7372 = vld [vmem:[%s5 + $0x2f8] sm:$0xff]
        %v7373 = vld [vmem:[%s5 + $0x300] sm:$0xff]
        %v7374 = vld [vmem:[%s5 + $0x308] sm:$0xff]
        %v7375 = vld [vmem:[%s5 + $0x310] sm:$0xff]
        %v7376 = vld [vmem:[%s5 + $0x318] sm:$0xff]
        %v7377 = vld [vmem:[%s5 + $0x320] sm:$0xff]
        %v7378 = vld [vmem:[%s5 + $0x328] sm:$0xff]
        %v7379 = vld [vmem:[%s5 + $0x330] sm:$0xff]
        %v7380 = vld [vmem:[%s5 + $0x338] sm:$0xff]
        %v7381 = vld [vmem:[%s5 + $0x340] sm:$0xff]
        %v7382 = vld [vmem:[%s5 + $0x348] sm:$0xff]
        %v7383 = vld [vmem:[%s5 + $0x350] sm:$0xff]
        %v7384 = vld [vmem:[%s5 + $0x358] sm:$0xff]
        %v7385 = vld [vmem:[%s5 + $0x360] sm:$0xff]
        %v7386 = vld [vmem:[%s5 + $0x368] sm:$0xff]
        %v7387 = vld [vmem:[%s5 + $0x370] sm:$0xff]
        %v7388 = vld [vmem:[%s5 + $0x378] sm:$0xff]
        %v7389 = vld [vmem:[%s5 + $0x380] sm:$0xff]
        %v7390 = vld [vmem:[%s5 + $0x388] sm:$0xff]
        %v7391 = vld [vmem:[%s5 + $0x390] sm:$0xff]
        %v7392 = vld [vmem:[%s5 + $0x398] sm:$0xff]
        %v7393 = vld [vmem:[%s5 + $0x3a0] sm:$0xff]
        %v7394 = vld [vmem:[%s5 + $0x3a8] sm:$0xff]
        %v7395 = vld [vmem:[%s5 + $0x3b0] sm:$0xff]
        %v7396 = vld [vmem:[%s5 + $0x3b8] sm:$0xff]
        %v7397 = vld [vmem:[%s5 + $0x3c0] sm:$0xff]
        %v7398 = vld [vmem:[%s5 + $0x3c8] sm:$0xff]
        %v7399 = vld [vmem:[%s5 + $0x3d0] sm:$0xff]
        %v7400 = vld [vmem:[%s5 + $0x3d8] sm:$0xff]
        %v7401 = vld [vmem:[%s5 + $0x3e0] sm:$0xff]
        %v7402 = vld [vmem:[%s5 + $0x3e8] sm:$0xff]
        %v7403 = vld [vmem:[%s5 + $0x3f0] sm:$0xff]
        %v7404 = vld [vmem:[%s5 + $0x3f8] sm:$0xff]
        %v7405 = vld [vmem:[%s6] sm:$0xf]
        %v7407 = vlaneseq
        %v7408 = vshrl.u32 %v7407, 7
        %v7409 = vsub.s32 0, %v7408
        %v7410 = vrot.slane %v7405, %v7409
        %v7411 = vlaneseq
        %v7412 = vshrl.u32 %v7411, 7
        %v7413 = vsub.s32 1, %v7412
        %v7414 = vrot.slane %v7405, %v7413
        %v7415 = vlaneseq
        %v7416 = vshrl.u32 %v7415, 7
        %v7417 = vsub.s32 2, %v7416
        %v7418 = vrot.slane %v7405, %v7417
        %v7419 = vlaneseq
        %v7420 = vshrl.u32 %v7419, 7
        %v7421 = vsub.s32 3, %v7420
        %v7422 = vrot.slane %v7405, %v7421
        %v7555 = vunpack.c.l.b16 %v7277
        %v7556 = vunpack.c.h.b16 %v7277
        %v7557 = vunpack.c.l.b16 %v7278
        %v7558 = vunpack.c.h.b16 %v7278
        %v7559 = vunpack.c.l.b16 %v7279
        %v7560 = vunpack.c.h.b16 %v7279
        %v7561 = vunpack.c.l.b16 %v7280
        %v7562 = vunpack.c.h.b16 %v7280
        %v7563 = vunpack.c.l.b16 %v7281
        %v7564 = vunpack.c.h.b16 %v7281
        %v7565 = vunpack.c.l.b16 %v7282
        %v7566 = vunpack.c.h.b16 %v7282
        %v7567 = vunpack.c.l.b16 %v7283
        %v7568 = vunpack.c.h.b16 %v7283
        %v7569 = vunpack.c.l.b16 %v7284
        %v7570 = vunpack.c.h.b16 %v7284
        %v7571 = vunpack.c.l.b16 %v7285
        %v7572 = vunpack.c.h.b16 %v7285
        %v7573 = vunpack.c.l.b16 %v7286
        %v7574 = vunpack.c.h.b16 %v7286
        %v7575 = vunpack.c.l.b16 %v7287
        %v7576 = vunpack.c.h.b16 %v7287
        %v7577 = vunpack.c.l.b16 %v7288
        %v7578 = vunpack.c.h.b16 %v7288
        %v7579 = vunpack.c.l.b16 %v7289
        %v7580 = vunpack.c.h.b16 %v7289
        %v7581 = vunpack.c.l.b16 %v7290
        %v7582 = vunpack.c.h.b16 %v7290
        %v7583 = vunpack.c.l.b16 %v7291
        %v7584 = vunpack.c.h.b16 %v7291
        %v7585 = vunpack.c.l.b16 %v7292
        %v7586 = vunpack.c.h.b16 %v7292
        %v7587 = vunpack.c.l.b16 %v7293
        %v7588 = vunpack.c.h.b16 %v7293
        %v7589 = vunpack.c.l.b16 %v7294
        %v7590 = vunpack.c.h.b16 %v7294
        %v7591 = vunpack.c.l.b16 %v7295
        %v7592 = vunpack.c.h.b16 %v7295
        %v7593 = vunpack.c.l.b16 %v7296
        %v7594 = vunpack.c.h.b16 %v7296
        %v7595 = vunpack.c.l.b16 %v7297
        %v7596 = vunpack.c.h.b16 %v7297
        %v7597 = vunpack.c.l.b16 %v7298
        %v7598 = vunpack.c.h.b16 %v7298
        %v7599 = vunpack.c.l.b16 %v7299
        %v7600 = vunpack.c.h.b16 %v7299
        %v7601 = vunpack.c.l.b16 %v7300
        %v7602 = vunpack.c.h.b16 %v7300
        %v7603 = vunpack.c.l.b16 %v7301
        %v7604 = vunpack.c.h.b16 %v7301
        %v7605 = vunpack.c.l.b16 %v7302
        %v7606 = vunpack.c.h.b16 %v7302
        %v7607 = vunpack.c.l.b16 %v7303
        %v7608 = vunpack.c.h.b16 %v7303
        %v7609 = vunpack.c.l.b16 %v7304
        %v7610 = vunpack.c.h.b16 %v7304
        %v7611 = vunpack.c.l.b16 %v7305
        %v7612 = vunpack.c.h.b16 %v7305
        %v7613 = vunpack.c.l.b16 %v7306
        %v7614 = vunpack.c.h.b16 %v7306
        %v7615 = vunpack.c.l.b16 %v7307
        %v7616 = vunpack.c.h.b16 %v7307
        %v7617 = vunpack.c.l.b16 %v7308
        %v7618 = vunpack.c.h.b16 %v7308
        %v7619 = vunpack.c.l.b16 %v7309
        %v7620 = vunpack.c.h.b16 %v7309
        %v7621 = vunpack.c.l.b16 %v7310
        %v7622 = vunpack.c.h.b16 %v7310
        %v7623 = vunpack.c.l.b16 %v7311
        %v7624 = vunpack.c.h.b16 %v7311
        %v7625 = vunpack.c.l.b16 %v7312
        %v7626 = vunpack.c.h.b16 %v7312
        %v7627 = vunpack.c.l.b16 %v7313
        %v7628 = vunpack.c.h.b16 %v7313
        %v7629 = vunpack.c.l.b16 %v7314
        %v7630 = vunpack.c.h.b16 %v7314
        %v7631 = vunpack.c.l.b16 %v7315
        %v7632 = vunpack.c.h.b16 %v7315
        %v7633 = vunpack.c.l.b16 %v7316
        %v7634 = vunpack.c.h.b16 %v7316
        %v7635 = vunpack.c.l.b16 %v7317
        %v7636 = vunpack.c.h.b16 %v7317
        %v7637 = vunpack.c.l.b16 %v7318
        %v7638 = vunpack.c.h.b16 %v7318
        %v7639 = vunpack.c.l.b16 %v7319
        %v7640 = vunpack.c.h.b16 %v7319
        %v7641 = vunpack.c.l.b16 %v7320
        %v7642 = vunpack.c.h.b16 %v7320
        %v7643 = vunpack.c.l.b16 %v7321
        %v7644 = vunpack.c.h.b16 %v7321
        %v7645 = vunpack.c.l.b16 %v7322
        %v7646 = vunpack.c.h.b16 %v7322
        %v7647 = vunpack.c.l.b16 %v7323
        %v7648 = vunpack.c.h.b16 %v7323
        %v7649 = vunpack.c.l.b16 %v7324
        %v7650 = vunpack.c.h.b16 %v7324
        %v7651 = vunpack.c.l.b16 %v7325
        %v7652 = vunpack.c.h.b16 %v7325
        %v7653 = vunpack.c.l.b16 %v7326
        %v7654 = vunpack.c.h.b16 %v7326
        %v7655 = vunpack.c.l.b16 %v7327
        %v7656 = vunpack.c.h.b16 %v7327
        %v7657 = vunpack.c.l.b16 %v7328
        %v7658 = vunpack.c.h.b16 %v7328
        %v7659 = vunpack.c.l.b16 %v7329
        %v7660 = vunpack.c.h.b16 %v7329
        %v7661 = vunpack.c.l.b16 %v7330
        %v7662 = vunpack.c.h.b16 %v7330
        %v7663 = vunpack.c.l.b16 %v7331
        %v7664 = vunpack.c.h.b16 %v7331
        %v7665 = vunpack.c.l.b16 %v7332
        %v7666 = vunpack.c.h.b16 %v7332
        %v7667 = vunpack.c.l.b16 %v7333
        %v7668 = vunpack.c.h.b16 %v7333
        %v7669 = vunpack.c.l.b16 %v7334
        %v7670 = vunpack.c.h.b16 %v7334
        %v7671 = vunpack.c.l.b16 %v7335
        %v7672 = vunpack.c.h.b16 %v7335
        %v7673 = vunpack.c.l.b16 %v7336
        %v7674 = vunpack.c.h.b16 %v7336
        %v7675 = vunpack.c.l.b16 %v7337
        %v7676 = vunpack.c.h.b16 %v7337
        %v7677 = vunpack.c.l.b16 %v7338
        %v7678 = vunpack.c.h.b16 %v7338
        %v7679 = vunpack.c.l.b16 %v7339
        %v7680 = vunpack.c.h.b16 %v7339
        %v7681 = vunpack.c.l.b16 %v7340
        %v7682 = vunpack.c.h.b16 %v7340
        %v7683 = vunpack.c.l.b16 %v7341
        %v7684 = vunpack.c.h.b16 %v7341
        %v7685 = vunpack.c.l.b16 %v7342
        %v7686 = vunpack.c.h.b16 %v7342
        %v7687 = vunpack.c.l.b16 %v7343
        %v7688 = vunpack.c.h.b16 %v7343
        %v7689 = vunpack.c.l.b16 %v7344
        %v7690 = vunpack.c.h.b16 %v7344
        %v7691 = vunpack.c.l.b16 %v7345
        %v7692 = vunpack.c.h.b16 %v7345
        %v7693 = vunpack.c.l.b16 %v7346
        %v7694 = vunpack.c.h.b16 %v7346
        %v7695 = vunpack.c.l.b16 %v7347
        %v7696 = vunpack.c.h.b16 %v7347
        %v7697 = vunpack.c.l.b16 %v7348
        %v7698 = vunpack.c.h.b16 %v7348
        %v7699 = vunpack.c.l.b16 %v7349
        %v7700 = vunpack.c.h.b16 %v7349
        %v7701 = vunpack.c.l.b16 %v7350
        %v7702 = vunpack.c.h.b16 %v7350
        %v7703 = vunpack.c.l.b16 %v7351
        %v7704 = vunpack.c.h.b16 %v7351
        %v7705 = vunpack.c.l.b16 %v7352
        %v7706 = vunpack.c.h.b16 %v7352
        %v7707 = vunpack.c.l.b16 %v7353
        %v7708 = vunpack.c.h.b16 %v7353
        %v7709 = vunpack.c.l.b16 %v7354
        %v7710 = vunpack.c.h.b16 %v7354
        %v7711 = vunpack.c.l.b16 %v7355
        %v7712 = vunpack.c.h.b16 %v7355
        %v7713 = vunpack.c.l.b16 %v7356
        %v7714 = vunpack.c.h.b16 %v7356
        %v7715 = vunpack.c.l.b16 %v7357
        %v7716 = vunpack.c.h.b16 %v7357
        %v7717 = vunpack.c.l.b16 %v7358
        %v7718 = vunpack.c.h.b16 %v7358
        %v7719 = vunpack.c.l.b16 %v7359
        %v7720 = vunpack.c.h.b16 %v7359
        %v7721 = vunpack.c.l.b16 %v7360
        %v7722 = vunpack.c.h.b16 %v7360
        %v7723 = vunpack.c.l.b16 %v7361
        %v7724 = vunpack.c.h.b16 %v7361
        %v7725 = vunpack.c.l.b16 %v7362
        %v7726 = vunpack.c.h.b16 %v7362
        %v7727 = vunpack.c.l.b16 %v7363
        %v7728 = vunpack.c.h.b16 %v7363
        %v7729 = vunpack.c.l.b16 %v7364
        %v7730 = vunpack.c.h.b16 %v7364
        %v7731 = vunpack.c.l.b16 %v7365
        %v7732 = vunpack.c.h.b16 %v7365
        %v7733 = vunpack.c.l.b16 %v7366
        %v7734 = vunpack.c.h.b16 %v7366
        %v7735 = vunpack.c.l.b16 %v7367
        %v7736 = vunpack.c.h.b16 %v7367
        %v7737 = vunpack.c.l.b16 %v7368
        %v7738 = vunpack.c.h.b16 %v7368
        %v7739 = vunpack.c.l.b16 %v7369
        %v7740 = vunpack.c.h.b16 %v7369
        %v7741 = vunpack.c.l.b16 %v7370
        %v7742 = vunpack.c.h.b16 %v7370
        %v7743 = vunpack.c.l.b16 %v7371
        %v7744 = vunpack.c.h.b16 %v7371
        %v7745 = vunpack.c.l.b16 %v7372
        %v7746 = vunpack.c.h.b16 %v7372
        %v7747 = vunpack.c.l.b16 %v7373
        %v7748 = vunpack.c.h.b16 %v7373
        %v7749 = vunpack.c.l.b16 %v7374
        %v7750 = vunpack.c.h.b16 %v7374
        %v7751 = vunpack.c.l.b16 %v7375
        %v7752 = vunpack.c.h.b16 %v7375
        %v7753 = vunpack.c.l.b16 %v7376
        %v7754 = vunpack.c.h.b16 %v7376
        %v7755 = vunpack.c.l.b16 %v7377
        %v7756 = vunpack.c.h.b16 %v7377
        %v7757 = vunpack.c.l.b16 %v7378
        %v7758 = vunpack.c.h.b16 %v7378
        %v7759 = vunpack.c.l.b16 %v7379
        %v7760 = vunpack.c.h.b16 %v7379
        %v7761 = vunpack.c.l.b16 %v7380
        %v7762 = vunpack.c.h.b16 %v7380
        %v7763 = vunpack.c.l.b16 %v7381
        %v7764 = vunpack.c.h.b16 %v7381
        %v7765 = vunpack.c.l.b16 %v7382
        %v7766 = vunpack.c.h.b16 %v7382
        %v7767 = vunpack.c.l.b16 %v7383
        %v7768 = vunpack.c.h.b16 %v7383
        %v7769 = vunpack.c.l.b16 %v7384
        %v7770 = vunpack.c.h.b16 %v7384
        %v7771 = vunpack.c.l.b16 %v7385
        %v7772 = vunpack.c.h.b16 %v7385
        %v7773 = vunpack.c.l.b16 %v7386
        %v7774 = vunpack.c.h.b16 %v7386
        %v7775 = vunpack.c.l.b16 %v7387
        %v7776 = vunpack.c.h.b16 %v7387
        %v7777 = vunpack.c.l.b16 %v7388
        %v7778 = vunpack.c.h.b16 %v7388
        %v7779 = vunpack.c.l.b16 %v7389
        %v7780 = vunpack.c.h.b16 %v7389
        %v7781 = vunpack.c.l.b16 %v7390
        %v7782 = vunpack.c.h.b16 %v7390
        %v7783 = vunpack.c.l.b16 %v7391
        %v7784 = vunpack.c.h.b16 %v7391
        %v7785 = vunpack.c.l.b16 %v7392
        %v7786 = vunpack.c.h.b16 %v7392
        %v7787 = vunpack.c.l.b16 %v7393
        %v7788 = vunpack.c.h.b16 %v7393
        %v7789 = vunpack.c.l.b16 %v7394
        %v7790 = vunpack.c.h.b16 %v7394
        %v7791 = vunpack.c.l.b16 %v7395
        %v7792 = vunpack.c.h.b16 %v7395
        %v7793 = vunpack.c.l.b16 %v7396
        %v7794 = vunpack.c.h.b16 %v7396
        %v7795 = vunpack.c.l.b16 %v7397
        %v7796 = vunpack.c.h.b16 %v7397
        %v7797 = vunpack.c.l.b16 %v7398
        %v7798 = vunpack.c.h.b16 %v7398
        %v7799 = vunpack.c.l.b16 %v7399
        %v7800 = vunpack.c.h.b16 %v7399
        %v7801 = vunpack.c.l.b16 %v7400
        %v7802 = vunpack.c.h.b16 %v7400
        %v7803 = vunpack.c.l.b16 %v7401
        %v7804 = vunpack.c.h.b16 %v7401
        %v7805 = vunpack.c.l.b16 %v7402
        %v7806 = vunpack.c.h.b16 %v7402
        %v7807 = vunpack.c.l.b16 %v7403
        %v7808 = vunpack.c.h.b16 %v7403
        %v7809 = vunpack.c.l.b16 %v7404
        %v7810 = vunpack.c.h.b16 %v7404
        %v7811 = vpack.c.b16 %v7559, %v7555
        %v7812 = vpack.c.b16 %v7560, %v7556
        %v7813 = vpack.c.b16 %v7561, %v7557
        %v7814 = vpack.c.b16 %v7562, %v7558
        %v7815 = vpack.c.b16 %v7567, %v7563
        %v7816 = vpack.c.b16 %v7568, %v7564
        %v7817 = vpack.c.b16 %v7569, %v7565
        %v7818 = vpack.c.b16 %v7570, %v7566
        %v7819 = vpack.c.b16 %v7575, %v7571
        %v7820 = vpack.c.b16 %v7576, %v7572
        %v7821 = vpack.c.b16 %v7577, %v7573
        %v7822 = vpack.c.b16 %v7578, %v7574
        %v7823 = vpack.c.b16 %v7583, %v7579
        %v7824 = vpack.c.b16 %v7584, %v7580
        %v7825 = vpack.c.b16 %v7585, %v7581
        %v7826 = vpack.c.b16 %v7586, %v7582
        %v7827 = vpack.c.b16 %v7591, %v7587
        %v7828 = vpack.c.b16 %v7592, %v7588
        %v7829 = vpack.c.b16 %v7593, %v7589
        %v7830 = vpack.c.b16 %v7594, %v7590
        %v7831 = vpack.c.b16 %v7599, %v7595
        %v7832 = vpack.c.b16 %v7600, %v7596
        %v7833 = vpack.c.b16 %v7601, %v7597
        %v7834 = vpack.c.b16 %v7602, %v7598
        %v7835 = vpack.c.b16 %v7607, %v7603
        %v7836 = vpack.c.b16 %v7608, %v7604
        %v7837 = vpack.c.b16 %v7609, %v7605
        %v7838 = vpack.c.b16 %v7610, %v7606
        %v7839 = vpack.c.b16 %v7615, %v7611
        %v7840 = vpack.c.b16 %v7616, %v7612
        %v7841 = vpack.c.b16 %v7617, %v7613
        %v7842 = vpack.c.b16 %v7618, %v7614
        %v7843 = vpack.c.b16 %v7623, %v7619
        %v7844 = vpack.c.b16 %v7624, %v7620
        %v7845 = vpack.c.b16 %v7625, %v7621
        %v7846 = vpack.c.b16 %v7626, %v7622
        %v7847 = vpack.c.b16 %v7631, %v7627
        %v7848 = vpack.c.b16 %v7632, %v7628
        %v7849 = vpack.c.b16 %v7633, %v7629
        %v7850 = vpack.c.b16 %v7634, %v7630
        %v7851 = vpack.c.b16 %v7639, %v7635
        %v7852 = vpack.c.b16 %v7640, %v7636
        %v7853 = vpack.c.b16 %v7641, %v7637
        %v7854 = vpack.c.b16 %v7642, %v7638
        %v7855 = vpack.c.b16 %v7647, %v7643
        %v7856 = vpack.c.b16 %v7648, %v7644
        %v7857 = vpack.c.b16 %v7649, %v7645
        %v7858 = vpack.c.b16 %v7650, %v7646
        %v7859 = vpack.c.b16 %v7655, %v7651
        %v7860 = vpack.c.b16 %v7656, %v7652
        %v7861 = vpack.c.b16 %v7657, %v7653
        %v7862 = vpack.c.b16 %v7658, %v7654
        %v7863 = vpack.c.b16 %v7663, %v7659
        %v7864 = vpack.c.b16 %v7664, %v7660
        %v7865 = vpack.c.b16 %v7665, %v7661
        %v7866 = vpack.c.b16 %v7666, %v7662
        %v7867 = vpack.c.b16 %v7671, %v7667
        %v7868 = vpack.c.b16 %v7672, %v7668
        %v7869 = vpack.c.b16 %v7673, %v7669
        %v7870 = vpack.c.b16 %v7674, %v7670
        %v7871 = vpack.c.b16 %v7679, %v7675
        %v7872 = vpack.c.b16 %v7680, %v7676
        %v7873 = vpack.c.b16 %v7681, %v7677
        %v7874 = vpack.c.b16 %v7682, %v7678
        %v7875 = vpack.c.b16 %v7687, %v7683
        %v7876 = vpack.c.b16 %v7688, %v7684
        %v7877 = vpack.c.b16 %v7689, %v7685
        %v7878 = vpack.c.b16 %v7690, %v7686
        %v7879 = vpack.c.b16 %v7695, %v7691
        %v7880 = vpack.c.b16 %v7696, %v7692
        %v7881 = vpack.c.b16 %v7697, %v7693
        %v7882 = vpack.c.b16 %v7698, %v7694
        %v7883 = vpack.c.b16 %v7703, %v7699
        %v7884 = vpack.c.b16 %v7704, %v7700
        %v7885 = vpack.c.b16 %v7705, %v7701
        %v7886 = vpack.c.b16 %v7706, %v7702
        %v7887 = vpack.c.b16 %v7711, %v7707
        %v7888 = vpack.c.b16 %v7712, %v7708
        %v7889 = vpack.c.b16 %v7713, %v7709
        %v7890 = vpack.c.b16 %v7714, %v7710
        %v7891 = vpack.c.b16 %v7719, %v7715
        %v7892 = vpack.c.b16 %v7720, %v7716
        %v7893 = vpack.c.b16 %v7721, %v7717
        %v7894 = vpack.c.b16 %v7722, %v7718
        %v7895 = vpack.c.b16 %v7727, %v7723
        %v7896 = vpack.c.b16 %v7728, %v7724
        %v7897 = vpack.c.b16 %v7729, %v7725
        %v7898 = vpack.c.b16 %v7730, %v7726
        %v7899 = vpack.c.b16 %v7735, %v7731
        %v7900 = vpack.c.b16 %v7736, %v7732
        %v7901 = vpack.c.b16 %v7737, %v7733
        %v7902 = vpack.c.b16 %v7738, %v7734
        %v7903 = vpack.c.b16 %v7743, %v7739
        %v7904 = vpack.c.b16 %v7744, %v7740
        %v7905 = vpack.c.b16 %v7745, %v7741
        %v7906 = vpack.c.b16 %v7746, %v7742
        %v7907 = vpack.c.b16 %v7751, %v7747
        %v7908 = vpack.c.b16 %v7752, %v7748
        %v7909 = vpack.c.b16 %v7753, %v7749
        %v7910 = vpack.c.b16 %v7754, %v7750
        %v7911 = vpack.c.b16 %v7759, %v7755
        %v7912 = vpack.c.b16 %v7760, %v7756
        %v7913 = vpack.c.b16 %v7761, %v7757
        %v7914 = vpack.c.b16 %v7762, %v7758
        %v7915 = vpack.c.b16 %v7767, %v7763
        %v7916 = vpack.c.b16 %v7768, %v7764
        %v7917 = vpack.c.b16 %v7769, %v7765
        %v7918 = vpack.c.b16 %v7770, %v7766
        %v7919 = vpack.c.b16 %v7775, %v7771
        %v7920 = vpack.c.b16 %v7776, %v7772
        %v7921 = vpack.c.b16 %v7777, %v7773
        %v7922 = vpack.c.b16 %v7778, %v7774
        %v7923 = vpack.c.b16 %v7783, %v7779
        %v7924 = vpack.c.b16 %v7784, %v7780
        %v7925 = vpack.c.b16 %v7785, %v7781
        %v7926 = vpack.c.b16 %v7786, %v7782
        %v7927 = vpack.c.b16 %v7791, %v7787
        %v7928 = vpack.c.b16 %v7792, %v7788
        %v7929 = vpack.c.b16 %v7793, %v7789
        %v7930 = vpack.c.b16 %v7794, %v7790
        %v7931 = vpack.c.b16 %v7799, %v7795
        %v7932 = vpack.c.b16 %v7800, %v7796
        %v7933 = vpack.c.b16 %v7801, %v7797
        %v7934 = vpack.c.b16 %v7802, %v7798
        %v7935 = vpack.c.b16 %v7807, %v7803
        %v7936 = vpack.c.b16 %v7808, %v7804
        %v7937 = vpack.c.b16 %v7809, %v7805
        %v7938 = vpack.c.b16 %v7810, %v7806
        %8067 = vmatprep.subr.bf16.mxu0 %v7840
        %8068 = vmatpush1.bf16.msra.mxu0 %v7839
        %8069 = vmatprep.subr.bf16.mxu0 %v7836
        %8070 = vmatpush1.bf16.msra.mxu0 %v7835
        %8071 = vmatprep.subr.bf16.mxu0 %v7832
        %8072 = vmatpush1.bf16.msra.mxu0 %v7831
        %8073 = vmatprep.subr.bf16.mxu0 %v7828
        %8074 = vmatpush1.bf16.msra.mxu0 %v7827
        %8075 = vmatprep.subr.bf16.mxu0 %v7824
        %8076 = vmatpush1.bf16.msra.mxu0 %v7823
        %8077 = vmatprep.subr.bf16.mxu0 %v7820
        %8078 = vmatpush1.bf16.msra.mxu0 %v7819
        %8079 = vmatprep.subr.bf16.mxu0 %v7816
        %8080 = vmatpush1.bf16.msra.mxu0 %v7815
        %8081 = vmatprep.subr.bf16.mxu0 %v7812
        %8082 = vmatpush1.bf16.msra.mxu0 %v7811
        %8083 = vmatprep.subr.bf16.mxu0 %v7872
        %8084 = vmatpush2.bf16.msra.mxu0 %v7871
        %8085 = vmatprep.subr.bf16.mxu0 %v7868
        %8086 = vmatpush2.bf16.msra.mxu0 %v7867
        %8087 = vmatprep.subr.bf16.mxu0 %v7864
        %8088 = vmatpush2.bf16.msra.mxu0 %v7863
        %8089 = vmatprep.subr.bf16.mxu0 %v7860
        %8090 = vmatpush2.bf16.msra.mxu0 %v7859
        %8091 = vmatprep.subr.bf16.mxu0 %v7856
        %8092 = vmatpush2.bf16.msra.mxu0 %v7855
        %8093 = vmatprep.subr.bf16.mxu0 %v7852
        %8094 = vmatpush2.bf16.msra.mxu0 %v7851
        %8095 = vmatprep.subr.bf16.mxu0 %v7848
        %8096 = vmatpush2.bf16.msra.mxu0 %v7847
        %8097 = vmatprep.subr.bf16.mxu0 %v7844
        %8098 = vmatpush2.bf16.msra.mxu0 %v7843
        %8099 = vmatprep.mubr.bf16.mxu0 %v7274
        %8100 = vmatmul.mubr.bf16.gmra.mxu0 %v7273
        %v8101 = vpop.f32.mrf.mxu0
        %v8102 = vadd.f32 %v7410, %v8101
        %v8103 = vpop.f32.mrf.mxu0
        %v8104 = vadd.f32 %v7414, %v8103
        %v8105 = vpop.f32.mrf.mxu0
        %v8106 = vpop.f32.mrf.mxu0
        %8107 = vdwg.mxu0
        %8108 = vmatprep.subr.bf16.mxu0 %v7904
        %8109 = vmatpush1.bf16.msra.mxu0 %v7903
        %8110 = vmatprep.subr.bf16.mxu0 %v7900
        %8111 = vmatpush1.bf16.msra.mxu0 %v7899
        %8112 = vmatprep.subr.bf16.mxu0 %v7896
        %8113 = vmatpush1.bf16.msra.mxu0 %v7895
        %8114 = vmatprep.subr.bf16.mxu0 %v7892
        %8115 = vmatpush1.bf16.msra.mxu0 %v7891
        %8116 = vmatprep.subr.bf16.mxu0 %v7888
        %8117 = vmatpush1.bf16.msra.mxu0 %v7887
        %8118 = vmatprep.subr.bf16.mxu0 %v7884
        %8119 = vmatpush1.bf16.msra.mxu0 %v7883
        %8120 = vmatprep.subr.bf16.mxu0 %v7880
        %8121 = vmatpush1.bf16.msra.mxu0 %v7879
        %8122 = vmatprep.subr.bf16.mxu0 %v7876
        %8123 = vmatpush1.bf16.msra.mxu0 %v7875
        %8124 = vmatprep.subr.bf16.mxu0 %v7936
        %8125 = vmatpush2.bf16.msra.mxu0 %v7935
        %8126 = vmatprep.subr.bf16.mxu0 %v7932
        %8127 = vmatpush2.bf16.msra.mxu0 %v7931
        %8128 = vmatprep.subr.bf16.mxu0 %v7928
        %8129 = vmatpush2.bf16.msra.mxu0 %v7927
        %8130 = vmatprep.subr.bf16.mxu0 %v7924
        %8131 = vmatpush2.bf16.msra.mxu0 %v7923
        %8132 = vmatprep.subr.bf16.mxu0 %v7920
        %8133 = vmatpush2.bf16.msra.mxu0 %v7919
        %8134 = vmatprep.subr.bf16.mxu0 %v7916
        %8135 = vmatpush2.bf16.msra.mxu0 %v7915
        %8136 = vmatprep.subr.bf16.mxu0 %v7912
        %8137 = vmatpush2.bf16.msra.mxu0 %v7911
        %8138 = vmatprep.subr.bf16.mxu0 %v7908
        %8139 = vmatpush2.bf16.msra.mxu0 %v7907
        %8140 = vmatprep.mubr.bf16.mxu0 %v7276
        %8141 = vmatmul.mubr.bf16.gmra.mxu0 %v7275
        %v8142 = vpop.f32.mrf.mxu0
        %v8143 = vadd.f32 %v8102, %v8142
        %v8144 = vpop.f32.mrf.mxu0
        %v8145 = vadd.f32 %v8104, %v8144
        %v8146 = vpop.f32.mrf.mxu0
        %v8147 = vpop.f32.mrf.mxu0
        %8148 = vdwg.mxu0
        %8149 = vmatprep.subr.bf16.mxu0 %v7842
        %8150 = vmatpush1.bf16.msra.mxu0 %v7841
        %8151 = vmatprep.subr.bf16.mxu0 %v7838
        %8152 = vmatpush1.bf16.msra.mxu0 %v7837
        %8153 = vmatprep.subr.bf16.mxu0 %v7834
        %8154 = vmatpush1.bf16.msra.mxu0 %v7833
        %8155 = vmatprep.subr.bf16.mxu0 %v7830
        %8156 = vmatpush1.bf16.msra.mxu0 %v7829
        %8157 = vmatprep.subr.bf16.mxu0 %v7826
        %8158 = vmatpush1.bf16.msra.mxu0 %v7825
        %8159 = vmatprep.subr.bf16.mxu0 %v7822
        %8160 = vmatpush1.bf16.msra.mxu0 %v7821
        %8161 = vmatprep.subr.bf16.mxu0 %v7818
        %8162 = vmatpush1.bf16.msra.mxu0 %v7817
        %8163 = vmatprep.subr.bf16.mxu0 %v7814
        %8164 = vmatpush1.bf16.msra.mxu0 %v7813
        %8165 = vmatprep.subr.bf16.mxu0 %v7874
        %8166 = vmatpush2.bf16.msra.mxu0 %v7873
        %8167 = vmatprep.subr.bf16.mxu0 %v7870
        %8168 = vmatpush2.bf16.msra.mxu0 %v7869
        %8169 = vmatprep.subr.bf16.mxu0 %v7866
        %8170 = vmatpush2.bf16.msra.mxu0 %v7865
        %8171 = vmatprep.subr.bf16.mxu0 %v7862
        %8172 = vmatpush2.bf16.msra.mxu0 %v7861
        %8173 = vmatprep.subr.bf16.mxu0 %v7858
        %8174 = vmatpush2.bf16.msra.mxu0 %v7857
        %8175 = vmatprep.subr.bf16.mxu0 %v7854
        %8176 = vmatpush2.bf16.msra.mxu0 %v7853
        %8177 = vmatprep.subr.bf16.mxu0 %v7850
        %8178 = vmatpush2.bf16.msra.mxu0 %v7849
        %8179 = vmatprep.subr.bf16.mxu0 %v7846
        %8180 = vmatpush2.bf16.msra.mxu0 %v7845
        %8181 = vmatprep.mubr.bf16.mxu0 %v7274
        %8182 = vmatmul.mubr.bf16.gmra.mxu0 %v7273
        %v8183 = vpop.f32.mrf.mxu0
        %v8184 = vadd.f32 %v7418, %v8183
        %v8185 = vpop.f32.mrf.mxu0
        %v8186 = vadd.f32 %v7422, %v8185
        %v8187 = vpop.f32.mrf.mxu0
        %v8188 = vpop.f32.mrf.mxu0
        %8189 = vdwg.mxu0
        %8190 = vmatprep.subr.bf16.mxu0 %v7906
        %8191 = vmatpush1.bf16.msra.mxu0 %v7905
        %8192 = vmatprep.subr.bf16.mxu0 %v7902
        %8193 = vmatpush1.bf16.msra.mxu0 %v7901
        %8194 = vmatprep.subr.bf16.mxu0 %v7898
        %8195 = vmatpush1.bf16.msra.mxu0 %v7897
        %8196 = vmatprep.subr.bf16.mxu0 %v7894
        %8197 = vmatpush1.bf16.msra.mxu0 %v7893
        %8198 = vmatprep.subr.bf16.mxu0 %v7890
        %8199 = vmatpush1.bf16.msra.mxu0 %v7889
        %8200 = vmatprep.subr.bf16.mxu0 %v7886
        %8201 = vmatpush1.bf16.msra.mxu0 %v7885
        %8202 = vmatprep.subr.bf16.mxu0 %v7882
        %8203 = vmatpush1.bf16.msra.mxu0 %v7881
        %8204 = vmatprep.subr.bf16.mxu0 %v7878
        %8205 = vmatpush1.bf16.msra.mxu0 %v7877
        %8206 = vmatprep.subr.bf16.mxu0 %v7938
        %8207 = vmatpush2.bf16.msra.mxu0 %v7937
        %8208 = vmatprep.subr.bf16.mxu0 %v7934
        %8209 = vmatpush2.bf16.msra.mxu0 %v7933
        %8210 = vmatprep.subr.bf16.mxu0 %v7930
        %8211 = vmatpush2.bf16.msra.mxu0 %v7929
        %8212 = vmatprep.subr.bf16.mxu0 %v7926
        %8213 = vmatpush2.bf16.msra.mxu0 %v7925
        %8214 = vmatprep.subr.bf16.mxu0 %v7922
        %8215 = vmatpush2.bf16.msra.mxu0 %v7921
        %8216 = vmatprep.subr.bf16.mxu0 %v7918
        %8217 = vmatpush2.bf16.msra.mxu0 %v7917
        %8218 = vmatprep.subr.bf16.mxu0 %v7914
        %8219 = vmatpush2.bf16.msra.mxu0 %v7913
        %8220 = vmatprep.subr.bf16.mxu0 %v7910
        %8221 = vmatpush2.bf16.msra.mxu0 %v7909
        %8222 = vmatprep.mubr.bf16.mxu0 %v7276
        %8223 = vmatmul.mubr.bf16.gmra.mxu0 %v7275
        %v8224 = vpop.f32.mrf.mxu0
        %v8225 = vadd.f32 %v8184, %v8224
        %v8226 = vpop.f32.mrf.mxu0
        %v8227 = vadd.f32 %v8186, %v8226
        %v8228 = vpop.f32.mrf.mxu0
        %v8229 = vpop.f32.mrf.mxu0
        %8230 = vdwg.mxu0
        %v8235 = vcombine.low %v8143, %v8145
        %v8236 = vcombine.low %v8225, %v8227
        %v8238 = vunpack.c.l.s4 1983009808
        %v8239 = vunpack.c.0.s8 %v8238
        %v8240 = vlaneseq
        %v8241 = vshrl.u32 %v8240, 7
        %v8242 = vsub.s32 %v8239, %v8241
        %v8243 = vrot.slane %v8235, %v8242
        %v8245 = vunpack.c.l.s4 1983009808
        %v8246 = vunpack.c.0.s8 %v8245
        %v8247 = vlaneseq
        %v8248 = vshrl.u32 %v8247, 7
        %v8249 = vsub.s32 %v8246, %v8248
        %v8250 = vrot.slane %v8236, %v8249
        %v8251 = vcombine.low %v8243, %v8250
        %8253 = vst [vmem:[%s312] sm:$0xff] %v8251
      $region52: #{rnd_forward.7} parent=47 // pred_fallthru
        _
      %p8254 = scmp.eq.s32.totalorder %s18, 1
      // Predicated region
      $region53: #{rnd_forward.7} parent=47 // pred_check
        %p8255 = pneg %p8254
      $region54: #{rnd_forward.7} parent=47 // pred_check_branch
        %8257 = sbr.rel (%p8255) target = $region56
      $region55: #{rnd_forward.7} parent=47 // pred_region
        %v8262 = vcombine.low %v5764, %v5766
        %v8263 = vcombine.low %v6297, %v6299
        %v8265 = vunpack.c.l.s4 1983009808
        %v8266 = vunpack.c.0.s8 %v8265
        %v8267 = vlaneseq
        %v8268 = vshrl.u32 %v8267, 7
        %v8269 = vsub.s32 %v8266, %v8268
        %v8270 = vrot.slane %v8262, %v8269
        %v8272 = vunpack.c.l.s4 1983009808
        %v8273 = vunpack.c.0.s8 %v8272
        %v8274 = vlaneseq
        %v8275 = vshrl.u32 %v8274, 7
        %v8276 = vsub.s32 %v8273, %v8275
        %v8277 = vrot.slane %v8263, %v8276
        %v8278 = vcombine.low %v8270, %v8277
        %8280 = vst [vmem:[%s312] sm:$0xff] %v8278
      $region56: #{rnd_forward.7} parent=47 // pred_fallthru
        _
      %p8281 = scmp.lt.s32.totalorder %s18, 1
      %s8282 = scalar_select %p8281, %s18, 1
      %s8283 = smul.addr %s8282, 4
      %s8284 = smul.addr %s8283, 2
      %s8285 = scalar_lea.vmem %s7, %s8284
      // Predicated region
      $region57: #{rnd_forward.7} parent=47 // pred_check
        %p8286 = pneg %p198
      $region58: #{rnd_forward.7} parent=47 // pred_check_branch
        %8288 = sbr.rel (%p8286) target = $region60
      $region59: #{rnd_forward.7} parent=47 // pred_region
        _
      $region60: #{rnd_forward.7} parent=47 // pred_fallthru
        _
    $region48: #{rnd_forward.7} parent=5 // pred_fallthru
      _
    %p8289 = scmp.le.s32.totalorder 2, %s13
    // Predicated region
    $region61: #{rnd_forward.7} parent=5 // pred_check
      %p8290 = pneg %p8289
    $region62: #{rnd_forward.7} parent=5 // pred_check_branch
      %8292 = sbr.rel (%p8290) target = $region64
    $region63: #{rnd_forward.7} parent=5 // pred_region
      %s8293 = ssub.s32 %s13, 2
      // Predicated region
      $region65: #{rnd_forward.7} parent=63 // pred_check
        %p8294 = pneg %p204
      $region66: #{rnd_forward.7} parent=63 // pred_check_branch
        %8296 = sbr.rel (%p8294) target = $region68
      $region67: #{rnd_forward.7} parent=63 // pred_region
        %p8297 = scmp.lt.s32.totalorder %s19, 1
        %s8298 = scalar_select %p8297, %s19, 1
        %s8299 = smul.addr %s8298, 4
        %s8300 = smul.addr %s8299, 2
        %s8301 = scalar_lea.vmem %s7, %s8300
      $region68: #{rnd_forward.7} parent=63 // pred_fallthru
        _
    $region64: #{rnd_forward.7} parent=5 // pred_fallthru
      _
  $region6: #{rnd_forward.7} parent=0 // loop_footer
    %s17 = sadd.s32 1, %s13
  $region7: #{rnd_forward.7} parent=0 // loop_footer_branch
    %12 = sbr.rel target = $region3
  $region8: #{rnd_forward.7} parent=0 // loop_exit
    _

</llo_original>
